<compile_context>
chip_gen: v6e
topology: v6e:2x2x1
jax: 0.10.0
libtpu: 0.0.40
codegen_flags: <defaults>
</compile_context>

<pallas_src>
import functools

import jax
import jax.numpy as jnp
from jax.experimental import pallas as pl
from jax.experimental.pallas import tpu as pltpu


# Order of the stacked per-layer tensors (kernel unpack must match).
LAYER_KEYS = (
    "ln_sa_g", "ln_sa_b",
    "wq_sa", "bq_sa", "wk_sa", "bk_sa", "wv_sa", "bv_sa", "wo_sa", "bo_sa",
    "ln_ca_g", "ln_ca_b",
    "wq_ca", "bq_ca", "wk_ca", "bk_ca", "wv_ca", "bv_ca", "wo_ca", "bo_ca",
    "ln_ff_g", "ln_ff_b",
    "w1", "b1", "w2", "b2",
)


# --------------------------------------------------------------------------
# Fused decoder kernel: one grid step = (batch block bi, transformer layer d)
# --------------------------------------------------------------------------
def _decoder_kernel(*refs, tb, n, heads, dim_head, scale, eps, has_bias):
    if has_bias:
        emb_ref, ctx_ref, bias_ref = refs[0], refs[1], refs[2]
        rest = refs[3:]
    else:
        emb_ref, ctx_ref = refs[0], refs[1]
        bias_ref = None
        rest = refs[2:]

    (g_sa, be_sa, wq_sa, bq_sa, wk_sa, bk_sa, wv_sa, bv_sa, wo_sa, bo_sa,
     g_ca, be_ca, wq_ca, bq_ca, wk_ca, bk_ca, wv_ca, bv_ca, wo_ca, bo_ca,
     g_ff, be_ff, w1, b1, w2, b2,
     txg_ref, txb_ref, fg_ref, fb_ref, wp_ref, bp_ref,
     o_ref, x_sc, attn_sc) = rest

    d = pl.program_id(1)
    rows = tb * n
    inner = heads * dim_head
    dim = x_sc.shape[-1]

    # Initialize the residual stream from the shared embedding table.
    @pl.when(d == 0)
    def _init():
        x_sc[...] = jnp.broadcast_to(emb_ref[...][None], (tb, n, dim)
                                     ).reshape(rows, dim)

    x = x_sc[...]                                   # (rows, dim) f32 residual

    def ln(v, g, b):
        vf = v.astype(jnp.float32)
        mu = jnp.mean(vf, axis=-1, keepdims=True)
        var = jnp.mean(jnp.square(vf - mu), axis=-1, keepdims=True)
        return (vf - mu) * jax.lax.rsqrt(var + eps) * g + b

    def proj(a_b, w_r, b_r):
        # bf16 operands on the MXU, f32 accumulation + f32 bias; weight stacks
        # are VMEM-resident, indexed by the current layer d.
        return jnp.dot(a_b, w_r[d], preferred_element_type=jnp.float32) + b_r[d]

    def mha(q_in, kv, l_kv, bias_full,
            wq_r, bq_r, wk_r, bk_r, wv_r, bv_r, wo_r, bo_r):
        # 1/sqrt(dh) folded into Q once (not per head on the logits).
        q = (proj(q_in, wq_r, bq_r) * scale).astype(jnp.bfloat16)
        k = proj(kv, wk_r, bk_r).astype(jnp.bfloat16)
        v = proj(kv, wv_r, bv_r).astype(jnp.bfloat16)
        q = q.reshape(tb, n, inner)
        k = k.reshape(tb, l_kv, inner)
        v = v.reshape(tb, l_kv, inner)
        for h in range(heads):                      # static unroll, lane slices
            sl = slice(h * dim_head, (h + 1) * dim_head)
            s = jnp.einsum('bqd,bkd->bqk', q[:, :, sl], k[:, :, sl],
                           preferred_element_type=jnp.float32)     # (tb,n,L)
            if bias_full is not None:               # compile-time skip for self-attn
                s = s + bias_full
            s = s - jnp.max(s, axis=-1, keepdims=True)
            p = jnp.exp(s)
            # TODO(synk): approx reciprocal has ~1e-3 rel error vs exact division.
            p = p * pl.reciprocal(jnp.sum(p, axis=-1, keepdims=True), approx=True)
            oh = jnp.einsum('bqk,bkd->bqd', p.astype(jnp.bfloat16), v[:, :, sl],
                            preferred_element_type=jnp.float32)    # (tb,n,dh)
            # per-head store into the bf16 scratch (no concatenate relayout)
            attn_sc[:, sl] = oh.reshape(rows, dim_head).astype(jnp.bfloat16)
        return proj(attn_sc[...], wo_r, bo_r)                      # (rows, dim) f32

    # ---- self-attention (pre-norm, fused residual add) ----
    hb = ln(x, g_sa[d], be_sa[d]).astype(jnp.bfloat16)
    x = x + mha(hb, hb, n, None,
                wq_sa, bq_sa, wk_sa, bk_sa, wv_sa, bv_sa, wo_sa, bo_sa)

    # ---- cross-attention (context used raw for K/V, x-transformers default) ----
    # TODO(synk): assumes norm_context=False in the reference AttentionLayers.
    hb = ln(x, g_ca[d], be_ca[d]).astype(jnp.bfloat16)
    L = ctx_ref.shape[1]
    ctx2d = ctx_ref[...].reshape(tb * L, dim)
    if has_bias:
        # broadcast the (tb,1,L) mask bias ONCE per layer (JAX does not CSE it)
        bias_full = jnp.broadcast_to(bias_ref[...], (tb, n, L))
    else:
        bias_full = None
    x = x + mha(hb, ctx2d, L, bias_full,
                wq_ca, bq_ca, wk_ca, bk_ca, wv_ca, bv_ca, wo_ca, bo_ca)

    # ---- feed-forward (tanh GELU on the EUP, fused residual add) ----
    hb = ln(x, g_ff[d], be_ff[d]).astype(jnp.bfloat16)
    h1 = jax.nn.gelu(proj(hb, w1, b1), approximate=True)
    x = x + proj(h1.astype(jnp.bfloat16), w2, b2)

    x_sc[...] = x

    # ---- final head, only after the last layer ----
    @pl.when(d == pl.num_programs(1) - 1)
    def _final():
        # TODO(synk): assumes x-transformers' AttentionLayers applies its own
        # final pre-norm before returning (source not provided) -> two LNs here.
        out = ln(x, txg_ref[...], txb_ref[...])     # transformer final norm
        out = ln(out, fg_ref[...], fb_ref[...])     # module-level LayerNorm
        patched = jnp.dot(out.astype(jnp.bfloat16), wp_ref[...],
                          preferred_element_type=jnp.float32) + bp_ref[...]
        o_ref[...] = patched.reshape(o_ref.shape).astype(o_ref.dtype)


# --------------------------------------------------------------------------
# Parameters (weights stored pre-stacked / pre-cast / lane-padded)
# --------------------------------------------------------------------------
def init_params(key, *, patch_num, voxel_size, dim, depth, heads, dim_head):
    if voxel_size % patch_num != 0:
        raise ValueError("voxel_size must be dividable by patch_num")
    patch_size = voxel_size // patch_num
    inner = heads * dim_head
    ff_hidden = dim * 4
    n = patch_num ** 3
    P = patch_size ** 3
    P_pad = ((P + 127) // 128) * 128               # lane-dense to_patch output

    def dense(k, fi, fo):
        w = jax.random.normal(k, (fi, fo), jnp.float32) * 0.02
        return w, jnp.zeros((fo,), jnp.float32)

    keys = jax.random.split(key, depth * 10 + 2)
    ki = iter(keys)

    emb = jax.random.normal(next(ki), (n, dim), jnp.float32) * 0.02

    ones_d = jnp.ones((1, dim), jnp.float32)
    zeros_d = jnp.zeros((1, dim), jnp.float32)

    acc = {k: [] for k in LAYER_KEYS}
    for _ in range(depth):
        for pref in ("sa", "ca"):
            acc[f"ln_{pref}_g"].append(ones_d)
            acc[f"ln_{pref}_b"].append(zeros_d)
            for nm, fi, fo in (("q", dim, inner), ("k", dim, inner),
                               ("v", dim, inner), ("o", inner, dim)):
                w, b = dense(next(ki), fi, fo)
                acc[f"w{nm}_{pref}"].append(w.astype(jnp.bfloat16))
                acc[f"b{nm}_{pref}"].append(b.reshape(1, fo))
        acc["ln_ff_g"].append(ones_d)
        acc["ln_ff_b"].append(zeros_d)
        w, b = dense(next(ki), dim, ff_hidden)
        acc["w1"].append(w.astype(jnp.bfloat16))
        acc["b1"].append(b.reshape(1, ff_hidden))
        w, b = dense(next(ki), ff_hidden, dim)
        acc["w2"].append(w.astype(jnp.bfloat16))
        acc["b2"].append(b.reshape(1, dim))

    layers = {k: jnp.stack(v, axis=0) for k, v in acc.items()}   # (depth, ...)

    wp, bp = dense(next(ki), dim, P)
    if P_pad != P:
        wp = jnp.pad(wp, ((0, 0), (0, P_pad - P)))
        bp = jnp.pad(bp, ((0, P_pad - P),))
    return {
        "emb": emb,                                   # (n, dim) f32
        "layers": layers,                             # stacked along depth
        "tx_final_ln": (ones_d, zeros_d),             # x-transformers final norm
        "final_ln": (ones_d, zeros_d),                # module-level LayerNorm
        "to_patch": (wp.astype(jnp.bfloat16), bp.reshape(1, P_pad)),
    }


# --------------------------------------------------------------------------
# Batch-block picker: fill the MXU rows (TB*n) but keep >=2 blocks for v7x
# megacore when that still gives >= 128 rows.
# --------------------------------------------------------------------------
def _pick_tb(B, n, target_rows=256):
    divisors = [t for t in range(1, B + 1) if B % t == 0]
    tb = divisors[-1]
    for t in divisors:
        if t * n >= target_rows:
            tb = t
            break
    if B // tb < 2:
        for t in reversed(divisors):
            if B // t >= 2 and t * n >= 128:
                tb = t
                break
    return tb


# --------------------------------------------------------------------------
# Forward
# --------------------------------------------------------------------------
def voxel_decoder_forward(params, context, context_mask=None, *,
                          patch_num, voxel_size, dim, depth, heads, dim_head,
                          target_rows=256):
    B, L, _ = context.shape
    n = patch_num ** 3
    patch_size = voxel_size // patch_num
    P = patch_size ** 3
    inner = heads * dim_head
    scale = float(dim_head) ** -0.5

    wp, bp = params["to_patch"]
    P_pad = wp.shape[-1]
    txg, txb = params["tx_final_ln"]
    fg, fb = params["final_ln"]
    layer_inputs = [params["layers"][k] for k in LAYER_KEYS]

    tb = _pick_tb(B, n, target_rows)
    ctx = context.astype(jnp.bfloat16)              # bf16 MXU operand
    has_bias = context_mask is not None

    def batch_spec(a):                              # indexed by batch block only
        nd = a.ndim
        return pl.BlockSpec((tb,) + a.shape[1:], lambda b, d: (b,) + (0,) * (nd - 1))

    def const_spec(a):                              # VMEM-resident (fetched once)
        nd = a.ndim
        return pl.BlockSpec(a.shape, lambda b, d: (0,) * nd)

    inputs = [params["emb"], ctx]
    in_specs = [const_spec(params["emb"]), batch_spec(ctx)]
    if has_bias:
        # additive mask bias stays f32 (softmax math is f32 in-kernel)
        bias = jnp.where(context_mask[:, None, :], 0.0, -1e9).astype(jnp.float32)
        inputs.append(bias)
        in_specs.append(batch_spec(bias))

    consts = [txg, txb, fg, fb, wp, bp]
    inputs += layer_inputs + consts
    in_specs += [const_spec(a) for a in layer_inputs]
    in_specs += [const_spec(a) for a in consts]

    # ---- VMEM budget (resident stacks + 2x-buffered blocks + scratch) ----
    def nbytes(a):
        return int(a.size) * a.dtype.itemsize
    resident = sum(nbytes(a) for a in [params["emb"]] + layer_inputs + consts)
    ctx_blk = tb * L * dim * 2
    bias_blk = tb * L * 4 if has_bias else 0
    out_blk = tb * n * P_pad * 4
    scratch = tb * n * dim * 4 + tb * n * inner * 2
    need = 2 * (resident + ctx_blk + bias_blk + out_blk) + scratch
    # cap at the v7x per-core budget (64 MiB); v5e/v6e have 128 MiB physical.
    vmem_limit = int(min(64 << 20, max(32 << 20, 3 * need // 2)))

    kernel = functools.partial(_decoder_kernel, tb=tb, n=n, heads=heads,
                               dim_head=dim_head, scale=scale, eps=1e-5,
                               has_bias=has_bias)

    patched = pl.pallas_call(
        kernel,
        out_shape=jax.ShapeDtypeStruct((B, n, P_pad), jnp.float32),
        grid=(B // tb, depth),
        in_specs=in_specs,
        out_specs=pl.BlockSpec((tb, n, P_pad), lambda b, d: (b, 0, 0)),
        scratch_shapes=[pltpu.VMEM((tb * n, dim), jnp.float32),      # residual
                        pltpu.VMEM((tb * n, inner), jnp.bfloat16)],  # attn heads
        compiler_params=pltpu.CompilerParams(
            dimension_semantics=("parallel", "arbitrary"),
            vmem_limit_bytes=vmem_limit),
    )(*inputs)

    if P_pad != P:
        patched = patched[..., :P]                  # drop lane padding

    # TODO(synk): matches the PyTorch module's naive `.view(-1, vs, vs, vs)`
    # (no patch->voxel spatial rearrange is performed in the reference either).
    return patched.reshape(-1, voxel_size, voxel_size, voxel_size)


# --------------------------------------------------------------------------
if __name__ == "__main__":
    # Small config consistent with the module's constraints.
    patch_num, voxel_size = 2, 8          # patch_size = 4, seq n = 8
    dim, depth, heads, dim_head = 128, 2, 4, 32
    B, L = 2, 8                           # batch, context length

    key = jax.random.PRNGKey(0)
    kp, kc = jax.random.split(key)
    params = init_params(kp, patch_num=patch_num, voxel_size=voxel_size,
                         dim=dim, depth=depth, heads=heads, dim_head=dim_head)

    context = jax.random.normal(kc, (B, L, dim), jnp.float32)
    context_mask = jnp.ones((B, L), jnp.bool_).at[1, -2:].set(False)

    fwd = jax.jit(functools.partial(
        voxel_decoder_forward, patch_num=patch_num, voxel_size=voxel_size,
        dim=dim, depth=depth, heads=heads, dim_head=dim_head))

    out = fwd(params, context, context_mask)
    jax.block_until_ready(out)
    assert out.shape == (B, voxel_size, voxel_size, voxel_size), out.shape
    assert bool(jnp.isfinite(out).all())
    print("KERNEL_OK")
</pallas_src>

<mosaic_0001>
module attributes {stable_mosaic.version = 11 : i64} {
  func.func @_decoder_kernel(%arg0: i32, %arg1: i32, %arg2: memref<8x128xf32, #tpu.memory_space<vmem>>, %arg3: memref<2x8x128xbf16, #tpu.memory_space<vmem>>, %arg4: memref<2x1x8xf32, #tpu.memory_space<vmem>>, %arg5: memref<2x1x128xf32, #tpu.memory_space<vmem>>, %arg6: memref<2x1x128xf32, #tpu.memory_space<vmem>>, %arg7: memref<2x128x128xbf16, #tpu.memory_space<vmem>>, %arg8: memref<2x1x128xf32, #tpu.memory_space<vmem>>, %arg9: memref<2x128x128xbf16, #tpu.memory_space<vmem>>, %arg10: memref<2x1x128xf32, #tpu.memory_space<vmem>>, %arg11: memref<2x128x128xbf16, #tpu.memory_space<vmem>>, %arg12: memref<2x1x128xf32, #tpu.memory_space<vmem>>, %arg13: memref<2x128x128xbf16, #tpu.memory_space<vmem>>, %arg14: memref<2x1x128xf32, #tpu.memory_space<vmem>>, %arg15: memref<2x1x128xf32, #tpu.memory_space<vmem>>, %arg16: memref<2x1x128xf32, #tpu.memory_space<vmem>>, %arg17: memref<2x128x128xbf16, #tpu.memory_space<vmem>>, %arg18: memref<2x1x128xf32, #tpu.memory_space<vmem>>, %arg19: memref<2x128x128xbf16, #tpu.memory_space<vmem>>, %arg20: memref<2x1x128xf32, #tpu.memory_space<vmem>>, %arg21: memref<2x128x128xbf16, #tpu.memory_space<vmem>>, %arg22: memref<2x1x128xf32, #tpu.memory_space<vmem>>, %arg23: memref<2x128x128xbf16, #tpu.memory_space<vmem>>, %arg24: memref<2x1x128xf32, #tpu.memory_space<vmem>>, %arg25: memref<2x1x128xf32, #tpu.memory_space<vmem>>, %arg26: memref<2x1x128xf32, #tpu.memory_space<vmem>>, %arg27: memref<2x128x512xbf16, #tpu.memory_space<vmem>>, %arg28: memref<2x1x512xf32, #tpu.memory_space<vmem>>, %arg29: memref<2x512x128xbf16, #tpu.memory_space<vmem>>, %arg30: memref<2x1x128xf32, #tpu.memory_space<vmem>>, %arg31: memref<1x128xf32, #tpu.memory_space<vmem>>, %arg32: memref<1x128xf32, #tpu.memory_space<vmem>>, %arg33: memref<1x128xf32, #tpu.memory_space<vmem>>, %arg34: memref<1x128xf32, #tpu.memory_space<vmem>>, %arg35: memref<128x128xbf16, #tpu.memory_space<vmem>>, %arg36: memref<1x128xf32, #tpu.memory_space<vmem>>, %arg37: memref<2x8x128xf32, #tpu.memory_space<vmem>>, %arg38: memref<16x128xf32, #tpu.memory_space<vmem>>, %arg39: memref<16x128xbf16, #tpu.memory_space<vmem>>) attributes {dimension_semantics = [#tpu.dimension_semantics<parallel>, #tpu.dimension_semantics<arbitrary>], iteration_bounds = array<i64: 1, 2>, scalar_prefetch = 0 : i64, scratch_operands = 2 : i64, tpu.core_type = #tpu.core_type<tc>, window_params = [{pipeline_mode = #tpu.pipeline_mode<synchronous>, transform_indices = @transform_0, window_bounds = array<i64: 8, 128>}, {transform_indices = @transform_1, window_bounds = array<i64: 2, 8, 128>}, {transform_indices = @transform_2, window_bounds = array<i64: 2, 1, 8>}, {pipeline_mode = #tpu.pipeline_mode<synchronous>, transform_indices = @transform_3, window_bounds = array<i64: 2, 1, 128>}, {pipeline_mode = #tpu.pipeline_mode<synchronous>, transform_indices = @transform_4, window_bounds = array<i64: 2, 1, 128>}, {pipeline_mode = #tpu.pipeline_mode<synchronous>, transform_indices = @transform_5, window_bounds = array<i64: 2, 128, 128>}, {pipeline_mode = #tpu.pipeline_mode<synchronous>, transform_indices = @transform_6, window_bounds = array<i64: 2, 1, 128>}, {pipeline_mode = #tpu.pipeline_mode<synchronous>, transform_indices = @transform_7, window_bounds = array<i64: 2, 128, 128>}, {pipeline_mode = #tpu.pipeline_mode<synchronous>, transform_indices = @transform_8, window_bounds = array<i64: 2, 1, 128>}, {pipeline_mode = #tpu.pipeline_mode<synchronous>, transform_indices = @transform_9, window_bounds = array<i64: 2, 128, 128>}, {pipeline_mode = #tpu.pipeline_mode<synchronous>, transform_indices = @transform_10, window_bounds = array<i64: 2, 1, 128>}, {pipeline_mode = #tpu.pipeline_mode<synchronous>, transform_indices = @transform_11, window_bounds = array<i64: 2, 128, 128>}, {pipeline_mode = #tpu.pipeline_mode<synchronous>, transform_indices = @transform_12, window_bounds = array<i64: 2, 1, 128>}, {pipeline_mode = #tpu.pipeline_mode<synchronous>, transform_indices = @transform_13, window_bounds = array<i64: 2, 1, 128>}, {pipeline_mode = #tpu.pipeline_mode<synchronous>, transform_indices = @transform_14, window_bounds = array<i64: 2, 1, 128>}, {pipeline_mode = #tpu.pipeline_mode<synchronous>, transform_indices = @transform_15, window_bounds = array<i64: 2, 128, 128>}, {pipeline_mode = #tpu.pipeline_mode<synchronous>, transform_indices = @transform_16, window_bounds = array<i64: 2, 1, 128>}, {pipeline_mode = #tpu.pipeline_mode<synchronous>, transform_indices = @transform_17, window_bounds = array<i64: 2, 128, 128>}, {pipeline_mode = #tpu.pipeline_mode<synchronous>, transform_indices = @transform_18, window_bounds = array<i64: 2, 1, 128>}, {pipeline_mode = #tpu.pipeline_mode<synchronous>, transform_indices = @transform_19, window_bounds = array<i64: 2, 128, 128>}, {pipeline_mode = #tpu.pipeline_mode<synchronous>, transform_indices = @transform_20, window_bounds = array<i64: 2, 1, 128>}, {pipeline_mode = #tpu.pipeline_mode<synchronous>, transform_indices = @transform_21, window_bounds = array<i64: 2, 128, 128>}, {pipeline_mode = #tpu.pipeline_mode<synchronous>, transform_indices = @transform_22, window_bounds = array<i64: 2, 1, 128>}, {pipeline_mode = #tpu.pipeline_mode<synchronous>, transform_indices = @transform_23, window_bounds = array<i64: 2, 1, 128>}, {pipeline_mode = #tpu.pipeline_mode<synchronous>, transform_indices = @transform_24, window_bounds = array<i64: 2, 1, 128>}, {pipeline_mode = #tpu.pipeline_mode<synchronous>, transform_indices = @transform_25, window_bounds = array<i64: 2, 128, 512>}, {pipeline_mode = #tpu.pipeline_mode<synchronous>, transform_indices = @transform_26, window_bounds = array<i64: 2, 1, 512>}, {pipeline_mode = #tpu.pipeline_mode<synchronous>, transform_indices = @transform_27, window_bounds = array<i64: 2, 512, 128>}, {pipeline_mode = #tpu.pipeline_mode<synchronous>, transform_indices = @transform_28, window_bounds = array<i64: 2, 1, 128>}, {pipeline_mode = #tpu.pipeline_mode<synchronous>, transform_indices = @transform_29, window_bounds = array<i64: 1, 128>}, {pipeline_mode = #tpu.pipeline_mode<synchronous>, transform_indices = @transform_30, window_bounds = array<i64: 1, 128>}, {pipeline_mode = #tpu.pipeline_mode<synchronous>, transform_indices = @transform_31, window_bounds = array<i64: 1, 128>}, {pipeline_mode = #tpu.pipeline_mode<synchronous>, transform_indices = @transform_32, window_bounds = array<i64: 1, 128>}, {pipeline_mode = #tpu.pipeline_mode<synchronous>, transform_indices = @transform_33, window_bounds = array<i64: 128, 128>}, {pipeline_mode = #tpu.pipeline_mode<synchronous>, transform_indices = @transform_34, window_bounds = array<i64: 1, 128>}, {transform_indices = @transform_35, window_bounds = array<i64: 2, 8, 128>}]} {
    %c0_i32 = arith.constant 0 : i32
    %0 = arith.cmpi eq, %arg1, %c0_i32 : i32
    %1 = arith.extui %0 : i1 to i32
    %c0_i32_0 = arith.constant 0 : i32
    %2 = arith.cmpi ne, %1, %c0_i32_0 : i32
    scf.if %2 {
      %c0_142 = arith.constant 0 : index
      %c0_143 = arith.constant 0 : index
      %381 = vector.load %arg2[%c0_142, %c0_143] : memref<8x128xf32, #tpu.memory_space<vmem>>, vector<8x128xf32>
      %382 = vector.shape_cast %381 : vector<8x128xf32> to vector<1x8x128xf32>
      %383 = vector.shape_cast %382 : vector<1x8x128xf32> to vector<1x8x128xf32>
      %384 = vector.broadcast %383 : vector<1x8x128xf32> to vector<2x8x128xf32>
      %385 = vector.shape_cast %384 : vector<2x8x128xf32> to vector<16x128xf32>
      %c0_144 = arith.constant 0 : index
      %c0_145 = arith.constant 0 : index
      %386 = vector.load %arg38[%c0_144, %c0_145] : memref<16x128xf32, #tpu.memory_space<vmem>>, vector<16x128xf32>
      tpu.vector_store %arg38[%c0_144, %c0_145], %385 {strides = array<i32>} : memref<16x128xf32, #tpu.memory_space<vmem>>, vector<16x128xf32>,
    } else {
    }
    %c0 = arith.constant 0 : index
    %c0_1 = arith.constant 0 : index
    %3 = vector.load %arg38[%c0, %c0_1] : memref<16x128xf32, #tpu.memory_space<vmem>>, vector<16x128xf32>
    %4 = arith.index_cast %arg1 : i32 to index
    %c0_2 = arith.constant 0 : index
    %c0_3 = arith.constant 0 : index
    %5 = vector.load %arg5[%4, %c0_2, %c0_3] : memref<2x1x128xf32, #tpu.memory_space<vmem>>, vector<1x1x128xf32>
    %6 = vector.shape_cast %5 : vector<1x1x128xf32> to vector<1x128xf32>
    %7 = arith.index_cast %arg1 : i32 to index
    %c0_4 = arith.constant 0 : index
    %c0_5 = arith.constant 0 : index
    %8 = vector.load %arg6[%7, %c0_4, %c0_5] : memref<2x1x128xf32, #tpu.memory_space<vmem>>, vector<1x1x128xf32>
    %9 = vector.shape_cast %8 : vector<1x1x128xf32> to vector<1x128xf32>
    %cst = arith.constant dense<0.000000e+00> : vector<16xf32>
    %10 = vector.multi_reduction <add>, %3, %cst [1] : vector<16x128xf32> to vector<16xf32>
    %11 = vector.shape_cast %10 : vector<16xf32> to vector<16x1xf32>
    %cst_6 = arith.constant 1.280000e+02 : f32
    %12 = vector.broadcast %cst_6 : f32 to vector<16x1xf32>
    %13 = arith.divf %11, %12 : vector<16x1xf32>
    %14 = vector.broadcast %13 : vector<16x1xf32> to vector<16x128xf32>
    %15 = arith.subf %3, %14 : vector<16x128xf32>
    %16 = arith.mulf %15, %15 : vector<16x128xf32>
    %cst_7 = arith.constant dense<0.000000e+00> : vector<16xf32>
    %17 = vector.multi_reduction <add>, %16, %cst_7 [1] : vector<16x128xf32> to vector<16xf32>
    %18 = vector.shape_cast %17 : vector<16xf32> to vector<16x1xf32>
    %cst_8 = arith.constant 1.280000e+02 : f32
    %19 = vector.broadcast %cst_8 : f32 to vector<16x1xf32>
    %20 = arith.divf %18, %19 : vector<16x1xf32>
    %21 = vector.broadcast %13 : vector<16x1xf32> to vector<16x128xf32>
    %22 = arith.subf %3, %21 : vector<16x128xf32>
    %cst_9 = arith.constant 9.99999974E-6 : f32
    %23 = vector.broadcast %cst_9 : f32 to vector<16x1xf32>
    %24 = arith.addf %20, %23 : vector<16x1xf32>
    %25 = math.rsqrt %24 : vector<16x1xf32>
    %26 = vector.broadcast %25 : vector<16x1xf32> to vector<16x128xf32>
    %27 = arith.mulf %22, %26 : vector<16x128xf32>
    %28 = vector.broadcast %6 : vector<1x128xf32> to vector<16x128xf32>
    %29 = arith.mulf %27, %28 : vector<16x128xf32>
    %30 = vector.broadcast %9 : vector<1x128xf32> to vector<16x128xf32>
    %31 = arith.addf %29, %30 : vector<16x128xf32>
    %32 = arith.truncf %31 : vector<16x128xf32> to vector<16x128xbf16>
    %33 = arith.index_cast %arg1 : i32 to index
    %c0_10 = arith.constant 0 : index
    %c0_11 = arith.constant 0 : index
    %34 = vector.load %arg7[%33, %c0_10, %c0_11] : memref<2x128x128xbf16, #tpu.memory_space<vmem>>, vector<1x128x128xbf16>
    %35 = vector.shape_cast %34 : vector<1x128x128xbf16> to vector<128x128xbf16>
    %cst_12 = arith.constant dense<0.000000e+00> : vector<16x128xf32>
    %36 = tpu.matmul %32, %35, %cst_12 {dimension_numbers = #tpu.dot_dimension_numbers<[1], [0], [0], [1], [0, 0, 1, 1], [], []>} : vector<16x128xbf16>, vector<128x128xbf16>, vector<16x128xf32> -> vector<16x128xf32>
    %37 = arith.index_cast %arg1 : i32 to index
    %c0_13 = arith.constant 0 : index
    %c0_14 = arith.constant 0 : index
    %38 = vector.load %arg8[%37, %c0_13, %c0_14] : memref<2x1x128xf32, #tpu.memory_space<vmem>>, vector<1x1x128xf32>
    %39 = vector.shape_cast %38 : vector<1x1x128xf32> to vector<1x128xf32>
    %40 = vector.broadcast %39 : vector<1x128xf32> to vector<16x128xf32>
    %41 = arith.addf %36, %40 : vector<16x128xf32>
    %cst_15 = arith.constant 0.176776692 : f32
    %42 = vector.broadcast %cst_15 : f32 to vector<16x128xf32>
    %43 = arith.mulf %41, %42 : vector<16x128xf32>
    %44 = arith.truncf %43 : vector<16x128xf32> to vector<16x128xbf16>
    %45 = arith.index_cast %arg1 : i32 to index
    %c0_16 = arith.constant 0 : index
    %c0_17 = arith.constant 0 : index
    %46 = vector.load %arg9[%45, %c0_16, %c0_17] : memref<2x128x128xbf16, #tpu.memory_space<vmem>>, vector<1x128x128xbf16>
    %47 = vector.shape_cast %46 : vector<1x128x128xbf16> to vector<128x128xbf16>
    %cst_18 = arith.constant dense<0.000000e+00> : vector<16x128xf32>
    %48 = tpu.matmul %32, %47, %cst_18 {dimension_numbers = #tpu.dot_dimension_numbers<[1], [0], [0], [1], [0, 0, 1, 1], [], []>} : vector<16x128xbf16>, vector<128x128xbf16>, vector<16x128xf32> -> vector<16x128xf32>
    %49 = arith.index_cast %arg1 : i32 to index
    %c0_19 = arith.constant 0 : index
    %c0_20 = arith.constant 0 : index
    %50 = vector.load %arg10[%49, %c0_19, %c0_20] : memref<2x1x128xf32, #tpu.memory_space<vmem>>, vector<1x1x128xf32>
    %51 = vector.shape_cast %50 : vector<1x1x128xf32> to vector<1x128xf32>
    %52 = vector.broadcast %51 : vector<1x128xf32> to vector<16x128xf32>
    %53 = arith.addf %48, %52 : vector<16x128xf32>
    %54 = arith.truncf %53 : vector<16x128xf32> to vector<16x128xbf16>
    %55 = arith.index_cast %arg1 : i32 to index
    %c0_21 = arith.constant 0 : index
    %c0_22 = arith.constant 0 : index
    %56 = vector.load %arg11[%55, %c0_21, %c0_22] : memref<2x128x128xbf16, #tpu.memory_space<vmem>>, vector<1x128x128xbf16>
    %57 = vector.shape_cast %56 : vector<1x128x128xbf16> to vector<128x128xbf16>
    %cst_23 = arith.constant dense<0.000000e+00> : vector<16x128xf32>
    %58 = tpu.matmul %32, %57, %cst_23 {dimension_numbers = #tpu.dot_dimension_numbers<[1], [0], [0], [1], [0, 0, 1, 1], [], []>} : vector<16x128xbf16>, vector<128x128xbf16>, vector<16x128xf32> -> vector<16x128xf32>
    %59 = arith.index_cast %arg1 : i32 to index
    %c0_24 = arith.constant 0 : index
    %c0_25 = arith.constant 0 : index
    %60 = vector.load %arg12[%59, %c0_24, %c0_25] : memref<2x1x128xf32, #tpu.memory_space<vmem>>, vector<1x1x128xf32>
    %61 = vector.shape_cast %60 : vector<1x1x128xf32> to vector<1x128xf32>
    %62 = vector.broadcast %61 : vector<1x128xf32> to vector<16x128xf32>
    %63 = arith.addf %58, %62 : vector<16x128xf32>
    %64 = arith.truncf %63 : vector<16x128xf32> to vector<16x128xbf16>
    %65 = vector.shape_cast %44 : vector<16x128xbf16> to vector<2x8x128xbf16>
    %66 = vector.shape_cast %54 : vector<16x128xbf16> to vector<2x8x128xbf16>
    %67 = vector.shape_cast %64 : vector<16x128xbf16> to vector<2x8x128xbf16>
    %68 = vector.extract_strided_slice %65 {offsets = [0, 0, 0], sizes = [2, 8, 32], strides = [1, 1, 1]} : vector<2x8x128xbf16> to vector<2x8x32xbf16>
    %69 = vector.extract_strided_slice %66 {offsets = [0, 0, 0], sizes = [2, 8, 32], strides = [1, 1, 1]} : vector<2x8x128xbf16> to vector<2x8x32xbf16>
    "tpu.trace_start"() <{level = 10 : i32, message = "bqd,bkd->bqk"}> : () -> ()
    %cst_26 = arith.constant dense<0.000000e+00> : vector<2x8x8xf32>
    %70 = tpu.matmul %68, %69, %cst_26 {dimension_numbers = #tpu.dot_dimension_numbers<[2], [2], [1], [1], [0, 0, 0, 1, 1, 1], [0], [0]>} : vector<2x8x32xbf16>, vector<2x8x32xbf16>, vector<2x8x8xf32> -> vector<2x8x8xf32>
    "tpu.trace_stop"() : () -> ()
    %cst_27 = arith.constant dense<0xFF800000> : vector<2x8xf32>
    %71 = vector.multi_reduction <maximumf>, %70, %cst_27 [2] : vector<2x8x8xf32> to vector<2x8xf32>
    %72 = vector.shape_cast %71 : vector<2x8xf32> to vector<2x8x1xf32>
    %73 = vector.broadcast %72 : vector<2x8x1xf32> to vector<2x8x8xf32>
    %74 = arith.subf %70, %73 : vector<2x8x8xf32>
    %75 = math.exp %74 : vector<2x8x8xf32>
    %cst_28 = arith.constant dense<0.000000e+00> : vector<2x8xf32>
    %76 = vector.multi_reduction <add>, %75, %cst_28 [2] : vector<2x8x8xf32> to vector<2x8xf32>
    %77 = vector.shape_cast %76 : vector<2x8xf32> to vector<2x8x1xf32>
    %78 = tpu.reciprocal %77 {approx = true} : vector<2x8x1xf32> -> vector<2x8x1xf32>
    %79 = vector.broadcast %78 : vector<2x8x1xf32> to vector<2x8x8xf32>
    %80 = arith.mulf %75, %79 : vector<2x8x8xf32>
    %81 = arith.truncf %80 : vector<2x8x8xf32> to vector<2x8x8xbf16>
    %82 = vector.extract_strided_slice %67 {offsets = [0, 0, 0], sizes = [2, 8, 32], strides = [1, 1, 1]} : vector<2x8x128xbf16> to vector<2x8x32xbf16>
    "tpu.trace_start"() <{level = 10 : i32, message = "bqk,bkd->bqd"}> : () -> ()
    %cst_29 = arith.constant dense<0.000000e+00> : vector<2x8x32xf32>
    %83 = tpu.matmul %81, %82, %cst_29 {dimension_numbers = #tpu.dot_dimension_numbers<[2], [1], [1], [2], [0, 0, 0, 1, 1, 2], [0], [0]>} : vector<2x8x8xbf16>, vector<2x8x32xbf16>, vector<2x8x32xf32> -> vector<2x8x32xf32>
    "tpu.trace_stop"() : () -> ()
    %84 = vector.shape_cast %83 : vector<2x8x32xf32> to vector<16x32xf32>
    %85 = arith.truncf %84 : vector<16x32xf32> to vector<16x32xbf16>
    %c0_30 = arith.constant 0 : index
    %c0_31 = arith.constant 0 : index
    %86 = vector.load %arg39[%c0_30, %c0_31] : memref<16x128xbf16, #tpu.memory_space<vmem>>, vector<16x32xbf16>
    tpu.vector_store %arg39[%c0_30, %c0_31], %85 {strides = array<i32>} : memref<16x128xbf16, #tpu.memory_space<vmem>>, vector<16x32xbf16>,
    %87 = vector.extract_strided_slice %65 {offsets = [0, 0, 32], sizes = [2, 8, 32], strides = [1, 1, 1]} : vector<2x8x128xbf16> to vector<2x8x32xbf16>
    %88 = vector.extract_strided_slice %66 {offsets = [0, 0, 32], sizes = [2, 8, 32], strides = [1, 1, 1]} : vector<2x8x128xbf16> to vector<2x8x32xbf16>
    "tpu.trace_start"() <{level = 10 : i32, message = "bqd,bkd->bqk"}> : () -> ()
    %cst_32 = arith.constant dense<0.000000e+00> : vector<2x8x8xf32>
    %89 = tpu.matmul %87, %88, %cst_32 {dimension_numbers = #tpu.dot_dimension_numbers<[2], [2], [1], [1], [0, 0, 0, 1, 1, 1], [0], [0]>} : vector<2x8x32xbf16>, vector<2x8x32xbf16>, vector<2x8x8xf32> -> vector<2x8x8xf32>
    "tpu.trace_stop"() : () -> ()
    %cst_33 = arith.constant dense<0xFF800000> : vector<2x8xf32>
    %90 = vector.multi_reduction <maximumf>, %89, %cst_33 [2] : vector<2x8x8xf32> to vector<2x8xf32>
    %91 = vector.shape_cast %90 : vector<2x8xf32> to vector<2x8x1xf32>
    %92 = vector.broadcast %91 : vector<2x8x1xf32> to vector<2x8x8xf32>
    %93 = arith.subf %89, %92 : vector<2x8x8xf32>
    %94 = math.exp %93 : vector<2x8x8xf32>
    %cst_34 = arith.constant dense<0.000000e+00> : vector<2x8xf32>
    %95 = vector.multi_reduction <add>, %94, %cst_34 [2] : vector<2x8x8xf32> to vector<2x8xf32>
    %96 = vector.shape_cast %95 : vector<2x8xf32> to vector<2x8x1xf32>
    %97 = tpu.reciprocal %96 {approx = true} : vector<2x8x1xf32> -> vector<2x8x1xf32>
    %98 = vector.broadcast %97 : vector<2x8x1xf32> to vector<2x8x8xf32>
    %99 = arith.mulf %94, %98 : vector<2x8x8xf32>
    %100 = arith.truncf %99 : vector<2x8x8xf32> to vector<2x8x8xbf16>
    %101 = vector.extract_strided_slice %67 {offsets = [0, 0, 32], sizes = [2, 8, 32], strides = [1, 1, 1]} : vector<2x8x128xbf16> to vector<2x8x32xbf16>
    "tpu.trace_start"() <{level = 10 : i32, message = "bqk,bkd->bqd"}> : () -> ()
    %cst_35 = arith.constant dense<0.000000e+00> : vector<2x8x32xf32>
    %102 = tpu.matmul %100, %101, %cst_35 {dimension_numbers = #tpu.dot_dimension_numbers<[2], [1], [1], [2], [0, 0, 0, 1, 1, 2], [0], [0]>} : vector<2x8x8xbf16>, vector<2x8x32xbf16>, vector<2x8x32xf32> -> vector<2x8x32xf32>
    "tpu.trace_stop"() : () -> ()
    %103 = vector.shape_cast %102 : vector<2x8x32xf32> to vector<16x32xf32>
    %104 = arith.truncf %103 : vector<16x32xf32> to vector<16x32xbf16>
    %c0_36 = arith.constant 0 : index
    %c32 = arith.constant 32 : index
    %105 = vector.load %arg39[%c0_36, %c32] : memref<16x128xbf16, #tpu.memory_space<vmem>>, vector<16x32xbf16>
    tpu.vector_store %arg39[%c0_36, %c32], %104 {strides = array<i32>} : memref<16x128xbf16, #tpu.memory_space<vmem>>, vector<16x32xbf16>,
    %106 = vector.extract_strided_slice %65 {offsets = [0, 0, 64], sizes = [2, 8, 32], strides = [1, 1, 1]} : vector<2x8x128xbf16> to vector<2x8x32xbf16>
    %107 = vector.extract_strided_slice %66 {offsets = [0, 0, 64], sizes = [2, 8, 32], strides = [1, 1, 1]} : vector<2x8x128xbf16> to vector<2x8x32xbf16>
    "tpu.trace_start"() <{level = 10 : i32, message = "bqd,bkd->bqk"}> : () -> ()
    %cst_37 = arith.constant dense<0.000000e+00> : vector<2x8x8xf32>
    %108 = tpu.matmul %106, %107, %cst_37 {dimension_numbers = #tpu.dot_dimension_numbers<[2], [2], [1], [1], [0, 0, 0, 1, 1, 1], [0], [0]>} : vector<2x8x32xbf16>, vector<2x8x32xbf16>, vector<2x8x8xf32> -> vector<2x8x8xf32>
    "tpu.trace_stop"() : () -> ()
    %cst_38 = arith.constant dense<0xFF800000> : vector<2x8xf32>
    %109 = vector.multi_reduction <maximumf>, %108, %cst_38 [2] : vector<2x8x8xf32> to vector<2x8xf32>
    %110 = vector.shape_cast %109 : vector<2x8xf32> to vector<2x8x1xf32>
    %111 = vector.broadcast %110 : vector<2x8x1xf32> to vector<2x8x8xf32>
    %112 = arith.subf %108, %111 : vector<2x8x8xf32>
    %113 = math.exp %112 : vector<2x8x8xf32>
    %cst_39 = arith.constant dense<0.000000e+00> : vector<2x8xf32>
    %114 = vector.multi_reduction <add>, %113, %cst_39 [2] : vector<2x8x8xf32> to vector<2x8xf32>
    %115 = vector.shape_cast %114 : vector<2x8xf32> to vector<2x8x1xf32>
    %116 = tpu.reciprocal %115 {approx = true} : vector<2x8x1xf32> -> vector<2x8x1xf32>
    %117 = vector.broadcast %116 : vector<2x8x1xf32> to vector<2x8x8xf32>
    %118 = arith.mulf %113, %117 : vector<2x8x8xf32>
    %119 = arith.truncf %118 : vector<2x8x8xf32> to vector<2x8x8xbf16>
    %120 = vector.extract_strided_slice %67 {offsets = [0, 0, 64], sizes = [2, 8, 32], strides = [1, 1, 1]} : vector<2x8x128xbf16> to vector<2x8x32xbf16>
    "tpu.trace_start"() <{level = 10 : i32, message = "bqk,bkd->bqd"}> : () -> ()
    %cst_40 = arith.constant dense<0.000000e+00> : vector<2x8x32xf32>
    %121 = tpu.matmul %119, %120, %cst_40 {dimension_numbers = #tpu.dot_dimension_numbers<[2], [1], [1], [2], [0, 0, 0, 1, 1, 2], [0], [0]>} : vector<2x8x8xbf16>, vector<2x8x32xbf16>, vector<2x8x32xf32> -> vector<2x8x32xf32>
    "tpu.trace_stop"() : () -> ()
    %122 = vector.shape_cast %121 : vector<2x8x32xf32> to vector<16x32xf32>
    %123 = arith.truncf %122 : vector<16x32xf32> to vector<16x32xbf16>
    %c0_41 = arith.constant 0 : index
    %c64 = arith.constant 64 : index
    %124 = vector.load %arg39[%c0_41, %c64] : memref<16x128xbf16, #tpu.memory_space<vmem>>, vector<16x32xbf16>
    tpu.vector_store %arg39[%c0_41, %c64], %123 {strides = array<i32>} : memref<16x128xbf16, #tpu.memory_space<vmem>>, vector<16x32xbf16>,
    %125 = vector.extract_strided_slice %65 {offsets = [0, 0, 96], sizes = [2, 8, 32], strides = [1, 1, 1]} : vector<2x8x128xbf16> to vector<2x8x32xbf16>
    %126 = vector.extract_strided_slice %66 {offsets = [0, 0, 96], sizes = [2, 8, 32], strides = [1, 1, 1]} : vector<2x8x128xbf16> to vector<2x8x32xbf16>
    "tpu.trace_start"() <{level = 10 : i32, message = "bqd,bkd->bqk"}> : () -> ()
    %cst_42 = arith.constant dense<0.000000e+00> : vector<2x8x8xf32>
    %127 = tpu.matmul %125, %126, %cst_42 {dimension_numbers = #tpu.dot_dimension_numbers<[2], [2], [1], [1], [0, 0, 0, 1, 1, 1], [0], [0]>} : vector<2x8x32xbf16>, vector<2x8x32xbf16>, vector<2x8x8xf32> -> vector<2x8x8xf32>
    "tpu.trace_stop"() : () -> ()
    %cst_43 = arith.constant dense<0xFF800000> : vector<2x8xf32>
    %128 = vector.multi_reduction <maximumf>, %127, %cst_43 [2] : vector<2x8x8xf32> to vector<2x8xf32>
    %129 = vector.shape_cast %128 : vector<2x8xf32> to vector<2x8x1xf32>
    %130 = vector.broadcast %129 : vector<2x8x1xf32> to vector<2x8x8xf32>
    %131 = arith.subf %127, %130 : vector<2x8x8xf32>
    %132 = math.exp %131 : vector<2x8x8xf32>
    %cst_44 = arith.constant dense<0.000000e+00> : vector<2x8xf32>
    %133 = vector.multi_reduction <add>, %132, %cst_44 [2] : vector<2x8x8xf32> to vector<2x8xf32>
    %134 = vector.shape_cast %133 : vector<2x8xf32> to vector<2x8x1xf32>
    %135 = tpu.reciprocal %134 {approx = true} : vector<2x8x1xf32> -> vector<2x8x1xf32>
    %136 = vector.broadcast %135 : vector<2x8x1xf32> to vector<2x8x8xf32>
    %137 = arith.mulf %132, %136 : vector<2x8x8xf32>
    %138 = arith.truncf %137 : vector<2x8x8xf32> to vector<2x8x8xbf16>
    %139 = vector.extract_strided_slice %67 {offsets = [0, 0, 96], sizes = [2, 8, 32], strides = [1, 1, 1]} : vector<2x8x128xbf16> to vector<2x8x32xbf16>
    "tpu.trace_start"() <{level = 10 : i32, message = "bqk,bkd->bqd"}> : () -> ()
    %cst_45 = arith.constant dense<0.000000e+00> : vector<2x8x32xf32>
    %140 = tpu.matmul %138, %139, %cst_45 {dimension_numbers = #tpu.dot_dimension_numbers<[2], [1], [1], [2], [0, 0, 0, 1, 1, 2], [0], [0]>} : vector<2x8x8xbf16>, vector<2x8x32xbf16>, vector<2x8x32xf32> -> vector<2x8x32xf32>
    "tpu.trace_stop"() : () -> ()
    %141 = vector.shape_cast %140 : vector<2x8x32xf32> to vector<16x32xf32>
    %142 = arith.truncf %141 : vector<16x32xf32> to vector<16x32xbf16>
    %c0_46 = arith.constant 0 : index
    %c96 = arith.constant 96 : index
    %143 = vector.load %arg39[%c0_46, %c96] : memref<16x128xbf16, #tpu.memory_space<vmem>>, vector<16x32xbf16>
    tpu.vector_store %arg39[%c0_46, %c96], %142 {strides = array<i32>} : memref<16x128xbf16, #tpu.memory_space<vmem>>, vector<16x32xbf16>,
    %c0_47 = arith.constant 0 : index
    %c0_48 = arith.constant 0 : index
    %144 = vector.load %arg39[%c0_47, %c0_48] : memref<16x128xbf16, #tpu.memory_space<vmem>>, vector<16x128xbf16>
    %145 = arith.index_cast %arg1 : i32 to index
    %c0_49 = arith.constant 0 : index
    %c0_50 = arith.constant 0 : index
    %146 = vector.load %arg13[%145, %c0_49, %c0_50] : memref<2x128x128xbf16, #tpu.memory_space<vmem>>, vector<1x128x128xbf16>
    %147 = vector.shape_cast %146 : vector<1x128x128xbf16> to vector<128x128xbf16>
    %cst_51 = arith.constant dense<0.000000e+00> : vector<16x128xf32>
    %148 = tpu.matmul %144, %147, %cst_51 {dimension_numbers = #tpu.dot_dimension_numbers<[1], [0], [0], [1], [0, 0, 1, 1], [], []>} : vector<16x128xbf16>, vector<128x128xbf16>, vector<16x128xf32> -> vector<16x128xf32>
    %149 = arith.index_cast %arg1 : i32 to index
    %c0_52 = arith.constant 0 : index
    %c0_53 = arith.constant 0 : index
    %150 = vector.load %arg14[%149, %c0_52, %c0_53] : memref<2x1x128xf32, #tpu.memory_space<vmem>>, vector<1x1x128xf32>
    %151 = vector.shape_cast %150 : vector<1x1x128xf32> to vector<1x128xf32>
    %152 = vector.broadcast %151 : vector<1x128xf32> to vector<16x128xf32>
    %153 = arith.addf %148, %152 : vector<16x128xf32>
    %154 = arith.addf %3, %153 : vector<16x128xf32>
    %155 = arith.index_cast %arg1 : i32 to index
    %c0_54 = arith.constant 0 : index
    %c0_55 = arith.constant 0 : index
    %156 = vector.load %arg15[%155, %c0_54, %c0_55] : memref<2x1x128xf32, #tpu.memory_space<vmem>>, vector<1x1x128xf32>
    %157 = vector.shape_cast %156 : vector<1x1x128xf32> to vector<1x128xf32>
    %158 = arith.index_cast %arg1 : i32 to index
    %c0_56 = arith.constant 0 : index
    %c0_57 = arith.constant 0 : index
    %159 = vector.load %arg16[%158, %c0_56, %c0_57] : memref<2x1x128xf32, #tpu.memory_space<vmem>>, vector<1x1x128xf32>
    %160 = vector.shape_cast %159 : vector<1x1x128xf32> to vector<1x128xf32>
    %cst_58 = arith.constant dense<0.000000e+00> : vector<16xf32>
    %161 = vector.multi_reduction <add>, %154, %cst_58 [1] : vector<16x128xf32> to vector<16xf32>
    %162 = vector.shape_cast %161 : vector<16xf32> to vector<16x1xf32>
    %cst_59 = arith.constant 1.280000e+02 : f32
    %163 = vector.broadcast %cst_59 : f32 to vector<16x1xf32>
    %164 = arith.divf %162, %163 : vector<16x1xf32>
    %165 = vector.broadcast %164 : vector<16x1xf32> to vector<16x128xf32>
    %166 = arith.subf %154, %165 : vector<16x128xf32>
    %167 = arith.mulf %166, %166 : vector<16x128xf32>
    %cst_60 = arith.constant dense<0.000000e+00> : vector<16xf32>
    %168 = vector.multi_reduction <add>, %167, %cst_60 [1] : vector<16x128xf32> to vector<16xf32>
    %169 = vector.shape_cast %168 : vector<16xf32> to vector<16x1xf32>
    %cst_61 = arith.constant 1.280000e+02 : f32
    %170 = vector.broadcast %cst_61 : f32 to vector<16x1xf32>
    %171 = arith.divf %169, %170 : vector<16x1xf32>
    %172 = vector.broadcast %164 : vector<16x1xf32> to vector<16x128xf32>
    %173 = arith.subf %154, %172 : vector<16x128xf32>
    %cst_62 = arith.constant 9.99999974E-6 : f32
    %174 = vector.broadcast %cst_62 : f32 to vector<16x1xf32>
    %175 = arith.addf %171, %174 : vector<16x1xf32>
    %176 = math.rsqrt %175 : vector<16x1xf32>
    %177 = vector.broadcast %176 : vector<16x1xf32> to vector<16x128xf32>
    %178 = arith.mulf %173, %177 : vector<16x128xf32>
    %179 = vector.broadcast %157 : vector<1x128xf32> to vector<16x128xf32>
    %180 = arith.mulf %178, %179 : vector<16x128xf32>
    %181 = vector.broadcast %160 : vector<1x128xf32> to vector<16x128xf32>
    %182 = arith.addf %180, %181 : vector<16x128xf32>
    %183 = arith.truncf %182 : vector<16x128xf32> to vector<16x128xbf16>
    %c0_63 = arith.constant 0 : index
    %c0_64 = arith.constant 0 : index
    %c0_65 = arith.constant 0 : index
    %184 = vector.load %arg3[%c0_63, %c0_64, %c0_65] : memref<2x8x128xbf16, #tpu.memory_space<vmem>>, vector<2x8x128xbf16>
    %185 = vector.shape_cast %184 : vector<2x8x128xbf16> to vector<16x128xbf16>
    %c0_66 = arith.constant 0 : index
    %c0_67 = arith.constant 0 : index
    %c0_68 = arith.constant 0 : index
    %186 = vector.load %arg4[%c0_66, %c0_67, %c0_68] : memref<2x1x8xf32, #tpu.memory_space<vmem>>, vector<2x1x8xf32>
    %187 = vector.shape_cast %186 : vector<2x1x8xf32> to vector<2x1x8xf32>
    %188 = vector.broadcast %187 : vector<2x1x8xf32> to vector<2x8x8xf32>
    %189 = arith.index_cast %arg1 : i32 to index
    %c0_69 = arith.constant 0 : index
    %c0_70 = arith.constant 0 : index
    %190 = vector.load %arg17[%189, %c0_69, %c0_70] : memref<2x128x128xbf16, #tpu.memory_space<vmem>>, vector<1x128x128xbf16>
    %191 = vector.shape_cast %190 : vector<1x128x128xbf16> to vector<128x128xbf16>
    %cst_71 = arith.constant dense<0.000000e+00> : vector<16x128xf32>
    %192 = tpu.matmul %183, %191, %cst_71 {dimension_numbers = #tpu.dot_dimension_numbers<[1], [0], [0], [1], [0, 0, 1, 1], [], []>} : vector<16x128xbf16>, vector<128x128xbf16>, vector<16x128xf32> -> vector<16x128xf32>
    %193 = arith.index_cast %arg1 : i32 to index
    %c0_72 = arith.constant 0 : index
    %c0_73 = arith.constant 0 : index
    %194 = vector.load %arg18[%193, %c0_72, %c0_73] : memref<2x1x128xf32, #tpu.memory_space<vmem>>, vector<1x1x128xf32>
    %195 = vector.shape_cast %194 : vector<1x1x128xf32> to vector<1x128xf32>
    %196 = vector.broadcast %195 : vector<1x128xf32> to vector<16x128xf32>
    %197 = arith.addf %192, %196 : vector<16x128xf32>
    %cst_74 = arith.constant 0.176776692 : f32
    %198 = vector.broadcast %cst_74 : f32 to vector<16x128xf32>
    %199 = arith.mulf %197, %198 : vector<16x128xf32>
    %200 = arith.truncf %199 : vector<16x128xf32> to vector<16x128xbf16>
    %201 = arith.index_cast %arg1 : i32 to index
    %c0_75 = arith.constant 0 : index
    %c0_76 = arith.constant 0 : index
    %202 = vector.load %arg19[%201, %c0_75, %c0_76] : memref<2x128x128xbf16, #tpu.memory_space<vmem>>, vector<1x128x128xbf16>
    %203 = vector.shape_cast %202 : vector<1x128x128xbf16> to vector<128x128xbf16>
    %cst_77 = arith.constant dense<0.000000e+00> : vector<16x128xf32>
    %204 = tpu.matmul %185, %203, %cst_77 {dimension_numbers = #tpu.dot_dimension_numbers<[1], [0], [0], [1], [0, 0, 1, 1], [], []>} : vector<16x128xbf16>, vector<128x128xbf16>, vector<16x128xf32> -> vector<16x128xf32>
    %205 = arith.index_cast %arg1 : i32 to index
    %c0_78 = arith.constant 0 : index
    %c0_79 = arith.constant 0 : index
    %206 = vector.load %arg20[%205, %c0_78, %c0_79] : memref<2x1x128xf32, #tpu.memory_space<vmem>>, vector<1x1x128xf32>
    %207 = vector.shape_cast %206 : vector<1x1x128xf32> to vector<1x128xf32>
    %208 = vector.broadcast %207 : vector<1x128xf32> to vector<16x128xf32>
    %209 = arith.addf %204, %208 : vector<16x128xf32>
    %210 = arith.truncf %209 : vector<16x128xf32> to vector<16x128xbf16>
    %211 = arith.index_cast %arg1 : i32 to index
    %c0_80 = arith.constant 0 : index
    %c0_81 = arith.constant 0 : index
    %212 = vector.load %arg21[%211, %c0_80, %c0_81] : memref<2x128x128xbf16, #tpu.memory_space<vmem>>, vector<1x128x128xbf16>
    %213 = vector.shape_cast %212 : vector<1x128x128xbf16> to vector<128x128xbf16>
    %cst_82 = arith.constant dense<0.000000e+00> : vector<16x128xf32>
    %214 = tpu.matmul %185, %213, %cst_82 {dimension_numbers = #tpu.dot_dimension_numbers<[1], [0], [0], [1], [0, 0, 1, 1], [], []>} : vector<16x128xbf16>, vector<128x128xbf16>, vector<16x128xf32> -> vector<16x128xf32>
    %215 = arith.index_cast %arg1 : i32 to index
    %c0_83 = arith.constant 0 : index
    %c0_84 = arith.constant 0 : index
    %216 = vector.load %arg22[%215, %c0_83, %c0_84] : memref<2x1x128xf32, #tpu.memory_space<vmem>>, vector<1x1x128xf32>
    %217 = vector.shape_cast %216 : vector<1x1x128xf32> to vector<1x128xf32>
    %218 = vector.broadcast %217 : vector<1x128xf32> to vector<16x128xf32>
    %219 = arith.addf %214, %218 : vector<16x128xf32>
    %220 = arith.truncf %219 : vector<16x128xf32> to vector<16x128xbf16>
    %221 = vector.shape_cast %200 : vector<16x128xbf16> to vector<2x8x128xbf16>
    %222 = vector.shape_cast %210 : vector<16x128xbf16> to vector<2x8x128xbf16>
    %223 = vector.shape_cast %220 : vector<16x128xbf16> to vector<2x8x128xbf16>
    %224 = vector.extract_strided_slice %221 {offsets = [0, 0, 0], sizes = [2, 8, 32], strides = [1, 1, 1]} : vector<2x8x128xbf16> to vector<2x8x32xbf16>
    %225 = vector.extract_strided_slice %222 {offsets = [0, 0, 0], sizes = [2, 8, 32], strides = [1, 1, 1]} : vector<2x8x128xbf16> to vector<2x8x32xbf16>
    "tpu.trace_start"() <{level = 10 : i32, message = "bqd,bkd->bqk"}> : () -> ()
    %cst_85 = arith.constant dense<0.000000e+00> : vector<2x8x8xf32>
    %226 = tpu.matmul %224, %225, %cst_85 {dimension_numbers = #tpu.dot_dimension_numbers<[2], [2], [1], [1], [0, 0, 0, 1, 1, 1], [0], [0]>} : vector<2x8x32xbf16>, vector<2x8x32xbf16>, vector<2x8x8xf32> -> vector<2x8x8xf32>
    "tpu.trace_stop"() : () -> ()
    %227 = arith.addf %226, %188 : vector<2x8x8xf32>
    %cst_86 = arith.constant dense<0xFF800000> : vector<2x8xf32>
    %228 = vector.multi_reduction <maximumf>, %227, %cst_86 [2] : vector<2x8x8xf32> to vector<2x8xf32>
    %229 = vector.shape_cast %228 : vector<2x8xf32> to vector<2x8x1xf32>
    %230 = vector.broadcast %229 : vector<2x8x1xf32> to vector<2x8x8xf32>
    %231 = arith.subf %227, %230 : vector<2x8x8xf32>
    %232 = math.exp %231 : vector<2x8x8xf32>
    %cst_87 = arith.constant dense<0.000000e+00> : vector<2x8xf32>
    %233 = vector.multi_reduction <add>, %232, %cst_87 [2] : vector<2x8x8xf32> to vector<2x8xf32>
    %234 = vector.shape_cast %233 : vector<2x8xf32> to vector<2x8x1xf32>
    %235 = tpu.reciprocal %234 {approx = true} : vector<2x8x1xf32> -> vector<2x8x1xf32>
    %236 = vector.broadcast %235 : vector<2x8x1xf32> to vector<2x8x8xf32>
    %237 = arith.mulf %232, %236 : vector<2x8x8xf32>
    %238 = arith.truncf %237 : vector<2x8x8xf32> to vector<2x8x8xbf16>
    %239 = vector.extract_strided_slice %223 {offsets = [0, 0, 0], sizes = [2, 8, 32], strides = [1, 1, 1]} : vector<2x8x128xbf16> to vector<2x8x32xbf16>
    "tpu.trace_start"() <{level = 10 : i32, message = "bqk,bkd->bqd"}> : () -> ()
    %cst_88 = arith.constant dense<0.000000e+00> : vector<2x8x32xf32>
    %240 = tpu.matmul %238, %239, %cst_88 {dimension_numbers = #tpu.dot_dimension_numbers<[2], [1], [1], [2], [0, 0, 0, 1, 1, 2], [0], [0]>} : vector<2x8x8xbf16>, vector<2x8x32xbf16>, vector<2x8x32xf32> -> vector<2x8x32xf32>
    "tpu.trace_stop"() : () -> ()
    %241 = vector.shape_cast %240 : vector<2x8x32xf32> to vector<16x32xf32>
    %242 = arith.truncf %241 : vector<16x32xf32> to vector<16x32xbf16>
    %c0_89 = arith.constant 0 : index
    %c0_90 = arith.constant 0 : index
    %243 = vector.load %arg39[%c0_89, %c0_90] : memref<16x128xbf16, #tpu.memory_space<vmem>>, vector<16x32xbf16>
    tpu.vector_store %arg39[%c0_89, %c0_90], %242 {strides = array<i32>} : memref<16x128xbf16, #tpu.memory_space<vmem>>, vector<16x32xbf16>,
    %244 = vector.extract_strided_slice %221 {offsets = [0, 0, 32], sizes = [2, 8, 32], strides = [1, 1, 1]} : vector<2x8x128xbf16> to vector<2x8x32xbf16>
    %245 = vector.extract_strided_slice %222 {offsets = [0, 0, 32], sizes = [2, 8, 32], strides = [1, 1, 1]} : vector<2x8x128xbf16> to vector<2x8x32xbf16>
    "tpu.trace_start"() <{level = 10 : i32, message = "bqd,bkd->bqk"}> : () -> ()
    %cst_91 = arith.constant dense<0.000000e+00> : vector<2x8x8xf32>
    %246 = tpu.matmul %244, %245, %cst_91 {dimension_numbers = #tpu.dot_dimension_numbers<[2], [2], [1], [1], [0, 0, 0, 1, 1, 1], [0], [0]>} : vector<2x8x32xbf16>, vector<2x8x32xbf16>, vector<2x8x8xf32> -> vector<2x8x8xf32>
    "tpu.trace_stop"() : () -> ()
    %247 = arith.addf %246, %188 : vector<2x8x8xf32>
    %cst_92 = arith.constant dense<0xFF800000> : vector<2x8xf32>
    %248 = vector.multi_reduction <maximumf>, %247, %cst_92 [2] : vector<2x8x8xf32> to vector<2x8xf32>
    %249 = vector.shape_cast %248 : vector<2x8xf32> to vector<2x8x1xf32>
    %250 = vector.broadcast %249 : vector<2x8x1xf32> to vector<2x8x8xf32>
    %251 = arith.subf %247, %250 : vector<2x8x8xf32>
    %252 = math.exp %251 : vector<2x8x8xf32>
    %cst_93 = arith.constant dense<0.000000e+00> : vector<2x8xf32>
    %253 = vector.multi_reduction <add>, %252, %cst_93 [2] : vector<2x8x8xf32> to vector<2x8xf32>
    %254 = vector.shape_cast %253 : vector<2x8xf32> to vector<2x8x1xf32>
    %255 = tpu.reciprocal %254 {approx = true} : vector<2x8x1xf32> -> vector<2x8x1xf32>
    %256 = vector.broadcast %255 : vector<2x8x1xf32> to vector<2x8x8xf32>
    %257 = arith.mulf %252, %256 : vector<2x8x8xf32>
    %258 = arith.truncf %257 : vector<2x8x8xf32> to vector<2x8x8xbf16>
    %259 = vector.extract_strided_slice %223 {offsets = [0, 0, 32], sizes = [2, 8, 32], strides = [1, 1, 1]} : vector<2x8x128xbf16> to vector<2x8x32xbf16>
    "tpu.trace_start"() <{level = 10 : i32, message = "bqk,bkd->bqd"}> : () -> ()
    %cst_94 = arith.constant dense<0.000000e+00> : vector<2x8x32xf32>
    %260 = tpu.matmul %258, %259, %cst_94 {dimension_numbers = #tpu.dot_dimension_numbers<[2], [1], [1], [2], [0, 0, 0, 1, 1, 2], [0], [0]>} : vector<2x8x8xbf16>, vector<2x8x32xbf16>, vector<2x8x32xf32> -> vector<2x8x32xf32>
    "tpu.trace_stop"() : () -> ()
    %261 = vector.shape_cast %260 : vector<2x8x32xf32> to vector<16x32xf32>
    %262 = arith.truncf %261 : vector<16x32xf32> to vector<16x32xbf16>
    %c0_95 = arith.constant 0 : index
    %c32_96 = arith.constant 32 : index
    %263 = vector.load %arg39[%c0_95, %c32_96] : memref<16x128xbf16, #tpu.memory_space<vmem>>, vector<16x32xbf16>
    tpu.vector_store %arg39[%c0_95, %c32_96], %262 {strides = array<i32>} : memref<16x128xbf16, #tpu.memory_space<vmem>>, vector<16x32xbf16>,
    %264 = vector.extract_strided_slice %221 {offsets = [0, 0, 64], sizes = [2, 8, 32], strides = [1, 1, 1]} : vector<2x8x128xbf16> to vector<2x8x32xbf16>
    %265 = vector.extract_strided_slice %222 {offsets = [0, 0, 64], sizes = [2, 8, 32], strides = [1, 1, 1]} : vector<2x8x128xbf16> to vector<2x8x32xbf16>
    "tpu.trace_start"() <{level = 10 : i32, message = "bqd,bkd->bqk"}> : () -> ()
    %cst_97 = arith.constant dense<0.000000e+00> : vector<2x8x8xf32>
    %266 = tpu.matmul %264, %265, %cst_97 {dimension_numbers = #tpu.dot_dimension_numbers<[2], [2], [1], [1], [0, 0, 0, 1, 1, 1], [0], [0]>} : vector<2x8x32xbf16>, vector<2x8x32xbf16>, vector<2x8x8xf32> -> vector<2x8x8xf32>
    "tpu.trace_stop"() : () -> ()
    %267 = arith.addf %266, %188 : vector<2x8x8xf32>
    %cst_98 = arith.constant dense<0xFF800000> : vector<2x8xf32>
    %268 = vector.multi_reduction <maximumf>, %267, %cst_98 [2] : vector<2x8x8xf32> to vector<2x8xf32>
    %269 = vector.shape_cast %268 : vector<2x8xf32> to vector<2x8x1xf32>
    %270 = vector.broadcast %269 : vector<2x8x1xf32> to vector<2x8x8xf32>
    %271 = arith.subf %267, %270 : vector<2x8x8xf32>
    %272 = math.exp %271 : vector<2x8x8xf32>
    %cst_99 = arith.constant dense<0.000000e+00> : vector<2x8xf32>
    %273 = vector.multi_reduction <add>, %272, %cst_99 [2] : vector<2x8x8xf32> to vector<2x8xf32>
    %274 = vector.shape_cast %273 : vector<2x8xf32> to vector<2x8x1xf32>
    %275 = tpu.reciprocal %274 {approx = true} : vector<2x8x1xf32> -> vector<2x8x1xf32>
    %276 = vector.broadcast %275 : vector<2x8x1xf32> to vector<2x8x8xf32>
    %277 = arith.mulf %272, %276 : vector<2x8x8xf32>
    %278 = arith.truncf %277 : vector<2x8x8xf32> to vector<2x8x8xbf16>
    %279 = vector.extract_strided_slice %223 {offsets = [0, 0, 64], sizes = [2, 8, 32], strides = [1, 1, 1]} : vector<2x8x128xbf16> to vector<2x8x32xbf16>
    "tpu.trace_start"() <{level = 10 : i32, message = "bqk,bkd->bqd"}> : () -> ()
    %cst_100 = arith.constant dense<0.000000e+00> : vector<2x8x32xf32>
    %280 = tpu.matmul %278, %279, %cst_100 {dimension_numbers = #tpu.dot_dimension_numbers<[2], [1], [1], [2], [0, 0, 0, 1, 1, 2], [0], [0]>} : vector<2x8x8xbf16>, vector<2x8x32xbf16>, vector<2x8x32xf32> -> vector<2x8x32xf32>
    "tpu.trace_stop"() : () -> ()
    %281 = vector.shape_cast %280 : vector<2x8x32xf32> to vector<16x32xf32>
    %282 = arith.truncf %281 : vector<16x32xf32> to vector<16x32xbf16>
    %c0_101 = arith.constant 0 : index
    %c64_102 = arith.constant 64 : index
    %283 = vector.load %arg39[%c0_101, %c64_102] : memref<16x128xbf16, #tpu.memory_space<vmem>>, vector<16x32xbf16>
    tpu.vector_store %arg39[%c0_101, %c64_102], %282 {strides = array<i32>} : memref<16x128xbf16, #tpu.memory_space<vmem>>, vector<16x32xbf16>,
    %284 = vector.extract_strided_slice %221 {offsets = [0, 0, 96], sizes = [2, 8, 32], strides = [1, 1, 1]} : vector<2x8x128xbf16> to vector<2x8x32xbf16>
    %285 = vector.extract_strided_slice %222 {offsets = [0, 0, 96], sizes = [2, 8, 32], strides = [1, 1, 1]} : vector<2x8x128xbf16> to vector<2x8x32xbf16>
    "tpu.trace_start"() <{level = 10 : i32, message = "bqd,bkd->bqk"}> : () -> ()
    %cst_103 = arith.constant dense<0.000000e+00> : vector<2x8x8xf32>
    %286 = tpu.matmul %284, %285, %cst_103 {dimension_numbers = #tpu.dot_dimension_numbers<[2], [2], [1], [1], [0, 0, 0, 1, 1, 1], [0], [0]>} : vector<2x8x32xbf16>, vector<2x8x32xbf16>, vector<2x8x8xf32> -> vector<2x8x8xf32>
    "tpu.trace_stop"() : () -> ()
    %287 = arith.addf %286, %188 : vector<2x8x8xf32>
    %cst_104 = arith.constant dense<0xFF800000> : vector<2x8xf32>
    %288 = vector.multi_reduction <maximumf>, %287, %cst_104 [2] : vector<2x8x8xf32> to vector<2x8xf32>
    %289 = vector.shape_cast %288 : vector<2x8xf32> to vector<2x8x1xf32>
    %290 = vector.broadcast %289 : vector<2x8x1xf32> to vector<2x8x8xf32>
    %291 = arith.subf %287, %290 : vector<2x8x8xf32>
    %292 = math.exp %291 : vector<2x8x8xf32>
    %cst_105 = arith.constant dense<0.000000e+00> : vector<2x8xf32>
    %293 = vector.multi_reduction <add>, %292, %cst_105 [2] : vector<2x8x8xf32> to vector<2x8xf32>
    %294 = vector.shape_cast %293 : vector<2x8xf32> to vector<2x8x1xf32>
    %295 = tpu.reciprocal %294 {approx = true} : vector<2x8x1xf32> -> vector<2x8x1xf32>
    %296 = vector.broadcast %295 : vector<2x8x1xf32> to vector<2x8x8xf32>
    %297 = arith.mulf %292, %296 : vector<2x8x8xf32>
    %298 = arith.truncf %297 : vector<2x8x8xf32> to vector<2x8x8xbf16>
    %299 = vector.extract_strided_slice %223 {offsets = [0, 0, 96], sizes = [2, 8, 32], strides = [1, 1, 1]} : vector<2x8x128xbf16> to vector<2x8x32xbf16>
    "tpu.trace_start"() <{level = 10 : i32, message = "bqk,bkd->bqd"}> : () -> ()
    %cst_106 = arith.constant dense<0.000000e+00> : vector<2x8x32xf32>
    %300 = tpu.matmul %298, %299, %cst_106 {dimension_numbers = #tpu.dot_dimension_numbers<[2], [1], [1], [2], [0, 0, 0, 1, 1, 2], [0], [0]>} : vector<2x8x8xbf16>, vector<2x8x32xbf16>, vector<2x8x32xf32> -> vector<2x8x32xf32>
    "tpu.trace_stop"() : () -> ()
    %301 = vector.shape_cast %300 : vector<2x8x32xf32> to vector<16x32xf32>
    %302 = arith.truncf %301 : vector<16x32xf32> to vector<16x32xbf16>
    %c0_107 = arith.constant 0 : index
    %c96_108 = arith.constant 96 : index
    %303 = vector.load %arg39[%c0_107, %c96_108] : memref<16x128xbf16, #tpu.memory_space<vmem>>, vector<16x32xbf16>
    tpu.vector_store %arg39[%c0_107, %c96_108], %302 {strides = array<i32>} : memref<16x128xbf16, #tpu.memory_space<vmem>>, vector<16x32xbf16>,
    %c0_109 = arith.constant 0 : index
    %c0_110 = arith.constant 0 : index
    %304 = vector.load %arg39[%c0_109, %c0_110] : memref<16x128xbf16, #tpu.memory_space<vmem>>, vector<16x128xbf16>
    %305 = arith.index_cast %arg1 : i32 to index
    %c0_111 = arith.constant 0 : index
    %c0_112 = arith.constant 0 : index
    %306 = vector.load %arg23[%305, %c0_111, %c0_112] : memref<2x128x128xbf16, #tpu.memory_space<vmem>>, vector<1x128x128xbf16>
    %307 = vector.shape_cast %306 : vector<1x128x128xbf16> to vector<128x128xbf16>
    %cst_113 = arith.constant dense<0.000000e+00> : vector<16x128xf32>
    %308 = tpu.matmul %304, %307, %cst_113 {dimension_numbers = #tpu.dot_dimension_numbers<[1], [0], [0], [1], [0, 0, 1, 1], [], []>} : vector<16x128xbf16>, vector<128x128xbf16>, vector<16x128xf32> -> vector<16x128xf32>
    %309 = arith.index_cast %arg1 : i32 to index
    %c0_114 = arith.constant 0 : index
    %c0_115 = arith.constant 0 : index
    %310 = vector.load %arg24[%309, %c0_114, %c0_115] : memref<2x1x128xf32, #tpu.memory_space<vmem>>, vector<1x1x128xf32>
    %311 = vector.shape_cast %310 : vector<1x1x128xf32> to vector<1x128xf32>
    %312 = vector.broadcast %311 : vector<1x128xf32> to vector<16x128xf32>
    %313 = arith.addf %308, %312 : vector<16x128xf32>
    %314 = arith.addf %154, %313 : vector<16x128xf32>
    %315 = arith.index_cast %arg1 : i32 to index
    %c0_116 = arith.constant 0 : index
    %c0_117 = arith.constant 0 : index
    %316 = vector.load %arg25[%315, %c0_116, %c0_117] : memref<2x1x128xf32, #tpu.memory_space<vmem>>, vector<1x1x128xf32>
    %317 = vector.shape_cast %316 : vector<1x1x128xf32> to vector<1x128xf32>
    %318 = arith.index_cast %arg1 : i32 to index
    %c0_118 = arith.constant 0 : index
    %c0_119 = arith.constant 0 : index
    %319 = vector.load %arg26[%318, %c0_118, %c0_119] : memref<2x1x128xf32, #tpu.memory_space<vmem>>, vector<1x1x128xf32>
    %320 = vector.shape_cast %319 : vector<1x1x128xf32> to vector<1x128xf32>
    %cst_120 = arith.constant dense<0.000000e+00> : vector<16xf32>
    %321 = vector.multi_reduction <add>, %314, %cst_120 [1] : vector<16x128xf32> to vector<16xf32>
    %322 = vector.shape_cast %321 : vector<16xf32> to vector<16x1xf32>
    %cst_121 = arith.constant 1.280000e+02 : f32
    %323 = vector.broadcast %cst_121 : f32 to vector<16x1xf32>
    %324 = arith.divf %322, %323 : vector<16x1xf32>
    %325 = vector.broadcast %324 : vector<16x1xf32> to vector<16x128xf32>
    %326 = arith.subf %314, %325 : vector<16x128xf32>
    %327 = arith.mulf %326, %326 : vector<16x128xf32>
    %cst_122 = arith.constant dense<0.000000e+00> : vector<16xf32>
    %328 = vector.multi_reduction <add>, %327, %cst_122 [1] : vector<16x128xf32> to vector<16xf32>
    %329 = vector.shape_cast %328 : vector<16xf32> to vector<16x1xf32>
    %cst_123 = arith.constant 1.280000e+02 : f32
    %330 = vector.broadcast %cst_123 : f32 to vector<16x1xf32>
    %331 = arith.divf %329, %330 : vector<16x1xf32>
    %332 = vector.broadcast %324 : vector<16x1xf32> to vector<16x128xf32>
    %333 = arith.subf %314, %332 : vector<16x128xf32>
    %cst_124 = arith.constant 9.99999974E-6 : f32
    %334 = vector.broadcast %cst_124 : f32 to vector<16x1xf32>
    %335 = arith.addf %331, %334 : vector<16x1xf32>
    %336 = math.rsqrt %335 : vector<16x1xf32>
    %337 = vector.broadcast %336 : vector<16x1xf32> to vector<16x128xf32>
    %338 = arith.mulf %333, %337 : vector<16x128xf32>
    %339 = vector.broadcast %317 : vector<1x128xf32> to vector<16x128xf32>
    %340 = arith.mulf %338, %339 : vector<16x128xf32>
    %341 = vector.broadcast %320 : vector<1x128xf32> to vector<16x128xf32>
    %342 = arith.addf %340, %341 : vector<16x128xf32>
    %343 = arith.truncf %342 : vector<16x128xf32> to vector<16x128xbf16>
    %344 = arith.index_cast %arg1 : i32 to index
    %c0_125 = arith.constant 0 : index
    %c0_126 = arith.constant 0 : index
    %345 = vector.load %arg27[%344, %c0_125, %c0_126] : memref<2x128x512xbf16, #tpu.memory_space<vmem>>, vector<1x128x512xbf16>
    %346 = vector.shape_cast %345 : vector<1x128x512xbf16> to vector<128x512xbf16>
    %cst_127 = arith.constant dense<0.000000e+00> : vector<16x512xf32>
    %347 = tpu.matmul %343, %346, %cst_127 {dimension_numbers = #tpu.dot_dimension_numbers<[1], [0], [0], [1], [0, 0, 1, 1], [], []>} : vector<16x128xbf16>, vector<128x512xbf16>, vector<16x512xf32> -> vector<16x512xf32>
    %348 = arith.index_cast %arg1 : i32 to index
    %c0_128 = arith.constant 0 : index
    %c0_129 = arith.constant 0 : index
    %349 = vector.load %arg28[%348, %c0_128, %c0_129] : memref<2x1x512xf32, #tpu.memory_space<vmem>>, vector<1x1x512xf32>
    %350 = vector.shape_cast %349 : vector<1x1x512xf32> to vector<1x512xf32>
    %351 = vector.broadcast %350 : vector<1x512xf32> to vector<16x512xf32>
    %352 = arith.addf %347, %351 : vector<16x512xf32>
    %353 = arith.mulf %352, %352 : vector<16x512xf32>
    %354 = arith.mulf %352, %353 : vector<16x512xf32>
    %cst_130 = arith.constant 4.471500e-02 : f32
    %355 = vector.broadcast %cst_130 : f32 to vector<16x512xf32>
    %356 = arith.mulf %355, %354 : vector<16x512xf32>
    %357 = arith.addf %352, %356 : vector<16x512xf32>
    %cst_131 = arith.constant 0.797884583 : f32
    %358 = vector.broadcast %cst_131 : f32 to vector<16x512xf32>
    %359 = arith.mulf %358, %357 : vector<16x512xf32>
    %360 = math.tanh %359 : vector<16x512xf32>
    %cst_132 = arith.constant 1.000000e+00 : f32
    %361 = vector.broadcast %cst_132 : f32 to vector<16x512xf32>
    %362 = arith.addf %361, %360 : vector<16x512xf32>
    %cst_133 = arith.constant 5.000000e-01 : f32
    %363 = vector.broadcast %cst_133 : f32 to vector<16x512xf32>
    %364 = arith.mulf %363, %362 : vector<16x512xf32>
    %365 = arith.mulf %352, %364 : vector<16x512xf32>
    %366 = arith.truncf %365 : vector<16x512xf32> to vector<16x512xbf16>
    %367 = arith.index_cast %arg1 : i32 to index
    %c0_134 = arith.constant 0 : index
    %c0_135 = arith.constant 0 : index
    %368 = vector.load %arg29[%367, %c0_134, %c0_135] : memref<2x512x128xbf16, #tpu.memory_space<vmem>>, vector<1x512x128xbf16>
    %369 = vector.shape_cast %368 : vector<1x512x128xbf16> to vector<512x128xbf16>
    %cst_136 = arith.constant dense<0.000000e+00> : vector<16x128xf32>
    %370 = tpu.matmul %366, %369, %cst_136 {dimension_numbers = #tpu.dot_dimension_numbers<[1], [0], [0], [1], [0, 0, 1, 1], [], []>} : vector<16x512xbf16>, vector<512x128xbf16>, vector<16x128xf32> -> vector<16x128xf32>
    %371 = arith.index_cast %arg1 : i32 to index
    %c0_137 = arith.constant 0 : index
    %c0_138 = arith.constant 0 : index
    %372 = vector.load %arg30[%371, %c0_137, %c0_138] : memref<2x1x128xf32, #tpu.memory_space<vmem>>, vector<1x1x128xf32>
    %373 = vector.shape_cast %372 : vector<1x1x128xf32> to vector<1x128xf32>
    %374 = vector.broadcast %373 : vector<1x128xf32> to vector<16x128xf32>
    %375 = arith.addf %370, %374 : vector<16x128xf32>
    %376 = arith.addf %314, %375 : vector<16x128xf32>
    %c0_139 = arith.constant 0 : index
    %c0_140 = arith.constant 0 : index
    %377 = vector.load %arg38[%c0_139, %c0_140] : memref<16x128xf32, #tpu.memory_space<vmem>>, vector<16x128xf32>
    tpu.vector_store %arg38[%c0_139, %c0_140], %376 {strides = array<i32>} : memref<16x128xf32, #tpu.memory_space<vmem>>, vector<16x128xf32>,
    %c1_i32 = arith.constant 1 : i32
    %378 = arith.cmpi eq, %arg1, %c1_i32 : i32
    %379 = arith.extui %378 : i1 to i32
    %c0_i32_141 = arith.constant 0 : i32
    %380 = arith.cmpi ne, %379, %c0_i32_141 : i32
    scf.if %380 {
      %c0_142 = arith.constant 0 : index
      %c0_143 = arith.constant 0 : index
      %381 = vector.load %arg31[%c0_142, %c0_143] : memref<1x128xf32, #tpu.memory_space<vmem>>, vector<1x128xf32>
      %c0_144 = arith.constant 0 : index
      %c0_145 = arith.constant 0 : index
      %382 = vector.load %arg32[%c0_144, %c0_145] : memref<1x128xf32, #tpu.memory_space<vmem>>, vector<1x128xf32>
      %cst_146 = arith.constant dense<0.000000e+00> : vector<16xf32>
      %383 = vector.multi_reduction <add>, %376, %cst_146 [1] : vector<16x128xf32> to vector<16xf32>
      %384 = vector.shape_cast %383 : vector<16xf32> to vector<16x1xf32>
      %cst_147 = arith.constant 1.280000e+02 : f32
      %385 = vector.broadcast %cst_147 : f32 to vector<16x1xf32>
      %386 = arith.divf %384, %385 : vector<16x1xf32>
      %387 = vector.broadcast %386 : vector<16x1xf32> to vector<16x128xf32>
      %388 = arith.subf %376, %387 : vector<16x128xf32>
      %389 = arith.mulf %388, %388 : vector<16x128xf32>
      %cst_148 = arith.constant dense<0.000000e+00> : vector<16xf32>
      %390 = vector.multi_reduction <add>, %389, %cst_148 [1] : vector<16x128xf32> to vector<16xf32>
      %391 = vector.shape_cast %390 : vector<16xf32> to vector<16x1xf32>
      %cst_149 = arith.constant 1.280000e+02 : f32
      %392 = vector.broadcast %cst_149 : f32 to vector<16x1xf32>
      %393 = arith.divf %391, %392 : vector<16x1xf32>
      %394 = vector.broadcast %386 : vector<16x1xf32> to vector<16x128xf32>
      %395 = arith.subf %376, %394 : vector<16x128xf32>
      %cst_150 = arith.constant 9.99999974E-6 : f32
      %396 = vector.broadcast %cst_150 : f32 to vector<16x1xf32>
      %397 = arith.addf %393, %396 : vector<16x1xf32>
      %398 = math.rsqrt %397 : vector<16x1xf32>
      %399 = vector.broadcast %398 : vector<16x1xf32> to vector<16x128xf32>
      %400 = arith.mulf %395, %399 : vector<16x128xf32>
      %401 = vector.broadcast %381 : vector<1x128xf32> to vector<16x128xf32>
      %402 = arith.mulf %400, %401 : vector<16x128xf32>
      %403 = vector.broadcast %382 : vector<1x128xf32> to vector<16x128xf32>
      %404 = arith.addf %402, %403 : vector<16x128xf32>
      %c0_151 = arith.constant 0 : index
      %c0_152 = arith.constant 0 : index
      %405 = vector.load %arg33[%c0_151, %c0_152] : memref<1x128xf32, #tpu.memory_space<vmem>>, vector<1x128xf32>
      %c0_153 = arith.constant 0 : index
      %c0_154 = arith.constant 0 : index
      %406 = vector.load %arg34[%c0_153, %c0_154] : memref<1x128xf32, #tpu.memory_space<vmem>>, vector<1x128xf32>
      %cst_155 = arith.constant dense<0.000000e+00> : vector<16xf32>
      %407 = vector.multi_reduction <add>, %404, %cst_155 [1] : vector<16x128xf32> to vector<16xf32>
      %408 = vector.shape_cast %407 : vector<16xf32> to vector<16x1xf32>
      %cst_156 = arith.constant 1.280000e+02 : f32
      %409 = vector.broadcast %cst_156 : f32 to vector<16x1xf32>
      %410 = arith.divf %408, %409 : vector<16x1xf32>
      %411 = vector.broadcast %410 : vector<16x1xf32> to vector<16x128xf32>
      %412 = arith.subf %404, %411 : vector<16x128xf32>
      %413 = arith.mulf %412, %412 : vector<16x128xf32>
      %cst_157 = arith.constant dense<0.000000e+00> : vector<16xf32>
      %414 = vector.multi_reduction <add>, %413, %cst_157 [1] : vector<16x128xf32> to vector<16xf32>
      %415 = vector.shape_cast %414 : vector<16xf32> to vector<16x1xf32>
      %cst_158 = arith.constant 1.280000e+02 : f32
      %416 = vector.broadcast %cst_158 : f32 to vector<16x1xf32>
      %417 = arith.divf %415, %416 : vector<16x1xf32>
      %418 = vector.broadcast %410 : vector<16x1xf32> to vector<16x128xf32>
      %419 = arith.subf %404, %418 : vector<16x128xf32>
      %cst_159 = arith.constant 9.99999974E-6 : f32
      %420 = vector.broadcast %cst_159 : f32 to vector<16x1xf32>
      %421 = arith.addf %417, %420 : vector<16x1xf32>
      %422 = math.rsqrt %421 : vector<16x1xf32>
      %423 = vector.broadcast %422 : vector<16x1xf32> to vector<16x128xf32>
      %424 = arith.mulf %419, %423 : vector<16x128xf32>
      %425 = vector.broadcast %405 : vector<1x128xf32> to vector<16x128xf32>
      %426 = arith.mulf %424, %425 : vector<16x128xf32>
      %427 = vector.broadcast %406 : vector<1x128xf32> to vector<16x128xf32>
      %428 = arith.addf %426, %427 : vector<16x128xf32>
      %429 = arith.truncf %428 : vector<16x128xf32> to vector<16x128xbf16>
      %c0_160 = arith.constant 0 : index
      %c0_161 = arith.constant 0 : index
      %430 = vector.load %arg35[%c0_160, %c0_161] : memref<128x128xbf16, #tpu.memory_space<vmem>>, vector<128x128xbf16>
      %cst_162 = arith.constant dense<0.000000e+00> : vector<16x128xf32>
      %431 = tpu.matmul %429, %430, %cst_162 {dimension_numbers = #tpu.dot_dimension_numbers<[1], [0], [0], [1], [0, 0, 1, 1], [], []>} : vector<16x128xbf16>, vector<128x128xbf16>, vector<16x128xf32> -> vector<16x128xf32>
      %c0_163 = arith.constant 0 : index
      %c0_164 = arith.constant 0 : index
      %432 = vector.load %arg36[%c0_163, %c0_164] : memref<1x128xf32, #tpu.memory_space<vmem>>, vector<1x128xf32>
      %433 = vector.broadcast %432 : vector<1x128xf32> to vector<16x128xf32>
      %434 = arith.addf %431, %433 : vector<16x128xf32>
      %435 = vector.shape_cast %434 : vector<16x128xf32> to vector<2x8x128xf32>
      %c0_165 = arith.constant 0 : index
      %c0_166 = arith.constant 0 : index
      %c0_167 = arith.constant 0 : index
      %436 = vector.load %arg37[%c0_165, %c0_166, %c0_167] : memref<2x8x128xf32, #tpu.memory_space<vmem>>, vector<2x8x128xf32>
      tpu.vector_store %arg37[%c0_165, %c0_166, %c0_167], %435 {strides = array<i32>} : memref<2x8x128xf32, #tpu.memory_space<vmem>>, vector<2x8x128xf32>,
    } else {
    }
    return
  }
  func.func @transform_0(%arg0: i32, %arg1: i32) -> (i32, i32) {
    %c0_i32 = arith.constant 0 : i32
    %c0_i32_0 = arith.constant 0 : i32
    %c0_i32_1 = arith.constant 0 : i32
    return %c0_i32, %c0_i32_0 : i32, i32
  }
  func.func @transform_1(%arg0: i32, %arg1: i32) -> (i32, i32, i32) {
    %c0_i32 = arith.constant 0 : i32
    %c0_i32_0 = arith.constant 0 : i32
    %c0_i32_1 = arith.constant 0 : i32
    return %arg0, %c0_i32, %c0_i32_0 : i32, i32, i32
  }
  func.func @transform_2(%arg0: i32, %arg1: i32) -> (i32, i32, i32) {
    %c0_i32 = arith.constant 0 : i32
    %c0_i32_0 = arith.constant 0 : i32
    %c0_i32_1 = arith.constant 0 : i32
    return %arg0, %c0_i32, %c0_i32_0 : i32, i32, i32
  }
  func.func @transform_3(%arg0: i32, %arg1: i32) -> (i32, i32, i32) {
    %c0_i32 = arith.constant 0 : i32
    %c0_i32_0 = arith.constant 0 : i32
    %c0_i32_1 = arith.constant 0 : i32
    %c0_i32_2 = arith.constant 0 : i32
    return %c0_i32, %c0_i32_0, %c0_i32_1 : i32, i32, i32
  }
  func.func @transform_4(%arg0: i32, %arg1: i32) -> (i32, i32, i32) {
    %c0_i32 = arith.constant 0 : i32
    %c0_i32_0 = arith.constant 0 : i32
    %c0_i32_1 = arith.constant 0 : i32
    %c0_i32_2 = arith.constant 0 : i32
    return %c0_i32, %c0_i32_0, %c0_i32_1 : i32, i32, i32
  }
  func.func @transform_5(%arg0: i32, %arg1: i32) -> (i32, i32, i32) {
    %c0_i32 = arith.constant 0 : i32
    %c0_i32_0 = arith.constant 0 : i32
    %c0_i32_1 = arith.constant 0 : i32
    %c0_i32_2 = arith.constant 0 : i32
    return %c0_i32, %c0_i32_0, %c0_i32_1 : i32, i32, i32
  }
  func.func @transform_6(%arg0: i32, %arg1: i32) -> (i32, i32, i32) {
    %c0_i32 = arith.constant 0 : i32
    %c0_i32_0 = arith.constant 0 : i32
    %c0_i32_1 = arith.constant 0 : i32
    %c0_i32_2 = arith.constant 0 : i32
    return %c0_i32, %c0_i32_0, %c0_i32_1 : i32, i32, i32
  }
  func.func @transform_7(%arg0: i32, %arg1: i32) -> (i32, i32, i32) {
    %c0_i32 = arith.constant 0 : i32
    %c0_i32_0 = arith.constant 0 : i32
    %c0_i32_1 = arith.constant 0 : i32
    %c0_i32_2 = arith.constant 0 : i32
    return %c0_i32, %c0_i32_0, %c0_i32_1 : i32, i32, i32
  }
  func.func @transform_8(%arg0: i32, %arg1: i32) -> (i32, i32, i32) {
    %c0_i32 = arith.constant 0 : i32
    %c0_i32_0 = arith.constant 0 : i32
    %c0_i32_1 = arith.constant 0 : i32
    %c0_i32_2 = arith.constant 0 : i32
    return %c0_i32, %c0_i32_0, %c0_i32_1 : i32, i32, i32
  }
  func.func @transform_9(%arg0: i32, %arg1: i32) -> (i32, i32, i32) {
    %c0_i32 = arith.constant 0 : i32
    %c0_i32_0 = arith.constant 0 : i32
    %c0_i32_1 = arith.constant 0 : i32
    %c0_i32_2 = arith.constant 0 : i32
    return %c0_i32, %c0_i32_0, %c0_i32_1 : i32, i32, i32
  }
  func.func @transform_10(%arg0: i32, %arg1: i32) -> (i32, i32, i32) {
    %c0_i32 = arith.constant 0 : i32
    %c0_i32_0 = arith.constant 0 : i32
    %c0_i32_1 = arith.constant 0 : i32
    %c0_i32_2 = arith.constant 0 : i32
    return %c0_i32, %c0_i32_0, %c0_i32_1 : i32, i32, i32
  }
  func.func @transform_11(%arg0: i32, %arg1: i32) -> (i32, i32, i32) {
    %c0_i32 = arith.constant 0 : i32
    %c0_i32_0 = arith.constant 0 : i32
    %c0_i32_1 = arith.constant 0 : i32
    %c0_i32_2 = arith.constant 0 : i32
    return %c0_i32, %c0_i32_0, %c0_i32_1 : i32, i32, i32
  }
  func.func @transform_12(%arg0: i32, %arg1: i32) -> (i32, i32, i32) {
    %c0_i32 = arith.constant 0 : i32
    %c0_i32_0 = arith.constant 0 : i32
    %c0_i32_1 = arith.constant 0 : i32
    %c0_i32_2 = arith.constant 0 : i32
    return %c0_i32, %c0_i32_0, %c0_i32_1 : i32, i32, i32
  }
  func.func @transform_13(%arg0: i32, %arg1: i32) -> (i32, i32, i32) {
    %c0_i32 = arith.constant 0 : i32
    %c0_i32_0 = arith.constant 0 : i32
    %c0_i32_1 = arith.constant 0 : i32
    %c0_i32_2 = arith.constant 0 : i32
    return %c0_i32, %c0_i32_0, %c0_i32_1 : i32, i32, i32
  }
  func.func @transform_14(%arg0: i32, %arg1: i32) -> (i32, i32, i32) {
    %c0_i32 = arith.constant 0 : i32
    %c0_i32_0 = arith.constant 0 : i32
    %c0_i32_1 = arith.constant 0 : i32
    %c0_i32_2 = arith.constant 0 : i32
    return %c0_i32, %c0_i32_0, %c0_i32_1 : i32, i32, i32
  }
  func.func @transform_15(%arg0: i32, %arg1: i32) -> (i32, i32, i32) {
    %c0_i32 = arith.constant 0 : i32
    %c0_i32_0 = arith.constant 0 : i32
    %c0_i32_1 = arith.constant 0 : i32
    %c0_i32_2 = arith.constant 0 : i32
    return %c0_i32, %c0_i32_0, %c0_i32_1 : i32, i32, i32
  }
  func.func @transform_16(%arg0: i32, %arg1: i32) -> (i32, i32, i32) {
    %c0_i32 = arith.constant 0 : i32
    %c0_i32_0 = arith.constant 0 : i32
    %c0_i32_1 = arith.constant 0 : i32
    %c0_i32_2 = arith.constant 0 : i32
    return %c0_i32, %c0_i32_0, %c0_i32_1 : i32, i32, i32
  }
  func.func @transform_17(%arg0: i32, %arg1: i32) -> (i32, i32, i32) {
    %c0_i32 = arith.constant 0 : i32
    %c0_i32_0 = arith.constant 0 : i32
    %c0_i32_1 = arith.constant 0 : i32
    %c0_i32_2 = arith.constant 0 : i32
    return %c0_i32, %c0_i32_0, %c0_i32_1 : i32, i32, i32
  }
  func.func @transform_18(%arg0: i32, %arg1: i32) -> (i32, i32, i32) {
    %c0_i32 = arith.constant 0 : i32
    %c0_i32_0 = arith.constant 0 : i32
    %c0_i32_1 = arith.constant 0 : i32
    %c0_i32_2 = arith.constant 0 : i32
    return %c0_i32, %c0_i32_0, %c0_i32_1 : i32, i32, i32
  }
  func.func @transform_19(%arg0: i32, %arg1: i32) -> (i32, i32, i32) {
    %c0_i32 = arith.constant 0 : i32
    %c0_i32_0 = arith.constant 0 : i32
    %c0_i32_1 = arith.constant 0 : i32
    %c0_i32_2 = arith.constant 0 : i32
    return %c0_i32, %c0_i32_0, %c0_i32_1 : i32, i32, i32
  }
  func.func @transform_20(%arg0: i32, %arg1: i32) -> (i32, i32, i32) {
    %c0_i32 = arith.constant 0 : i32
    %c0_i32_0 = arith.constant 0 : i32
    %c0_i32_1 = arith.constant 0 : i32
    %c0_i32_2 = arith.constant 0 : i32
    return %c0_i32, %c0_i32_0, %c0_i32_1 : i32, i32, i32
  }
  func.func @transform_21(%arg0: i32, %arg1: i32) -> (i32, i32, i32) {
    %c0_i32 = arith.constant 0 : i32
    %c0_i32_0 = arith.constant 0 : i32
    %c0_i32_1 = arith.constant 0 : i32
    %c0_i32_2 = arith.constant 0 : i32
    return %c0_i32, %c0_i32_0, %c0_i32_1 : i32, i32, i32
  }
  func.func @transform_22(%arg0: i32, %arg1: i32) -> (i32, i32, i32) {
    %c0_i32 = arith.constant 0 : i32
    %c0_i32_0 = arith.constant 0 : i32
    %c0_i32_1 = arith.constant 0 : i32
    %c0_i32_2 = arith.constant 0 : i32
    return %c0_i32, %c0_i32_0, %c0_i32_1 : i32, i32, i32
  }
  func.func @transform_23(%arg0: i32, %arg1: i32) -> (i32, i32, i32) {
    %c0_i32 = arith.constant 0 : i32
    %c0_i32_0 = arith.constant 0 : i32
    %c0_i32_1 = arith.constant 0 : i32
    %c0_i32_2 = arith.constant 0 : i32
    return %c0_i32, %c0_i32_0, %c0_i32_1 : i32, i32, i32
  }
  func.func @transform_24(%arg0: i32, %arg1: i32) -> (i32, i32, i32) {
    %c0_i32 = arith.constant 0 : i32
    %c0_i32_0 = arith.constant 0 : i32
    %c0_i32_1 = arith.constant 0 : i32
    %c0_i32_2 = arith.constant 0 : i32
    return %c0_i32, %c0_i32_0, %c0_i32_1 : i32, i32, i32
  }
  func.func @transform_25(%arg0: i32, %arg1: i32) -> (i32, i32, i32) {
    %c0_i32 = arith.constant 0 : i32
    %c0_i32_0 = arith.constant 0 : i32
    %c0_i32_1 = arith.constant 0 : i32
    %c0_i32_2 = arith.constant 0 : i32
    return %c0_i32, %c0_i32_0, %c0_i32_1 : i32, i32, i32
  }
  func.func @transform_26(%arg0: i32, %arg1: i32) -> (i32, i32, i32) {
    %c0_i32 = arith.constant 0 : i32
    %c0_i32_0 = arith.constant 0 : i32
    %c0_i32_1 = arith.constant 0 : i32
    %c0_i32_2 = arith.constant 0 : i32
    return %c0_i32, %c0_i32_0, %c0_i32_1 : i32, i32, i32
  }
  func.func @transform_27(%arg0: i32, %arg1: i32) -> (i32, i32, i32) {
    %c0_i32 = arith.constant 0 : i32
    %c0_i32_0 = arith.constant 0 : i32
    %c0_i32_1 = arith.constant 0 : i32
    %c0_i32_2 = arith.constant 0 : i32
    return %c0_i32, %c0_i32_0, %c0_i32_1 : i32, i32, i32
  }
  func.func @transform_28(%arg0: i32, %arg1: i32) -> (i32, i32, i32) {
    %c0_i32 = arith.constant 0 : i32
    %c0_i32_0 = arith.constant 0 : i32
    %c0_i32_1 = arith.constant 0 : i32
    %c0_i32_2 = arith.constant 0 : i32
    return %c0_i32, %c0_i32_0, %c0_i32_1 : i32, i32, i32
  }
  func.func @transform_29(%arg0: i32, %arg1: i32) -> (i32, i32) {
    %c0_i32 = arith.constant 0 : i32
    %c0_i32_0 = arith.constant 0 : i32
    %c0_i32_1 = arith.constant 0 : i32
    return %c0_i32, %c0_i32_0 : i32, i32
  }
  func.func @transform_30(%arg0: i32, %arg1: i32) -> (i32, i32) {
    %c0_i32 = arith.constant 0 : i32
    %c0_i32_0 = arith.constant 0 : i32
    %c0_i32_1 = arith.constant 0 : i32
    return %c0_i32, %c0_i32_0 : i32, i32
  }
  func.func @transform_31(%arg0: i32, %arg1: i32) -> (i32, i32) {
    %c0_i32 = arith.constant 0 : i32
    %c0_i32_0 = arith.constant 0 : i32
    %c0_i32_1 = arith.constant 0 : i32
    return %c0_i32, %c0_i32_0 : i32, i32
  }
  func.func @transform_32(%arg0: i32, %arg1: i32) -> (i32, i32) {
    %c0_i32 = arith.constant 0 : i32
    %c0_i32_0 = arith.constant 0 : i32
    %c0_i32_1 = arith.constant 0 : i32
    return %c0_i32, %c0_i32_0 : i32, i32
  }
  func.func @transform_33(%arg0: i32, %arg1: i32) -> (i32, i32) {
    %c0_i32 = arith.constant 0 : i32
    %c0_i32_0 = arith.constant 0 : i32
    %c0_i32_1 = arith.constant 0 : i32
    return %c0_i32, %c0_i32_0 : i32, i32
  }
  func.func @transform_34(%arg0: i32, %arg1: i32) -> (i32, i32) {
    %c0_i32 = arith.constant 0 : i32
    %c0_i32_0 = arith.constant 0 : i32
    %c0_i32_1 = arith.constant 0 : i32
    return %c0_i32, %c0_i32_0 : i32, i32
  }
  func.func @transform_35(%arg0: i32, %arg1: i32) -> (i32, i32, i32) {
    %c0_i32 = arith.constant 0 : i32
    %c0_i32_0 = arith.constant 0 : i32
    %c0_i32_1 = arith.constant 0 : i32
    return %arg0, %c0_i32, %c0_i32_0 : i32, i32, i32
  }
}

</mosaic_0001>

<llo_original>
// kernel: voxel_decoder_forward.1
$region0: #{voxel_decoder_forward.1}
  #allocation0 [shape = 'u32[]', space=smem, size = 0x4, offset = 0x4, fixed_abs, tag = 'smem constant byte address 0x4 - core index']
  #allocation1 [shape = 'u32[144,128]{1,0:T(1,128)}', space=vmem, size = 0x12000, scoped, tag = 'internal scratch']
  #allocation2 [shape = 'f32[16,128]{1,0:T(8,128)}', space=vmem, size = 0x2000, scoped, tag = 'scratch operand']
  #allocation3 [shape = 'bf16[16,128]{1,0:T(8,128)(2,1)}', space=vmem, size = 0x1000, scoped, tag = 'scratch operand']
  %s0 = inlined_call_operand.smem [shape: u32[36], index: -1, kind: input, shape index: {}]
  %s1 = sld [smem:[%s0]]
  %s2 = scalar_lea.smem %s0, 1
  %s3 = sld [smem:[%s2]]
  %s4 = scalar_lea.smem %s0, 2
  %s5 = sld [smem:[%s4]]
  %s6 = scalar_lea.smem %s0, 3
  %s7 = sld [smem:[%s6]]
  %s8 = scalar_lea.smem %s0, 4
  %s9 = sld [smem:[%s8]]
  %s10 = scalar_lea.smem %s0, 5
  %s11 = sld [smem:[%s10]]
  %s12 = scalar_lea.smem %s0, 6
  %s13 = sld [smem:[%s12]]
  %s14 = scalar_lea.smem %s0, 7
  %s15 = sld [smem:[%s14]]
  %s16 = scalar_lea.smem %s0, 8
  %s17 = sld [smem:[%s16]]
  %s18 = scalar_lea.smem %s0, 9
  %s19 = sld [smem:[%s18]]
  %s20 = scalar_lea.smem %s0, 10
  %s21 = sld [smem:[%s20]]
  %s22 = scalar_lea.smem %s0, 11
  %s23 = sld [smem:[%s22]]
  %s24 = scalar_lea.smem %s0, 12
  %s25 = sld [smem:[%s24]]
  %s26 = scalar_lea.smem %s0, 13
  %s27 = sld [smem:[%s26]]
  %s28 = scalar_lea.smem %s0, 14
  %s29 = sld [smem:[%s28]]
  %s30 = scalar_lea.smem %s0, 15
  %s31 = sld [smem:[%s30]]
  %s32 = scalar_lea.smem %s0, 16
  %s33 = sld [smem:[%s32]]
  %s34 = scalar_lea.smem %s0, 17
  %s35 = sld [smem:[%s34]]
  %s36 = scalar_lea.smem %s0, 18
  %s37 = sld [smem:[%s36]]
  %s38 = scalar_lea.smem %s0, 19
  %s39 = sld [smem:[%s38]]
  %s40 = scalar_lea.smem %s0, 20
  %s41 = sld [smem:[%s40]]
  %s42 = scalar_lea.smem %s0, 21
  %s43 = sld [smem:[%s42]]
  %s44 = scalar_lea.smem %s0, 22
  %s45 = sld [smem:[%s44]]
  %s46 = scalar_lea.smem %s0, 23
  %s47 = sld [smem:[%s46]]
  %s48 = scalar_lea.smem %s0, 24
  %s49 = sld [smem:[%s48]]
  %s50 = scalar_lea.smem %s0, 25
  %s51 = sld [smem:[%s50]]
  %s52 = scalar_lea.smem %s0, 26
  %s53 = sld [smem:[%s52]]
  %s54 = scalar_lea.smem %s0, 27
  %s55 = sld [smem:[%s54]]
  %s56 = scalar_lea.smem %s0, 28
  %s57 = sld [smem:[%s56]]
  %s58 = scalar_lea.smem %s0, 29
  %s59 = sld [smem:[%s58]]
  %s60 = scalar_lea.smem %s0, 30
  %s61 = sld [smem:[%s60]]
  %s62 = scalar_lea.smem %s0, 31
  %s63 = sld [smem:[%s62]]
  %s64 = scalar_lea.smem %s0, 32
  %s65 = sld [smem:[%s64]]
  %s66 = scalar_lea.smem %s0, 33
  %s67 = sld [smem:[%s66]]
  %s68 = scalar_lea.smem %s0, 34
  %s69 = sld [smem:[%s68]]
  %s70 = scalar_lea.smem %s0, 35
  %s71 = sld [smem:[%s70]]
  %s72 = sld [smem:[#allocation0]]
  $region297: #{voxel_decoder_forward.1} parent=0
    _
  %s74 = ssub.s32 1, %s72
  %s75 = scalar_select 0, %s74, %s72
  $region1: #{voxel_decoder_forward.1} parent=0
    #allocation4 [shape = 'u8[4096]{0}', space=vmem, size = 0x1000, scoped, tag = 'input window, operand 0, single buffered']
    #allocation5 [shape = 's32[2]{0}', space=sflag, size = 0x8, scoped, tag = 'scoped memory for voxel_decoder_forward.1']
    #allocation6 [shape = 'u8[1024]{0}', space=vmem, size = 0x400, scoped, tag = 'input window, operand 4, single buffered']
    #allocation7 [shape = 's32[1]{0}', space=sflag, size = 0x4, scoped, tag = 'scoped memory for voxel_decoder_forward.1']
    #allocation8 [shape = 'u8[65536]{0}', space=vmem, size = 0x10000, scoped, tag = 'input window, operand 5, single buffered']
    #allocation9 [shape = 'u8[1024]{0}', space=vmem, size = 0x400, scoped, tag = 'input window, operand 6, single buffered']
    #allocation10 [shape = 's32[1]{0}', space=sflag, size = 0x4, scoped, tag = 'scoped memory for voxel_decoder_forward.1']
    #allocation11 [shape = 'u8[65536]{0}', space=vmem, size = 0x10000, scoped, tag = 'input window, operand 7, single buffered']
    #allocation12 [shape = 'u8[1024]{0}', space=vmem, size = 0x400, scoped, tag = 'input window, operand 8, single buffered']
    #allocation13 [shape = 's32[1]{0}', space=sflag, size = 0x4, scoped, tag = 'scoped memory for voxel_decoder_forward.1']
    #allocation14 [shape = 'u8[65536]{0}', space=vmem, size = 0x10000, scoped, tag = 'input window, operand 9, single buffered']
    #allocation15 [shape = 'u8[1024]{0}', space=vmem, size = 0x400, scoped, tag = 'input window, operand 10, single buffered']
    #allocation16 [shape = 's32[1]{0}', space=sflag, size = 0x4, scoped, tag = 'scoped memory for voxel_decoder_forward.1']
    #allocation17 [shape = 'u8[65536]{0}', space=vmem, size = 0x10000, scoped, tag = 'input window, operand 11, single buffered']
    #allocation18 [shape = 'u8[1024]{0}', space=vmem, size = 0x400, scoped, tag = 'input window, operand 12, single buffered']
    #allocation19 [shape = 's32[1]{0}', space=sflag, size = 0x4, scoped, tag = 'scoped memory for voxel_decoder_forward.1']
    #allocation20 [shape = 'u8[1024]{0}', space=vmem, size = 0x400, scoped, tag = 'input window, operand 13, single buffered']
    #allocation21 [shape = 'u8[1024]{0}', space=vmem, size = 0x400, scoped, tag = 'input window, operand 14, single buffered']
    #allocation22 [shape = 's32[1]{0}', space=sflag, size = 0x4, scoped, tag = 'scoped memory for voxel_decoder_forward.1']
    #allocation23 [shape = 'u8[65536]{0}', space=vmem, size = 0x10000, scoped, tag = 'input window, operand 15, single buffered']
    #allocation24 [shape = 'u8[1024]{0}', space=vmem, size = 0x400, scoped, tag = 'input window, operand 16, single buffered']
    #allocation25 [shape = 's32[1]{0}', space=sflag, size = 0x4, scoped, tag = 'scoped memory for voxel_decoder_forward.1']
    #allocation26 [shape = 'u8[65536]{0}', space=vmem, size = 0x10000, scoped, tag = 'input window, operand 17, single buffered']
    #allocation27 [shape = 'u8[1024]{0}', space=vmem, size = 0x400, scoped, tag = 'input window, operand 18, single buffered']
    #allocation28 [shape = 's32[1]{0}', space=sflag, size = 0x4, scoped, tag = 'scoped memory for voxel_decoder_forward.1']
    #allocation29 [shape = 'u8[65536]{0}', space=vmem, size = 0x10000, scoped, tag = 'input window, operand 19, single buffered']
    #allocation30 [shape = 'u8[1024]{0}', space=vmem, size = 0x400, scoped, tag = 'input window, operand 20, single buffered']
    #allocation31 [shape = 's32[1]{0}', space=sflag, size = 0x4, scoped, tag = 'scoped memory for voxel_decoder_forward.1']
    #allocation32 [shape = 'u8[65536]{0}', space=vmem, size = 0x10000, scoped, tag = 'input window, operand 21, single buffered']
    #allocation33 [shape = 'u8[1024]{0}', space=vmem, size = 0x400, scoped, tag = 'input window, operand 22, single buffered']
    #allocation34 [shape = 's32[1]{0}', space=sflag, size = 0x4, scoped, tag = 'scoped memory for voxel_decoder_forward.1']
    #allocation35 [shape = 'u8[1024]{0}', space=vmem, size = 0x400, scoped, tag = 'input window, operand 23, single buffered']
    #allocation36 [shape = 'u8[1024]{0}', space=vmem, size = 0x400, scoped, tag = 'input window, operand 24, single buffered']
    #allocation37 [shape = 's32[1]{0}', space=sflag, size = 0x4, scoped, tag = 'scoped memory for voxel_decoder_forward.1']
    #allocation38 [shape = 'u8[262144]{0}', space=vmem, size = 0x40000, scoped, tag = 'input window, operand 25, single buffered']
    #allocation39 [shape = 'u8[4096]{0}', space=vmem, size = 0x1000, scoped, tag = 'input window, operand 26, single buffered']
    #allocation40 [shape = 's32[1]{0}', space=sflag, size = 0x4, scoped, tag = 'scoped memory for voxel_decoder_forward.1']
    #allocation41 [shape = 'u8[262144]{0}', space=vmem, size = 0x40000, scoped, tag = 'input window, operand 27, single buffered']
    #allocation42 [shape = 'u8[1024]{0}', space=vmem, size = 0x400, scoped, tag = 'input window, operand 28, single buffered']
    #allocation43 [shape = 's32[1]{0}', space=sflag, size = 0x4, scoped, tag = 'scoped memory for voxel_decoder_forward.1']
    #allocation44 [shape = 'u8[512]{0}', space=vmem, size = 0x400, scoped, tag = 'input window, operand 31, single buffered']
    #allocation45 [shape = 'u8[512]{0}', space=vmem, size = 0x400, scoped, tag = 'input window, operand 32, single buffered']
    #allocation46 [shape = 's32[1]{0}', space=sflag, size = 0x4, scoped, tag = 'scoped memory for voxel_decoder_forward.1']
    #allocation47 [shape = 'u8[512]{0}', space=vmem, size = 0x400, scoped, tag = 'input window, operand 34, single buffered']
    %76 = vsyncpa [#allocation5], 0
    %77 = vsyncpa [#allocation7], 0
    %78 = vsyncpa [#allocation10], 0
    %79 = vsyncpa [#allocation13], 0
    %80 = vsyncpa [#allocation16], 0
    %81 = vsyncpa [#allocation19], 0
    %82 = vsyncpa [#allocation22], 0
    %83 = vsyncpa [#allocation25], 0
    %84 = vsyncpa [#allocation28], 0
    %85 = vsyncpa [#allocation31], 0
    %86 = vsyncpa [#allocation34], 0
    %87 = vsyncpa [#allocation37], 0
    %88 = vsyncpa [#allocation40], 0
    %89 = vsyncpa [#allocation43], 0
    %90 = vsyncpa [#allocation46], 0
    loop: start=0, step=1, limit=4
    $region2: #{voxel_decoder_forward.1} parent=1 // loop_pre_header
      _
    $region3: #{voxel_decoder_forward.1} parent=1 // loop_header
      %s92 = sphi 0, %s96
      %p93 = scmp.ge.s32.totalorder %s92, 4
      %s99 = sphi 0, %s111
      %s100 = sphi 0, %s107
      %s101 = sphi 0, %s99
      %s102 = sphi 0, %s100
      %s103 = sphi 0, %s101
      %s104 = sphi 0, %s102
      %s112 = sphi 0, %s112
      %s114 = sphi 0, %s112
      %s115 = sphi 0, %s114
      %s129 = sphi 0, %s115
      %s135 = sphi 0, %s137
      %s138 = sphi 0, %s135
      %s139 = sphi 0, %s138
      %s155 = sphi 0, %s139
      %s161 = sphi 0, %s163
      %s164 = sphi 0, %s161
      %s165 = sphi 0, %s164
      %s181 = sphi 0, %s165
      %s185 = sphi 0, %s185
      %s187 = sphi 0, %s185
      %s188 = sphi 0, %s187
      %s202 = sphi 0, %s188
      %s206 = sphi 0, %s206
      %s208 = sphi 0, %s206
      %s209 = sphi 0, %s208
      %s223 = sphi 0, %s209
      %s227 = sphi 0, %s227
      %s229 = sphi 0, %s227
      %s230 = sphi 0, %s229
      %s244 = sphi 0, %s230
      %s248 = sphi 0, %s248
      %s250 = sphi 0, %s248
      %s251 = sphi 0, %s250
      %s265 = sphi 0, %s251
      %s269 = sphi 0, %s269
      %s271 = sphi 0, %s269
      %s272 = sphi 0, %s271
      %s286 = sphi 0, %s272
      %s290 = sphi 0, %s290
      %s292 = sphi 0, %s290
      %s293 = sphi 0, %s292
      %s307 = sphi 0, %s293
      %s311 = sphi 0, %s311
      %s313 = sphi 0, %s311
      %s314 = sphi 0, %s313
      %s328 = sphi 0, %s314
      %s332 = sphi 0, %s332
      %s334 = sphi 0, %s332
      %s335 = sphi 0, %s334
      %s349 = sphi 0, %s335
      %s353 = sphi 0, %s353
      %s355 = sphi 0, %s353
      %s356 = sphi 0, %s355
      %s370 = sphi 0, %s356
      %s374 = sphi 0, %s374
      %s376 = sphi 0, %s374
      %s377 = sphi 0, %s376
      %s391 = sphi 0, %s377
      %s395 = sphi 0, %s395
      %s397 = sphi 0, %s395
      %s398 = sphi 0, %s397
      %s412 = sphi 0, %s398
      %s416 = sphi 0, %s416
      %s418 = sphi 0, %s416
      %s419 = sphi 0, %s418
      %s433 = sphi 0, %s419
      %s437 = sphi 0, %s437
      %s439 = sphi 0, %s437
      %s440 = sphi 0, %s439
      %s454 = sphi 0, %s440
      %s458 = sphi 0, %s458
      %s460 = sphi 0, %s458
      %s461 = sphi 0, %s460
      %s475 = sphi 0, %s461
      %s479 = sphi 0, %s479
      %s481 = sphi 0, %s479
      %s482 = sphi 0, %s481
      %s496 = sphi 0, %s482
      %s500 = sphi 0, %s500
      %s502 = sphi 0, %s500
      %s503 = sphi 0, %s502
      %s517 = sphi 0, %s503
      %s521 = sphi 0, %s521
      %s523 = sphi 0, %s521
      %s524 = sphi 0, %s523
      %s538 = sphi 0, %s524
      %s542 = sphi 0, %s542
      %s544 = sphi 0, %s542
      %s545 = sphi 0, %s544
      %s559 = sphi 0, %s545
      %s563 = sphi 0, %s563
      %s565 = sphi 0, %s563
      %s566 = sphi 0, %s565
      %s580 = sphi 0, %s566
      %s584 = sphi 0, %s584
      %s586 = sphi 0, %s584
      %s587 = sphi 0, %s586
      %s601 = sphi 0, %s587
      %s605 = sphi 0, %s605
      %s607 = sphi 0, %s605
      %s608 = sphi 0, %s607
      %s622 = sphi 0, %s608
      %s626 = sphi 0, %s626
      %s628 = sphi 0, %s626
      %s629 = sphi 0, %s628
      %s643 = sphi 0, %s629
      %s647 = sphi 0, %s647
      %s649 = sphi 0, %s647
      %s650 = sphi 0, %s649
      %s664 = sphi 0, %s650
      %s668 = sphi 0, %s668
      %s670 = sphi 0, %s668
      %s671 = sphi 0, %s670
      %s685 = sphi 0, %s671
      %s689 = sphi 0, %s689
      %s691 = sphi 0, %s689
      %s692 = sphi 0, %s691
      %s706 = sphi 0, %s692
      %s710 = sphi 0, %s710
      %s712 = sphi 0, %s710
      %s713 = sphi 0, %s712
      %s727 = sphi 0, %s713
      %s731 = sphi 0, %s731
      %s733 = sphi 0, %s731
      %s734 = sphi 0, %s733
      %s748 = sphi 0, %s734
      %s752 = sphi 0, %s752
      %s754 = sphi 0, %s752
      %s755 = sphi 0, %s754
      %s769 = sphi 0, %s755
      %s773 = sphi 0, %s773
      %s775 = sphi 0, %s773
      %s776 = sphi 0, %s775
      %s790 = sphi 0, %s776
      %s794 = sphi 0, %s794
      %s796 = sphi 0, %s794
      %s797 = sphi 0, %s796
      %s811 = sphi 0, %s797
      %s815 = sphi 0, %s815
      %s817 = sphi 0, %s815
      %s818 = sphi 0, %s817
      %s832 = sphi 0, %s818
      %s836 = sphi 0, %s836
      %s838 = sphi 0, %s836
      %s839 = sphi 0, %s838
      %s853 = sphi 0, %s839
      %s859 = sphi 0, %s861
      %s862 = sphi 0, %s859
      %s863 = sphi 0, %s862
      %s879 = sphi 0, %s863
    $region4: #{voxel_decoder_forward.1} parent=1 // loop_header_branch
      %95 = sbr.rel (%p93) target = $region8
    $region5: #{voxel_decoder_forward.1} parent=1 // loop_body
      %s97 = ssub.s32 %s92, 1
      %s98 = ssub.s32 %s92, 2
      %s105 = sadd.s32 1, %s100
      %p106 = scmp.ge.s32.totalorder %s105, 2
      %s107 = scalar_select %p106, 0, %s105
      %s108 = sadd.s32 1, %s99
      %s109 = scalar_select %p106, %s108, %s99
      %p110 = scmp.ge.s32.totalorder %s109, 1
      %s111 = scalar_select %p110, 0, %s109
      %s113 = sadd.s32 %s112, 1
      %p116 = scmp.eq.s32.totalorder %s92, 1
      %p117 = scmp.ne.s32.totalorder %s112, %s114
      %p118 = scmp.eq.s32.totalorder %s92, 0
      %p119 = por %p117, %p118
      %p120 = scmp.ne.s32.totalorder %s112, %s114
      %p121 = scmp.eq.s32.totalorder %s97, 1
      %p122 = por %p120, %p121
      %p123 = scmp.ne.s32.totalorder %s114, %s115
      %p124 = scmp.eq.s32.totalorder %s97, 0
      %p125 = por %p123, %p124
      %p126 = scmp.ne.s32.totalorder %s114, %s115
      %p127 = scmp.eq.s32.totalorder %s98, 1
      %p128 = por %p126, %p127
      %p130 = scmp.ne.s32.totalorder %s115, %s129
      %p131 = scmp.eq.s32.totalorder %s98, 0
      %p132 = por %p130, %p131
      %s133 = ssub.s32 %s99, %s111
      %p134 = scmp.eq.s32.totalorder %s133, 0
      %s136 = sadd.s32 %s135, 1
      %s137 = scalar_select %p134, %s135, %s136
      %p140 = pneg %p134
      %p141 = scmp.eq.s32.totalorder %s92, 1
      %p142 = por %p140, %p141
      %p143 = scmp.ne.s32.totalorder %s135, %s138
      %p144 = scmp.eq.s32.totalorder %s92, 0
      %p145 = por %p143, %p144
      %p146 = scmp.ne.s32.totalorder %s135, %s138
      %p147 = scmp.eq.s32.totalorder %s97, 1
      %p148 = por %p146, %p147
      %p149 = scmp.ne.s32.totalorder %s138, %s139
      %p150 = scmp.eq.s32.totalorder %s97, 0
      %p151 = por %p149, %p150
      %p152 = scmp.ne.s32.totalorder %s138, %s139
      %p153 = scmp.eq.s32.totalorder %s98, 1
      %p154 = por %p152, %p153
      %p156 = scmp.ne.s32.totalorder %s139, %s155
      %p157 = scmp.eq.s32.totalorder %s98, 0
      %p158 = por %p156, %p157
      %s159 = ssub.s32 %s99, %s111
      %p160 = scmp.eq.s32.totalorder %s159, 0
      %s162 = sadd.s32 %s161, 1
      %s163 = scalar_select %p160, %s161, %s162
      %p166 = pneg %p160
      %p167 = scmp.eq.s32.totalorder %s92, 1
      %p168 = por %p166, %p167
      %p169 = scmp.ne.s32.totalorder %s161, %s164
      %p170 = scmp.eq.s32.totalorder %s92, 0
      %p171 = por %p169, %p170
      %p172 = scmp.ne.s32.totalorder %s161, %s164
      %p173 = scmp.eq.s32.totalorder %s97, 1
      %p174 = por %p172, %p173
      %p175 = scmp.ne.s32.totalorder %s164, %s165
      %p176 = scmp.eq.s32.totalorder %s97, 0
      %p177 = por %p175, %p176
      %p178 = scmp.ne.s32.totalorder %s164, %s165
      %p179 = scmp.eq.s32.totalorder %s98, 1
      %p180 = por %p178, %p179
      %p182 = scmp.ne.s32.totalorder %s165, %s181
      %p183 = scmp.eq.s32.totalorder %s98, 0
      %p184 = por %p182, %p183
      %s186 = sadd.s32 %s185, 1
      %p189 = scmp.eq.s32.totalorder %s92, 1
      %p190 = scmp.ne.s32.totalorder %s185, %s187
      %p191 = scmp.eq.s32.totalorder %s92, 0
      %p192 = por %p190, %p191
      %p193 = scmp.ne.s32.totalorder %s185, %s187
      %p194 = scmp.eq.s32.totalorder %s97, 1
      %p195 = por %p193, %p194
      %p196 = scmp.ne.s32.totalorder %s187, %s188
      %p197 = scmp.eq.s32.totalorder %s97, 0
      %p198 = por %p196, %p197
      %p199 = scmp.ne.s32.totalorder %s187, %s188
      %p200 = scmp.eq.s32.totalorder %s98, 1
      %p201 = por %p199, %p200
      %p203 = scmp.ne.s32.totalorder %s188, %s202
      %p204 = scmp.eq.s32.totalorder %s98, 0
      %p205 = por %p203, %p204
      %s207 = sadd.s32 %s206, 1
      %p210 = scmp.eq.s32.totalorder %s92, 1
      %p211 = scmp.ne.s32.totalorder %s206, %s208
      %p212 = scmp.eq.s32.totalorder %s92, 0
      %p213 = por %p211, %p212
      %p214 = scmp.ne.s32.totalorder %s206, %s208
      %p215 = scmp.eq.s32.totalorder %s97, 1
      %p216 = por %p214, %p215
      %p217 = scmp.ne.s32.totalorder %s208, %s209
      %p218 = scmp.eq.s32.totalorder %s97, 0
      %p219 = por %p217, %p218
      %p220 = scmp.ne.s32.totalorder %s208, %s209
      %p221 = scmp.eq.s32.totalorder %s98, 1
      %p222 = por %p220, %p221
      %p224 = scmp.ne.s32.totalorder %s209, %s223
      %p225 = scmp.eq.s32.totalorder %s98, 0
      %p226 = por %p224, %p225
      %s228 = sadd.s32 %s227, 1
      %p231 = scmp.eq.s32.totalorder %s92, 1
      %p232 = scmp.ne.s32.totalorder %s227, %s229
      %p233 = scmp.eq.s32.totalorder %s92, 0
      %p234 = por %p232, %p233
      %p235 = scmp.ne.s32.totalorder %s227, %s229
      %p236 = scmp.eq.s32.totalorder %s97, 1
      %p237 = por %p235, %p236
      %p238 = scmp.ne.s32.totalorder %s229, %s230
      %p239 = scmp.eq.s32.totalorder %s97, 0
      %p240 = por %p238, %p239
      %p241 = scmp.ne.s32.totalorder %s229, %s230
      %p242 = scmp.eq.s32.totalorder %s98, 1
      %p243 = por %p241, %p242
      %p245 = scmp.ne.s32.totalorder %s230, %s244
      %p246 = scmp.eq.s32.totalorder %s98, 0
      %p247 = por %p245, %p246
      %s249 = sadd.s32 %s248, 1
      %p252 = scmp.eq.s32.totalorder %s92, 1
      %p253 = scmp.ne.s32.totalorder %s248, %s250
      %p254 = scmp.eq.s32.totalorder %s92, 0
      %p255 = por %p253, %p254
      %p256 = scmp.ne.s32.totalorder %s248, %s250
      %p257 = scmp.eq.s32.totalorder %s97, 1
      %p258 = por %p256, %p257
      %p259 = scmp.ne.s32.totalorder %s250, %s251
      %p260 = scmp.eq.s32.totalorder %s97, 0
      %p261 = por %p259, %p260
      %p262 = scmp.ne.s32.totalorder %s250, %s251
      %p263 = scmp.eq.s32.totalorder %s98, 1
      %p264 = por %p262, %p263
      %p266 = scmp.ne.s32.totalorder %s251, %s265
      %p267 = scmp.eq.s32.totalorder %s98, 0
      %p268 = por %p266, %p267
      %s270 = sadd.s32 %s269, 1
      %p273 = scmp.eq.s32.totalorder %s92, 1
      %p274 = scmp.ne.s32.totalorder %s269, %s271
      %p275 = scmp.eq.s32.totalorder %s92, 0
      %p276 = por %p274, %p275
      %p277 = scmp.ne.s32.totalorder %s269, %s271
      %p278 = scmp.eq.s32.totalorder %s97, 1
      %p279 = por %p277, %p278
      %p280 = scmp.ne.s32.totalorder %s271, %s272
      %p281 = scmp.eq.s32.totalorder %s97, 0
      %p282 = por %p280, %p281
      %p283 = scmp.ne.s32.totalorder %s271, %s272
      %p284 = scmp.eq.s32.totalorder %s98, 1
      %p285 = por %p283, %p284
      %p287 = scmp.ne.s32.totalorder %s272, %s286
      %p288 = scmp.eq.s32.totalorder %s98, 0
      %p289 = por %p287, %p288
      %s291 = sadd.s32 %s290, 1
      %p294 = scmp.eq.s32.totalorder %s92, 1
      %p295 = scmp.ne.s32.totalorder %s290, %s292
      %p296 = scmp.eq.s32.totalorder %s92, 0
      %p297 = por %p295, %p296
      %p298 = scmp.ne.s32.totalorder %s290, %s292
      %p299 = scmp.eq.s32.totalorder %s97, 1
      %p300 = por %p298, %p299
      %p301 = scmp.ne.s32.totalorder %s292, %s293
      %p302 = scmp.eq.s32.totalorder %s97, 0
      %p303 = por %p301, %p302
      %p304 = scmp.ne.s32.totalorder %s292, %s293
      %p305 = scmp.eq.s32.totalorder %s98, 1
      %p306 = por %p304, %p305
      %p308 = scmp.ne.s32.totalorder %s293, %s307
      %p309 = scmp.eq.s32.totalorder %s98, 0
      %p310 = por %p308, %p309
      %s312 = sadd.s32 %s311, 1
      %p315 = scmp.eq.s32.totalorder %s92, 1
      %p316 = scmp.ne.s32.totalorder %s311, %s313
      %p317 = scmp.eq.s32.totalorder %s92, 0
      %p318 = por %p316, %p317
      %p319 = scmp.ne.s32.totalorder %s311, %s313
      %p320 = scmp.eq.s32.totalorder %s97, 1
      %p321 = por %p319, %p320
      %p322 = scmp.ne.s32.totalorder %s313, %s314
      %p323 = scmp.eq.s32.totalorder %s97, 0
      %p324 = por %p322, %p323
      %p325 = scmp.ne.s32.totalorder %s313, %s314
      %p326 = scmp.eq.s32.totalorder %s98, 1
      %p327 = por %p325, %p326
      %p329 = scmp.ne.s32.totalorder %s314, %s328
      %p330 = scmp.eq.s32.totalorder %s98, 0
      %p331 = por %p329, %p330
      %s333 = sadd.s32 %s332, 1
      %p336 = scmp.eq.s32.totalorder %s92, 1
      %p337 = scmp.ne.s32.totalorder %s332, %s334
      %p338 = scmp.eq.s32.totalorder %s92, 0
      %p339 = por %p337, %p338
      %p340 = scmp.ne.s32.totalorder %s332, %s334
      %p341 = scmp.eq.s32.totalorder %s97, 1
      %p342 = por %p340, %p341
      %p343 = scmp.ne.s32.totalorder %s334, %s335
      %p344 = scmp.eq.s32.totalorder %s97, 0
      %p345 = por %p343, %p344
      %p346 = scmp.ne.s32.totalorder %s334, %s335
      %p347 = scmp.eq.s32.totalorder %s98, 1
      %p348 = por %p346, %p347
      %p350 = scmp.ne.s32.totalorder %s335, %s349
      %p351 = scmp.eq.s32.totalorder %s98, 0
      %p352 = por %p350, %p351
      %s354 = sadd.s32 %s353, 1
      %p357 = scmp.eq.s32.totalorder %s92, 1
      %p358 = scmp.ne.s32.totalorder %s353, %s355
      %p359 = scmp.eq.s32.totalorder %s92, 0
      %p360 = por %p358, %p359
      %p361 = scmp.ne.s32.totalorder %s353, %s355
      %p362 = scmp.eq.s32.totalorder %s97, 1
      %p363 = por %p361, %p362
      %p364 = scmp.ne.s32.totalorder %s355, %s356
      %p365 = scmp.eq.s32.totalorder %s97, 0
      %p366 = por %p364, %p365
      %p367 = scmp.ne.s32.totalorder %s355, %s356
      %p368 = scmp.eq.s32.totalorder %s98, 1
      %p369 = por %p367, %p368
      %p371 = scmp.ne.s32.totalorder %s356, %s370
      %p372 = scmp.eq.s32.totalorder %s98, 0
      %p373 = por %p371, %p372
      %s375 = sadd.s32 %s374, 1
      %p378 = scmp.eq.s32.totalorder %s92, 1
      %p379 = scmp.ne.s32.totalorder %s374, %s376
      %p380 = scmp.eq.s32.totalorder %s92, 0
      %p381 = por %p379, %p380
      %p382 = scmp.ne.s32.totalorder %s374, %s376
      %p383 = scmp.eq.s32.totalorder %s97, 1
      %p384 = por %p382, %p383
      %p385 = scmp.ne.s32.totalorder %s376, %s377
      %p386 = scmp.eq.s32.totalorder %s97, 0
      %p387 = por %p385, %p386
      %p388 = scmp.ne.s32.totalorder %s376, %s377
      %p389 = scmp.eq.s32.totalorder %s98, 1
      %p390 = por %p388, %p389
      %p392 = scmp.ne.s32.totalorder %s377, %s391
      %p393 = scmp.eq.s32.totalorder %s98, 0
      %p394 = por %p392, %p393
      %s396 = sadd.s32 %s395, 1
      %p399 = scmp.eq.s32.totalorder %s92, 1
      %p400 = scmp.ne.s32.totalorder %s395, %s397
      %p401 = scmp.eq.s32.totalorder %s92, 0
      %p402 = por %p400, %p401
      %p403 = scmp.ne.s32.totalorder %s395, %s397
      %p404 = scmp.eq.s32.totalorder %s97, 1
      %p405 = por %p403, %p404
      %p406 = scmp.ne.s32.totalorder %s397, %s398
      %p407 = scmp.eq.s32.totalorder %s97, 0
      %p408 = por %p406, %p407
      %p409 = scmp.ne.s32.totalorder %s397, %s398
      %p410 = scmp.eq.s32.totalorder %s98, 1
      %p411 = por %p409, %p410
      %p413 = scmp.ne.s32.totalorder %s398, %s412
      %p414 = scmp.eq.s32.totalorder %s98, 0
      %p415 = por %p413, %p414
      %s417 = sadd.s32 %s416, 1
      %p420 = scmp.eq.s32.totalorder %s92, 1
      %p421 = scmp.ne.s32.totalorder %s416, %s418
      %p422 = scmp.eq.s32.totalorder %s92, 0
      %p423 = por %p421, %p422
      %p424 = scmp.ne.s32.totalorder %s416, %s418
      %p425 = scmp.eq.s32.totalorder %s97, 1
      %p426 = por %p424, %p425
      %p427 = scmp.ne.s32.totalorder %s418, %s419
      %p428 = scmp.eq.s32.totalorder %s97, 0
      %p429 = por %p427, %p428
      %p430 = scmp.ne.s32.totalorder %s418, %s419
      %p431 = scmp.eq.s32.totalorder %s98, 1
      %p432 = por %p430, %p431
      %p434 = scmp.ne.s32.totalorder %s419, %s433
      %p435 = scmp.eq.s32.totalorder %s98, 0
      %p436 = por %p434, %p435
      %s438 = sadd.s32 %s437, 1
      %p441 = scmp.eq.s32.totalorder %s92, 1
      %p442 = scmp.ne.s32.totalorder %s437, %s439
      %p443 = scmp.eq.s32.totalorder %s92, 0
      %p444 = por %p442, %p443
      %p445 = scmp.ne.s32.totalorder %s437, %s439
      %p446 = scmp.eq.s32.totalorder %s97, 1
      %p447 = por %p445, %p446
      %p448 = scmp.ne.s32.totalorder %s439, %s440
      %p449 = scmp.eq.s32.totalorder %s97, 0
      %p450 = por %p448, %p449
      %p451 = scmp.ne.s32.totalorder %s439, %s440
      %p452 = scmp.eq.s32.totalorder %s98, 1
      %p453 = por %p451, %p452
      %p455 = scmp.ne.s32.totalorder %s440, %s454
      %p456 = scmp.eq.s32.totalorder %s98, 0
      %p457 = por %p455, %p456
      %s459 = sadd.s32 %s458, 1
      %p462 = scmp.eq.s32.totalorder %s92, 1
      %p463 = scmp.ne.s32.totalorder %s458, %s460
      %p464 = scmp.eq.s32.totalorder %s92, 0
      %p465 = por %p463, %p464
      %p466 = scmp.ne.s32.totalorder %s458, %s460
      %p467 = scmp.eq.s32.totalorder %s97, 1
      %p468 = por %p466, %p467
      %p469 = scmp.ne.s32.totalorder %s460, %s461
      %p470 = scmp.eq.s32.totalorder %s97, 0
      %p471 = por %p469, %p470
      %p472 = scmp.ne.s32.totalorder %s460, %s461
      %p473 = scmp.eq.s32.totalorder %s98, 1
      %p474 = por %p472, %p473
      %p476 = scmp.ne.s32.totalorder %s461, %s475
      %p477 = scmp.eq.s32.totalorder %s98, 0
      %p478 = por %p476, %p477
      %s480 = sadd.s32 %s479, 1
      %p483 = scmp.eq.s32.totalorder %s92, 1
      %p484 = scmp.ne.s32.totalorder %s479, %s481
      %p485 = scmp.eq.s32.totalorder %s92, 0
      %p486 = por %p484, %p485
      %p487 = scmp.ne.s32.totalorder %s479, %s481
      %p488 = scmp.eq.s32.totalorder %s97, 1
      %p489 = por %p487, %p488
      %p490 = scmp.ne.s32.totalorder %s481, %s482
      %p491 = scmp.eq.s32.totalorder %s97, 0
      %p492 = por %p490, %p491
      %p493 = scmp.ne.s32.totalorder %s481, %s482
      %p494 = scmp.eq.s32.totalorder %s98, 1
      %p495 = por %p493, %p494
      %p497 = scmp.ne.s32.totalorder %s482, %s496
      %p498 = scmp.eq.s32.totalorder %s98, 0
      %p499 = por %p497, %p498
      %s501 = sadd.s32 %s500, 1
      %p504 = scmp.eq.s32.totalorder %s92, 1
      %p505 = scmp.ne.s32.totalorder %s500, %s502
      %p506 = scmp.eq.s32.totalorder %s92, 0
      %p507 = por %p505, %p506
      %p508 = scmp.ne.s32.totalorder %s500, %s502
      %p509 = scmp.eq.s32.totalorder %s97, 1
      %p510 = por %p508, %p509
      %p511 = scmp.ne.s32.totalorder %s502, %s503
      %p512 = scmp.eq.s32.totalorder %s97, 0
      %p513 = por %p511, %p512
      %p514 = scmp.ne.s32.totalorder %s502, %s503
      %p515 = scmp.eq.s32.totalorder %s98, 1
      %p516 = por %p514, %p515
      %p518 = scmp.ne.s32.totalorder %s503, %s517
      %p519 = scmp.eq.s32.totalorder %s98, 0
      %p520 = por %p518, %p519
      %s522 = sadd.s32 %s521, 1
      %p525 = scmp.eq.s32.totalorder %s92, 1
      %p526 = scmp.ne.s32.totalorder %s521, %s523
      %p527 = scmp.eq.s32.totalorder %s92, 0
      %p528 = por %p526, %p527
      %p529 = scmp.ne.s32.totalorder %s521, %s523
      %p530 = scmp.eq.s32.totalorder %s97, 1
      %p531 = por %p529, %p530
      %p532 = scmp.ne.s32.totalorder %s523, %s524
      %p533 = scmp.eq.s32.totalorder %s97, 0
      %p534 = por %p532, %p533
      %p535 = scmp.ne.s32.totalorder %s523, %s524
      %p536 = scmp.eq.s32.totalorder %s98, 1
      %p537 = por %p535, %p536
      %p539 = scmp.ne.s32.totalorder %s524, %s538
      %p540 = scmp.eq.s32.totalorder %s98, 0
      %p541 = por %p539, %p540
      %s543 = sadd.s32 %s542, 1
      %p546 = scmp.eq.s32.totalorder %s92, 1
      %p547 = scmp.ne.s32.totalorder %s542, %s544
      %p548 = scmp.eq.s32.totalorder %s92, 0
      %p549 = por %p547, %p548
      %p550 = scmp.ne.s32.totalorder %s542, %s544
      %p551 = scmp.eq.s32.totalorder %s97, 1
      %p552 = por %p550, %p551
      %p553 = scmp.ne.s32.totalorder %s544, %s545
      %p554 = scmp.eq.s32.totalorder %s97, 0
      %p555 = por %p553, %p554
      %p556 = scmp.ne.s32.totalorder %s544, %s545
      %p557 = scmp.eq.s32.totalorder %s98, 1
      %p558 = por %p556, %p557
      %p560 = scmp.ne.s32.totalorder %s545, %s559
      %p561 = scmp.eq.s32.totalorder %s98, 0
      %p562 = por %p560, %p561
      %s564 = sadd.s32 %s563, 1
      %p567 = scmp.eq.s32.totalorder %s92, 1
      %p568 = scmp.ne.s32.totalorder %s563, %s565
      %p569 = scmp.eq.s32.totalorder %s92, 0
      %p570 = por %p568, %p569
      %p571 = scmp.ne.s32.totalorder %s563, %s565
      %p572 = scmp.eq.s32.totalorder %s97, 1
      %p573 = por %p571, %p572
      %p574 = scmp.ne.s32.totalorder %s565, %s566
      %p575 = scmp.eq.s32.totalorder %s97, 0
      %p576 = por %p574, %p575
      %p577 = scmp.ne.s32.totalorder %s565, %s566
      %p578 = scmp.eq.s32.totalorder %s98, 1
      %p579 = por %p577, %p578
      %p581 = scmp.ne.s32.totalorder %s566, %s580
      %p582 = scmp.eq.s32.totalorder %s98, 0
      %p583 = por %p581, %p582
      %s585 = sadd.s32 %s584, 1
      %p588 = scmp.eq.s32.totalorder %s92, 1
      %p589 = scmp.ne.s32.totalorder %s584, %s586
      %p590 = scmp.eq.s32.totalorder %s92, 0
      %p591 = por %p589, %p590
      %p592 = scmp.ne.s32.totalorder %s584, %s586
      %p593 = scmp.eq.s32.totalorder %s97, 1
      %p594 = por %p592, %p593
      %p595 = scmp.ne.s32.totalorder %s586, %s587
      %p596 = scmp.eq.s32.totalorder %s97, 0
      %p597 = por %p595, %p596
      %p598 = scmp.ne.s32.totalorder %s586, %s587
      %p599 = scmp.eq.s32.totalorder %s98, 1
      %p600 = por %p598, %p599
      %p602 = scmp.ne.s32.totalorder %s587, %s601
      %p603 = scmp.eq.s32.totalorder %s98, 0
      %p604 = por %p602, %p603
      %s606 = sadd.s32 %s605, 1
      %p609 = scmp.eq.s32.totalorder %s92, 1
      %p610 = scmp.ne.s32.totalorder %s605, %s607
      %p611 = scmp.eq.s32.totalorder %s92, 0
      %p612 = por %p610, %p611
      %p613 = scmp.ne.s32.totalorder %s605, %s607
      %p614 = scmp.eq.s32.totalorder %s97, 1
      %p615 = por %p613, %p614
      %p616 = scmp.ne.s32.totalorder %s607, %s608
      %p617 = scmp.eq.s32.totalorder %s97, 0
      %p618 = por %p616, %p617
      %p619 = scmp.ne.s32.totalorder %s607, %s608
      %p620 = scmp.eq.s32.totalorder %s98, 1
      %p621 = por %p619, %p620
      %p623 = scmp.ne.s32.totalorder %s608, %s622
      %p624 = scmp.eq.s32.totalorder %s98, 0
      %p625 = por %p623, %p624
      %s627 = sadd.s32 %s626, 1
      %p630 = scmp.eq.s32.totalorder %s92, 1
      %p631 = scmp.ne.s32.totalorder %s626, %s628
      %p632 = scmp.eq.s32.totalorder %s92, 0
      %p633 = por %p631, %p632
      %p634 = scmp.ne.s32.totalorder %s626, %s628
      %p635 = scmp.eq.s32.totalorder %s97, 1
      %p636 = por %p634, %p635
      %p637 = scmp.ne.s32.totalorder %s628, %s629
      %p638 = scmp.eq.s32.totalorder %s97, 0
      %p639 = por %p637, %p638
      %p640 = scmp.ne.s32.totalorder %s628, %s629
      %p641 = scmp.eq.s32.totalorder %s98, 1
      %p642 = por %p640, %p641
      %p644 = scmp.ne.s32.totalorder %s629, %s643
      %p645 = scmp.eq.s32.totalorder %s98, 0
      %p646 = por %p644, %p645
      %s648 = sadd.s32 %s647, 1
      %p651 = scmp.eq.s32.totalorder %s92, 1
      %p652 = scmp.ne.s32.totalorder %s647, %s649
      %p653 = scmp.eq.s32.totalorder %s92, 0
      %p654 = por %p652, %p653
      %p655 = scmp.ne.s32.totalorder %s647, %s649
      %p656 = scmp.eq.s32.totalorder %s97, 1
      %p657 = por %p655, %p656
      %p658 = scmp.ne.s32.totalorder %s649, %s650
      %p659 = scmp.eq.s32.totalorder %s97, 0
      %p660 = por %p658, %p659
      %p661 = scmp.ne.s32.totalorder %s649, %s650
      %p662 = scmp.eq.s32.totalorder %s98, 1
      %p663 = por %p661, %p662
      %p665 = scmp.ne.s32.totalorder %s650, %s664
      %p666 = scmp.eq.s32.totalorder %s98, 0
      %p667 = por %p665, %p666
      %s669 = sadd.s32 %s668, 1
      %p672 = scmp.eq.s32.totalorder %s92, 1
      %p673 = scmp.ne.s32.totalorder %s668, %s670
      %p674 = scmp.eq.s32.totalorder %s92, 0
      %p675 = por %p673, %p674
      %p676 = scmp.ne.s32.totalorder %s668, %s670
      %p677 = scmp.eq.s32.totalorder %s97, 1
      %p678 = por %p676, %p677
      %p679 = scmp.ne.s32.totalorder %s670, %s671
      %p680 = scmp.eq.s32.totalorder %s97, 0
      %p681 = por %p679, %p680
      %p682 = scmp.ne.s32.totalorder %s670, %s671
      %p683 = scmp.eq.s32.totalorder %s98, 1
      %p684 = por %p682, %p683
      %p686 = scmp.ne.s32.totalorder %s671, %s685
      %p687 = scmp.eq.s32.totalorder %s98, 0
      %p688 = por %p686, %p687
      %s690 = sadd.s32 %s689, 1
      %p693 = scmp.eq.s32.totalorder %s92, 1
      %p694 = scmp.ne.s32.totalorder %s689, %s691
      %p695 = scmp.eq.s32.totalorder %s92, 0
      %p696 = por %p694, %p695
      %p697 = scmp.ne.s32.totalorder %s689, %s691
      %p698 = scmp.eq.s32.totalorder %s97, 1
      %p699 = por %p697, %p698
      %p700 = scmp.ne.s32.totalorder %s691, %s692
      %p701 = scmp.eq.s32.totalorder %s97, 0
      %p702 = por %p700, %p701
      %p703 = scmp.ne.s32.totalorder %s691, %s692
      %p704 = scmp.eq.s32.totalorder %s98, 1
      %p705 = por %p703, %p704
      %p707 = scmp.ne.s32.totalorder %s692, %s706
      %p708 = scmp.eq.s32.totalorder %s98, 0
      %p709 = por %p707, %p708
      %s711 = sadd.s32 %s710, 1
      %p714 = scmp.eq.s32.totalorder %s92, 1
      %p715 = scmp.ne.s32.totalorder %s710, %s712
      %p716 = scmp.eq.s32.totalorder %s92, 0
      %p717 = por %p715, %p716
      %p718 = scmp.ne.s32.totalorder %s710, %s712
      %p719 = scmp.eq.s32.totalorder %s97, 1
      %p720 = por %p718, %p719
      %p721 = scmp.ne.s32.totalorder %s712, %s713
      %p722 = scmp.eq.s32.totalorder %s97, 0
      %p723 = por %p721, %p722
      %p724 = scmp.ne.s32.totalorder %s712, %s713
      %p725 = scmp.eq.s32.totalorder %s98, 1
      %p726 = por %p724, %p725
      %p728 = scmp.ne.s32.totalorder %s713, %s727
      %p729 = scmp.eq.s32.totalorder %s98, 0
      %p730 = por %p728, %p729
      %s732 = sadd.s32 %s731, 1
      %p735 = scmp.eq.s32.totalorder %s92, 1
      %p736 = scmp.ne.s32.totalorder %s731, %s733
      %p737 = scmp.eq.s32.totalorder %s92, 0
      %p738 = por %p736, %p737
      %p739 = scmp.ne.s32.totalorder %s731, %s733
      %p740 = scmp.eq.s32.totalorder %s97, 1
      %p741 = por %p739, %p740
      %p742 = scmp.ne.s32.totalorder %s733, %s734
      %p743 = scmp.eq.s32.totalorder %s97, 0
      %p744 = por %p742, %p743
      %p745 = scmp.ne.s32.totalorder %s733, %s734
      %p746 = scmp.eq.s32.totalorder %s98, 1
      %p747 = por %p745, %p746
      %p749 = scmp.ne.s32.totalorder %s734, %s748
      %p750 = scmp.eq.s32.totalorder %s98, 0
      %p751 = por %p749, %p750
      %s753 = sadd.s32 %s752, 1
      %p756 = scmp.eq.s32.totalorder %s92, 1
      %p757 = scmp.ne.s32.totalorder %s752, %s754
      %p758 = scmp.eq.s32.totalorder %s92, 0
      %p759 = por %p757, %p758
      %p760 = scmp.ne.s32.totalorder %s752, %s754
      %p761 = scmp.eq.s32.totalorder %s97, 1
      %p762 = por %p760, %p761
      %p763 = scmp.ne.s32.totalorder %s754, %s755
      %p764 = scmp.eq.s32.totalorder %s97, 0
      %p765 = por %p763, %p764
      %p766 = scmp.ne.s32.totalorder %s754, %s755
      %p767 = scmp.eq.s32.totalorder %s98, 1
      %p768 = por %p766, %p767
      %p770 = scmp.ne.s32.totalorder %s755, %s769
      %p771 = scmp.eq.s32.totalorder %s98, 0
      %p772 = por %p770, %p771
      %s774 = sadd.s32 %s773, 1
      %p777 = scmp.eq.s32.totalorder %s92, 1
      %p778 = scmp.ne.s32.totalorder %s773, %s775
      %p779 = scmp.eq.s32.totalorder %s92, 0
      %p780 = por %p778, %p779
      %p781 = scmp.ne.s32.totalorder %s773, %s775
      %p782 = scmp.eq.s32.totalorder %s97, 1
      %p783 = por %p781, %p782
      %p784 = scmp.ne.s32.totalorder %s775, %s776
      %p785 = scmp.eq.s32.totalorder %s97, 0
      %p786 = por %p784, %p785
      %p787 = scmp.ne.s32.totalorder %s775, %s776
      %p788 = scmp.eq.s32.totalorder %s98, 1
      %p789 = por %p787, %p788
      %p791 = scmp.ne.s32.totalorder %s776, %s790
      %p792 = scmp.eq.s32.totalorder %s98, 0
      %p793 = por %p791, %p792
      %s795 = sadd.s32 %s794, 1
      %p798 = scmp.eq.s32.totalorder %s92, 1
      %p799 = scmp.ne.s32.totalorder %s794, %s796
      %p800 = scmp.eq.s32.totalorder %s92, 0
      %p801 = por %p799, %p800
      %p802 = scmp.ne.s32.totalorder %s794, %s796
      %p803 = scmp.eq.s32.totalorder %s97, 1
      %p804 = por %p802, %p803
      %p805 = scmp.ne.s32.totalorder %s796, %s797
      %p806 = scmp.eq.s32.totalorder %s97, 0
      %p807 = por %p805, %p806
      %p808 = scmp.ne.s32.totalorder %s796, %s797
      %p809 = scmp.eq.s32.totalorder %s98, 1
      %p810 = por %p808, %p809
      %p812 = scmp.ne.s32.totalorder %s797, %s811
      %p813 = scmp.eq.s32.totalorder %s98, 0
      %p814 = por %p812, %p813
      %s816 = sadd.s32 %s815, 1
      %p819 = scmp.eq.s32.totalorder %s92, 1
      %p820 = scmp.ne.s32.totalorder %s815, %s817
      %p821 = scmp.eq.s32.totalorder %s92, 0
      %p822 = por %p820, %p821
      %p823 = scmp.ne.s32.totalorder %s815, %s817
      %p824 = scmp.eq.s32.totalorder %s97, 1
      %p825 = por %p823, %p824
      %p826 = scmp.ne.s32.totalorder %s817, %s818
      %p827 = scmp.eq.s32.totalorder %s97, 0
      %p828 = por %p826, %p827
      %p829 = scmp.ne.s32.totalorder %s817, %s818
      %p830 = scmp.eq.s32.totalorder %s98, 1
      %p831 = por %p829, %p830
      %p833 = scmp.ne.s32.totalorder %s818, %s832
      %p834 = scmp.eq.s32.totalorder %s98, 0
      %p835 = por %p833, %p834
      %s837 = sadd.s32 %s836, 1
      %p840 = scmp.eq.s32.totalorder %s92, 1
      %p841 = scmp.ne.s32.totalorder %s836, %s838
      %p842 = scmp.eq.s32.totalorder %s92, 0
      %p843 = por %p841, %p842
      %p844 = scmp.ne.s32.totalorder %s836, %s838
      %p845 = scmp.eq.s32.totalorder %s97, 1
      %p846 = por %p844, %p845
      %p847 = scmp.ne.s32.totalorder %s838, %s839
      %p848 = scmp.eq.s32.totalorder %s97, 0
      %p849 = por %p847, %p848
      %p850 = scmp.ne.s32.totalorder %s838, %s839
      %p851 = scmp.eq.s32.totalorder %s98, 1
      %p852 = por %p850, %p851
      %p854 = scmp.ne.s32.totalorder %s839, %s853
      %p855 = scmp.eq.s32.totalorder %s98, 0
      %p856 = por %p854, %p855
      %s857 = ssub.s32 %s99, %s111
      %p858 = scmp.eq.s32.totalorder %s857, 0
      %s860 = sadd.s32 %s859, 1
      %s861 = scalar_select %p858, %s859, %s860
      %p864 = pneg %p858
      %p865 = scmp.eq.s32.totalorder %s92, 1
      %p866 = por %p864, %p865
      %p867 = scmp.ne.s32.totalorder %s859, %s862
      %p868 = scmp.eq.s32.totalorder %s92, 0
      %p869 = por %p867, %p868
      %p870 = scmp.ne.s32.totalorder %s859, %s862
      %p871 = scmp.eq.s32.totalorder %s97, 1
      %p872 = por %p870, %p871
      %p873 = scmp.ne.s32.totalorder %s862, %s863
      %p874 = scmp.eq.s32.totalorder %s97, 0
      %p875 = por %p873, %p874
      %p876 = scmp.ne.s32.totalorder %s862, %s863
      %p877 = scmp.eq.s32.totalorder %s98, 1
      %p878 = por %p876, %p877
      %p880 = scmp.ne.s32.totalorder %s863, %s879
      %p881 = scmp.eq.s32.totalorder %s98, 0
      %p882 = por %p880, %p881
      %p883 = scmp.le.s32.totalorder 1, %s92
      %p884 = scmp.lt.s32.totalorder %s92, 3
      %p885 = pnand %p883, %p884
      %p886 = pneg %p885
      // Predicated region
      $region9: #{voxel_decoder_forward.1} parent=5 // pred_check
        _
      $region10: #{voxel_decoder_forward.1} parent=5 // pred_check_branch
        %888 = sbr.rel (%p885) target = $region12
      $region11: #{voxel_decoder_forward.1} parent=5 // pred_region
        %s889 = ssub.s32 %s92, 1
        // Predicated region
        $region13: #{voxel_decoder_forward.1} parent=11 // pred_check
          %p890 = pneg %p125
        $region14: #{voxel_decoder_forward.1} parent=11 // pred_check_branch
          %892 = sbr.rel (%p890) target = $region16
        $region15: #{voxel_decoder_forward.1} parent=11 // pred_region
          %s894 = ssub.s32 128, 128
          %895 = vsyncadd [#allocation5], %s894
          %s897 = sshll.u32 [#allocation4], 4
          %s898 = int_to_ptr.vmem [resolvable:$true] %s897
          %900 = dma.hbm_to_vmem [thread:$0]  %s1, 128, %s898, [#allocation5]
        $region16: #{voxel_decoder_forward.1} parent=11 // pred_fallthru
          _
        // Predicated region
        $region17: #{voxel_decoder_forward.1} parent=11 // pred_check
          %p901 = pneg %p151
        $region18: #{voxel_decoder_forward.1} parent=11 // pred_check_branch
          %903 = sbr.rel (%p901) target = $region20
        $region19: #{voxel_decoder_forward.1} parent=11 // pred_region
          %s904 = smul.u32 2, %s101
          %p905 = scmp.lt.s32.totalorder %s904, 1
          %s906 = scalar_select %p905, %s904, 1
          %s907 = smul.addr %s906, 4
          %s908 = scalar_lea.vmem %s3, %s907
          %s909 = smul.u32 2, %s101
        $region20: #{voxel_decoder_forward.1} parent=11 // pred_fallthru
          _
        // Predicated region
        $region21: #{voxel_decoder_forward.1} parent=11 // pred_check
          %p910 = pneg %p177
        $region22: #{voxel_decoder_forward.1} parent=11 // pred_check_branch
          %912 = sbr.rel (%p910) target = $region24
        $region23: #{voxel_decoder_forward.1} parent=11 // pred_region
          %s913 = smul.u32 2, %s101
          %p914 = scmp.lt.s32.totalorder %s913, 1
          %s915 = scalar_select %p914, %s913, 1
          %s916 = scalar_lea.vmem %s5, %s915
          %s917 = smul.u32 2, %s101
        $region24: #{voxel_decoder_forward.1} parent=11 // pred_fallthru
          _
        // Predicated region
        $region25: #{voxel_decoder_forward.1} parent=11 // pred_check
          %p918 = pneg %p198
        $region26: #{voxel_decoder_forward.1} parent=11 // pred_check_branch
          %920 = sbr.rel (%p918) target = $region28
        $region27: #{voxel_decoder_forward.1} parent=11 // pred_region
          _
        $region28: #{voxel_decoder_forward.1} parent=11 // pred_fallthru
          _
        // Predicated region
        $region29: #{voxel_decoder_forward.1} parent=11 // pred_check
          %p921 = pneg %p219
        $region30: #{voxel_decoder_forward.1} parent=11 // pred_check_branch
          %923 = sbr.rel (%p921) target = $region32
        $region31: #{voxel_decoder_forward.1} parent=11 // pred_region
          %s925 = ssub.s32 32, 32
          %926 = vsyncadd [#allocation7], %s925
          %s927 = sshll.u32 [#allocation6], 4
          %s928 = int_to_ptr.vmem [resolvable:$true] %s927
          %933 = dma.hbm_to_vmem [thread:$0]  %s9, 32, %s928, [#allocation7], 16, 16, 1
        $region32: #{voxel_decoder_forward.1} parent=11 // pred_fallthru
          _
        // Predicated region
        $region33: #{voxel_decoder_forward.1} parent=11 // pred_check
          %p934 = pneg %p240
        $region34: #{voxel_decoder_forward.1} parent=11 // pred_check_branch
          %936 = sbr.rel (%p934) target = $region36
        $region35: #{voxel_decoder_forward.1} parent=11 // pred_region
          %s938 = ssub.s32 2048, 2048
          %939 = vsyncadd [#allocation7], %s938
          %s940 = sshll.u32 [#allocation8], 4
          %s941 = int_to_ptr.vmem [resolvable:$true] %s940
          %946 = dma.hbm_to_vmem [thread:$0]  %s11, 2048, %s941, [#allocation7], 64, 64, 4
        $region36: #{voxel_decoder_forward.1} parent=11 // pred_fallthru
          _
        // Predicated region
        $region37: #{voxel_decoder_forward.1} parent=11 // pred_check
          %p947 = pneg %p261
        $region38: #{voxel_decoder_forward.1} parent=11 // pred_check_branch
          %949 = sbr.rel (%p947) target = $region40
        $region39: #{voxel_decoder_forward.1} parent=11 // pred_region
          %s951 = ssub.s32 32, 32
          %952 = vsyncadd [#allocation10], %s951
          %s953 = sshll.u32 [#allocation9], 4
          %s954 = int_to_ptr.vmem [resolvable:$true] %s953
          %959 = dma.hbm_to_vmem [thread:$0]  %s13, 32, %s954, [#allocation10], 16, 16, 1
        $region40: #{voxel_decoder_forward.1} parent=11 // pred_fallthru
          _
        // Predicated region
        $region41: #{voxel_decoder_forward.1} parent=11 // pred_check
          %p960 = pneg %p282
        $region42: #{voxel_decoder_forward.1} parent=11 // pred_check_branch
          %962 = sbr.rel (%p960) target = $region44
        $region43: #{voxel_decoder_forward.1} parent=11 // pred_region
          %s964 = ssub.s32 2048, 2048
          %965 = vsyncadd [#allocation10], %s964
          %s966 = sshll.u32 [#allocation11], 4
          %s967 = int_to_ptr.vmem [resolvable:$true] %s966
          %972 = dma.hbm_to_vmem [thread:$0]  %s15, 2048, %s967, [#allocation10], 64, 64, 4
        $region44: #{voxel_decoder_forward.1} parent=11 // pred_fallthru
          _
        // Predicated region
        $region45: #{voxel_decoder_forward.1} parent=11 // pred_check
          %p973 = pneg %p303
        $region46: #{voxel_decoder_forward.1} parent=11 // pred_check_branch
          %975 = sbr.rel (%p973) target = $region48
        $region47: #{voxel_decoder_forward.1} parent=11 // pred_region
          %s977 = ssub.s32 32, 32
          %978 = vsyncadd [#allocation13], %s977
          %s979 = sshll.u32 [#allocation12], 4
          %s980 = int_to_ptr.vmem [resolvable:$true] %s979
          %985 = dma.hbm_to_vmem [thread:$0]  %s17, 32, %s980, [#allocation13], 16, 16, 1
        $region48: #{voxel_decoder_forward.1} parent=11 // pred_fallthru
          _
        // Predicated region
        $region49: #{voxel_decoder_forward.1} parent=11 // pred_check
          %p986 = pneg %p324
        $region50: #{voxel_decoder_forward.1} parent=11 // pred_check_branch
          %988 = sbr.rel (%p986) target = $region52
        $region51: #{voxel_decoder_forward.1} parent=11 // pred_region
          %s990 = ssub.s32 2048, 2048
          %991 = vsyncadd [#allocation13], %s990
          %s992 = sshll.u32 [#allocation14], 4
          %s993 = int_to_ptr.vmem [resolvable:$true] %s992
          %998 = dma.hbm_to_vmem [thread:$0]  %s19, 2048, %s993, [#allocation13], 64, 64, 4
        $region52: #{voxel_decoder_forward.1} parent=11 // pred_fallthru
          _
        // Predicated region
        $region53: #{voxel_decoder_forward.1} parent=11 // pred_check
          %p999 = pneg %p345
        $region54: #{voxel_decoder_forward.1} parent=11 // pred_check_branch
          %1001 = sbr.rel (%p999) target = $region56
        $region55: #{voxel_decoder_forward.1} parent=11 // pred_region
          %s1003 = ssub.s32 32, 32
          %1004 = vsyncadd [#allocation16], %s1003
          %s1005 = sshll.u32 [#allocation15], 4
          %s1006 = int_to_ptr.vmem [resolvable:$true] %s1005
          %1011 = dma.hbm_to_vmem [thread:$0]  %s21, 32, %s1006, [#allocation16], 16, 16, 1
        $region56: #{voxel_decoder_forward.1} parent=11 // pred_fallthru
          _
        // Predicated region
        $region57: #{voxel_decoder_forward.1} parent=11 // pred_check
          %p1012 = pneg %p366
        $region58: #{voxel_decoder_forward.1} parent=11 // pred_check_branch
          %1014 = sbr.rel (%p1012) target = $region60
        $region59: #{voxel_decoder_forward.1} parent=11 // pred_region
          %s1016 = ssub.s32 2048, 2048
          %1017 = vsyncadd [#allocation16], %s1016
          %s1018 = sshll.u32 [#allocation17], 4
          %s1019 = int_to_ptr.vmem [resolvable:$true] %s1018
          %1024 = dma.hbm_to_vmem [thread:$0]  %s23, 2048, %s1019, [#allocation16], 64, 64, 4
        $region60: #{voxel_decoder_forward.1} parent=11 // pred_fallthru
          _
        // Predicated region
        $region61: #{voxel_decoder_forward.1} parent=11 // pred_check
          %p1025 = pneg %p387
        $region62: #{voxel_decoder_forward.1} parent=11 // pred_check_branch
          %1027 = sbr.rel (%p1025) target = $region64
        $region63: #{voxel_decoder_forward.1} parent=11 // pred_region
          %s1029 = ssub.s32 32, 32
          %1030 = vsyncadd [#allocation19], %s1029
          %s1031 = sshll.u32 [#allocation18], 4
          %s1032 = int_to_ptr.vmem [resolvable:$true] %s1031
          %1037 = dma.hbm_to_vmem [thread:$0]  %s25, 32, %s1032, [#allocation19], 16, 16, 1
        $region64: #{voxel_decoder_forward.1} parent=11 // pred_fallthru
          _
        // Predicated region
        $region65: #{voxel_decoder_forward.1} parent=11 // pred_check
          %p1038 = pneg %p408
        $region66: #{voxel_decoder_forward.1} parent=11 // pred_check_branch
          %1040 = sbr.rel (%p1038) target = $region68
        $region67: #{voxel_decoder_forward.1} parent=11 // pred_region
          %s1042 = ssub.s32 32, 32
          %1043 = vsyncadd [#allocation19], %s1042
          %s1044 = sshll.u32 [#allocation20], 4
          %s1045 = int_to_ptr.vmem [resolvable:$true] %s1044
          %1050 = dma.hbm_to_vmem [thread:$0]  %s27, 32, %s1045, [#allocation19], 16, 16, 1
        $region68: #{voxel_decoder_forward.1} parent=11 // pred_fallthru
          _
        // Predicated region
        $region69: #{voxel_decoder_forward.1} parent=11 // pred_check
          %p1051 = pneg %p429
        $region70: #{voxel_decoder_forward.1} parent=11 // pred_check_branch
          %1053 = sbr.rel (%p1051) target = $region72
        $region71: #{voxel_decoder_forward.1} parent=11 // pred_region
          %s1055 = ssub.s32 32, 32
          %1056 = vsyncadd [#allocation22], %s1055
          %s1057 = sshll.u32 [#allocation21], 4
          %s1058 = int_to_ptr.vmem [resolvable:$true] %s1057
          %1063 = dma.hbm_to_vmem [thread:$0]  %s29, 32, %s1058, [#allocation22], 16, 16, 1
        $region72: #{voxel_decoder_forward.1} parent=11 // pred_fallthru
          _
        // Predicated region
        $region73: #{voxel_decoder_forward.1} parent=11 // pred_check
          %p1064 = pneg %p450
        $region74: #{voxel_decoder_forward.1} parent=11 // pred_check_branch
          %1066 = sbr.rel (%p1064) target = $region76
        $region75: #{voxel_decoder_forward.1} parent=11 // pred_region
          %s1068 = ssub.s32 2048, 2048
          %1069 = vsyncadd [#allocation22], %s1068
          %s1070 = sshll.u32 [#allocation23], 4
          %s1071 = int_to_ptr.vmem [resolvable:$true] %s1070
          %1076 = dma.hbm_to_vmem [thread:$0]  %s31, 2048, %s1071, [#allocation22], 64, 64, 4
        $region76: #{voxel_decoder_forward.1} parent=11 // pred_fallthru
          _
        // Predicated region
        $region77: #{voxel_decoder_forward.1} parent=11 // pred_check
          %p1077 = pneg %p471
        $region78: #{voxel_decoder_forward.1} parent=11 // pred_check_branch
          %1079 = sbr.rel (%p1077) target = $region80
        $region79: #{voxel_decoder_forward.1} parent=11 // pred_region
          %s1081 = ssub.s32 32, 32
          %1082 = vsyncadd [#allocation25], %s1081
          %s1083 = sshll.u32 [#allocation24], 4
          %s1084 = int_to_ptr.vmem [resolvable:$true] %s1083
          %1089 = dma.hbm_to_vmem [thread:$0]  %s33, 32, %s1084, [#allocation25], 16, 16, 1
        $region80: #{voxel_decoder_forward.1} parent=11 // pred_fallthru
          _
        // Predicated region
        $region81: #{voxel_decoder_forward.1} parent=11 // pred_check
          %p1090 = pneg %p492
        $region82: #{voxel_decoder_forward.1} parent=11 // pred_check_branch
          %1092 = sbr.rel (%p1090) target = $region84
        $region83: #{voxel_decoder_forward.1} parent=11 // pred_region
          %s1094 = ssub.s32 2048, 2048
          %1095 = vsyncadd [#allocation25], %s1094
          %s1096 = sshll.u32 [#allocation26], 4
          %s1097 = int_to_ptr.vmem [resolvable:$true] %s1096
          %1102 = dma.hbm_to_vmem [thread:$0]  %s35, 2048, %s1097, [#allocation25], 64, 64, 4
        $region84: #{voxel_decoder_forward.1} parent=11 // pred_fallthru
          _
        // Predicated region
        $region85: #{voxel_decoder_forward.1} parent=11 // pred_check
          %p1103 = pneg %p513
        $region86: #{voxel_decoder_forward.1} parent=11 // pred_check_branch
          %1105 = sbr.rel (%p1103) target = $region88
        $region87: #{voxel_decoder_forward.1} parent=11 // pred_region
          %s1107 = ssub.s32 32, 32
          %1108 = vsyncadd [#allocation28], %s1107
          %s1109 = sshll.u32 [#allocation27], 4
          %s1110 = int_to_ptr.vmem [resolvable:$true] %s1109
          %1115 = dma.hbm_to_vmem [thread:$0]  %s37, 32, %s1110, [#allocation28], 16, 16, 1
        $region88: #{voxel_decoder_forward.1} parent=11 // pred_fallthru
          _
        // Predicated region
        $region89: #{voxel_decoder_forward.1} parent=11 // pred_check
          %p1116 = pneg %p534
        $region90: #{voxel_decoder_forward.1} parent=11 // pred_check_branch
          %1118 = sbr.rel (%p1116) target = $region92
        $region91: #{voxel_decoder_forward.1} parent=11 // pred_region
          %s1120 = ssub.s32 2048, 2048
          %1121 = vsyncadd [#allocation28], %s1120
          %s1122 = sshll.u32 [#allocation29], 4
          %s1123 = int_to_ptr.vmem [resolvable:$true] %s1122
          %1128 = dma.hbm_to_vmem [thread:$0]  %s39, 2048, %s1123, [#allocation28], 64, 64, 4
        $region92: #{voxel_decoder_forward.1} parent=11 // pred_fallthru
          _
        // Predicated region
        $region93: #{voxel_decoder_forward.1} parent=11 // pred_check
          %p1129 = pneg %p555
        $region94: #{voxel_decoder_forward.1} parent=11 // pred_check_branch
          %1131 = sbr.rel (%p1129) target = $region96
        $region95: #{voxel_decoder_forward.1} parent=11 // pred_region
          %s1133 = ssub.s32 32, 32
          %1134 = vsyncadd [#allocation31], %s1133
          %s1135 = sshll.u32 [#allocation30], 4
          %s1136 = int_to_ptr.vmem [resolvable:$true] %s1135
          %1141 = dma.hbm_to_vmem [thread:$0]  %s41, 32, %s1136, [#allocation31], 16, 16, 1
        $region96: #{voxel_decoder_forward.1} parent=11 // pred_fallthru
          _
        // Predicated region
        $region97: #{voxel_decoder_forward.1} parent=11 // pred_check
          %p1142 = pneg %p576
        $region98: #{voxel_decoder_forward.1} parent=11 // pred_check_branch
          %1144 = sbr.rel (%p1142) target = $region100
        $region99: #{voxel_decoder_forward.1} parent=11 // pred_region
          %s1146 = ssub.s32 2048, 2048
          %1147 = vsyncadd [#allocation31], %s1146
          %s1148 = sshll.u32 [#allocation32], 4
          %s1149 = int_to_ptr.vmem [resolvable:$true] %s1148
          %1154 = dma.hbm_to_vmem [thread:$0]  %s43, 2048, %s1149, [#allocation31], 64, 64, 4
        $region100: #{voxel_decoder_forward.1} parent=11 // pred_fallthru
          _
        // Predicated region
        $region101: #{voxel_decoder_forward.1} parent=11 // pred_check
          %p1155 = pneg %p597
        $region102: #{voxel_decoder_forward.1} parent=11 // pred_check_branch
          %1157 = sbr.rel (%p1155) target = $region104
        $region103: #{voxel_decoder_forward.1} parent=11 // pred_region
          %s1159 = ssub.s32 32, 32
          %1160 = vsyncadd [#allocation34], %s1159
          %s1161 = sshll.u32 [#allocation33], 4
          %s1162 = int_to_ptr.vmem [resolvable:$true] %s1161
          %1167 = dma.hbm_to_vmem [thread:$0]  %s45, 32, %s1162, [#allocation34], 16, 16, 1
        $region104: #{voxel_decoder_forward.1} parent=11 // pred_fallthru
          _
        // Predicated region
        $region105: #{voxel_decoder_forward.1} parent=11 // pred_check
          %p1168 = pneg %p618
        $region106: #{voxel_decoder_forward.1} parent=11 // pred_check_branch
          %1170 = sbr.rel (%p1168) target = $region108
        $region107: #{voxel_decoder_forward.1} parent=11 // pred_region
          %s1172 = ssub.s32 32, 32
          %1173 = vsyncadd [#allocation34], %s1172
          %s1174 = sshll.u32 [#allocation35], 4
          %s1175 = int_to_ptr.vmem [resolvable:$true] %s1174
          %1180 = dma.hbm_to_vmem [thread:$0]  %s47, 32, %s1175, [#allocation34], 16, 16, 1
        $region108: #{voxel_decoder_forward.1} parent=11 // pred_fallthru
          _
        // Predicated region
        $region109: #{voxel_decoder_forward.1} parent=11 // pred_check
          %p1181 = pneg %p639
        $region110: #{voxel_decoder_forward.1} parent=11 // pred_check_branch
          %1183 = sbr.rel (%p1181) target = $region112
        $region111: #{voxel_decoder_forward.1} parent=11 // pred_region
          %s1185 = ssub.s32 32, 32
          %1186 = vsyncadd [#allocation37], %s1185
          %s1187 = sshll.u32 [#allocation36], 4
          %s1188 = int_to_ptr.vmem [resolvable:$true] %s1187
          %1193 = dma.hbm_to_vmem [thread:$0]  %s49, 32, %s1188, [#allocation37], 16, 16, 1
        $region112: #{voxel_decoder_forward.1} parent=11 // pred_fallthru
          _
        // Predicated region
        $region113: #{voxel_decoder_forward.1} parent=11 // pred_check
          %p1194 = pneg %p660
        $region114: #{voxel_decoder_forward.1} parent=11 // pred_check_branch
          %1196 = sbr.rel (%p1194) target = $region116
        $region115: #{voxel_decoder_forward.1} parent=11 // pred_region
          %s1198 = ssub.s32 8192, 8192
          %1199 = vsyncadd [#allocation37], %s1198
          %s1200 = sshll.u32 [#allocation38], 4
          %s1201 = int_to_ptr.vmem [resolvable:$true] %s1200
          %1206 = dma.hbm_to_vmem [thread:$0]  %s51, 8192, %s1201, [#allocation37], 256, 256, 16
        $region116: #{voxel_decoder_forward.1} parent=11 // pred_fallthru
          _
        // Predicated region
        $region117: #{voxel_decoder_forward.1} parent=11 // pred_check
          %p1207 = pneg %p681
        $region118: #{voxel_decoder_forward.1} parent=11 // pred_check_branch
          %1209 = sbr.rel (%p1207) target = $region120
        $region119: #{voxel_decoder_forward.1} parent=11 // pred_region
          %s1211 = ssub.s32 128, 128
          %1212 = vsyncadd [#allocation40], %s1211
          %s1213 = sshll.u32 [#allocation39], 4
          %s1214 = int_to_ptr.vmem [resolvable:$true] %s1213
          %1219 = dma.hbm_to_vmem [thread:$0]  %s53, 128, %s1214, [#allocation40], 64, 64, 4
        $region120: #{voxel_decoder_forward.1} parent=11 // pred_fallthru
          _
        // Predicated region
        $region121: #{voxel_decoder_forward.1} parent=11 // pred_check
          %p1220 = pneg %p702
        $region122: #{voxel_decoder_forward.1} parent=11 // pred_check_branch
          %1222 = sbr.rel (%p1220) target = $region124
        $region123: #{voxel_decoder_forward.1} parent=11 // pred_region
          %s1224 = ssub.s32 8192, 8192
          %1225 = vsyncadd [#allocation40], %s1224
          %s1226 = sshll.u32 [#allocation41], 4
          %s1227 = int_to_ptr.vmem [resolvable:$true] %s1226
          %1232 = dma.hbm_to_vmem [thread:$0]  %s55, 8192, %s1227, [#allocation40], 64, 64, 4
        $region124: #{voxel_decoder_forward.1} parent=11 // pred_fallthru
          _
        // Predicated region
        $region125: #{voxel_decoder_forward.1} parent=11 // pred_check
          %p1233 = pneg %p723
        $region126: #{voxel_decoder_forward.1} parent=11 // pred_check_branch
          %1235 = sbr.rel (%p1233) target = $region128
        $region127: #{voxel_decoder_forward.1} parent=11 // pred_region
          %s1237 = ssub.s32 32, 32
          %1238 = vsyncadd [#allocation43], %s1237
          %s1239 = sshll.u32 [#allocation42], 4
          %s1240 = int_to_ptr.vmem [resolvable:$true] %s1239
          %1245 = dma.hbm_to_vmem [thread:$0]  %s57, 32, %s1240, [#allocation43], 16, 16, 1
        $region128: #{voxel_decoder_forward.1} parent=11 // pred_fallthru
          _
        // Predicated region
        $region129: #{voxel_decoder_forward.1} parent=11 // pred_check
          %p1246 = pneg %p744
        $region130: #{voxel_decoder_forward.1} parent=11 // pred_check_branch
          %1248 = sbr.rel (%p1246) target = $region132
        $region131: #{voxel_decoder_forward.1} parent=11 // pred_region
          _
        $region132: #{voxel_decoder_forward.1} parent=11 // pred_fallthru
          _
        // Predicated region
        $region133: #{voxel_decoder_forward.1} parent=11 // pred_check
          %p1249 = pneg %p765
        $region134: #{voxel_decoder_forward.1} parent=11 // pred_check_branch
          %1251 = sbr.rel (%p1249) target = $region136
        $region135: #{voxel_decoder_forward.1} parent=11 // pred_region
          _
        $region136: #{voxel_decoder_forward.1} parent=11 // pred_fallthru
          _
        // Predicated region
        $region137: #{voxel_decoder_forward.1} parent=11 // pred_check
          %p1252 = pneg %p786
        $region138: #{voxel_decoder_forward.1} parent=11 // pred_check_branch
          %1254 = sbr.rel (%p1252) target = $region140
        $region139: #{voxel_decoder_forward.1} parent=11 // pred_region
          %s1256 = ssub.s32 16, 16
          %1257 = vsyncadd [#allocation43], %s1256
          %s1259 = sshll.u32 [#allocation44], 4
          %s1260 = int_to_ptr.vmem [resolvable:$true] %s1259
          %1262 = dma.hbm_to_vmem [thread:$0]  %s63, 16, %s1260, [#allocation43]
        $region140: #{voxel_decoder_forward.1} parent=11 // pred_fallthru
          _
        // Predicated region
        $region141: #{voxel_decoder_forward.1} parent=11 // pred_check
          %p1263 = pneg %p807
        $region142: #{voxel_decoder_forward.1} parent=11 // pred_check_branch
          %1265 = sbr.rel (%p1263) target = $region144
        $region143: #{voxel_decoder_forward.1} parent=11 // pred_region
          %s1267 = ssub.s32 16, 16
          %1268 = vsyncadd [#allocation46], %s1267
          %s1270 = sshll.u32 [#allocation45], 4
          %s1271 = int_to_ptr.vmem [resolvable:$true] %s1270
          %1273 = dma.hbm_to_vmem [thread:$0]  %s65, 16, %s1271, [#allocation46]
        $region144: #{voxel_decoder_forward.1} parent=11 // pred_fallthru
          _
        // Predicated region
        $region145: #{voxel_decoder_forward.1} parent=11 // pred_check
          %p1274 = pneg %p828
        $region146: #{voxel_decoder_forward.1} parent=11 // pred_check_branch
          %1276 = sbr.rel (%p1274) target = $region148
        $region147: #{voxel_decoder_forward.1} parent=11 // pred_region
          _
        $region148: #{voxel_decoder_forward.1} parent=11 // pred_fallthru
          _
        // Predicated region
        $region149: #{voxel_decoder_forward.1} parent=11 // pred_check
          %p1277 = pneg %p849
        $region150: #{voxel_decoder_forward.1} parent=11 // pred_check_branch
          %1279 = sbr.rel (%p1277) target = $region152
        $region151: #{voxel_decoder_forward.1} parent=11 // pred_region
          %s1281 = ssub.s32 16, 16
          %1282 = vsyncadd [#allocation46], %s1281
          %s1284 = sshll.u32 [#allocation47], 4
          %s1285 = int_to_ptr.vmem [resolvable:$true] %s1284
          %1287 = dma.hbm_to_vmem [thread:$0]  %s69, 16, %s1285, [#allocation46]
        $region152: #{voxel_decoder_forward.1} parent=11 // pred_fallthru
          _
      $region12: #{voxel_decoder_forward.1} parent=5 // pred_fallthru
        _
      %p1288 = scmp.lt.s32.totalorder %s92, 2
      // Predicated region
      $region153: #{voxel_decoder_forward.1} parent=5 // pred_check
        %p1289 = pneg %p1288
      $region154: #{voxel_decoder_forward.1} parent=5 // pred_check_branch
        %1291 = sbr.rel (%p1289) target = $region156
      $region155: #{voxel_decoder_forward.1} parent=5 // pred_region
        _
      $region156: #{voxel_decoder_forward.1} parent=5 // pred_fallthru
        _
      %p1292 = scmp.le.s32.totalorder 1, %s92
      %p1293 = scmp.lt.s32.totalorder %s92, 3
      %p1294 = pnand %p1292, %p1293
      %p1295 = pneg %p1294
      // Predicated region
      $region157: #{voxel_decoder_forward.1} parent=5 // pred_check
        _
      $region158: #{voxel_decoder_forward.1} parent=5 // pred_check_branch
        %1297 = sbr.rel (%p1294) target = $region160
      $region159: #{voxel_decoder_forward.1} parent=5 // pred_region
        %s1298 = ssub.s32 %s92, 1
        // Predicated region
        $region161: #{voxel_decoder_forward.1} parent=159 // pred_check
          %p1299 = pneg %p125
        $region162: #{voxel_decoder_forward.1} parent=159 // pred_check_branch
          %1301 = sbr.rel (%p1299) target = $region164
        $region163: #{voxel_decoder_forward.1} parent=159 // pred_region
          %1302 = dma.done [#allocation5], 128
        $region164: #{voxel_decoder_forward.1} parent=159 // pred_fallthru
          _
        // Predicated region
        $region165: #{voxel_decoder_forward.1} parent=159 // pred_check
          %p1303 = pneg %p219
        $region166: #{voxel_decoder_forward.1} parent=159 // pred_check_branch
          %1305 = sbr.rel (%p1303) target = $region168
        $region167: #{voxel_decoder_forward.1} parent=159 // pred_region
          %1306 = dma.done [#allocation7], 32
        $region168: #{voxel_decoder_forward.1} parent=159 // pred_fallthru
          _
        // Predicated region
        $region169: #{voxel_decoder_forward.1} parent=159 // pred_check
          %p1307 = pneg %p240
        $region170: #{voxel_decoder_forward.1} parent=159 // pred_check_branch
          %1309 = sbr.rel (%p1307) target = $region172
        $region171: #{voxel_decoder_forward.1} parent=159 // pred_region
          %1310 = dma.done [#allocation7], 2048
        $region172: #{voxel_decoder_forward.1} parent=159 // pred_fallthru
          _
        // Predicated region
        $region173: #{voxel_decoder_forward.1} parent=159 // pred_check
          %p1311 = pneg %p261
        $region174: #{voxel_decoder_forward.1} parent=159 // pred_check_branch
          %1313 = sbr.rel (%p1311) target = $region176
        $region175: #{voxel_decoder_forward.1} parent=159 // pred_region
          %1314 = dma.done [#allocation10], 32
        $region176: #{voxel_decoder_forward.1} parent=159 // pred_fallthru
          _
        // Predicated region
        $region177: #{voxel_decoder_forward.1} parent=159 // pred_check
          %p1315 = pneg %p282
        $region178: #{voxel_decoder_forward.1} parent=159 // pred_check_branch
          %1317 = sbr.rel (%p1315) target = $region180
        $region179: #{voxel_decoder_forward.1} parent=159 // pred_region
          %1318 = dma.done [#allocation10], 2048
        $region180: #{voxel_decoder_forward.1} parent=159 // pred_fallthru
          _
        // Predicated region
        $region181: #{voxel_decoder_forward.1} parent=159 // pred_check
          %p1319 = pneg %p303
        $region182: #{voxel_decoder_forward.1} parent=159 // pred_check_branch
          %1321 = sbr.rel (%p1319) target = $region184
        $region183: #{voxel_decoder_forward.1} parent=159 // pred_region
          %1322 = dma.done [#allocation13], 32
        $region184: #{voxel_decoder_forward.1} parent=159 // pred_fallthru
          _
        // Predicated region
        $region185: #{voxel_decoder_forward.1} parent=159 // pred_check
          %p1323 = pneg %p324
        $region186: #{voxel_decoder_forward.1} parent=159 // pred_check_branch
          %1325 = sbr.rel (%p1323) target = $region188
        $region187: #{voxel_decoder_forward.1} parent=159 // pred_region
          %1326 = dma.done [#allocation13], 2048
        $region188: #{voxel_decoder_forward.1} parent=159 // pred_fallthru
          _
        // Predicated region
        $region189: #{voxel_decoder_forward.1} parent=159 // pred_check
          %p1327 = pneg %p345
        $region190: #{voxel_decoder_forward.1} parent=159 // pred_check_branch
          %1329 = sbr.rel (%p1327) target = $region192
        $region191: #{voxel_decoder_forward.1} parent=159 // pred_region
          %1330 = dma.done [#allocation16], 32
        $region192: #{voxel_decoder_forward.1} parent=159 // pred_fallthru
          _
        // Predicated region
        $region193: #{voxel_decoder_forward.1} parent=159 // pred_check
          %p1331 = pneg %p366
        $region194: #{voxel_decoder_forward.1} parent=159 // pred_check_branch
          %1333 = sbr.rel (%p1331) target = $region196
        $region195: #{voxel_decoder_forward.1} parent=159 // pred_region
          %1334 = dma.done [#allocation16], 2048
        $region196: #{voxel_decoder_forward.1} parent=159 // pred_fallthru
          _
        // Predicated region
        $region197: #{voxel_decoder_forward.1} parent=159 // pred_check
          %p1335 = pneg %p387
        $region198: #{voxel_decoder_forward.1} parent=159 // pred_check_branch
          %1337 = sbr.rel (%p1335) target = $region200
        $region199: #{voxel_decoder_forward.1} parent=159 // pred_region
          %1338 = dma.done [#allocation19], 32
        $region200: #{voxel_decoder_forward.1} parent=159 // pred_fallthru
          _
        // Predicated region
        $region201: #{voxel_decoder_forward.1} parent=159 // pred_check
          %p1339 = pneg %p408
        $region202: #{voxel_decoder_forward.1} parent=159 // pred_check_branch
          %1341 = sbr.rel (%p1339) target = $region204
        $region203: #{voxel_decoder_forward.1} parent=159 // pred_region
          %1342 = dma.done [#allocation19], 32
        $region204: #{voxel_decoder_forward.1} parent=159 // pred_fallthru
          _
        // Predicated region
        $region205: #{voxel_decoder_forward.1} parent=159 // pred_check
          %p1343 = pneg %p429
        $region206: #{voxel_decoder_forward.1} parent=159 // pred_check_branch
          %1345 = sbr.rel (%p1343) target = $region208
        $region207: #{voxel_decoder_forward.1} parent=159 // pred_region
          %1346 = dma.done [#allocation22], 32
        $region208: #{voxel_decoder_forward.1} parent=159 // pred_fallthru
          _
        // Predicated region
        $region209: #{voxel_decoder_forward.1} parent=159 // pred_check
          %p1347 = pneg %p450
        $region210: #{voxel_decoder_forward.1} parent=159 // pred_check_branch
          %1349 = sbr.rel (%p1347) target = $region212
        $region211: #{voxel_decoder_forward.1} parent=159 // pred_region
          %1350 = dma.done [#allocation22], 2048
        $region212: #{voxel_decoder_forward.1} parent=159 // pred_fallthru
          _
        // Predicated region
        $region213: #{voxel_decoder_forward.1} parent=159 // pred_check
          %p1351 = pneg %p471
        $region214: #{voxel_decoder_forward.1} parent=159 // pred_check_branch
          %1353 = sbr.rel (%p1351) target = $region216
        $region215: #{voxel_decoder_forward.1} parent=159 // pred_region
          %1354 = dma.done [#allocation25], 32
        $region216: #{voxel_decoder_forward.1} parent=159 // pred_fallthru
          _
        // Predicated region
        $region217: #{voxel_decoder_forward.1} parent=159 // pred_check
          %p1355 = pneg %p492
        $region218: #{voxel_decoder_forward.1} parent=159 // pred_check_branch
          %1357 = sbr.rel (%p1355) target = $region220
        $region219: #{voxel_decoder_forward.1} parent=159 // pred_region
          %1358 = dma.done [#allocation25], 2048
        $region220: #{voxel_decoder_forward.1} parent=159 // pred_fallthru
          _
        // Predicated region
        $region221: #{voxel_decoder_forward.1} parent=159 // pred_check
          %p1359 = pneg %p513
        $region222: #{voxel_decoder_forward.1} parent=159 // pred_check_branch
          %1361 = sbr.rel (%p1359) target = $region224
        $region223: #{voxel_decoder_forward.1} parent=159 // pred_region
          %1362 = dma.done [#allocation28], 32
        $region224: #{voxel_decoder_forward.1} parent=159 // pred_fallthru
          _
        // Predicated region
        $region225: #{voxel_decoder_forward.1} parent=159 // pred_check
          %p1363 = pneg %p534
        $region226: #{voxel_decoder_forward.1} parent=159 // pred_check_branch
          %1365 = sbr.rel (%p1363) target = $region228
        $region227: #{voxel_decoder_forward.1} parent=159 // pred_region
          %1366 = dma.done [#allocation28], 2048
        $region228: #{voxel_decoder_forward.1} parent=159 // pred_fallthru
          _
        // Predicated region
        $region229: #{voxel_decoder_forward.1} parent=159 // pred_check
          %p1367 = pneg %p555
        $region230: #{voxel_decoder_forward.1} parent=159 // pred_check_branch
          %1369 = sbr.rel (%p1367) target = $region232
        $region231: #{voxel_decoder_forward.1} parent=159 // pred_region
          %1370 = dma.done [#allocation31], 32
        $region232: #{voxel_decoder_forward.1} parent=159 // pred_fallthru
          _
        // Predicated region
        $region233: #{voxel_decoder_forward.1} parent=159 // pred_check
          %p1371 = pneg %p576
        $region234: #{voxel_decoder_forward.1} parent=159 // pred_check_branch
          %1373 = sbr.rel (%p1371) target = $region236
        $region235: #{voxel_decoder_forward.1} parent=159 // pred_region
          %1374 = dma.done [#allocation31], 2048
        $region236: #{voxel_decoder_forward.1} parent=159 // pred_fallthru
          _
        // Predicated region
        $region237: #{voxel_decoder_forward.1} parent=159 // pred_check
          %p1375 = pneg %p597
        $region238: #{voxel_decoder_forward.1} parent=159 // pred_check_branch
          %1377 = sbr.rel (%p1375) target = $region240
        $region239: #{voxel_decoder_forward.1} parent=159 // pred_region
          %1378 = dma.done [#allocation34], 32
        $region240: #{voxel_decoder_forward.1} parent=159 // pred_fallthru
          _
        // Predicated region
        $region241: #{voxel_decoder_forward.1} parent=159 // pred_check
          %p1379 = pneg %p618
        $region242: #{voxel_decoder_forward.1} parent=159 // pred_check_branch
          %1381 = sbr.rel (%p1379) target = $region244
        $region243: #{voxel_decoder_forward.1} parent=159 // pred_region
          %1382 = dma.done [#allocation34], 32
        $region244: #{voxel_decoder_forward.1} parent=159 // pred_fallthru
          _
        // Predicated region
        $region245: #{voxel_decoder_forward.1} parent=159 // pred_check
          %p1383 = pneg %p639
        $region246: #{voxel_decoder_forward.1} parent=159 // pred_check_branch
          %1385 = sbr.rel (%p1383) target = $region248
        $region247: #{voxel_decoder_forward.1} parent=159 // pred_region
          %1386 = dma.done [#allocation37], 32
        $region248: #{voxel_decoder_forward.1} parent=159 // pred_fallthru
          _
        // Predicated region
        $region249: #{voxel_decoder_forward.1} parent=159 // pred_check
          %p1387 = pneg %p660
        $region250: #{voxel_decoder_forward.1} parent=159 // pred_check_branch
          %1389 = sbr.rel (%p1387) target = $region252
        $region251: #{voxel_decoder_forward.1} parent=159 // pred_region
          %1390 = dma.done [#allocation37], 8192
        $region252: #{voxel_decoder_forward.1} parent=159 // pred_fallthru
          _
        // Predicated region
        $region253: #{voxel_decoder_forward.1} parent=159 // pred_check
          %p1391 = pneg %p681
        $region254: #{voxel_decoder_forward.1} parent=159 // pred_check_branch
          %1393 = sbr.rel (%p1391) target = $region256
        $region255: #{voxel_decoder_forward.1} parent=159 // pred_region
          %1394 = dma.done [#allocation40], 128
        $region256: #{voxel_decoder_forward.1} parent=159 // pred_fallthru
          _
        // Predicated region
        $region257: #{voxel_decoder_forward.1} parent=159 // pred_check
          %p1395 = pneg %p702
        $region258: #{voxel_decoder_forward.1} parent=159 // pred_check_branch
          %1397 = sbr.rel (%p1395) target = $region260
        $region259: #{voxel_decoder_forward.1} parent=159 // pred_region
          %1398 = dma.done [#allocation40], 8192
        $region260: #{voxel_decoder_forward.1} parent=159 // pred_fallthru
          _
        // Predicated region
        $region261: #{voxel_decoder_forward.1} parent=159 // pred_check
          %p1399 = pneg %p723
        $region262: #{voxel_decoder_forward.1} parent=159 // pred_check_branch
          %1401 = sbr.rel (%p1399) target = $region264
        $region263: #{voxel_decoder_forward.1} parent=159 // pred_region
          %1402 = dma.done [#allocation43], 32
        $region264: #{voxel_decoder_forward.1} parent=159 // pred_fallthru
          _
        // Predicated region
        $region265: #{voxel_decoder_forward.1} parent=159 // pred_check
          %p1403 = pneg %p786
        $region266: #{voxel_decoder_forward.1} parent=159 // pred_check_branch
          %1405 = sbr.rel (%p1403) target = $region268
        $region267: #{voxel_decoder_forward.1} parent=159 // pred_region
          %1406 = dma.done [#allocation43], 16
        $region268: #{voxel_decoder_forward.1} parent=159 // pred_fallthru
          _
        // Predicated region
        $region269: #{voxel_decoder_forward.1} parent=159 // pred_check
          %p1407 = pneg %p807
        $region270: #{voxel_decoder_forward.1} parent=159 // pred_check_branch
          %1409 = sbr.rel (%p1407) target = $region272
        $region271: #{voxel_decoder_forward.1} parent=159 // pred_region
          %1410 = dma.done [#allocation46], 16
        $region272: #{voxel_decoder_forward.1} parent=159 // pred_fallthru
          _
        // Predicated region
        $region273: #{voxel_decoder_forward.1} parent=159 // pred_check
          %p1411 = pneg %p849
        $region274: #{voxel_decoder_forward.1} parent=159 // pred_check_branch
          %1413 = sbr.rel (%p1411) target = $region276
        $region275: #{voxel_decoder_forward.1} parent=159 // pred_region
          %1414 = dma.done [#allocation46], 16
        $region276: #{voxel_decoder_forward.1} parent=159 // pred_fallthru
          _
        %p1415 = pneg %p125
        %p1416 = pneg %p122
        %s1417 = smul.u32 2, %s101
        %p1418 = scmp.lt.s32.totalorder %s1417, 1
        %s1419 = scalar_select %p1418, %s1417, 1
        %s1420 = smul.addr %s1419, 4
        %s1421 = scalar_lea.vmem %s3, %s1420
        %p1422 = pneg %p151
        %p1423 = pneg %p148
        %s1424 = smul.u32 2, %s101
        %p1425 = scmp.lt.s32.totalorder %s1424, 1
        %s1426 = scalar_select %p1425, %s1424, 1
        %s1427 = scalar_lea.vmem %s5, %s1426
        %p1428 = pneg %p177
        %p1429 = pneg %p174
        %p1430 = pneg %p198
        %p1431 = pneg %p195
        %p1432 = pneg %p219
        %p1433 = pneg %p216
        %p1434 = pneg %p240
        %p1435 = pneg %p237
        %p1436 = pneg %p261
        %p1437 = pneg %p258
        %p1438 = pneg %p282
        %p1439 = pneg %p279
        %p1440 = pneg %p303
        %p1441 = pneg %p300
        %p1442 = pneg %p324
        %p1443 = pneg %p321
        %p1444 = pneg %p345
        %p1445 = pneg %p342
        %p1446 = pneg %p366
        %p1447 = pneg %p363
        %p1448 = pneg %p387
        %p1449 = pneg %p384
        %p1450 = pneg %p408
        %p1451 = pneg %p405
        %p1452 = pneg %p429
        %p1453 = pneg %p426
        %p1454 = pneg %p450
        %p1455 = pneg %p447
        %p1456 = pneg %p471
        %p1457 = pneg %p468
        %p1458 = pneg %p492
        %p1459 = pneg %p489
        %p1460 = pneg %p513
        %p1461 = pneg %p510
        %p1462 = pneg %p534
        %p1463 = pneg %p531
        %p1464 = pneg %p555
        %p1465 = pneg %p552
        %p1466 = pneg %p576
        %p1467 = pneg %p573
        %p1468 = pneg %p597
        %p1469 = pneg %p594
        %p1470 = pneg %p618
        %p1471 = pneg %p615
        %p1472 = pneg %p639
        %p1473 = pneg %p636
        %p1474 = pneg %p660
        %p1475 = pneg %p657
        %p1476 = pneg %p681
        %p1477 = pneg %p678
        %p1478 = pneg %p702
        %p1479 = pneg %p699
        %p1480 = pneg %p723
        %p1481 = pneg %p720
        %p1482 = pneg %p744
        %p1483 = pneg %p741
        %p1484 = pneg %p765
        %p1485 = pneg %p762
        %p1486 = pneg %p786
        %p1487 = pneg %p783
        %p1488 = pneg %p807
        %p1489 = pneg %p804
        %p1490 = pneg %p828
        %p1491 = pneg %p825
        %p1492 = pneg %p849
        %p1493 = pneg %p846
        %p1494 = pneg %p875
        %p1495 = pneg %p872
        %s1496 = smul.u32 2, %s101
        %p1497 = scmp.lt.s32.totalorder %s1496, 1
        %s1498 = scalar_select %p1497, %s1496, 1
        %s1499 = smul.addr %s1498, 8
        %s1500 = scalar_lea.vmem %s71, %s1499
        %s1501 = smul.u32 2, %s101
        %p1502 = scmp.lt.s32.totalorder %s1501, 1
        %s1503 = scalar_select %p1502, %s1501, 1
        %s1504 = smul.addr %s1503, 4
        %s1505 = scalar_lea.vmem %s3, %s1504
        %s1506 = smul.u32 2, %s101
        %s1507 = smul.u32 2, %s101
        %p1508 = scmp.lt.s32.totalorder %s1507, 1
        %s1509 = scalar_select %p1508, %s1507, 1
        %s1510 = scalar_lea.vmem %s5, %s1509
        %s1511 = smul.u32 2, %s101
        %s1512 = smul.u32 2, %s101
        %p1513 = scmp.lt.s32.totalorder %s1512, 1
        %s1514 = scalar_select %p1513, %s1512, 1
        %s1515 = smul.addr %s1514, 8
        %s1516 = scalar_lea.vmem %s71, %s1515
        %s1517 = smul.u32 2, %s101
        %p1519 = scmp.eq.s32.totalorder %s102, 0
        // Predicated region
        $region277: #{voxel_decoder_forward.1} parent=159 // pred_check
          %p1520 = pneg %p1519
        $region278: #{voxel_decoder_forward.1} parent=159 // pred_check_branch
          %1522 = sbr.rel (%p1520) target = $region280
        $region279: #{voxel_decoder_forward.1} parent=159 // pred_region
          %v1523 = vld [vmem:[#allocation4] sm:$0xff]
          %1524 = vst [vmem:[#allocation2] sm:$0xff] %v1523
          %1525 = vst [vmem:[#allocation2 + $0x8] sm:$0xff] %v1523
        $region280: #{voxel_decoder_forward.1} parent=159 // pred_fallthru
          _
        %v1526 = vld [vmem:[#allocation2] sm:$0xff]
        %v1527 = vld [vmem:[#allocation2 + $0x8] sm:$0xff]
        %s1528 = scalar_lea.vmem %s7, %s102
        %v1529 = vld [vmem:[%s1528] sm:$0x1]
        %s1530 = scalar_lea.vmem [#allocation6], %s102
        %v1531 = vld [vmem:[%s1530] sm:$0x1]
        %1532 = vadd.xlane.f32.xlu0 %v1526
        %v1533 = vpop.xlane.xlu0 %1532
        %1534 = vadd.xlane.f32.xlu0 %v1527
        %v1535 = vpop.xlane.xlu0 %1534
        %v1536 = vrcp.pop 128.0
        %v1537 = vmul.f32 %v1533, %v1536
        %v1538 = vmul.f32 %v1535, %v1536
        %v1539 = vsub.f32 %v1526, %v1537
        %v1540 = vsub.f32 %v1527, %v1538
        %v1541 = vmul.f32 %v1539, %v1539
        %v1542 = vmul.f32 %v1540, %v1540
        %1543 = vadd.xlane.f32.xlu0 %v1541
        %v1544 = vpop.xlane.xlu0 %1543
        %1545 = vadd.xlane.f32.xlu0 %v1542
        %v1546 = vpop.xlane.xlu0 %1545
        %v1547 = vmul.f32 %v1544, %v1536
        %v1548 = vmul.f32 %v1546, %v1536
        %v1549 = vadd.f32 %v1547, 1e-05
        %v1550 = vadd.f32 %v1548, 1e-05
        %v1551 = vrsqrt.pop %v1549
        %v1552 = vrsqrt.pop %v1550
        %v1553 = vmul.f32 %v1539, %v1551
        %v1554 = vmul.f32 %v1540, %v1552
        %v1556 = vlaneseq
        %v1557 = vshrl.u32 %v1556, 7
        %v1558 = vsub.s32 0, %v1557
        %v1559 = vrot.slane %v1529, %v1558
        %v1561 = vmul.f32 %v1553, %v1559
        %v1562 = vmul.f32 %v1554, %v1559
        %v1564 = vlaneseq
        %v1565 = vshrl.u32 %v1564, 7
        %v1566 = vsub.s32 0, %v1565
        %v1567 = vrot.slane %v1531, %v1566
        %v1569 = vadd.f32 %v1561, %v1567
        %v1570 = vadd.f32 %v1562, %v1567
        %v1571 = vpack.c.bf16 %v1570, %v1569
        %s1572 = smul.u32 %s102, 16
        %s1573 = smul.addr %s1572, 4
        %s1574 = scalar_lea.vmem [#allocation8], %s1573
        %v1575 = vld [vmem:[%s1574] sm:$0xf]
        %v1576 = vld [vmem:[%s1574 + $0x4] sm:$0xf]
        %v1577 = vld [vmem:[%s1574 + $0x8] sm:$0xf]
        %v1578 = vld [vmem:[%s1574 + $0xc] sm:$0xf]
        %v1579 = vld [vmem:[%s1574 + $0x10] sm:$0xf]
        %v1580 = vld [vmem:[%s1574 + $0x14] sm:$0xf]
        %v1581 = vld [vmem:[%s1574 + $0x18] sm:$0xf]
        %v1582 = vld [vmem:[%s1574 + $0x1c] sm:$0xf]
        %v1583 = vld [vmem:[%s1574 + $0x20] sm:$0xf]
        %v1584 = vld [vmem:[%s1574 + $0x24] sm:$0xf]
        %v1585 = vld [vmem:[%s1574 + $0x28] sm:$0xf]
        %v1586 = vld [vmem:[%s1574 + $0x2c] sm:$0xf]
        %v1587 = vld [vmem:[%s1574 + $0x30] sm:$0xf]
        %v1588 = vld [vmem:[%s1574 + $0x34] sm:$0xf]
        %v1589 = vld [vmem:[%s1574 + $0x38] sm:$0xf]
        %v1590 = vld [vmem:[%s1574 + $0x3c] sm:$0xf]
        %s1591 = scalar_lea.vmem [#allocation9], %s102
        %v1592 = vld [vmem:[%s1591] sm:$0x1]
        %v1594 = vlaneseq
        %v1595 = vshrl.u32 %v1594, 7
        %v1596 = vsub.s32 0, %v1595
        %v1597 = vrot.slane %v1592, %v1596
        %v1615 = vunpack.c.l.b16 %v1575
        %v1616 = vunpack.c.l.b16 %v1576
        %v1617 = vunpack.c.l.b16 %v1577
        %v1618 = vunpack.c.l.b16 %v1578
        %v1619 = vunpack.c.l.b16 %v1579
        %v1620 = vunpack.c.l.b16 %v1580
        %v1621 = vunpack.c.l.b16 %v1581
        %v1622 = vunpack.c.l.b16 %v1582
        %v1623 = vunpack.c.l.b16 %v1583
        %v1624 = vunpack.c.l.b16 %v1584
        %v1625 = vunpack.c.l.b16 %v1585
        %v1626 = vunpack.c.l.b16 %v1586
        %v1627 = vunpack.c.l.b16 %v1587
        %v1628 = vunpack.c.l.b16 %v1588
        %v1629 = vunpack.c.l.b16 %v1589
        %v1630 = vunpack.c.l.b16 %v1590
        %v1631 = vpack.c.b16 %v1616, %v1615
        %v1632 = vpack.c.b16 %v1618, %v1617
        %v1633 = vpack.c.b16 %v1620, %v1619
        %v1634 = vpack.c.b16 %v1622, %v1621
        %v1635 = vpack.c.b16 %v1624, %v1623
        %v1636 = vpack.c.b16 %v1626, %v1625
        %v1637 = vpack.c.b16 %v1628, %v1627
        %v1638 = vpack.c.b16 %v1630, %v1629
        %1647 = vmatprep.subr.bf16.mxu0 0
        %1648 = vmatpush1.bf16.msra.mxu0 %v1638
        %1649 = vmatprep.subr.bf16.mxu0 0
        %1650 = vmatpush1.bf16.msra.mxu0 %v1637
        %1651 = vmatprep.subr.bf16.mxu0 0
        %1652 = vmatpush1.bf16.msra.mxu0 %v1636
        %1653 = vmatprep.subr.bf16.mxu0 0
        %1654 = vmatpush1.bf16.msra.mxu0 %v1635
        %1655 = vmatprep.subr.bf16.mxu0 0
        %1656 = vmatpush1.bf16.msra.mxu0 %v1634
        %1657 = vmatprep.subr.bf16.mxu0 0
        %1658 = vmatpush1.bf16.msra.mxu0 %v1633
        %1659 = vmatprep.subr.bf16.mxu0 0
        %1660 = vmatpush1.bf16.msra.mxu0 %v1632
        %1661 = vmatprep.subr.bf16.mxu0 0
        %1662 = vmatpush1.bf16.msra.mxu0 %v1631
        %1663 = vmatprep.subr.bf16.mxu0 0
        %1664 = vmatpush2.bf16.msra.mxu0 0
        %1665 = vmatprep.subr.bf16.mxu0 0
        %1666 = vmatpush2.bf16.msra.mxu0 0
        %1667 = vmatprep.subr.bf16.mxu0 0
        %1668 = vmatpush2.bf16.msra.mxu0 0
        %1669 = vmatprep.subr.bf16.mxu0 0
        %1670 = vmatpush2.bf16.msra.mxu0 0
        %1671 = vmatprep.subr.bf16.mxu0 0
        %1672 = vmatpush2.bf16.msra.mxu0 0
        %1673 = vmatprep.subr.bf16.mxu0 0
        %1674 = vmatpush2.bf16.msra.mxu0 0
        %1675 = vmatprep.subr.bf16.mxu0 0
        %1676 = vmatpush2.bf16.msra.mxu0 0
        %1677 = vmatprep.subr.bf16.mxu0 0
        %1678 = vmatpush2.bf16.msra.mxu0 0
        %1679 = vmatprep.mubr.bf16.mxu0 0
        %1680 = vmatmul.mubr.bf16.gmra.mxu0 %v1571
        %v1681 = vpop.f32.mrf.mxu0
        %v1682 = vadd.f32 %v1597, %v1681
        %v1683 = vpop.f32.mrf.mxu0
        %v1684 = vpop.f32.mrf.mxu0
        %v1685 = vadd.f32 %v1597, %v1684
        %v1686 = vpop.f32.mrf.mxu0
        %1687 = vdwg.mxu0
        %v1688 = vmul.f32 %v1682, 0.17677669
        %v1689 = vmul.f32 %v1685, 0.17677669
        %v1690 = vpack.c.bf16 %v1689, %v1688
        %s1691 = smul.addr %s1572, 4
        %s1692 = scalar_lea.vmem [#allocation11], %s1691
        %v1693 = vld [vmem:[%s1692] sm:$0xf]
        %v1694 = vld [vmem:[%s1692 + $0x4] sm:$0xf]
        %v1695 = vld [vmem:[%s1692 + $0x8] sm:$0xf]
        %v1696 = vld [vmem:[%s1692 + $0xc] sm:$0xf]
        %v1697 = vld [vmem:[%s1692 + $0x10] sm:$0xf]
        %v1698 = vld [vmem:[%s1692 + $0x14] sm:$0xf]
        %v1699 = vld [vmem:[%s1692 + $0x18] sm:$0xf]
        %v1700 = vld [vmem:[%s1692 + $0x1c] sm:$0xf]
        %v1701 = vld [vmem:[%s1692 + $0x20] sm:$0xf]
        %v1702 = vld [vmem:[%s1692 + $0x24] sm:$0xf]
        %v1703 = vld [vmem:[%s1692 + $0x28] sm:$0xf]
        %v1704 = vld [vmem:[%s1692 + $0x2c] sm:$0xf]
        %v1705 = vld [vmem:[%s1692 + $0x30] sm:$0xf]
        %v1706 = vld [vmem:[%s1692 + $0x34] sm:$0xf]
        %v1707 = vld [vmem:[%s1692 + $0x38] sm:$0xf]
        %v1708 = vld [vmem:[%s1692 + $0x3c] sm:$0xf]
        %s1709 = scalar_lea.vmem [#allocation12], %s102
        %v1710 = vld [vmem:[%s1709] sm:$0x1]
        %v1712 = vlaneseq
        %v1713 = vshrl.u32 %v1712, 7
        %v1714 = vsub.s32 0, %v1713
        %v1715 = vrot.slane %v1710, %v1714
        %v1733 = vunpack.c.l.b16 %v1693
        %v1734 = vunpack.c.l.b16 %v1694
        %v1735 = vunpack.c.l.b16 %v1695
        %v1736 = vunpack.c.l.b16 %v1696
        %v1737 = vunpack.c.l.b16 %v1697
        %v1738 = vunpack.c.l.b16 %v1698
        %v1739 = vunpack.c.l.b16 %v1699
        %v1740 = vunpack.c.l.b16 %v1700
        %v1741 = vunpack.c.l.b16 %v1701
        %v1742 = vunpack.c.l.b16 %v1702
        %v1743 = vunpack.c.l.b16 %v1703
        %v1744 = vunpack.c.l.b16 %v1704
        %v1745 = vunpack.c.l.b16 %v1705
        %v1746 = vunpack.c.l.b16 %v1706
        %v1747 = vunpack.c.l.b16 %v1707
        %v1748 = vunpack.c.l.b16 %v1708
        %v1749 = vpack.c.b16 %v1734, %v1733
        %v1750 = vpack.c.b16 %v1736, %v1735
        %v1751 = vpack.c.b16 %v1738, %v1737
        %v1752 = vpack.c.b16 %v1740, %v1739
        %v1753 = vpack.c.b16 %v1742, %v1741
        %v1754 = vpack.c.b16 %v1744, %v1743
        %v1755 = vpack.c.b16 %v1746, %v1745
        %v1756 = vpack.c.b16 %v1748, %v1747
        %1765 = vmatprep.subr.bf16.mxu0 0
        %1766 = vmatpush1.bf16.msra.mxu0 %v1756
        %1767 = vmatprep.subr.bf16.mxu0 0
        %1768 = vmatpush1.bf16.msra.mxu0 %v1755
        %1769 = vmatprep.subr.bf16.mxu0 0
        %1770 = vmatpush1.bf16.msra.mxu0 %v1754
        %1771 = vmatprep.subr.bf16.mxu0 0
        %1772 = vmatpush1.bf16.msra.mxu0 %v1753
        %1773 = vmatprep.subr.bf16.mxu0 0
        %1774 = vmatpush1.bf16.msra.mxu0 %v1752
        %1775 = vmatprep.subr.bf16.mxu0 0
        %1776 = vmatpush1.bf16.msra.mxu0 %v1751
        %1777 = vmatprep.subr.bf16.mxu0 0
        %1778 = vmatpush1.bf16.msra.mxu0 %v1750
        %1779 = vmatprep.subr.bf16.mxu0 0
        %1780 = vmatpush1.bf16.msra.mxu0 %v1749
        %1781 = vmatprep.subr.bf16.mxu0 0
        %1782 = vmatpush2.bf16.msra.mxu0 0
        %1783 = vmatprep.subr.bf16.mxu0 0
        %1784 = vmatpush2.bf16.msra.mxu0 0
        %1785 = vmatprep.subr.bf16.mxu0 0
        %1786 = vmatpush2.bf16.msra.mxu0 0
        %1787 = vmatprep.subr.bf16.mxu0 0
        %1788 = vmatpush2.bf16.msra.mxu0 0
        %1789 = vmatprep.subr.bf16.mxu0 0
        %1790 = vmatpush2.bf16.msra.mxu0 0
        %1791 = vmatprep.subr.bf16.mxu0 0
        %1792 = vmatpush2.bf16.msra.mxu0 0
        %1793 = vmatprep.subr.bf16.mxu0 0
        %1794 = vmatpush2.bf16.msra.mxu0 0
        %1795 = vmatprep.subr.bf16.mxu0 0
        %1796 = vmatpush2.bf16.msra.mxu0 0
        %1797 = vmatprep.mubr.bf16.mxu0 0
        %1798 = vmatmul.mubr.bf16.gmra.mxu0 %v1571
        %v1799 = vpop.f32.mrf.mxu0
        %v1800 = vadd.f32 %v1715, %v1799
        %v1801 = vpop.f32.mrf.mxu0
        %v1802 = vpop.f32.mrf.mxu0
        %v1803 = vadd.f32 %v1715, %v1802
        %v1804 = vpop.f32.mrf.mxu0
        %1805 = vdwg.mxu0
        %v1806 = vpack.c.bf16 %v1803, %v1800
        %s1807 = smul.addr %s1572, 4
        %s1808 = scalar_lea.vmem [#allocation14], %s1807
        %v1809 = vld [vmem:[%s1808] sm:$0xf]
        %v1810 = vld [vmem:[%s1808 + $0x4] sm:$0xf]
        %v1811 = vld [vmem:[%s1808 + $0x8] sm:$0xf]
        %v1812 = vld [vmem:[%s1808 + $0xc] sm:$0xf]
        %v1813 = vld [vmem:[%s1808 + $0x10] sm:$0xf]
        %v1814 = vld [vmem:[%s1808 + $0x14] sm:$0xf]
        %v1815 = vld [vmem:[%s1808 + $0x18] sm:$0xf]
        %v1816 = vld [vmem:[%s1808 + $0x1c] sm:$0xf]
        %v1817 = vld [vmem:[%s1808 + $0x20] sm:$0xf]
        %v1818 = vld [vmem:[%s1808 + $0x24] sm:$0xf]
        %v1819 = vld [vmem:[%s1808 + $0x28] sm:$0xf]
        %v1820 = vld [vmem:[%s1808 + $0x2c] sm:$0xf]
        %v1821 = vld [vmem:[%s1808 + $0x30] sm:$0xf]
        %v1822 = vld [vmem:[%s1808 + $0x34] sm:$0xf]
        %v1823 = vld [vmem:[%s1808 + $0x38] sm:$0xf]
        %v1824 = vld [vmem:[%s1808 + $0x3c] sm:$0xf]
        %s1825 = scalar_lea.vmem [#allocation15], %s102
        %v1826 = vld [vmem:[%s1825] sm:$0x1]
        %v1828 = vlaneseq
        %v1829 = vshrl.u32 %v1828, 7
        %v1830 = vsub.s32 0, %v1829
        %v1831 = vrot.slane %v1826, %v1830
        %v1849 = vunpack.c.l.b16 %v1809
        %v1850 = vunpack.c.l.b16 %v1810
        %v1851 = vunpack.c.l.b16 %v1811
        %v1852 = vunpack.c.l.b16 %v1812
        %v1853 = vunpack.c.l.b16 %v1813
        %v1854 = vunpack.c.l.b16 %v1814
        %v1855 = vunpack.c.l.b16 %v1815
        %v1856 = vunpack.c.l.b16 %v1816
        %v1857 = vunpack.c.l.b16 %v1817
        %v1858 = vunpack.c.l.b16 %v1818
        %v1859 = vunpack.c.l.b16 %v1819
        %v1860 = vunpack.c.l.b16 %v1820
        %v1861 = vunpack.c.l.b16 %v1821
        %v1862 = vunpack.c.l.b16 %v1822
        %v1863 = vunpack.c.l.b16 %v1823
        %v1864 = vunpack.c.l.b16 %v1824
        %v1865 = vpack.c.b16 %v1850, %v1849
        %v1866 = vpack.c.b16 %v1852, %v1851
        %v1867 = vpack.c.b16 %v1854, %v1853
        %v1868 = vpack.c.b16 %v1856, %v1855
        %v1869 = vpack.c.b16 %v1858, %v1857
        %v1870 = vpack.c.b16 %v1860, %v1859
        %v1871 = vpack.c.b16 %v1862, %v1861
        %v1872 = vpack.c.b16 %v1864, %v1863
        %1881 = vmatprep.subr.bf16.mxu0 0
        %1882 = vmatpush1.bf16.msra.mxu0 %v1872
        %1883 = vmatprep.subr.bf16.mxu0 0
        %1884 = vmatpush1.bf16.msra.mxu0 %v1871
        %1885 = vmatprep.subr.bf16.mxu0 0
        %1886 = vmatpush1.bf16.msra.mxu0 %v1870
        %1887 = vmatprep.subr.bf16.mxu0 0
        %1888 = vmatpush1.bf16.msra.mxu0 %v1869
        %1889 = vmatprep.subr.bf16.mxu0 0
        %1890 = vmatpush1.bf16.msra.mxu0 %v1868
        %1891 = vmatprep.subr.bf16.mxu0 0
        %1892 = vmatpush1.bf16.msra.mxu0 %v1867
        %1893 = vmatprep.subr.bf16.mxu0 0
        %1894 = vmatpush1.bf16.msra.mxu0 %v1866
        %1895 = vmatprep.subr.bf16.mxu0 0
        %1896 = vmatpush1.bf16.msra.mxu0 %v1865
        %1897 = vmatprep.subr.bf16.mxu0 0
        %1898 = vmatpush2.bf16.msra.mxu0 0
        %1899 = vmatprep.subr.bf16.mxu0 0
        %1900 = vmatpush2.bf16.msra.mxu0 0
        %1901 = vmatprep.subr.bf16.mxu0 0
        %1902 = vmatpush2.bf16.msra.mxu0 0
        %1903 = vmatprep.subr.bf16.mxu0 0
        %1904 = vmatpush2.bf16.msra.mxu0 0
        %1905 = vmatprep.subr.bf16.mxu0 0
        %1906 = vmatpush2.bf16.msra.mxu0 0
        %1907 = vmatprep.subr.bf16.mxu0 0
        %1908 = vmatpush2.bf16.msra.mxu0 0
        %1909 = vmatprep.subr.bf16.mxu0 0
        %1910 = vmatpush2.bf16.msra.mxu0 0
        %1911 = vmatprep.subr.bf16.mxu0 0
        %1912 = vmatpush2.bf16.msra.mxu0 0
        %1913 = vmatprep.mubr.bf16.mxu0 0
        %1914 = vmatmul.mubr.bf16.gmra.mxu0 %v1571
        %v1915 = vpop.f32.mrf.mxu0
        %v1916 = vadd.f32 %v1831, %v1915
        %v1917 = vpop.f32.mrf.mxu0
        %v1918 = vpop.f32.mrf.mxu0
        %v1919 = vadd.f32 %v1831, %v1918
        %v1920 = vpop.f32.mrf.mxu0
        %1921 = vdwg.mxu0
        %v1922 = vpack.c.bf16 %v1919, %v1916
        %v1924 = vunpack.c.l.b16 %v1690
        %v1925 = vunpack.c.h.b16 %v1690
        %v1926 = vpack.c.b16 %v1924, %v1924
        %v1927 = vpack.c.b16 %v1925, %v1925
        %v1929 = vunpack.c.l.b16 %v1806
        %v1930 = vunpack.c.h.b16 %v1806
        %v1931 = vpack.c.b16 %v1929, %v1929
        %v1932 = vpack.c.b16 %v1930, %v1930
        %v1934 = vunpack.c.l.b16 %v1922
        %v1935 = vunpack.c.h.b16 %v1922
        %v1936 = vpack.c.b16 %v1934, %v1934
        %v1937 = vpack.c.b16 %v1935, %v1935
        %vm1938 = vcmask 261120
        %v1940 = vsel %vm1938, %v1926, 0
        %v1943 = vsel %vm1938, %v1931, 0
        %1945 = vmatprep.subr.bf16.mxu0 0
        %1946 = vmatpush1.bf16.xpose.msra.mxu0 0
        %1947 = vmatprep.subr.bf16.mxu0 0
        %1948 = vmatpush1.bf16.xpose.msra.mxu0 0
        %1949 = vmatprep.subr.bf16.mxu0 0
        %1950 = vmatpush1.bf16.xpose.msra.mxu0 0
        %1951 = vmatprep.subr.bf16.mxu0 0
        %1952 = vmatpush1.bf16.xpose.msra.mxu0 0
        %1953 = vmatprep.subr.bf16.mxu0 0
        %1954 = vmatpush1.bf16.xpose.msra.mxu0 0
        %1955 = vmatprep.subr.bf16.mxu0 0
        %1956 = vmatpush1.bf16.xpose.msra.mxu0 0
        %1957 = vmatprep.subr.bf16.mxu0 0
        %1958 = vmatpush1.bf16.xpose.msra.mxu0 0
        %1959 = vmatprep.subr.bf16.mxu0 0
        %1960 = vmatpush1.bf16.xpose.msra.mxu0 %v1943
        %1961 = vmatprep.subr.bf16.mxu0 0
        %1962 = vmatpush2.bf16.xpose.msra.mxu0 0
        %1963 = vmatprep.subr.bf16.mxu0 0
        %1964 = vmatpush2.bf16.xpose.msra.mxu0 0
        %1965 = vmatprep.subr.bf16.mxu0 0
        %1966 = vmatpush2.bf16.xpose.msra.mxu0 0
        %1967 = vmatprep.subr.bf16.mxu0 0
        %1968 = vmatpush2.bf16.xpose.msra.mxu0 0
        %1969 = vmatprep.subr.bf16.mxu0 0
        %1970 = vmatpush2.bf16.xpose.msra.mxu0 0
        %1971 = vmatprep.subr.bf16.mxu0 0
        %1972 = vmatpush2.bf16.xpose.msra.mxu0 0
        %1973 = vmatprep.subr.bf16.mxu0 0
        %1974 = vmatpush2.bf16.xpose.msra.mxu0 0
        %1975 = vmatprep.subr.bf16.mxu0 0
        %1976 = vmatpush2.bf16.xpose.msra.mxu0 0
        %1977 = vmatprep.mubr.bf16.mxu0 0
        %1978 = vmatmul.mubr.bf16.gmra.mxu0 %v1940
        %v1979 = vpop.f32.mrf.mxu0
        %v1980 = vadd.f32 0.0, %v1979
        %v1981 = vpop.f32.mrf.mxu0
        %v1982 = vpop.f32.mrf.mxu0
        %v1983 = vpop.f32.mrf.mxu0
        %1984 = vdwg.mxu0
        %v1986 = vsel %vm1938, %v1927, 0
        %v1989 = vsel %vm1938, %v1932, 0
        %1991 = vmatprep.subr.bf16.mxu0 0
        %1992 = vmatpush1.bf16.xpose.msra.mxu0 0
        %1993 = vmatprep.subr.bf16.mxu0 0
        %1994 = vmatpush1.bf16.xpose.msra.mxu0 0
        %1995 = vmatprep.subr.bf16.mxu0 0
        %1996 = vmatpush1.bf16.xpose.msra.mxu0 0
        %1997 = vmatprep.subr.bf16.mxu0 0
        %1998 = vmatpush1.bf16.xpose.msra.mxu0 0
        %1999 = vmatprep.subr.bf16.mxu0 0
        %2000 = vmatpush1.bf16.xpose.msra.mxu0 0
        %2001 = vmatprep.subr.bf16.mxu0 0
        %2002 = vmatpush1.bf16.xpose.msra.mxu0 0
        %2003 = vmatprep.subr.bf16.mxu0 0
        %2004 = vmatpush1.bf16.xpose.msra.mxu0 0
        %2005 = vmatprep.subr.bf16.mxu0 0
        %2006 = vmatpush1.bf16.xpose.msra.mxu0 %v1989
        %2007 = vmatprep.subr.bf16.mxu0 0
        %2008 = vmatpush2.bf16.xpose.msra.mxu0 0
        %2009 = vmatprep.subr.bf16.mxu0 0
        %2010 = vmatpush2.bf16.xpose.msra.mxu0 0
        %2011 = vmatprep.subr.bf16.mxu0 0
        %2012 = vmatpush2.bf16.xpose.msra.mxu0 0
        %2013 = vmatprep.subr.bf16.mxu0 0
        %2014 = vmatpush2.bf16.xpose.msra.mxu0 0
        %2015 = vmatprep.subr.bf16.mxu0 0
        %2016 = vmatpush2.bf16.xpose.msra.mxu0 0
        %2017 = vmatprep.subr.bf16.mxu0 0
        %2018 = vmatpush2.bf16.xpose.msra.mxu0 0
        %2019 = vmatprep.subr.bf16.mxu0 0
        %2020 = vmatpush2.bf16.xpose.msra.mxu0 0
        %2021 = vmatprep.subr.bf16.mxu0 0
        %2022 = vmatpush2.bf16.xpose.msra.mxu0 0
        %2023 = vmatprep.mubr.bf16.mxu0 0
        %2024 = vmatmul.mubr.bf16.gmra.mxu0 %v1986
        %v2025 = vpop.f32.mrf.mxu0
        %v2026 = vadd.f32 0.0, %v2025
        %v2027 = vpop.f32.mrf.mxu0
        %v2028 = vpop.f32.mrf.mxu0
        %v2029 = vpop.f32.mrf.mxu0
        %2030 = vdwg.mxu0
        %vm2031 = vcmask 64512
        %v2032 = vsel %vm2031, %v1980, -inf
        %2033 = vmax.xlane.f32.xlu0 %v2032
        %v2034 = vpop.xlane.xlu0 %2033
        %v2035 = vsel %vm2031, %v2026, -inf
        %2036 = vmax.xlane.f32.xlu0 %v2035
        %v2037 = vpop.xlane.xlu0 %2036
        %v2038 = vsub.f32 %v1980, %v2034
        %v2039 = vsub.f32 %v2026, %v2037
        %v2040 = vmul.f32 %v2038, 1.442695
        %v2041 = vpow.pop %v2040
        %v2042 = vmul.f32 %v2039, 1.442695
        %v2043 = vpow.pop %v2042
        %v2044 = vsel %vm2031, %v2041, 0.0
        %2045 = vadd.xlane.f32.xlu0 %v2044
        %v2046 = vpop.xlane.xlu0 %2045
        %v2047 = vsel %vm2031, %v2043, 0.0
        %2048 = vadd.xlane.f32.xlu0 %v2047
        %v2049 = vpop.xlane.xlu0 %2048
        %v2050 = vrcp.pop %v2046
        %v2051 = vrcp.pop %v2049
        %v2052 = vmul.f32 %v2041, %v2050
        %v2053 = vmul.f32 %v2043, %v2051
        %v2054 = vpack.c.bf16 %v2052, %v2052
        %v2055 = vpack.c.bf16 %v2053, %v2053
        %v2057 = vsel %vm2031, %v2054, 0
        %vm2059 = vcmask 1043456
        %v2061 = vsel %vm2059, %v1936, 0
        %2063 = vmatprep.subr.bf16.mxu0 0
        %2064 = vmatpush1.bf16.msra.mxu0 0
        %2065 = vmatprep.subr.bf16.mxu0 0
        %2066 = vmatpush1.bf16.msra.mxu0 0
        %2067 = vmatprep.subr.bf16.mxu0 0
        %2068 = vmatpush1.bf16.msra.mxu0 0
        %2069 = vmatprep.subr.bf16.mxu0 0
        %2070 = vmatpush1.bf16.msra.mxu0 0
        %2071 = vmatprep.subr.bf16.mxu0 0
        %2072 = vmatpush1.bf16.msra.mxu0 0
        %2073 = vmatprep.subr.bf16.mxu0 0
        %2074 = vmatpush1.bf16.msra.mxu0 0
        %2075 = vmatprep.subr.bf16.mxu0 0
        %2076 = vmatpush1.bf16.msra.mxu0 0
        %2077 = vmatprep.subr.bf16.mxu0 0
        %2078 = vmatpush1.bf16.msra.mxu0 %v2061
        %2079 = vmatprep.subr.bf16.mxu0 0
        %2080 = vmatpush2.bf16.msra.mxu0 0
        %2081 = vmatprep.subr.bf16.mxu0 0
        %2082 = vmatpush2.bf16.msra.mxu0 0
        %2083 = vmatprep.subr.bf16.mxu0 0
        %2084 = vmatpush2.bf16.msra.mxu0 0
        %2085 = vmatprep.subr.bf16.mxu0 0
        %2086 = vmatpush2.bf16.msra.mxu0 0
        %2087 = vmatprep.subr.bf16.mxu0 0
        %2088 = vmatpush2.bf16.msra.mxu0 0
        %2089 = vmatprep.subr.bf16.mxu0 0
        %2090 = vmatpush2.bf16.msra.mxu0 0
        %2091 = vmatprep.subr.bf16.mxu0 0
        %2092 = vmatpush2.bf16.msra.mxu0 0
        %2093 = vmatprep.subr.bf16.mxu0 0
        %2094 = vmatpush2.bf16.msra.mxu0 0
        %2095 = vmatprep.mubr.bf16.mxu0 0
        %2096 = vmatmul.mubr.bf16.gmra.mxu0 %v2057
        %v2097 = vpop.f32.mrf.mxu0
        %v2098 = vadd.f32 0.0, %v2097
        %v2099 = vpop.f32.mrf.mxu0
        %v2100 = vpop.f32.mrf.mxu0
        %v2101 = vpop.f32.mrf.mxu0
        %2102 = vdwg.mxu0
        %v2104 = vsel %vm2031, %v2055, 0
        %v2107 = vsel %vm2059, %v1937, 0
        %2109 = vmatprep.subr.bf16.mxu0 0
        %2110 = vmatpush1.bf16.msra.mxu0 0
        %2111 = vmatprep.subr.bf16.mxu0 0
        %2112 = vmatpush1.bf16.msra.mxu0 0
        %2113 = vmatprep.subr.bf16.mxu0 0
        %2114 = vmatpush1.bf16.msra.mxu0 0
        %2115 = vmatprep.subr.bf16.mxu0 0
        %2116 = vmatpush1.bf16.msra.mxu0 0
        %2117 = vmatprep.subr.bf16.mxu0 0
        %2118 = vmatpush1.bf16.msra.mxu0 0
        %2119 = vmatprep.subr.bf16.mxu0 0
        %2120 = vmatpush1.bf16.msra.mxu0 0
        %2121 = vmatprep.subr.bf16.mxu0 0
        %2122 = vmatpush1.bf16.msra.mxu0 0
        %2123 = vmatprep.subr.bf16.mxu0 0
        %2124 = vmatpush1.bf16.msra.mxu0 %v2107
        %2125 = vmatprep.subr.bf16.mxu0 0
        %2126 = vmatpush2.bf16.msra.mxu0 0
        %2127 = vmatprep.subr.bf16.mxu0 0
        %2128 = vmatpush2.bf16.msra.mxu0 0
        %2129 = vmatprep.subr.bf16.mxu0 0
        %2130 = vmatpush2.bf16.msra.mxu0 0
        %2131 = vmatprep.subr.bf16.mxu0 0
        %2132 = vmatpush2.bf16.msra.mxu0 0
        %2133 = vmatprep.subr.bf16.mxu0 0
        %2134 = vmatpush2.bf16.msra.mxu0 0
        %2135 = vmatprep.subr.bf16.mxu0 0
        %2136 = vmatpush2.bf16.msra.mxu0 0
        %2137 = vmatprep.subr.bf16.mxu0 0
        %2138 = vmatpush2.bf16.msra.mxu0 0
        %2139 = vmatprep.subr.bf16.mxu0 0
        %2140 = vmatpush2.bf16.msra.mxu0 0
        %2141 = vmatprep.mubr.bf16.mxu0 0
        %2142 = vmatmul.mubr.bf16.gmra.mxu0 %v2104
        %v2143 = vpop.f32.mrf.mxu0
        %v2144 = vadd.f32 0.0, %v2143
        %v2145 = vpop.f32.mrf.mxu0
        %v2146 = vpop.f32.mrf.mxu0
        %v2147 = vpop.f32.mrf.mxu0
        %2148 = vdwg.mxu0
        %v2149 = vpack.c.bf16 %v2144, %v2098
        %v2151 = vunpack.c.l.b16 %v2149
        %v2152 = vunpack.c.h.b16 %v2149
        %v2153 = vpack.c.b16 %v2151, %v2151
        %v2154 = vpack.c.b16 %v2152, %v2152
        %vm2157 = vcmask 257024
        %2158 = vst.msk [vmem:[#allocation3] sm:$0xf] %vm2157, %v2153
        %2159 = vst.msk [vmem:[#allocation3 + $0x4] sm:$0xf] %vm2157, %v2154
        %2160 = vrot.lane.b32.xlu0 %v1926, 96
        %v2161 = vpop.permute.xlu0 %2160
        %2162 = vrot.lane.b32.xlu0 %v1931, 96
        %v2163 = vpop.permute.xlu0 %2162
        %v2165 = vsel %vm1938, %v2161, 0
        %v2168 = vsel %vm1938, %v2163, 0
        %2170 = vmatprep.subr.bf16.mxu0 0
        %2171 = vmatpush1.bf16.xpose.msra.mxu0 0
        %2172 = vmatprep.subr.bf16.mxu0 0
        %2173 = vmatpush1.bf16.xpose.msra.mxu0 0
        %2174 = vmatprep.subr.bf16.mxu0 0
        %2175 = vmatpush1.bf16.xpose.msra.mxu0 0
        %2176 = vmatprep.subr.bf16.mxu0 0
        %2177 = vmatpush1.bf16.xpose.msra.mxu0 0
        %2178 = vmatprep.subr.bf16.mxu0 0
        %2179 = vmatpush1.bf16.xpose.msra.mxu0 0
        %2180 = vmatprep.subr.bf16.mxu0 0
        %2181 = vmatpush1.bf16.xpose.msra.mxu0 0
        %2182 = vmatprep.subr.bf16.mxu0 0
        %2183 = vmatpush1.bf16.xpose.msra.mxu0 0
        %2184 = vmatprep.subr.bf16.mxu0 0
        %2185 = vmatpush1.bf16.xpose.msra.mxu0 %v2168
        %2186 = vmatprep.subr.bf16.mxu0 0
        %2187 = vmatpush2.bf16.xpose.msra.mxu0 0
        %2188 = vmatprep.subr.bf16.mxu0 0
        %2189 = vmatpush2.bf16.xpose.msra.mxu0 0
        %2190 = vmatprep.subr.bf16.mxu0 0
        %2191 = vmatpush2.bf16.xpose.msra.mxu0 0
        %2192 = vmatprep.subr.bf16.mxu0 0
        %2193 = vmatpush2.bf16.xpose.msra.mxu0 0
        %2194 = vmatprep.subr.bf16.mxu0 0
        %2195 = vmatpush2.bf16.xpose.msra.mxu0 0
        %2196 = vmatprep.subr.bf16.mxu0 0
        %2197 = vmatpush2.bf16.xpose.msra.mxu0 0
        %2198 = vmatprep.subr.bf16.mxu0 0
        %2199 = vmatpush2.bf16.xpose.msra.mxu0 0
        %2200 = vmatprep.subr.bf16.mxu0 0
        %2201 = vmatpush2.bf16.xpose.msra.mxu0 0
        %2202 = vmatprep.mubr.bf16.mxu0 0
        %2203 = vmatmul.mubr.bf16.gmra.mxu0 %v2165
        %v2204 = vpop.f32.mrf.mxu0
        %v2205 = vadd.f32 0.0, %v2204
        %v2206 = vpop.f32.mrf.mxu0
        %v2207 = vpop.f32.mrf.mxu0
        %v2208 = vpop.f32.mrf.mxu0
        %2209 = vdwg.mxu0
        %2210 = vrot.lane.b32.xlu0 %v1927, 96
        %v2211 = vpop.permute.xlu0 %2210
        %2212 = vrot.lane.b32.xlu0 %v1932, 96
        %v2213 = vpop.permute.xlu0 %2212
        %v2215 = vsel %vm1938, %v2211, 0
        %v2218 = vsel %vm1938, %v2213, 0
        %2220 = vmatprep.subr.bf16.mxu0 0
        %2221 = vmatpush1.bf16.xpose.msra.mxu0 0
        %2222 = vmatprep.subr.bf16.mxu0 0
        %2223 = vmatpush1.bf16.xpose.msra.mxu0 0
        %2224 = vmatprep.subr.bf16.mxu0 0
        %2225 = vmatpush1.bf16.xpose.msra.mxu0 0
        %2226 = vmatprep.subr.bf16.mxu0 0
        %2227 = vmatpush1.bf16.xpose.msra.mxu0 0
        %2228 = vmatprep.subr.bf16.mxu0 0
        %2229 = vmatpush1.bf16.xpose.msra.mxu0 0
        %2230 = vmatprep.subr.bf16.mxu0 0
        %2231 = vmatpush1.bf16.xpose.msra.mxu0 0
        %2232 = vmatprep.subr.bf16.mxu0 0
        %2233 = vmatpush1.bf16.xpose.msra.mxu0 0
        %2234 = vmatprep.subr.bf16.mxu0 0
        %2235 = vmatpush1.bf16.xpose.msra.mxu0 %v2218
        %2236 = vmatprep.subr.bf16.mxu0 0
        %2237 = vmatpush2.bf16.xpose.msra.mxu0 0
        %2238 = vmatprep.subr.bf16.mxu0 0
        %2239 = vmatpush2.bf16.xpose.msra.mxu0 0
        %2240 = vmatprep.subr.bf16.mxu0 0
        %2241 = vmatpush2.bf16.xpose.msra.mxu0 0
        %2242 = vmatprep.subr.bf16.mxu0 0
        %2243 = vmatpush2.bf16.xpose.msra.mxu0 0
        %2244 = vmatprep.subr.bf16.mxu0 0
        %2245 = vmatpush2.bf16.xpose.msra.mxu0 0
        %2246 = vmatprep.subr.bf16.mxu0 0
        %2247 = vmatpush2.bf16.xpose.msra.mxu0 0
        %2248 = vmatprep.subr.bf16.mxu0 0
        %2249 = vmatpush2.bf16.xpose.msra.mxu0 0
        %2250 = vmatprep.subr.bf16.mxu0 0
        %2251 = vmatpush2.bf16.xpose.msra.mxu0 0
        %2252 = vmatprep.mubr.bf16.mxu0 0
        %2253 = vmatmul.mubr.bf16.gmra.mxu0 %v2215
        %v2254 = vpop.f32.mrf.mxu0
        %v2255 = vadd.f32 0.0, %v2254
        %v2256 = vpop.f32.mrf.mxu0
        %v2257 = vpop.f32.mrf.mxu0
        %v2258 = vpop.f32.mrf.mxu0
        %2259 = vdwg.mxu0
        %v2260 = vsel %vm2031, %v2205, -inf
        %2261 = vmax.xlane.f32.xlu0 %v2260
        %v2262 = vpop.xlane.xlu0 %2261
        %v2263 = vsel %vm2031, %v2255, -inf
        %2264 = vmax.xlane.f32.xlu0 %v2263
        %v2265 = vpop.xlane.xlu0 %2264
        %v2266 = vsub.f32 %v2205, %v2262
        %v2267 = vsub.f32 %v2255, %v2265
        %v2268 = vmul.f32 %v2266, 1.442695
        %v2269 = vpow.pop %v2268
        %v2270 = vmul.f32 %v2267, 1.442695
        %v2271 = vpow.pop %v2270
        %v2272 = vsel %vm2031, %v2269, 0.0
        %2273 = vadd.xlane.f32.xlu0 %v2272
        %v2274 = vpop.xlane.xlu0 %2273
        %v2275 = vsel %vm2031, %v2271, 0.0
        %2276 = vadd.xlane.f32.xlu0 %v2275
        %v2277 = vpop.xlane.xlu0 %2276
        %v2278 = vrcp.pop %v2274
        %v2279 = vrcp.pop %v2277
        %v2280 = vmul.f32 %v2269, %v2278
        %v2281 = vmul.f32 %v2271, %v2279
        %v2282 = vpack.c.bf16 %v2280, %v2280
        %v2283 = vpack.c.bf16 %v2281, %v2281
        %2284 = vrot.lane.b32.xlu0 %v1936, 96
        %v2285 = vpop.permute.xlu0 %2284
        %v2287 = vsel %vm2031, %v2282, 0
        %v2290 = vsel %vm2059, %v2285, 0
        %2292 = vmatprep.subr.bf16.mxu0 0
        %2293 = vmatpush1.bf16.msra.mxu0 0
        %2294 = vmatprep.subr.bf16.mxu0 0
        %2295 = vmatpush1.bf16.msra.mxu0 0
        %2296 = vmatprep.subr.bf16.mxu0 0
        %2297 = vmatpush1.bf16.msra.mxu0 0
        %2298 = vmatprep.subr.bf16.mxu0 0
        %2299 = vmatpush1.bf16.msra.mxu0 0
        %2300 = vmatprep.subr.bf16.mxu0 0
        %2301 = vmatpush1.bf16.msra.mxu0 0
        %2302 = vmatprep.subr.bf16.mxu0 0
        %2303 = vmatpush1.bf16.msra.mxu0 0
        %2304 = vmatprep.subr.bf16.mxu0 0
        %2305 = vmatpush1.bf16.msra.mxu0 0
        %2306 = vmatprep.subr.bf16.mxu0 0
        %2307 = vmatpush1.bf16.msra.mxu0 %v2290
        %2308 = vmatprep.subr.bf16.mxu0 0
        %2309 = vmatpush2.bf16.msra.mxu0 0
        %2310 = vmatprep.subr.bf16.mxu0 0
        %2311 = vmatpush2.bf16.msra.mxu0 0
        %2312 = vmatprep.subr.bf16.mxu0 0
        %2313 = vmatpush2.bf16.msra.mxu0 0
        %2314 = vmatprep.subr.bf16.mxu0 0
        %2315 = vmatpush2.bf16.msra.mxu0 0
        %2316 = vmatprep.subr.bf16.mxu0 0
        %2317 = vmatpush2.bf16.msra.mxu0 0
        %2318 = vmatprep.subr.bf16.mxu0 0
        %2319 = vmatpush2.bf16.msra.mxu0 0
        %2320 = vmatprep.subr.bf16.mxu0 0
        %2321 = vmatpush2.bf16.msra.mxu0 0
        %2322 = vmatprep.subr.bf16.mxu0 0
        %2323 = vmatpush2.bf16.msra.mxu0 0
        %2324 = vmatprep.mubr.bf16.mxu0 0
        %2325 = vmatmul.mubr.bf16.gmra.mxu0 %v2287
        %v2326 = vpop.f32.mrf.mxu0
        %v2327 = vadd.f32 0.0, %v2326
        %v2328 = vpop.f32.mrf.mxu0
        %v2329 = vpop.f32.mrf.mxu0
        %v2330 = vpop.f32.mrf.mxu0
        %2331 = vdwg.mxu0
        %2332 = vrot.lane.b32.xlu0 %v1937, 96
        %v2333 = vpop.permute.xlu0 %2332
        %v2335 = vsel %vm2031, %v2283, 0
        %v2338 = vsel %vm2059, %v2333, 0
        %2340 = vmatprep.subr.bf16.mxu0 0
        %2341 = vmatpush1.bf16.msra.mxu0 0
        %2342 = vmatprep.subr.bf16.mxu0 0
        %2343 = vmatpush1.bf16.msra.mxu0 0
        %2344 = vmatprep.subr.bf16.mxu0 0
        %2345 = vmatpush1.bf16.msra.mxu0 0
        %2346 = vmatprep.subr.bf16.mxu0 0
        %2347 = vmatpush1.bf16.msra.mxu0 0
        %2348 = vmatprep.subr.bf16.mxu0 0
        %2349 = vmatpush1.bf16.msra.mxu0 0
        %2350 = vmatprep.subr.bf16.mxu0 0
        %2351 = vmatpush1.bf16.msra.mxu0 0
        %2352 = vmatprep.subr.bf16.mxu0 0
        %2353 = vmatpush1.bf16.msra.mxu0 0
        %2354 = vmatprep.subr.bf16.mxu0 0
        %2355 = vmatpush1.bf16.msra.mxu0 %v2338
        %2356 = vmatprep.subr.bf16.mxu0 0
        %2357 = vmatpush2.bf16.msra.mxu0 0
        %2358 = vmatprep.subr.bf16.mxu0 0
        %2359 = vmatpush2.bf16.msra.mxu0 0
        %2360 = vmatprep.subr.bf16.mxu0 0
        %2361 = vmatpush2.bf16.msra.mxu0 0
        %2362 = vmatprep.subr.bf16.mxu0 0
        %2363 = vmatpush2.bf16.msra.mxu0 0
        %2364 = vmatprep.subr.bf16.mxu0 0
        %2365 = vmatpush2.bf16.msra.mxu0 0
        %2366 = vmatprep.subr.bf16.mxu0 0
        %2367 = vmatpush2.bf16.msra.mxu0 0
        %2368 = vmatprep.subr.bf16.mxu0 0
        %2369 = vmatpush2.bf16.msra.mxu0 0
        %2370 = vmatprep.subr.bf16.mxu0 0
        %2371 = vmatpush2.bf16.msra.mxu0 0
        %2372 = vmatprep.mubr.bf16.mxu0 0
        %2373 = vmatmul.mubr.bf16.gmra.mxu0 %v2335
        %v2374 = vpop.f32.mrf.mxu0
        %v2375 = vadd.f32 0.0, %v2374
        %v2376 = vpop.f32.mrf.mxu0
        %v2377 = vpop.f32.mrf.mxu0
        %v2378 = vpop.f32.mrf.mxu0
        %2379 = vdwg.mxu0
        %v2380 = vpack.c.bf16 %v2375, %v2327
        %v2382 = vunpack.c.l.b16 %v2380
        %v2383 = vunpack.c.h.b16 %v2380
        %v2384 = vpack.c.b16 %v2382, %v2382
        %v2385 = vpack.c.b16 %v2383, %v2383
        %2386 = vrot.lane.b32.xlu0 %v2384, 32
        %v2387 = vpop.permute.xlu0 %2386
        %2388 = vrot.lane.b32.xlu0 %v2385, 32
        %v2389 = vpop.permute.xlu0 %2388
        %vm2392 = vcmask 519424
        %2393 = vst.msk [vmem:[#allocation3] sm:$0xf] %vm2392, %v2387
        %2394 = vst.msk [vmem:[#allocation3 + $0x4] sm:$0xf] %vm2392, %v2389
        %2395 = vrot.lane.b32.xlu0 %v1926, 64
        %v2396 = vpop.permute.xlu0 %2395
        %2397 = vrot.lane.b32.xlu0 %v1931, 64
        %v2398 = vpop.permute.xlu0 %2397
        %v2400 = vsel %vm1938, %v2396, 0
        %v2403 = vsel %vm1938, %v2398, 0
        %2405 = vmatprep.subr.bf16.mxu0 0
        %2406 = vmatpush1.bf16.xpose.msra.mxu0 0
        %2407 = vmatprep.subr.bf16.mxu0 0
        %2408 = vmatpush1.bf16.xpose.msra.mxu0 0
        %2409 = vmatprep.subr.bf16.mxu0 0
        %2410 = vmatpush1.bf16.xpose.msra.mxu0 0
        %2411 = vmatprep.subr.bf16.mxu0 0
        %2412 = vmatpush1.bf16.xpose.msra.mxu0 0
        %2413 = vmatprep.subr.bf16.mxu0 0
        %2414 = vmatpush1.bf16.xpose.msra.mxu0 0
        %2415 = vmatprep.subr.bf16.mxu0 0
        %2416 = vmatpush1.bf16.xpose.msra.mxu0 0
        %2417 = vmatprep.subr.bf16.mxu0 0
        %2418 = vmatpush1.bf16.xpose.msra.mxu0 0
        %2419 = vmatprep.subr.bf16.mxu0 0
        %2420 = vmatpush1.bf16.xpose.msra.mxu0 %v2403
        %2421 = vmatprep.subr.bf16.mxu0 0
        %2422 = vmatpush2.bf16.xpose.msra.mxu0 0
        %2423 = vmatprep.subr.bf16.mxu0 0
        %2424 = vmatpush2.bf16.xpose.msra.mxu0 0
        %2425 = vmatprep.subr.bf16.mxu0 0
        %2426 = vmatpush2.bf16.xpose.msra.mxu0 0
        %2427 = vmatprep.subr.bf16.mxu0 0
        %2428 = vmatpush2.bf16.xpose.msra.mxu0 0
        %2429 = vmatprep.subr.bf16.mxu0 0
        %2430 = vmatpush2.bf16.xpose.msra.mxu0 0
        %2431 = vmatprep.subr.bf16.mxu0 0
        %2432 = vmatpush2.bf16.xpose.msra.mxu0 0
        %2433 = vmatprep.subr.bf16.mxu0 0
        %2434 = vmatpush2.bf16.xpose.msra.mxu0 0
        %2435 = vmatprep.subr.bf16.mxu0 0
        %2436 = vmatpush2.bf16.xpose.msra.mxu0 0
        %2437 = vmatprep.mubr.bf16.mxu0 0
        %2438 = vmatmul.mubr.bf16.gmra.mxu0 %v2400
        %v2439 = vpop.f32.mrf.mxu0
        %v2440 = vadd.f32 0.0, %v2439
        %v2441 = vpop.f32.mrf.mxu0
        %v2442 = vpop.f32.mrf.mxu0
        %v2443 = vpop.f32.mrf.mxu0
        %2444 = vdwg.mxu0
        %2445 = vrot.lane.b32.xlu0 %v1927, 64
        %v2446 = vpop.permute.xlu0 %2445
        %2447 = vrot.lane.b32.xlu0 %v1932, 64
        %v2448 = vpop.permute.xlu0 %2447
        %v2450 = vsel %vm1938, %v2446, 0
        %v2453 = vsel %vm1938, %v2448, 0
        %2455 = vmatprep.subr.bf16.mxu0 0
        %2456 = vmatpush1.bf16.xpose.msra.mxu0 0
        %2457 = vmatprep.subr.bf16.mxu0 0
        %2458 = vmatpush1.bf16.xpose.msra.mxu0 0
        %2459 = vmatprep.subr.bf16.mxu0 0
        %2460 = vmatpush1.bf16.xpose.msra.mxu0 0
        %2461 = vmatprep.subr.bf16.mxu0 0
        %2462 = vmatpush1.bf16.xpose.msra.mxu0 0
        %2463 = vmatprep.subr.bf16.mxu0 0
        %2464 = vmatpush1.bf16.xpose.msra.mxu0 0
        %2465 = vmatprep.subr.bf16.mxu0 0
        %2466 = vmatpush1.bf16.xpose.msra.mxu0 0
        %2467 = vmatprep.subr.bf16.mxu0 0
        %2468 = vmatpush1.bf16.xpose.msra.mxu0 0
        %2469 = vmatprep.subr.bf16.mxu0 0
        %2470 = vmatpush1.bf16.xpose.msra.mxu0 %v2453
        %2471 = vmatprep.subr.bf16.mxu0 0
        %2472 = vmatpush2.bf16.xpose.msra.mxu0 0
        %2473 = vmatprep.subr.bf16.mxu0 0
        %2474 = vmatpush2.bf16.xpose.msra.mxu0 0
        %2475 = vmatprep.subr.bf16.mxu0 0
        %2476 = vmatpush2.bf16.xpose.msra.mxu0 0
        %2477 = vmatprep.subr.bf16.mxu0 0
        %2478 = vmatpush2.bf16.xpose.msra.mxu0 0
        %2479 = vmatprep.subr.bf16.mxu0 0
        %2480 = vmatpush2.bf16.xpose.msra.mxu0 0
        %2481 = vmatprep.subr.bf16.mxu0 0
        %2482 = vmatpush2.bf16.xpose.msra.mxu0 0
        %2483 = vmatprep.subr.bf16.mxu0 0
        %2484 = vmatpush2.bf16.xpose.msra.mxu0 0
        %2485 = vmatprep.subr.bf16.mxu0 0
        %2486 = vmatpush2.bf16.xpose.msra.mxu0 0
        %2487 = vmatprep.mubr.bf16.mxu0 0
        %2488 = vmatmul.mubr.bf16.gmra.mxu0 %v2450
        %v2489 = vpop.f32.mrf.mxu0
        %v2490 = vadd.f32 0.0, %v2489
        %v2491 = vpop.f32.mrf.mxu0
        %v2492 = vpop.f32.mrf.mxu0
        %v2493 = vpop.f32.mrf.mxu0
        %2494 = vdwg.mxu0
        %v2495 = vsel %vm2031, %v2440, -inf
        %2496 = vmax.xlane.f32.xlu0 %v2495
        %v2497 = vpop.xlane.xlu0 %2496
        %v2498 = vsel %vm2031, %v2490, -inf
        %2499 = vmax.xlane.f32.xlu0 %v2498
        %v2500 = vpop.xlane.xlu0 %2499
        %v2501 = vsub.f32 %v2440, %v2497
        %v2502 = vsub.f32 %v2490, %v2500
        %v2503 = vmul.f32 %v2501, 1.442695
        %v2504 = vpow.pop %v2503
        %v2505 = vmul.f32 %v2502, 1.442695
        %v2506 = vpow.pop %v2505
        %v2507 = vsel %vm2031, %v2504, 0.0
        %2508 = vadd.xlane.f32.xlu0 %v2507
        %v2509 = vpop.xlane.xlu0 %2508
        %v2510 = vsel %vm2031, %v2506, 0.0
        %2511 = vadd.xlane.f32.xlu0 %v2510
        %v2512 = vpop.xlane.xlu0 %2511
        %v2513 = vrcp.pop %v2509
        %v2514 = vrcp.pop %v2512
        %v2515 = vmul.f32 %v2504, %v2513
        %v2516 = vmul.f32 %v2506, %v2514
        %v2517 = vpack.c.bf16 %v2515, %v2515
        %v2518 = vpack.c.bf16 %v2516, %v2516
        %2519 = vrot.lane.b32.xlu0 %v1936, 64
        %v2520 = vpop.permute.xlu0 %2519
        %v2522 = vsel %vm2031, %v2517, 0
        %v2525 = vsel %vm2059, %v2520, 0
        %2527 = vmatprep.subr.bf16.mxu0 0
        %2528 = vmatpush1.bf16.msra.mxu0 0
        %2529 = vmatprep.subr.bf16.mxu0 0
        %2530 = vmatpush1.bf16.msra.mxu0 0
        %2531 = vmatprep.subr.bf16.mxu0 0
        %2532 = vmatpush1.bf16.msra.mxu0 0
        %2533 = vmatprep.subr.bf16.mxu0 0
        %2534 = vmatpush1.bf16.msra.mxu0 0
        %2535 = vmatprep.subr.bf16.mxu0 0
        %2536 = vmatpush1.bf16.msra.mxu0 0
        %2537 = vmatprep.subr.bf16.mxu0 0
        %2538 = vmatpush1.bf16.msra.mxu0 0
        %2539 = vmatprep.subr.bf16.mxu0 0
        %2540 = vmatpush1.bf16.msra.mxu0 0
        %2541 = vmatprep.subr.bf16.mxu0 0
        %2542 = vmatpush1.bf16.msra.mxu0 %v2525
        %2543 = vmatprep.subr.bf16.mxu0 0
        %2544 = vmatpush2.bf16.msra.mxu0 0
        %2545 = vmatprep.subr.bf16.mxu0 0
        %2546 = vmatpush2.bf16.msra.mxu0 0
        %2547 = vmatprep.subr.bf16.mxu0 0
        %2548 = vmatpush2.bf16.msra.mxu0 0
        %2549 = vmatprep.subr.bf16.mxu0 0
        %2550 = vmatpush2.bf16.msra.mxu0 0
        %2551 = vmatprep.subr.bf16.mxu0 0
        %2552 = vmatpush2.bf16.msra.mxu0 0
        %2553 = vmatprep.subr.bf16.mxu0 0
        %2554 = vmatpush2.bf16.msra.mxu0 0
        %2555 = vmatprep.subr.bf16.mxu0 0
        %2556 = vmatpush2.bf16.msra.mxu0 0
        %2557 = vmatprep.subr.bf16.mxu0 0
        %2558 = vmatpush2.bf16.msra.mxu0 0
        %2559 = vmatprep.mubr.bf16.mxu0 0
        %2560 = vmatmul.mubr.bf16.gmra.mxu0 %v2522
        %v2561 = vpop.f32.mrf.mxu0
        %v2562 = vadd.f32 0.0, %v2561
        %v2563 = vpop.f32.mrf.mxu0
        %v2564 = vpop.f32.mrf.mxu0
        %v2565 = vpop.f32.mrf.mxu0
        %2566 = vdwg.mxu0
        %2567 = vrot.lane.b32.xlu0 %v1937, 64
        %v2568 = vpop.permute.xlu0 %2567
        %v2570 = vsel %vm2031, %v2518, 0
        %v2573 = vsel %vm2059, %v2568, 0
        %2575 = vmatprep.subr.bf16.mxu0 0
        %2576 = vmatpush1.bf16.msra.mxu0 0
        %2577 = vmatprep.subr.bf16.mxu0 0
        %2578 = vmatpush1.bf16.msra.mxu0 0
        %2579 = vmatprep.subr.bf16.mxu0 0
        %2580 = vmatpush1.bf16.msra.mxu0 0
        %2581 = vmatprep.subr.bf16.mxu0 0
        %2582 = vmatpush1.bf16.msra.mxu0 0
        %2583 = vmatprep.subr.bf16.mxu0 0
        %2584 = vmatpush1.bf16.msra.mxu0 0
        %2585 = vmatprep.subr.bf16.mxu0 0
        %2586 = vmatpush1.bf16.msra.mxu0 0
        %2587 = vmatprep.subr.bf16.mxu0 0
        %2588 = vmatpush1.bf16.msra.mxu0 0
        %2589 = vmatprep.subr.bf16.mxu0 0
        %2590 = vmatpush1.bf16.msra.mxu0 %v2573
        %2591 = vmatprep.subr.bf16.mxu0 0
        %2592 = vmatpush2.bf16.msra.mxu0 0
        %2593 = vmatprep.subr.bf16.mxu0 0
        %2594 = vmatpush2.bf16.msra.mxu0 0
        %2595 = vmatprep.subr.bf16.mxu0 0
        %2596 = vmatpush2.bf16.msra.mxu0 0
        %2597 = vmatprep.subr.bf16.mxu0 0
        %2598 = vmatpush2.bf16.msra.mxu0 0
        %2599 = vmatprep.subr.bf16.mxu0 0
        %2600 = vmatpush2.bf16.msra.mxu0 0
        %2601 = vmatprep.subr.bf16.mxu0 0
        %2602 = vmatpush2.bf16.msra.mxu0 0
        %2603 = vmatprep.subr.bf16.mxu0 0
        %2604 = vmatpush2.bf16.msra.mxu0 0
        %2605 = vmatprep.subr.bf16.mxu0 0
        %2606 = vmatpush2.bf16.msra.mxu0 0
        %2607 = vmatprep.mubr.bf16.mxu0 0
        %2608 = vmatmul.mubr.bf16.gmra.mxu0 %v2570
        %v2609 = vpop.f32.mrf.mxu0
        %v2610 = vadd.f32 0.0, %v2609
        %v2611 = vpop.f32.mrf.mxu0
        %v2612 = vpop.f32.mrf.mxu0
        %v2613 = vpop.f32.mrf.mxu0
        %2614 = vdwg.mxu0
        %v2615 = vpack.c.bf16 %v2610, %v2562
        %v2617 = vunpack.c.l.b16 %v2615
        %v2618 = vunpack.c.h.b16 %v2615
        %v2619 = vpack.c.b16 %v2617, %v2617
        %v2620 = vpack.c.b16 %v2618, %v2618
        %2621 = vrot.lane.b32.xlu0 %v2619, 64
        %v2622 = vpop.permute.xlu0 %2621
        %2623 = vrot.lane.b32.xlu0 %v2620, 64
        %v2624 = vpop.permute.xlu0 %2623
        %vm2627 = vcmask 781824
        %2628 = vst.msk [vmem:[#allocation3] sm:$0xf] %vm2627, %v2622
        %2629 = vst.msk [vmem:[#allocation3 + $0x4] sm:$0xf] %vm2627, %v2624
        %2630 = vrot.lane.b32.xlu0 %v1926, 32
        %v2631 = vpop.permute.xlu0 %2630
        %2632 = vrot.lane.b32.xlu0 %v1931, 32
        %v2633 = vpop.permute.xlu0 %2632
        %v2635 = vsel %vm1938, %v2631, 0
        %v2638 = vsel %vm1938, %v2633, 0
        %2640 = vmatprep.subr.bf16.mxu0 0
        %2641 = vmatpush1.bf16.xpose.msra.mxu0 0
        %2642 = vmatprep.subr.bf16.mxu0 0
        %2643 = vmatpush1.bf16.xpose.msra.mxu0 0
        %2644 = vmatprep.subr.bf16.mxu0 0
        %2645 = vmatpush1.bf16.xpose.msra.mxu0 0
        %2646 = vmatprep.subr.bf16.mxu0 0
        %2647 = vmatpush1.bf16.xpose.msra.mxu0 0
        %2648 = vmatprep.subr.bf16.mxu0 0
        %2649 = vmatpush1.bf16.xpose.msra.mxu0 0
        %2650 = vmatprep.subr.bf16.mxu0 0
        %2651 = vmatpush1.bf16.xpose.msra.mxu0 0
        %2652 = vmatprep.subr.bf16.mxu0 0
        %2653 = vmatpush1.bf16.xpose.msra.mxu0 0
        %2654 = vmatprep.subr.bf16.mxu0 0
        %2655 = vmatpush1.bf16.xpose.msra.mxu0 %v2638
        %2656 = vmatprep.subr.bf16.mxu0 0
        %2657 = vmatpush2.bf16.xpose.msra.mxu0 0
        %2658 = vmatprep.subr.bf16.mxu0 0
        %2659 = vmatpush2.bf16.xpose.msra.mxu0 0
        %2660 = vmatprep.subr.bf16.mxu0 0
        %2661 = vmatpush2.bf16.xpose.msra.mxu0 0
        %2662 = vmatprep.subr.bf16.mxu0 0
        %2663 = vmatpush2.bf16.xpose.msra.mxu0 0
        %2664 = vmatprep.subr.bf16.mxu0 0
        %2665 = vmatpush2.bf16.xpose.msra.mxu0 0
        %2666 = vmatprep.subr.bf16.mxu0 0
        %2667 = vmatpush2.bf16.xpose.msra.mxu0 0
        %2668 = vmatprep.subr.bf16.mxu0 0
        %2669 = vmatpush2.bf16.xpose.msra.mxu0 0
        %2670 = vmatprep.subr.bf16.mxu0 0
        %2671 = vmatpush2.bf16.xpose.msra.mxu0 0
        %2672 = vmatprep.mubr.bf16.mxu0 0
        %2673 = vmatmul.mubr.bf16.gmra.mxu0 %v2635
        %v2674 = vpop.f32.mrf.mxu0
        %v2675 = vadd.f32 0.0, %v2674
        %v2676 = vpop.f32.mrf.mxu0
        %v2677 = vpop.f32.mrf.mxu0
        %v2678 = vpop.f32.mrf.mxu0
        %2679 = vdwg.mxu0
        %2680 = vrot.lane.b32.xlu0 %v1927, 32
        %v2681 = vpop.permute.xlu0 %2680
        %2682 = vrot.lane.b32.xlu0 %v1932, 32
        %v2683 = vpop.permute.xlu0 %2682
        %v2685 = vsel %vm1938, %v2681, 0
        %v2688 = vsel %vm1938, %v2683, 0
        %2690 = vmatprep.subr.bf16.mxu0 0
        %2691 = vmatpush1.bf16.xpose.msra.mxu0 0
        %2692 = vmatprep.subr.bf16.mxu0 0
        %2693 = vmatpush1.bf16.xpose.msra.mxu0 0
        %2694 = vmatprep.subr.bf16.mxu0 0
        %2695 = vmatpush1.bf16.xpose.msra.mxu0 0
        %2696 = vmatprep.subr.bf16.mxu0 0
        %2697 = vmatpush1.bf16.xpose.msra.mxu0 0
        %2698 = vmatprep.subr.bf16.mxu0 0
        %2699 = vmatpush1.bf16.xpose.msra.mxu0 0
        %2700 = vmatprep.subr.bf16.mxu0 0
        %2701 = vmatpush1.bf16.xpose.msra.mxu0 0
        %2702 = vmatprep.subr.bf16.mxu0 0
        %2703 = vmatpush1.bf16.xpose.msra.mxu0 0
        %2704 = vmatprep.subr.bf16.mxu0 0
        %2705 = vmatpush1.bf16.xpose.msra.mxu0 %v2688
        %2706 = vmatprep.subr.bf16.mxu0 0
        %2707 = vmatpush2.bf16.xpose.msra.mxu0 0
        %2708 = vmatprep.subr.bf16.mxu0 0
        %2709 = vmatpush2.bf16.xpose.msra.mxu0 0
        %2710 = vmatprep.subr.bf16.mxu0 0
        %2711 = vmatpush2.bf16.xpose.msra.mxu0 0
        %2712 = vmatprep.subr.bf16.mxu0 0
        %2713 = vmatpush2.bf16.xpose.msra.mxu0 0
        %2714 = vmatprep.subr.bf16.mxu0 0
        %2715 = vmatpush2.bf16.xpose.msra.mxu0 0
        %2716 = vmatprep.subr.bf16.mxu0 0
        %2717 = vmatpush2.bf16.xpose.msra.mxu0 0
        %2718 = vmatprep.subr.bf16.mxu0 0
        %2719 = vmatpush2.bf16.xpose.msra.mxu0 0
        %2720 = vmatprep.subr.bf16.mxu0 0
        %2721 = vmatpush2.bf16.xpose.msra.mxu0 0
        %2722 = vmatprep.mubr.bf16.mxu0 0
        %2723 = vmatmul.mubr.bf16.gmra.mxu0 %v2685
        %v2724 = vpop.f32.mrf.mxu0
        %v2725 = vadd.f32 0.0, %v2724
        %v2726 = vpop.f32.mrf.mxu0
        %v2727 = vpop.f32.mrf.mxu0
        %v2728 = vpop.f32.mrf.mxu0
        %2729 = vdwg.mxu0
        %v2730 = vsel %vm2031, %v2675, -inf
        %2731 = vmax.xlane.f32.xlu0 %v2730
        %v2732 = vpop.xlane.xlu0 %2731
        %v2733 = vsel %vm2031, %v2725, -inf
        %2734 = vmax.xlane.f32.xlu0 %v2733
        %v2735 = vpop.xlane.xlu0 %2734
        %v2736 = vsub.f32 %v2675, %v2732
        %v2737 = vsub.f32 %v2725, %v2735
        %v2738 = vmul.f32 %v2736, 1.442695
        %v2739 = vpow.pop %v2738
        %v2740 = vmul.f32 %v2737, 1.442695
        %v2741 = vpow.pop %v2740
        %v2742 = vsel %vm2031, %v2739, 0.0
        %2743 = vadd.xlane.f32.xlu0 %v2742
        %v2744 = vpop.xlane.xlu0 %2743
        %v2745 = vsel %vm2031, %v2741, 0.0
        %2746 = vadd.xlane.f32.xlu0 %v2745
        %v2747 = vpop.xlane.xlu0 %2746
        %v2748 = vrcp.pop %v2744
        %v2749 = vrcp.pop %v2747
        %v2750 = vmul.f32 %v2739, %v2748
        %v2751 = vmul.f32 %v2741, %v2749
        %v2752 = vpack.c.bf16 %v2750, %v2750
        %v2753 = vpack.c.bf16 %v2751, %v2751
        %2754 = vrot.lane.b32.xlu0 %v1936, 32
        %v2755 = vpop.permute.xlu0 %2754
        %v2757 = vsel %vm2031, %v2752, 0
        %v2760 = vsel %vm2059, %v2755, 0
        %2762 = vmatprep.subr.bf16.mxu0 0
        %2763 = vmatpush1.bf16.msra.mxu0 0
        %2764 = vmatprep.subr.bf16.mxu0 0
        %2765 = vmatpush1.bf16.msra.mxu0 0
        %2766 = vmatprep.subr.bf16.mxu0 0
        %2767 = vmatpush1.bf16.msra.mxu0 0
        %2768 = vmatprep.subr.bf16.mxu0 0
        %2769 = vmatpush1.bf16.msra.mxu0 0
        %2770 = vmatprep.subr.bf16.mxu0 0
        %2771 = vmatpush1.bf16.msra.mxu0 0
        %2772 = vmatprep.subr.bf16.mxu0 0
        %2773 = vmatpush1.bf16.msra.mxu0 0
        %2774 = vmatprep.subr.bf16.mxu0 0
        %2775 = vmatpush1.bf16.msra.mxu0 0
        %2776 = vmatprep.subr.bf16.mxu0 0
        %2777 = vmatpush1.bf16.msra.mxu0 %v2760
        %2778 = vmatprep.subr.bf16.mxu0 0
        %2779 = vmatpush2.bf16.msra.mxu0 0
        %2780 = vmatprep.subr.bf16.mxu0 0
        %2781 = vmatpush2.bf16.msra.mxu0 0
        %2782 = vmatprep.subr.bf16.mxu0 0
        %2783 = vmatpush2.bf16.msra.mxu0 0
        %2784 = vmatprep.subr.bf16.mxu0 0
        %2785 = vmatpush2.bf16.msra.mxu0 0
        %2786 = vmatprep.subr.bf16.mxu0 0
        %2787 = vmatpush2.bf16.msra.mxu0 0
        %2788 = vmatprep.subr.bf16.mxu0 0
        %2789 = vmatpush2.bf16.msra.mxu0 0
        %2790 = vmatprep.subr.bf16.mxu0 0
        %2791 = vmatpush2.bf16.msra.mxu0 0
        %2792 = vmatprep.subr.bf16.mxu0 0
        %2793 = vmatpush2.bf16.msra.mxu0 0
        %2794 = vmatprep.mubr.bf16.mxu0 0
        %2795 = vmatmul.mubr.bf16.gmra.mxu0 %v2757
        %v2796 = vpop.f32.mrf.mxu0
        %v2797 = vadd.f32 0.0, %v2796
        %v2798 = vpop.f32.mrf.mxu0
        %v2799 = vpop.f32.mrf.mxu0
        %v2800 = vpop.f32.mrf.mxu0
        %2801 = vdwg.mxu0
        %2802 = vrot.lane.b32.xlu0 %v1937, 32
        %v2803 = vpop.permute.xlu0 %2802
        %v2805 = vsel %vm2031, %v2753, 0
        %v2808 = vsel %vm2059, %v2803, 0
        %2810 = vmatprep.subr.bf16.mxu0 0
        %2811 = vmatpush1.bf16.msra.mxu0 0
        %2812 = vmatprep.subr.bf16.mxu0 0
        %2813 = vmatpush1.bf16.msra.mxu0 0
        %2814 = vmatprep.subr.bf16.mxu0 0
        %2815 = vmatpush1.bf16.msra.mxu0 0
        %2816 = vmatprep.subr.bf16.mxu0 0
        %2817 = vmatpush1.bf16.msra.mxu0 0
        %2818 = vmatprep.subr.bf16.mxu0 0
        %2819 = vmatpush1.bf16.msra.mxu0 0
        %2820 = vmatprep.subr.bf16.mxu0 0
        %2821 = vmatpush1.bf16.msra.mxu0 0
        %2822 = vmatprep.subr.bf16.mxu0 0
        %2823 = vmatpush1.bf16.msra.mxu0 0
        %2824 = vmatprep.subr.bf16.mxu0 0
        %2825 = vmatpush1.bf16.msra.mxu0 %v2808
        %2826 = vmatprep.subr.bf16.mxu0 0
        %2827 = vmatpush2.bf16.msra.mxu0 0
        %2828 = vmatprep.subr.bf16.mxu0 0
        %2829 = vmatpush2.bf16.msra.mxu0 0
        %2830 = vmatprep.subr.bf16.mxu0 0
        %2831 = vmatpush2.bf16.msra.mxu0 0
        %2832 = vmatprep.subr.bf16.mxu0 0
        %2833 = vmatpush2.bf16.msra.mxu0 0
        %2834 = vmatprep.subr.bf16.mxu0 0
        %2835 = vmatpush2.bf16.msra.mxu0 0
        %2836 = vmatprep.subr.bf16.mxu0 0
        %2837 = vmatpush2.bf16.msra.mxu0 0
        %2838 = vmatprep.subr.bf16.mxu0 0
        %2839 = vmatpush2.bf16.msra.mxu0 0
        %2840 = vmatprep.subr.bf16.mxu0 0
        %2841 = vmatpush2.bf16.msra.mxu0 0
        %2842 = vmatprep.mubr.bf16.mxu0 0
        %2843 = vmatmul.mubr.bf16.gmra.mxu0 %v2805
        %v2844 = vpop.f32.mrf.mxu0
        %v2845 = vadd.f32 0.0, %v2844
        %v2846 = vpop.f32.mrf.mxu0
        %v2847 = vpop.f32.mrf.mxu0
        %v2848 = vpop.f32.mrf.mxu0
        %2849 = vdwg.mxu0
        %v2850 = vpack.c.bf16 %v2845, %v2797
        %v2852 = vunpack.c.l.b16 %v2850
        %v2853 = vunpack.c.h.b16 %v2850
        %v2854 = vpack.c.b16 %v2852, %v2852
        %v2855 = vpack.c.b16 %v2853, %v2853
        %2856 = vrot.lane.b32.xlu0 %v2854, 96
        %v2857 = vpop.permute.xlu0 %2856
        %2858 = vrot.lane.b32.xlu0 %v2855, 96
        %v2859 = vpop.permute.xlu0 %2858
        %vm2862 = vcmask 1044224
        %2863 = vst.msk [vmem:[#allocation3] sm:$0xf] %vm2862, %v2857
        %2864 = vst.msk [vmem:[#allocation3 + $0x4] sm:$0xf] %vm2862, %v2859
        %v2865 = vld [vmem:[#allocation3] sm:$0xf]
        %v2866 = vld [vmem:[#allocation3 + $0x4] sm:$0xf]
        %s2867 = smul.addr %s1572, 4
        %s2868 = scalar_lea.vmem [#allocation17], %s2867
        %v2869 = vld [vmem:[%s2868] sm:$0xf]
        %v2870 = vld [vmem:[%s2868 + $0x4] sm:$0xf]
        %v2871 = vld [vmem:[%s2868 + $0x8] sm:$0xf]
        %v2872 = vld [vmem:[%s2868 + $0xc] sm:$0xf]
        %v2873 = vld [vmem:[%s2868 + $0x10] sm:$0xf]
        %v2874 = vld [vmem:[%s2868 + $0x14] sm:$0xf]
        %v2875 = vld [vmem:[%s2868 + $0x18] sm:$0xf]
        %v2876 = vld [vmem:[%s2868 + $0x1c] sm:$0xf]
        %v2877 = vld [vmem:[%s2868 + $0x20] sm:$0xf]
        %v2878 = vld [vmem:[%s2868 + $0x24] sm:$0xf]
        %v2879 = vld [vmem:[%s2868 + $0x28] sm:$0xf]
        %v2880 = vld [vmem:[%s2868 + $0x2c] sm:$0xf]
        %v2881 = vld [vmem:[%s2868 + $0x30] sm:$0xf]
        %v2882 = vld [vmem:[%s2868 + $0x34] sm:$0xf]
        %v2883 = vld [vmem:[%s2868 + $0x38] sm:$0xf]
        %v2884 = vld [vmem:[%s2868 + $0x3c] sm:$0xf]
        %s2885 = scalar_lea.vmem [#allocation18], %s102
        %v2886 = vld [vmem:[%s2885] sm:$0x1]
        %v2888 = vlaneseq
        %v2889 = vshrl.u32 %v2888, 7
        %v2890 = vsub.s32 0, %v2889
        %v2891 = vrot.slane %v2886, %v2890
        %v2895 = vunpack.c.l.b16 %v2865
        %v2896 = vunpack.c.l.b16 %v2866
        %v2897 = vpack.c.b16 %v2896, %v2895
        %v2915 = vunpack.c.l.b16 %v2869
        %v2916 = vunpack.c.l.b16 %v2870
        %v2917 = vunpack.c.l.b16 %v2871
        %v2918 = vunpack.c.l.b16 %v2872
        %v2919 = vunpack.c.l.b16 %v2873
        %v2920 = vunpack.c.l.b16 %v2874
        %v2921 = vunpack.c.l.b16 %v2875
        %v2922 = vunpack.c.l.b16 %v2876
        %v2923 = vunpack.c.l.b16 %v2877
        %v2924 = vunpack.c.l.b16 %v2878
        %v2925 = vunpack.c.l.b16 %v2879
        %v2926 = vunpack.c.l.b16 %v2880
        %v2927 = vunpack.c.l.b16 %v2881
        %v2928 = vunpack.c.l.b16 %v2882
        %v2929 = vunpack.c.l.b16 %v2883
        %v2930 = vunpack.c.l.b16 %v2884
        %v2931 = vpack.c.b16 %v2916, %v2915
        %v2932 = vpack.c.b16 %v2918, %v2917
        %v2933 = vpack.c.b16 %v2920, %v2919
        %v2934 = vpack.c.b16 %v2922, %v2921
        %v2935 = vpack.c.b16 %v2924, %v2923
        %v2936 = vpack.c.b16 %v2926, %v2925
        %v2937 = vpack.c.b16 %v2928, %v2927
        %v2938 = vpack.c.b16 %v2930, %v2929
        %2947 = vmatprep.subr.bf16.mxu0 0
        %2948 = vmatpush1.bf16.msra.mxu0 %v2938
        %2949 = vmatprep.subr.bf16.mxu0 0
        %2950 = vmatpush1.bf16.msra.mxu0 %v2937
        %2951 = vmatprep.subr.bf16.mxu0 0
        %2952 = vmatpush1.bf16.msra.mxu0 %v2936
        %2953 = vmatprep.subr.bf16.mxu0 0
        %2954 = vmatpush1.bf16.msra.mxu0 %v2935
        %2955 = vmatprep.subr.bf16.mxu0 0
        %2956 = vmatpush1.bf16.msra.mxu0 %v2934
        %2957 = vmatprep.subr.bf16.mxu0 0
        %2958 = vmatpush1.bf16.msra.mxu0 %v2933
        %2959 = vmatprep.subr.bf16.mxu0 0
        %2960 = vmatpush1.bf16.msra.mxu0 %v2932
        %2961 = vmatprep.subr.bf16.mxu0 0
        %2962 = vmatpush1.bf16.msra.mxu0 %v2931
        %2963 = vmatprep.subr.bf16.mxu0 0
        %2964 = vmatpush2.bf16.msra.mxu0 0
        %2965 = vmatprep.subr.bf16.mxu0 0
        %2966 = vmatpush2.bf16.msra.mxu0 0
        %2967 = vmatprep.subr.bf16.mxu0 0
        %2968 = vmatpush2.bf16.msra.mxu0 0
        %2969 = vmatprep.subr.bf16.mxu0 0
        %2970 = vmatpush2.bf16.msra.mxu0 0
        %2971 = vmatprep.subr.bf16.mxu0 0
        %2972 = vmatpush2.bf16.msra.mxu0 0
        %2973 = vmatprep.subr.bf16.mxu0 0
        %2974 = vmatpush2.bf16.msra.mxu0 0
        %2975 = vmatprep.subr.bf16.mxu0 0
        %2976 = vmatpush2.bf16.msra.mxu0 0
        %2977 = vmatprep.subr.bf16.mxu0 0
        %2978 = vmatpush2.bf16.msra.mxu0 0
        %2979 = vmatprep.mubr.bf16.mxu0 0
        %2980 = vmatmul.mubr.bf16.gmra.mxu0 %v2897
        %v2981 = vpop.f32.mrf.mxu0
        %v2982 = vadd.f32 %v2891, %v2981
        %v2983 = vpop.f32.mrf.mxu0
        %v2984 = vpop.f32.mrf.mxu0
        %v2985 = vadd.f32 %v2891, %v2984
        %v2986 = vpop.f32.mrf.mxu0
        %2987 = vdwg.mxu0
        %v2988 = vadd.f32 %v1526, %v2982
        %v2989 = vadd.f32 %v1527, %v2985
        %s2990 = scalar_lea.vmem [#allocation20], %s102
        %v2991 = vld [vmem:[%s2990] sm:$0x1]
        %s2992 = scalar_lea.vmem [#allocation21], %s102
        %v2993 = vld [vmem:[%s2992] sm:$0x1]
        %2994 = vadd.xlane.f32.xlu0 %v2988
        %v2995 = vpop.xlane.xlu0 %2994
        %2996 = vadd.xlane.f32.xlu0 %v2989
        %v2997 = vpop.xlane.xlu0 %2996
        %v2998 = vmul.f32 %v2995, %v1536
        %v2999 = vmul.f32 %v2997, %v1536
        %v3000 = vsub.f32 %v2988, %v2998
        %v3001 = vsub.f32 %v2989, %v2999
        %v3002 = vmul.f32 %v3000, %v3000
        %v3003 = vmul.f32 %v3001, %v3001
        %3004 = vadd.xlane.f32.xlu0 %v3002
        %v3005 = vpop.xlane.xlu0 %3004
        %3006 = vadd.xlane.f32.xlu0 %v3003
        %v3007 = vpop.xlane.xlu0 %3006
        %v3008 = vmul.f32 %v3005, %v1536
        %v3009 = vmul.f32 %v3007, %v1536
        %v3010 = vadd.f32 %v3008, 1e-05
        %v3011 = vadd.f32 %v3009, 1e-05
        %v3012 = vrsqrt.pop %v3010
        %v3013 = vrsqrt.pop %v3011
        %v3014 = vmul.f32 %v3000, %v3012
        %v3015 = vmul.f32 %v3001, %v3013
        %v3017 = vlaneseq
        %v3018 = vshrl.u32 %v3017, 7
        %v3019 = vsub.s32 0, %v3018
        %v3020 = vrot.slane %v2991, %v3019
        %v3022 = vmul.f32 %v3014, %v3020
        %v3023 = vmul.f32 %v3015, %v3020
        %v3025 = vlaneseq
        %v3026 = vshrl.u32 %v3025, 7
        %v3027 = vsub.s32 0, %v3026
        %v3028 = vrot.slane %v2993, %v3027
        %v3030 = vadd.f32 %v3022, %v3028
        %v3031 = vadd.f32 %v3023, %v3028
        %v3032 = vpack.c.bf16 %v3031, %v3030
        %v3033 = vld [vmem:[%s1505] sm:$0xf]
        %v3034 = vld [vmem:[%s1505 + $0x4] sm:$0xf]
        %v3035 = vld [vmem:[%s1510] sm:$0x1]
        %v3036 = vld [vmem:[%s1510 + $0x1] sm:$0x1]
        %v3039 = vlaneseq
        %v3040 = vshrl.u32 %v3039, 7
        %v3041 = vsub.s32 0, %v3040
        %v3042 = vrot.slane %v3035, %v3041
        %v3043 = vlaneseq
        %v3044 = vshrl.u32 %v3043, 7
        %v3045 = vsub.s32 0, %v3044
        %v3046 = vrot.slane %v3036, %v3045
        %s3049 = smul.addr %s1572, 4
        %s3050 = scalar_lea.vmem [#allocation23], %s3049
        %v3051 = vld [vmem:[%s3050] sm:$0xf]
        %v3052 = vld [vmem:[%s3050 + $0x4] sm:$0xf]
        %v3053 = vld [vmem:[%s3050 + $0x8] sm:$0xf]
        %v3054 = vld [vmem:[%s3050 + $0xc] sm:$0xf]
        %v3055 = vld [vmem:[%s3050 + $0x10] sm:$0xf]
        %v3056 = vld [vmem:[%s3050 + $0x14] sm:$0xf]
        %v3057 = vld [vmem:[%s3050 + $0x18] sm:$0xf]
        %v3058 = vld [vmem:[%s3050 + $0x1c] sm:$0xf]
        %v3059 = vld [vmem:[%s3050 + $0x20] sm:$0xf]
        %v3060 = vld [vmem:[%s3050 + $0x24] sm:$0xf]
        %v3061 = vld [vmem:[%s3050 + $0x28] sm:$0xf]
        %v3062 = vld [vmem:[%s3050 + $0x2c] sm:$0xf]
        %v3063 = vld [vmem:[%s3050 + $0x30] sm:$0xf]
        %v3064 = vld [vmem:[%s3050 + $0x34] sm:$0xf]
        %v3065 = vld [vmem:[%s3050 + $0x38] sm:$0xf]
        %v3066 = vld [vmem:[%s3050 + $0x3c] sm:$0xf]
        %s3067 = scalar_lea.vmem [#allocation24], %s102
        %v3068 = vld [vmem:[%s3067] sm:$0x1]
        %v3070 = vlaneseq
        %v3071 = vshrl.u32 %v3070, 7
        %v3072 = vsub.s32 0, %v3071
        %v3073 = vrot.slane %v3068, %v3072
        %v3091 = vunpack.c.l.b16 %v3051
        %v3092 = vunpack.c.l.b16 %v3052
        %v3093 = vunpack.c.l.b16 %v3053
        %v3094 = vunpack.c.l.b16 %v3054
        %v3095 = vunpack.c.l.b16 %v3055
        %v3096 = vunpack.c.l.b16 %v3056
        %v3097 = vunpack.c.l.b16 %v3057
        %v3098 = vunpack.c.l.b16 %v3058
        %v3099 = vunpack.c.l.b16 %v3059
        %v3100 = vunpack.c.l.b16 %v3060
        %v3101 = vunpack.c.l.b16 %v3061
        %v3102 = vunpack.c.l.b16 %v3062
        %v3103 = vunpack.c.l.b16 %v3063
        %v3104 = vunpack.c.l.b16 %v3064
        %v3105 = vunpack.c.l.b16 %v3065
        %v3106 = vunpack.c.l.b16 %v3066
        %v3107 = vpack.c.b16 %v3092, %v3091
        %v3108 = vpack.c.b16 %v3094, %v3093
        %v3109 = vpack.c.b16 %v3096, %v3095
        %v3110 = vpack.c.b16 %v3098, %v3097
        %v3111 = vpack.c.b16 %v3100, %v3099
        %v3112 = vpack.c.b16 %v3102, %v3101
        %v3113 = vpack.c.b16 %v3104, %v3103
        %v3114 = vpack.c.b16 %v3106, %v3105
        %3123 = vmatprep.subr.bf16.mxu0 0
        %3124 = vmatpush1.bf16.msra.mxu0 %v3114
        %3125 = vmatprep.subr.bf16.mxu0 0
        %3126 = vmatpush1.bf16.msra.mxu0 %v3113
        %3127 = vmatprep.subr.bf16.mxu0 0
        %3128 = vmatpush1.bf16.msra.mxu0 %v3112
        %3129 = vmatprep.subr.bf16.mxu0 0
        %3130 = vmatpush1.bf16.msra.mxu0 %v3111
        %3131 = vmatprep.subr.bf16.mxu0 0
        %3132 = vmatpush1.bf16.msra.mxu0 %v3110
        %3133 = vmatprep.subr.bf16.mxu0 0
        %3134 = vmatpush1.bf16.msra.mxu0 %v3109
        %3135 = vmatprep.subr.bf16.mxu0 0
        %3136 = vmatpush1.bf16.msra.mxu0 %v3108
        %3137 = vmatprep.subr.bf16.mxu0 0
        %3138 = vmatpush1.bf16.msra.mxu0 %v3107
        %3139 = vmatprep.subr.bf16.mxu0 0
        %3140 = vmatpush2.bf16.msra.mxu0 0
        %3141 = vmatprep.subr.bf16.mxu0 0
        %3142 = vmatpush2.bf16.msra.mxu0 0
        %3143 = vmatprep.subr.bf16.mxu0 0
        %3144 = vmatpush2.bf16.msra.mxu0 0
        %3145 = vmatprep.subr.bf16.mxu0 0
        %3146 = vmatpush2.bf16.msra.mxu0 0
        %3147 = vmatprep.subr.bf16.mxu0 0
        %3148 = vmatpush2.bf16.msra.mxu0 0
        %3149 = vmatprep.subr.bf16.mxu0 0
        %3150 = vmatpush2.bf16.msra.mxu0 0
        %3151 = vmatprep.subr.bf16.mxu0 0
        %3152 = vmatpush2.bf16.msra.mxu0 0
        %3153 = vmatprep.subr.bf16.mxu0 0
        %3154 = vmatpush2.bf16.msra.mxu0 0
        %3155 = vmatprep.mubr.bf16.mxu0 0
        %3156 = vmatmul.mubr.bf16.gmra.mxu0 %v3032
        %v3157 = vpop.f32.mrf.mxu0
        %v3158 = vadd.f32 %v3073, %v3157
        %v3159 = vpop.f32.mrf.mxu0
        %v3160 = vpop.f32.mrf.mxu0
        %v3161 = vadd.f32 %v3073, %v3160
        %v3162 = vpop.f32.mrf.mxu0
        %3163 = vdwg.mxu0
        %v3164 = vmul.f32 %v3158, 0.17677669
        %v3165 = vmul.f32 %v3161, 0.17677669
        %v3166 = vpack.c.bf16 %v3165, %v3164
        %s3167 = smul.addr %s1572, 4
        %s3168 = scalar_lea.vmem [#allocation26], %s3167
        %v3169 = vld [vmem:[%s3168] sm:$0xf]
        %v3170 = vld [vmem:[%s3168 + $0x4] sm:$0xf]
        %v3171 = vld [vmem:[%s3168 + $0x8] sm:$0xf]
        %v3172 = vld [vmem:[%s3168 + $0xc] sm:$0xf]
        %v3173 = vld [vmem:[%s3168 + $0x10] sm:$0xf]
        %v3174 = vld [vmem:[%s3168 + $0x14] sm:$0xf]
        %v3175 = vld [vmem:[%s3168 + $0x18] sm:$0xf]
        %v3176 = vld [vmem:[%s3168 + $0x1c] sm:$0xf]
        %v3177 = vld [vmem:[%s3168 + $0x20] sm:$0xf]
        %v3178 = vld [vmem:[%s3168 + $0x24] sm:$0xf]
        %v3179 = vld [vmem:[%s3168 + $0x28] sm:$0xf]
        %v3180 = vld [vmem:[%s3168 + $0x2c] sm:$0xf]
        %v3181 = vld [vmem:[%s3168 + $0x30] sm:$0xf]
        %v3182 = vld [vmem:[%s3168 + $0x34] sm:$0xf]
        %v3183 = vld [vmem:[%s3168 + $0x38] sm:$0xf]
        %v3184 = vld [vmem:[%s3168 + $0x3c] sm:$0xf]
        %s3185 = scalar_lea.vmem [#allocation27], %s102
        %v3186 = vld [vmem:[%s3185] sm:$0x1]
        %v3188 = vlaneseq
        %v3189 = vshrl.u32 %v3188, 7
        %v3190 = vsub.s32 0, %v3189
        %v3191 = vrot.slane %v3186, %v3190
        %v3195 = vunpack.c.l.b16 %v3033
        %v3196 = vunpack.c.l.b16 %v3034
        %v3197 = vpack.c.b16 %v3196, %v3195
        %v3215 = vunpack.c.l.b16 %v3169
        %v3216 = vunpack.c.l.b16 %v3170
        %v3217 = vunpack.c.l.b16 %v3171
        %v3218 = vunpack.c.l.b16 %v3172
        %v3219 = vunpack.c.l.b16 %v3173
        %v3220 = vunpack.c.l.b16 %v3174
        %v3221 = vunpack.c.l.b16 %v3175
        %v3222 = vunpack.c.l.b16 %v3176
        %v3223 = vunpack.c.l.b16 %v3177
        %v3224 = vunpack.c.l.b16 %v3178
        %v3225 = vunpack.c.l.b16 %v3179
        %v3226 = vunpack.c.l.b16 %v3180
        %v3227 = vunpack.c.l.b16 %v3181
        %v3228 = vunpack.c.l.b16 %v3182
        %v3229 = vunpack.c.l.b16 %v3183
        %v3230 = vunpack.c.l.b16 %v3184
        %v3231 = vpack.c.b16 %v3216, %v3215
        %v3232 = vpack.c.b16 %v3218, %v3217
        %v3233 = vpack.c.b16 %v3220, %v3219
        %v3234 = vpack.c.b16 %v3222, %v3221
        %v3235 = vpack.c.b16 %v3224, %v3223
        %v3236 = vpack.c.b16 %v3226, %v3225
        %v3237 = vpack.c.b16 %v3228, %v3227
        %v3238 = vpack.c.b16 %v3230, %v3229
        %3247 = vmatprep.subr.bf16.mxu0 0
        %3248 = vmatpush1.bf16.msra.mxu0 %v3238
        %3249 = vmatprep.subr.bf16.mxu0 0
        %3250 = vmatpush1.bf16.msra.mxu0 %v3237
        %3251 = vmatprep.subr.bf16.mxu0 0
        %3252 = vmatpush1.bf16.msra.mxu0 %v3236
        %3253 = vmatprep.subr.bf16.mxu0 0
        %3254 = vmatpush1.bf16.msra.mxu0 %v3235
        %3255 = vmatprep.subr.bf16.mxu0 0
        %3256 = vmatpush1.bf16.msra.mxu0 %v3234
        %3257 = vmatprep.subr.bf16.mxu0 0
        %3258 = vmatpush1.bf16.msra.mxu0 %v3233
        %3259 = vmatprep.subr.bf16.mxu0 0
        %3260 = vmatpush1.bf16.msra.mxu0 %v3232
        %3261 = vmatprep.subr.bf16.mxu0 0
        %3262 = vmatpush1.bf16.msra.mxu0 %v3231
        %3263 = vmatprep.subr.bf16.mxu0 0
        %3264 = vmatpush2.bf16.msra.mxu0 0
        %3265 = vmatprep.subr.bf16.mxu0 0
        %3266 = vmatpush2.bf16.msra.mxu0 0
        %3267 = vmatprep.subr.bf16.mxu0 0
        %3268 = vmatpush2.bf16.msra.mxu0 0
        %3269 = vmatprep.subr.bf16.mxu0 0
        %3270 = vmatpush2.bf16.msra.mxu0 0
        %3271 = vmatprep.subr.bf16.mxu0 0
        %3272 = vmatpush2.bf16.msra.mxu0 0
        %3273 = vmatprep.subr.bf16.mxu0 0
        %3274 = vmatpush2.bf16.msra.mxu0 0
        %3275 = vmatprep.subr.bf16.mxu0 0
        %3276 = vmatpush2.bf16.msra.mxu0 0
        %3277 = vmatprep.subr.bf16.mxu0 0
        %3278 = vmatpush2.bf16.msra.mxu0 0
        %3279 = vmatprep.mubr.bf16.mxu0 0
        %3280 = vmatmul.mubr.bf16.gmra.mxu0 %v3197
        %v3281 = vpop.f32.mrf.mxu0
        %v3282 = vadd.f32 %v3191, %v3281
        %v3283 = vpop.f32.mrf.mxu0
        %v3284 = vpop.f32.mrf.mxu0
        %v3285 = vadd.f32 %v3191, %v3284
        %v3286 = vpop.f32.mrf.mxu0
        %3287 = vdwg.mxu0
        %v3288 = vpack.c.bf16 %v3285, %v3282
        %s3289 = smul.addr %s1572, 4
        %s3290 = scalar_lea.vmem [#allocation29], %s3289
        %v3291 = vld [vmem:[%s3290] sm:$0xf]
        %v3292 = vld [vmem:[%s3290 + $0x4] sm:$0xf]
        %v3293 = vld [vmem:[%s3290 + $0x8] sm:$0xf]
        %v3294 = vld [vmem:[%s3290 + $0xc] sm:$0xf]
        %v3295 = vld [vmem:[%s3290 + $0x10] sm:$0xf]
        %v3296 = vld [vmem:[%s3290 + $0x14] sm:$0xf]
        %v3297 = vld [vmem:[%s3290 + $0x18] sm:$0xf]
        %v3298 = vld [vmem:[%s3290 + $0x1c] sm:$0xf]
        %v3299 = vld [vmem:[%s3290 + $0x20] sm:$0xf]
        %v3300 = vld [vmem:[%s3290 + $0x24] sm:$0xf]
        %v3301 = vld [vmem:[%s3290 + $0x28] sm:$0xf]
        %v3302 = vld [vmem:[%s3290 + $0x2c] sm:$0xf]
        %v3303 = vld [vmem:[%s3290 + $0x30] sm:$0xf]
        %v3304 = vld [vmem:[%s3290 + $0x34] sm:$0xf]
        %v3305 = vld [vmem:[%s3290 + $0x38] sm:$0xf]
        %v3306 = vld [vmem:[%s3290 + $0x3c] sm:$0xf]
        %s3307 = scalar_lea.vmem [#allocation30], %s102
        %v3308 = vld [vmem:[%s3307] sm:$0x1]
        %v3310 = vlaneseq
        %v3311 = vshrl.u32 %v3310, 7
        %v3312 = vsub.s32 0, %v3311
        %v3313 = vrot.slane %v3308, %v3312
        %v3331 = vunpack.c.l.b16 %v3291
        %v3332 = vunpack.c.l.b16 %v3292
        %v3333 = vunpack.c.l.b16 %v3293
        %v3334 = vunpack.c.l.b16 %v3294
        %v3335 = vunpack.c.l.b16 %v3295
        %v3336 = vunpack.c.l.b16 %v3296
        %v3337 = vunpack.c.l.b16 %v3297
        %v3338 = vunpack.c.l.b16 %v3298
        %v3339 = vunpack.c.l.b16 %v3299
        %v3340 = vunpack.c.l.b16 %v3300
        %v3341 = vunpack.c.l.b16 %v3301
        %v3342 = vunpack.c.l.b16 %v3302
        %v3343 = vunpack.c.l.b16 %v3303
        %v3344 = vunpack.c.l.b16 %v3304
        %v3345 = vunpack.c.l.b16 %v3305
        %v3346 = vunpack.c.l.b16 %v3306
        %v3347 = vpack.c.b16 %v3332, %v3331
        %v3348 = vpack.c.b16 %v3334, %v3333
        %v3349 = vpack.c.b16 %v3336, %v3335
        %v3350 = vpack.c.b16 %v3338, %v3337
        %v3351 = vpack.c.b16 %v3340, %v3339
        %v3352 = vpack.c.b16 %v3342, %v3341
        %v3353 = vpack.c.b16 %v3344, %v3343
        %v3354 = vpack.c.b16 %v3346, %v3345
        %3363 = vmatprep.subr.bf16.mxu0 0
        %3364 = vmatpush1.bf16.msra.mxu0 %v3354
        %3365 = vmatprep.subr.bf16.mxu0 0
        %3366 = vmatpush1.bf16.msra.mxu0 %v3353
        %3367 = vmatprep.subr.bf16.mxu0 0
        %3368 = vmatpush1.bf16.msra.mxu0 %v3352
        %3369 = vmatprep.subr.bf16.mxu0 0
        %3370 = vmatpush1.bf16.msra.mxu0 %v3351
        %3371 = vmatprep.subr.bf16.mxu0 0
        %3372 = vmatpush1.bf16.msra.mxu0 %v3350
        %3373 = vmatprep.subr.bf16.mxu0 0
        %3374 = vmatpush1.bf16.msra.mxu0 %v3349
        %3375 = vmatprep.subr.bf16.mxu0 0
        %3376 = vmatpush1.bf16.msra.mxu0 %v3348
        %3377 = vmatprep.subr.bf16.mxu0 0
        %3378 = vmatpush1.bf16.msra.mxu0 %v3347
        %3379 = vmatprep.subr.bf16.mxu0 0
        %3380 = vmatpush2.bf16.msra.mxu0 0
        %3381 = vmatprep.subr.bf16.mxu0 0
        %3382 = vmatpush2.bf16.msra.mxu0 0
        %3383 = vmatprep.subr.bf16.mxu0 0
        %3384 = vmatpush2.bf16.msra.mxu0 0
        %3385 = vmatprep.subr.bf16.mxu0 0
        %3386 = vmatpush2.bf16.msra.mxu0 0
        %3387 = vmatprep.subr.bf16.mxu0 0
        %3388 = vmatpush2.bf16.msra.mxu0 0
        %3389 = vmatprep.subr.bf16.mxu0 0
        %3390 = vmatpush2.bf16.msra.mxu0 0
        %3391 = vmatprep.subr.bf16.mxu0 0
        %3392 = vmatpush2.bf16.msra.mxu0 0
        %3393 = vmatprep.subr.bf16.mxu0 0
        %3394 = vmatpush2.bf16.msra.mxu0 0
        %3395 = vmatprep.mubr.bf16.mxu0 0
        %3396 = vmatmul.mubr.bf16.gmra.mxu0 %v3197
        %v3397 = vpop.f32.mrf.mxu0
        %v3398 = vadd.f32 %v3313, %v3397
        %v3399 = vpop.f32.mrf.mxu0
        %v3400 = vpop.f32.mrf.mxu0
        %v3401 = vadd.f32 %v3313, %v3400
        %v3402 = vpop.f32.mrf.mxu0
        %3403 = vdwg.mxu0
        %v3404 = vpack.c.bf16 %v3401, %v3398
        %v3406 = vunpack.c.l.b16 %v3166
        %v3407 = vunpack.c.h.b16 %v3166
        %v3408 = vpack.c.b16 %v3406, %v3406
        %v3409 = vpack.c.b16 %v3407, %v3407
        %v3411 = vunpack.c.l.b16 %v3288
        %v3412 = vunpack.c.h.b16 %v3288
        %v3413 = vpack.c.b16 %v3411, %v3411
        %v3414 = vpack.c.b16 %v3412, %v3412
        %v3416 = vunpack.c.l.b16 %v3404
        %v3417 = vunpack.c.h.b16 %v3404
        %v3418 = vpack.c.b16 %v3416, %v3416
        %v3419 = vpack.c.b16 %v3417, %v3417
        %v3421 = vsel %vm1938, %v3408, 0
        %v3424 = vsel %vm1938, %v3413, 0
        %3426 = vmatprep.subr.bf16.mxu0 0
        %3427 = vmatpush1.bf16.xpose.msra.mxu0 0
        %3428 = vmatprep.subr.bf16.mxu0 0
        %3429 = vmatpush1.bf16.xpose.msra.mxu0 0
        %3430 = vmatprep.subr.bf16.mxu0 0
        %3431 = vmatpush1.bf16.xpose.msra.mxu0 0
        %3432 = vmatprep.subr.bf16.mxu0 0
        %3433 = vmatpush1.bf16.xpose.msra.mxu0 0
        %3434 = vmatprep.subr.bf16.mxu0 0
        %3435 = vmatpush1.bf16.xpose.msra.mxu0 0
        %3436 = vmatprep.subr.bf16.mxu0 0
        %3437 = vmatpush1.bf16.xpose.msra.mxu0 0
        %3438 = vmatprep.subr.bf16.mxu0 0
        %3439 = vmatpush1.bf16.xpose.msra.mxu0 0
        %3440 = vmatprep.subr.bf16.mxu0 0
        %3441 = vmatpush1.bf16.xpose.msra.mxu0 %v3424
        %3442 = vmatprep.subr.bf16.mxu0 0
        %3443 = vmatpush2.bf16.xpose.msra.mxu0 0
        %3444 = vmatprep.subr.bf16.mxu0 0
        %3445 = vmatpush2.bf16.xpose.msra.mxu0 0
        %3446 = vmatprep.subr.bf16.mxu0 0
        %3447 = vmatpush2.bf16.xpose.msra.mxu0 0
        %3448 = vmatprep.subr.bf16.mxu0 0
        %3449 = vmatpush2.bf16.xpose.msra.mxu0 0
        %3450 = vmatprep.subr.bf16.mxu0 0
        %3451 = vmatpush2.bf16.xpose.msra.mxu0 0
        %3452 = vmatprep.subr.bf16.mxu0 0
        %3453 = vmatpush2.bf16.xpose.msra.mxu0 0
        %3454 = vmatprep.subr.bf16.mxu0 0
        %3455 = vmatpush2.bf16.xpose.msra.mxu0 0
        %3456 = vmatprep.subr.bf16.mxu0 0
        %3457 = vmatpush2.bf16.xpose.msra.mxu0 0
        %3458 = vmatprep.mubr.bf16.mxu0 0
        %3459 = vmatmul.mubr.bf16.gmra.mxu0 %v3421
        %v3460 = vpop.f32.mrf.mxu0
        %v3461 = vadd.f32 %v3042, %v3460
        %v3462 = vpop.f32.mrf.mxu0
        %v3463 = vpop.f32.mrf.mxu0
        %v3464 = vpop.f32.mrf.mxu0
        %3465 = vdwg.mxu0
        %v3467 = vsel %vm1938, %v3409, 0
        %v3470 = vsel %vm1938, %v3414, 0
        %3472 = vmatprep.subr.bf16.mxu0 0
        %3473 = vmatpush1.bf16.xpose.msra.mxu0 0
        %3474 = vmatprep.subr.bf16.mxu0 0
        %3475 = vmatpush1.bf16.xpose.msra.mxu0 0
        %3476 = vmatprep.subr.bf16.mxu0 0
        %3477 = vmatpush1.bf16.xpose.msra.mxu0 0
        %3478 = vmatprep.subr.bf16.mxu0 0
        %3479 = vmatpush1.bf16.xpose.msra.mxu0 0
        %3480 = vmatprep.subr.bf16.mxu0 0
        %3481 = vmatpush1.bf16.xpose.msra.mxu0 0
        %3482 = vmatprep.subr.bf16.mxu0 0
        %3483 = vmatpush1.bf16.xpose.msra.mxu0 0
        %3484 = vmatprep.subr.bf16.mxu0 0
        %3485 = vmatpush1.bf16.xpose.msra.mxu0 0
        %3486 = vmatprep.subr.bf16.mxu0 0
        %3487 = vmatpush1.bf16.xpose.msra.mxu0 %v3470
        %3488 = vmatprep.subr.bf16.mxu0 0
        %3489 = vmatpush2.bf16.xpose.msra.mxu0 0
        %3490 = vmatprep.subr.bf16.mxu0 0
        %3491 = vmatpush2.bf16.xpose.msra.mxu0 0
        %3492 = vmatprep.subr.bf16.mxu0 0
        %3493 = vmatpush2.bf16.xpose.msra.mxu0 0
        %3494 = vmatprep.subr.bf16.mxu0 0
        %3495 = vmatpush2.bf16.xpose.msra.mxu0 0
        %3496 = vmatprep.subr.bf16.mxu0 0
        %3497 = vmatpush2.bf16.xpose.msra.mxu0 0
        %3498 = vmatprep.subr.bf16.mxu0 0
        %3499 = vmatpush2.bf16.xpose.msra.mxu0 0
        %3500 = vmatprep.subr.bf16.mxu0 0
        %3501 = vmatpush2.bf16.xpose.msra.mxu0 0
        %3502 = vmatprep.subr.bf16.mxu0 0
        %3503 = vmatpush2.bf16.xpose.msra.mxu0 0
        %3504 = vmatprep.mubr.bf16.mxu0 0
        %3505 = vmatmul.mubr.bf16.gmra.mxu0 %v3467
        %v3506 = vpop.f32.mrf.mxu0
        %v3507 = vadd.f32 %v3046, %v3506
        %v3508 = vpop.f32.mrf.mxu0
        %v3509 = vpop.f32.mrf.mxu0
        %v3510 = vpop.f32.mrf.mxu0
        %3511 = vdwg.mxu0
        %v3512 = vsel %vm2031, %v3461, -inf
        %3513 = vmax.xlane.f32.xlu0 %v3512
        %v3514 = vpop.xlane.xlu0 %3513
        %v3515 = vsel %vm2031, %v3507, -inf
        %3516 = vmax.xlane.f32.xlu0 %v3515
        %v3517 = vpop.xlane.xlu0 %3516
        %v3518 = vsub.f32 %v3461, %v3514
        %v3519 = vsub.f32 %v3507, %v3517
        %v3520 = vmul.f32 %v3518, 1.442695
        %v3521 = vpow.pop %v3520
        %v3522 = vmul.f32 %v3519, 1.442695
        %v3523 = vpow.pop %v3522
        %v3524 = vsel %vm2031, %v3521, 0.0
        %3525 = vadd.xlane.f32.xlu0 %v3524
        %v3526 = vpop.xlane.xlu0 %3525
        %v3527 = vsel %vm2031, %v3523, 0.0
        %3528 = vadd.xlane.f32.xlu0 %v3527
        %v3529 = vpop.xlane.xlu0 %3528
        %v3530 = vrcp.pop %v3526
        %v3531 = vrcp.pop %v3529
        %v3532 = vmul.f32 %v3521, %v3530
        %v3533 = vmul.f32 %v3523, %v3531
        %v3534 = vpack.c.bf16 %v3532, %v3532
        %v3535 = vpack.c.bf16 %v3533, %v3533
        %v3537 = vsel %vm2031, %v3534, 0
        %v3540 = vsel %vm2059, %v3418, 0
        %3542 = vmatprep.subr.bf16.mxu0 0
        %3543 = vmatpush1.bf16.msra.mxu0 0
        %3544 = vmatprep.subr.bf16.mxu0 0
        %3545 = vmatpush1.bf16.msra.mxu0 0
        %3546 = vmatprep.subr.bf16.mxu0 0
        %3547 = vmatpush1.bf16.msra.mxu0 0
        %3548 = vmatprep.subr.bf16.mxu0 0
        %3549 = vmatpush1.bf16.msra.mxu0 0
        %3550 = vmatprep.subr.bf16.mxu0 0
        %3551 = vmatpush1.bf16.msra.mxu0 0
        %3552 = vmatprep.subr.bf16.mxu0 0
        %3553 = vmatpush1.bf16.msra.mxu0 0
        %3554 = vmatprep.subr.bf16.mxu0 0
        %3555 = vmatpush1.bf16.msra.mxu0 0
        %3556 = vmatprep.subr.bf16.mxu0 0
        %3557 = vmatpush1.bf16.msra.mxu0 %v3540
        %3558 = vmatprep.subr.bf16.mxu0 0
        %3559 = vmatpush2.bf16.msra.mxu0 0
        %3560 = vmatprep.subr.bf16.mxu0 0
        %3561 = vmatpush2.bf16.msra.mxu0 0
        %3562 = vmatprep.subr.bf16.mxu0 0
        %3563 = vmatpush2.bf16.msra.mxu0 0
        %3564 = vmatprep.subr.bf16.mxu0 0
        %3565 = vmatpush2.bf16.msra.mxu0 0
        %3566 = vmatprep.subr.bf16.mxu0 0
        %3567 = vmatpush2.bf16.msra.mxu0 0
        %3568 = vmatprep.subr.bf16.mxu0 0
        %3569 = vmatpush2.bf16.msra.mxu0 0
        %3570 = vmatprep.subr.bf16.mxu0 0
        %3571 = vmatpush2.bf16.msra.mxu0 0
        %3572 = vmatprep.subr.bf16.mxu0 0
        %3573 = vmatpush2.bf16.msra.mxu0 0
        %3574 = vmatprep.mubr.bf16.mxu0 0
        %3575 = vmatmul.mubr.bf16.gmra.mxu0 %v3537
        %v3576 = vpop.f32.mrf.mxu0
        %v3577 = vadd.f32 0.0, %v3576
        %v3578 = vpop.f32.mrf.mxu0
        %v3579 = vpop.f32.mrf.mxu0
        %v3580 = vpop.f32.mrf.mxu0
        %3581 = vdwg.mxu0
        %v3583 = vsel %vm2031, %v3535, 0
        %v3586 = vsel %vm2059, %v3419, 0
        %3588 = vmatprep.subr.bf16.mxu0 0
        %3589 = vmatpush1.bf16.msra.mxu0 0
        %3590 = vmatprep.subr.bf16.mxu0 0
        %3591 = vmatpush1.bf16.msra.mxu0 0
        %3592 = vmatprep.subr.bf16.mxu0 0
        %3593 = vmatpush1.bf16.msra.mxu0 0
        %3594 = vmatprep.subr.bf16.mxu0 0
        %3595 = vmatpush1.bf16.msra.mxu0 0
        %3596 = vmatprep.subr.bf16.mxu0 0
        %3597 = vmatpush1.bf16.msra.mxu0 0
        %3598 = vmatprep.subr.bf16.mxu0 0
        %3599 = vmatpush1.bf16.msra.mxu0 0
        %3600 = vmatprep.subr.bf16.mxu0 0
        %3601 = vmatpush1.bf16.msra.mxu0 0
        %3602 = vmatprep.subr.bf16.mxu0 0
        %3603 = vmatpush1.bf16.msra.mxu0 %v3586
        %3604 = vmatprep.subr.bf16.mxu0 0
        %3605 = vmatpush2.bf16.msra.mxu0 0
        %3606 = vmatprep.subr.bf16.mxu0 0
        %3607 = vmatpush2.bf16.msra.mxu0 0
        %3608 = vmatprep.subr.bf16.mxu0 0
        %3609 = vmatpush2.bf16.msra.mxu0 0
        %3610 = vmatprep.subr.bf16.mxu0 0
        %3611 = vmatpush2.bf16.msra.mxu0 0
        %3612 = vmatprep.subr.bf16.mxu0 0
        %3613 = vmatpush2.bf16.msra.mxu0 0
        %3614 = vmatprep.subr.bf16.mxu0 0
        %3615 = vmatpush2.bf16.msra.mxu0 0
        %3616 = vmatprep.subr.bf16.mxu0 0
        %3617 = vmatpush2.bf16.msra.mxu0 0
        %3618 = vmatprep.subr.bf16.mxu0 0
        %3619 = vmatpush2.bf16.msra.mxu0 0
        %3620 = vmatprep.mubr.bf16.mxu0 0
        %3621 = vmatmul.mubr.bf16.gmra.mxu0 %v3583
        %v3622 = vpop.f32.mrf.mxu0
        %v3623 = vadd.f32 0.0, %v3622
        %v3624 = vpop.f32.mrf.mxu0
        %v3625 = vpop.f32.mrf.mxu0
        %v3626 = vpop.f32.mrf.mxu0
        %3627 = vdwg.mxu0
        %v3628 = vpack.c.bf16 %v3623, %v3577
        %v3630 = vunpack.c.l.b16 %v3628
        %v3631 = vunpack.c.h.b16 %v3628
        %v3632 = vpack.c.b16 %v3630, %v3630
        %v3633 = vpack.c.b16 %v3631, %v3631
        %3636 = vst.msk [vmem:[#allocation3] sm:$0xf] %vm2157, %v3632
        %3637 = vst.msk [vmem:[#allocation3 + $0x4] sm:$0xf] %vm2157, %v3633
        %3638 = vrot.lane.b32.xlu0 %v3408, 96
        %v3639 = vpop.permute.xlu0 %3638
        %3640 = vrot.lane.b32.xlu0 %v3413, 96
        %v3641 = vpop.permute.xlu0 %3640
        %v3643 = vsel %vm1938, %v3639, 0
        %v3646 = vsel %vm1938, %v3641, 0
        %3648 = vmatprep.subr.bf16.mxu0 0
        %3649 = vmatpush1.bf16.xpose.msra.mxu0 0
        %3650 = vmatprep.subr.bf16.mxu0 0
        %3651 = vmatpush1.bf16.xpose.msra.mxu0 0
        %3652 = vmatprep.subr.bf16.mxu0 0
        %3653 = vmatpush1.bf16.xpose.msra.mxu0 0
        %3654 = vmatprep.subr.bf16.mxu0 0
        %3655 = vmatpush1.bf16.xpose.msra.mxu0 0
        %3656 = vmatprep.subr.bf16.mxu0 0
        %3657 = vmatpush1.bf16.xpose.msra.mxu0 0
        %3658 = vmatprep.subr.bf16.mxu0 0
        %3659 = vmatpush1.bf16.xpose.msra.mxu0 0
        %3660 = vmatprep.subr.bf16.mxu0 0
        %3661 = vmatpush1.bf16.xpose.msra.mxu0 0
        %3662 = vmatprep.subr.bf16.mxu0 0
        %3663 = vmatpush1.bf16.xpose.msra.mxu0 %v3646
        %3664 = vmatprep.subr.bf16.mxu0 0
        %3665 = vmatpush2.bf16.xpose.msra.mxu0 0
        %3666 = vmatprep.subr.bf16.mxu0 0
        %3667 = vmatpush2.bf16.xpose.msra.mxu0 0
        %3668 = vmatprep.subr.bf16.mxu0 0
        %3669 = vmatpush2.bf16.xpose.msra.mxu0 0
        %3670 = vmatprep.subr.bf16.mxu0 0
        %3671 = vmatpush2.bf16.xpose.msra.mxu0 0
        %3672 = vmatprep.subr.bf16.mxu0 0
        %3673 = vmatpush2.bf16.xpose.msra.mxu0 0
        %3674 = vmatprep.subr.bf16.mxu0 0
        %3675 = vmatpush2.bf16.xpose.msra.mxu0 0
        %3676 = vmatprep.subr.bf16.mxu0 0
        %3677 = vmatpush2.bf16.xpose.msra.mxu0 0
        %3678 = vmatprep.subr.bf16.mxu0 0
        %3679 = vmatpush2.bf16.xpose.msra.mxu0 0
        %3680 = vmatprep.mubr.bf16.mxu0 0
        %3681 = vmatmul.mubr.bf16.gmra.mxu0 %v3643
        %v3682 = vpop.f32.mrf.mxu0
        %v3683 = vadd.f32 %v3042, %v3682
        %v3684 = vpop.f32.mrf.mxu0
        %v3685 = vpop.f32.mrf.mxu0
        %v3686 = vpop.f32.mrf.mxu0
        %3687 = vdwg.mxu0
        %3688 = vrot.lane.b32.xlu0 %v3409, 96
        %v3689 = vpop.permute.xlu0 %3688
        %3690 = vrot.lane.b32.xlu0 %v3414, 96
        %v3691 = vpop.permute.xlu0 %3690
        %v3693 = vsel %vm1938, %v3689, 0
        %v3696 = vsel %vm1938, %v3691, 0
        %3698 = vmatprep.subr.bf16.mxu0 0
        %3699 = vmatpush1.bf16.xpose.msra.mxu0 0
        %3700 = vmatprep.subr.bf16.mxu0 0
        %3701 = vmatpush1.bf16.xpose.msra.mxu0 0
        %3702 = vmatprep.subr.bf16.mxu0 0
        %3703 = vmatpush1.bf16.xpose.msra.mxu0 0
        %3704 = vmatprep.subr.bf16.mxu0 0
        %3705 = vmatpush1.bf16.xpose.msra.mxu0 0
        %3706 = vmatprep.subr.bf16.mxu0 0
        %3707 = vmatpush1.bf16.xpose.msra.mxu0 0
        %3708 = vmatprep.subr.bf16.mxu0 0
        %3709 = vmatpush1.bf16.xpose.msra.mxu0 0
        %3710 = vmatprep.subr.bf16.mxu0 0
        %3711 = vmatpush1.bf16.xpose.msra.mxu0 0
        %3712 = vmatprep.subr.bf16.mxu0 0
        %3713 = vmatpush1.bf16.xpose.msra.mxu0 %v3696
        %3714 = vmatprep.subr.bf16.mxu0 0
        %3715 = vmatpush2.bf16.xpose.msra.mxu0 0
        %3716 = vmatprep.subr.bf16.mxu0 0
        %3717 = vmatpush2.bf16.xpose.msra.mxu0 0
        %3718 = vmatprep.subr.bf16.mxu0 0
        %3719 = vmatpush2.bf16.xpose.msra.mxu0 0
        %3720 = vmatprep.subr.bf16.mxu0 0
        %3721 = vmatpush2.bf16.xpose.msra.mxu0 0
        %3722 = vmatprep.subr.bf16.mxu0 0
        %3723 = vmatpush2.bf16.xpose.msra.mxu0 0
        %3724 = vmatprep.subr.bf16.mxu0 0
        %3725 = vmatpush2.bf16.xpose.msra.mxu0 0
        %3726 = vmatprep.subr.bf16.mxu0 0
        %3727 = vmatpush2.bf16.xpose.msra.mxu0 0
        %3728 = vmatprep.subr.bf16.mxu0 0
        %3729 = vmatpush2.bf16.xpose.msra.mxu0 0
        %3730 = vmatprep.mubr.bf16.mxu0 0
        %3731 = vmatmul.mubr.bf16.gmra.mxu0 %v3693
        %v3732 = vpop.f32.mrf.mxu0
        %v3733 = vadd.f32 %v3046, %v3732
        %v3734 = vpop.f32.mrf.mxu0
        %v3735 = vpop.f32.mrf.mxu0
        %v3736 = vpop.f32.mrf.mxu0
        %3737 = vdwg.mxu0
        %v3738 = vsel %vm2031, %v3683, -inf
        %3739 = vmax.xlane.f32.xlu0 %v3738
        %v3740 = vpop.xlane.xlu0 %3739
        %v3741 = vsel %vm2031, %v3733, -inf
        %3742 = vmax.xlane.f32.xlu0 %v3741
        %v3743 = vpop.xlane.xlu0 %3742
        %v3744 = vsub.f32 %v3683, %v3740
        %v3745 = vsub.f32 %v3733, %v3743
        %v3746 = vmul.f32 %v3744, 1.442695
        %v3747 = vpow.pop %v3746
        %v3748 = vmul.f32 %v3745, 1.442695
        %v3749 = vpow.pop %v3748
        %v3750 = vsel %vm2031, %v3747, 0.0
        %3751 = vadd.xlane.f32.xlu0 %v3750
        %v3752 = vpop.xlane.xlu0 %3751
        %v3753 = vsel %vm2031, %v3749, 0.0
        %3754 = vadd.xlane.f32.xlu0 %v3753
        %v3755 = vpop.xlane.xlu0 %3754
        %v3756 = vrcp.pop %v3752
        %v3757 = vrcp.pop %v3755
        %v3758 = vmul.f32 %v3747, %v3756
        %v3759 = vmul.f32 %v3749, %v3757
        %v3760 = vpack.c.bf16 %v3758, %v3758
        %v3761 = vpack.c.bf16 %v3759, %v3759
        %3762 = vrot.lane.b32.xlu0 %v3418, 96
        %v3763 = vpop.permute.xlu0 %3762
        %v3765 = vsel %vm2031, %v3760, 0
        %v3768 = vsel %vm2059, %v3763, 0
        %3770 = vmatprep.subr.bf16.mxu0 0
        %3771 = vmatpush1.bf16.msra.mxu0 0
        %3772 = vmatprep.subr.bf16.mxu0 0
        %3773 = vmatpush1.bf16.msra.mxu0 0
        %3774 = vmatprep.subr.bf16.mxu0 0
        %3775 = vmatpush1.bf16.msra.mxu0 0
        %3776 = vmatprep.subr.bf16.mxu0 0
        %3777 = vmatpush1.bf16.msra.mxu0 0
        %3778 = vmatprep.subr.bf16.mxu0 0
        %3779 = vmatpush1.bf16.msra.mxu0 0
        %3780 = vmatprep.subr.bf16.mxu0 0
        %3781 = vmatpush1.bf16.msra.mxu0 0
        %3782 = vmatprep.subr.bf16.mxu0 0
        %3783 = vmatpush1.bf16.msra.mxu0 0
        %3784 = vmatprep.subr.bf16.mxu0 0
        %3785 = vmatpush1.bf16.msra.mxu0 %v3768
        %3786 = vmatprep.subr.bf16.mxu0 0
        %3787 = vmatpush2.bf16.msra.mxu0 0
        %3788 = vmatprep.subr.bf16.mxu0 0
        %3789 = vmatpush2.bf16.msra.mxu0 0
        %3790 = vmatprep.subr.bf16.mxu0 0
        %3791 = vmatpush2.bf16.msra.mxu0 0
        %3792 = vmatprep.subr.bf16.mxu0 0
        %3793 = vmatpush2.bf16.msra.mxu0 0
        %3794 = vmatprep.subr.bf16.mxu0 0
        %3795 = vmatpush2.bf16.msra.mxu0 0
        %3796 = vmatprep.subr.bf16.mxu0 0
        %3797 = vmatpush2.bf16.msra.mxu0 0
        %3798 = vmatprep.subr.bf16.mxu0 0
        %3799 = vmatpush2.bf16.msra.mxu0 0
        %3800 = vmatprep.subr.bf16.mxu0 0
        %3801 = vmatpush2.bf16.msra.mxu0 0
        %3802 = vmatprep.mubr.bf16.mxu0 0
        %3803 = vmatmul.mubr.bf16.gmra.mxu0 %v3765
        %v3804 = vpop.f32.mrf.mxu0
        %v3805 = vadd.f32 0.0, %v3804
        %v3806 = vpop.f32.mrf.mxu0
        %v3807 = vpop.f32.mrf.mxu0
        %v3808 = vpop.f32.mrf.mxu0
        %3809 = vdwg.mxu0
        %3810 = vrot.lane.b32.xlu0 %v3419, 96
        %v3811 = vpop.permute.xlu0 %3810
        %v3813 = vsel %vm2031, %v3761, 0
        %v3816 = vsel %vm2059, %v3811, 0
        %3818 = vmatprep.subr.bf16.mxu0 0
        %3819 = vmatpush1.bf16.msra.mxu0 0
        %3820 = vmatprep.subr.bf16.mxu0 0
        %3821 = vmatpush1.bf16.msra.mxu0 0
        %3822 = vmatprep.subr.bf16.mxu0 0
        %3823 = vmatpush1.bf16.msra.mxu0 0
        %3824 = vmatprep.subr.bf16.mxu0 0
        %3825 = vmatpush1.bf16.msra.mxu0 0
        %3826 = vmatprep.subr.bf16.mxu0 0
        %3827 = vmatpush1.bf16.msra.mxu0 0
        %3828 = vmatprep.subr.bf16.mxu0 0
        %3829 = vmatpush1.bf16.msra.mxu0 0
        %3830 = vmatprep.subr.bf16.mxu0 0
        %3831 = vmatpush1.bf16.msra.mxu0 0
        %3832 = vmatprep.subr.bf16.mxu0 0
        %3833 = vmatpush1.bf16.msra.mxu0 %v3816
        %3834 = vmatprep.subr.bf16.mxu0 0
        %3835 = vmatpush2.bf16.msra.mxu0 0
        %3836 = vmatprep.subr.bf16.mxu0 0
        %3837 = vmatpush2.bf16.msra.mxu0 0
        %3838 = vmatprep.subr.bf16.mxu0 0
        %3839 = vmatpush2.bf16.msra.mxu0 0
        %3840 = vmatprep.subr.bf16.mxu0 0
        %3841 = vmatpush2.bf16.msra.mxu0 0
        %3842 = vmatprep.subr.bf16.mxu0 0
        %3843 = vmatpush2.bf16.msra.mxu0 0
        %3844 = vmatprep.subr.bf16.mxu0 0
        %3845 = vmatpush2.bf16.msra.mxu0 0
        %3846 = vmatprep.subr.bf16.mxu0 0
        %3847 = vmatpush2.bf16.msra.mxu0 0
        %3848 = vmatprep.subr.bf16.mxu0 0
        %3849 = vmatpush2.bf16.msra.mxu0 0
        %3850 = vmatprep.mubr.bf16.mxu0 0
        %3851 = vmatmul.mubr.bf16.gmra.mxu0 %v3813
        %v3852 = vpop.f32.mrf.mxu0
        %v3853 = vadd.f32 0.0, %v3852
        %v3854 = vpop.f32.mrf.mxu0
        %v3855 = vpop.f32.mrf.mxu0
        %v3856 = vpop.f32.mrf.mxu0
        %3857 = vdwg.mxu0
        %v3858 = vpack.c.bf16 %v3853, %v3805
        %v3860 = vunpack.c.l.b16 %v3858
        %v3861 = vunpack.c.h.b16 %v3858
        %v3862 = vpack.c.b16 %v3860, %v3860
        %v3863 = vpack.c.b16 %v3861, %v3861
        %3864 = vrot.lane.b32.xlu0 %v3862, 32
        %v3865 = vpop.permute.xlu0 %3864
        %3866 = vrot.lane.b32.xlu0 %v3863, 32
        %v3867 = vpop.permute.xlu0 %3866
        %3870 = vst.msk [vmem:[#allocation3] sm:$0xf] %vm2392, %v3865
        %3871 = vst.msk [vmem:[#allocation3 + $0x4] sm:$0xf] %vm2392, %v3867
        %3872 = vrot.lane.b32.xlu0 %v3408, 64
        %v3873 = vpop.permute.xlu0 %3872
        %3874 = vrot.lane.b32.xlu0 %v3413, 64
        %v3875 = vpop.permute.xlu0 %3874
        %v3877 = vsel %vm1938, %v3873, 0
        %v3880 = vsel %vm1938, %v3875, 0
        %3882 = vmatprep.subr.bf16.mxu0 0
        %3883 = vmatpush1.bf16.xpose.msra.mxu0 0
        %3884 = vmatprep.subr.bf16.mxu0 0
        %3885 = vmatpush1.bf16.xpose.msra.mxu0 0
        %3886 = vmatprep.subr.bf16.mxu0 0
        %3887 = vmatpush1.bf16.xpose.msra.mxu0 0
        %3888 = vmatprep.subr.bf16.mxu0 0
        %3889 = vmatpush1.bf16.xpose.msra.mxu0 0
        %3890 = vmatprep.subr.bf16.mxu0 0
        %3891 = vmatpush1.bf16.xpose.msra.mxu0 0
        %3892 = vmatprep.subr.bf16.mxu0 0
        %3893 = vmatpush1.bf16.xpose.msra.mxu0 0
        %3894 = vmatprep.subr.bf16.mxu0 0
        %3895 = vmatpush1.bf16.xpose.msra.mxu0 0
        %3896 = vmatprep.subr.bf16.mxu0 0
        %3897 = vmatpush1.bf16.xpose.msra.mxu0 %v3880
        %3898 = vmatprep.subr.bf16.mxu0 0
        %3899 = vmatpush2.bf16.xpose.msra.mxu0 0
        %3900 = vmatprep.subr.bf16.mxu0 0
        %3901 = vmatpush2.bf16.xpose.msra.mxu0 0
        %3902 = vmatprep.subr.bf16.mxu0 0
        %3903 = vmatpush2.bf16.xpose.msra.mxu0 0
        %3904 = vmatprep.subr.bf16.mxu0 0
        %3905 = vmatpush2.bf16.xpose.msra.mxu0 0
        %3906 = vmatprep.subr.bf16.mxu0 0
        %3907 = vmatpush2.bf16.xpose.msra.mxu0 0
        %3908 = vmatprep.subr.bf16.mxu0 0
        %3909 = vmatpush2.bf16.xpose.msra.mxu0 0
        %3910 = vmatprep.subr.bf16.mxu0 0
        %3911 = vmatpush2.bf16.xpose.msra.mxu0 0
        %3912 = vmatprep.subr.bf16.mxu0 0
        %3913 = vmatpush2.bf16.xpose.msra.mxu0 0
        %3914 = vmatprep.mubr.bf16.mxu0 0
        %3915 = vmatmul.mubr.bf16.gmra.mxu0 %v3877
        %v3916 = vpop.f32.mrf.mxu0
        %v3917 = vadd.f32 %v3042, %v3916
        %v3918 = vpop.f32.mrf.mxu0
        %v3919 = vpop.f32.mrf.mxu0
        %v3920 = vpop.f32.mrf.mxu0
        %3921 = vdwg.mxu0
        %3922 = vrot.lane.b32.xlu0 %v3409, 64
        %v3923 = vpop.permute.xlu0 %3922
        %3924 = vrot.lane.b32.xlu0 %v3414, 64
        %v3925 = vpop.permute.xlu0 %3924
        %v3927 = vsel %vm1938, %v3923, 0
        %v3930 = vsel %vm1938, %v3925, 0
        %3932 = vmatprep.subr.bf16.mxu0 0
        %3933 = vmatpush1.bf16.xpose.msra.mxu0 0
        %3934 = vmatprep.subr.bf16.mxu0 0
        %3935 = vmatpush1.bf16.xpose.msra.mxu0 0
        %3936 = vmatprep.subr.bf16.mxu0 0
        %3937 = vmatpush1.bf16.xpose.msra.mxu0 0
        %3938 = vmatprep.subr.bf16.mxu0 0
        %3939 = vmatpush1.bf16.xpose.msra.mxu0 0
        %3940 = vmatprep.subr.bf16.mxu0 0
        %3941 = vmatpush1.bf16.xpose.msra.mxu0 0
        %3942 = vmatprep.subr.bf16.mxu0 0
        %3943 = vmatpush1.bf16.xpose.msra.mxu0 0
        %3944 = vmatprep.subr.bf16.mxu0 0
        %3945 = vmatpush1.bf16.xpose.msra.mxu0 0
        %3946 = vmatprep.subr.bf16.mxu0 0
        %3947 = vmatpush1.bf16.xpose.msra.mxu0 %v3930
        %3948 = vmatprep.subr.bf16.mxu0 0
        %3949 = vmatpush2.bf16.xpose.msra.mxu0 0
        %3950 = vmatprep.subr.bf16.mxu0 0
        %3951 = vmatpush2.bf16.xpose.msra.mxu0 0
        %3952 = vmatprep.subr.bf16.mxu0 0
        %3953 = vmatpush2.bf16.xpose.msra.mxu0 0
        %3954 = vmatprep.subr.bf16.mxu0 0
        %3955 = vmatpush2.bf16.xpose.msra.mxu0 0
        %3956 = vmatprep.subr.bf16.mxu0 0
        %3957 = vmatpush2.bf16.xpose.msra.mxu0 0
        %3958 = vmatprep.subr.bf16.mxu0 0
        %3959 = vmatpush2.bf16.xpose.msra.mxu0 0
        %3960 = vmatprep.subr.bf16.mxu0 0
        %3961 = vmatpush2.bf16.xpose.msra.mxu0 0
        %3962 = vmatprep.subr.bf16.mxu0 0
        %3963 = vmatpush2.bf16.xpose.msra.mxu0 0
        %3964 = vmatprep.mubr.bf16.mxu0 0
        %3965 = vmatmul.mubr.bf16.gmra.mxu0 %v3927
        %v3966 = vpop.f32.mrf.mxu0
        %v3967 = vadd.f32 %v3046, %v3966
        %v3968 = vpop.f32.mrf.mxu0
        %v3969 = vpop.f32.mrf.mxu0
        %v3970 = vpop.f32.mrf.mxu0
        %3971 = vdwg.mxu0
        %v3972 = vsel %vm2031, %v3917, -inf
        %3973 = vmax.xlane.f32.xlu0 %v3972
        %v3974 = vpop.xlane.xlu0 %3973
        %v3975 = vsel %vm2031, %v3967, -inf
        %3976 = vmax.xlane.f32.xlu0 %v3975
        %v3977 = vpop.xlane.xlu0 %3976
        %v3978 = vsub.f32 %v3917, %v3974
        %v3979 = vsub.f32 %v3967, %v3977
        %v3980 = vmul.f32 %v3978, 1.442695
        %v3981 = vpow.pop %v3980
        %v3982 = vmul.f32 %v3979, 1.442695
        %v3983 = vpow.pop %v3982
        %v3984 = vsel %vm2031, %v3981, 0.0
        %3985 = vadd.xlane.f32.xlu0 %v3984
        %v3986 = vpop.xlane.xlu0 %3985
        %v3987 = vsel %vm2031, %v3983, 0.0
        %3988 = vadd.xlane.f32.xlu0 %v3987
        %v3989 = vpop.xlane.xlu0 %3988
        %v3990 = vrcp.pop %v3986
        %v3991 = vrcp.pop %v3989
        %v3992 = vmul.f32 %v3981, %v3990
        %v3993 = vmul.f32 %v3983, %v3991
        %v3994 = vpack.c.bf16 %v3992, %v3992
        %v3995 = vpack.c.bf16 %v3993, %v3993
        %3996 = vrot.lane.b32.xlu0 %v3418, 64
        %v3997 = vpop.permute.xlu0 %3996
        %v3999 = vsel %vm2031, %v3994, 0
        %v4002 = vsel %vm2059, %v3997, 0
        %4004 = vmatprep.subr.bf16.mxu0 0
        %4005 = vmatpush1.bf16.msra.mxu0 0
        %4006 = vmatprep.subr.bf16.mxu0 0
        %4007 = vmatpush1.bf16.msra.mxu0 0
        %4008 = vmatprep.subr.bf16.mxu0 0
        %4009 = vmatpush1.bf16.msra.mxu0 0
        %4010 = vmatprep.subr.bf16.mxu0 0
        %4011 = vmatpush1.bf16.msra.mxu0 0
        %4012 = vmatprep.subr.bf16.mxu0 0
        %4013 = vmatpush1.bf16.msra.mxu0 0
        %4014 = vmatprep.subr.bf16.mxu0 0
        %4015 = vmatpush1.bf16.msra.mxu0 0
        %4016 = vmatprep.subr.bf16.mxu0 0
        %4017 = vmatpush1.bf16.msra.mxu0 0
        %4018 = vmatprep.subr.bf16.mxu0 0
        %4019 = vmatpush1.bf16.msra.mxu0 %v4002
        %4020 = vmatprep.subr.bf16.mxu0 0
        %4021 = vmatpush2.bf16.msra.mxu0 0
        %4022 = vmatprep.subr.bf16.mxu0 0
        %4023 = vmatpush2.bf16.msra.mxu0 0
        %4024 = vmatprep.subr.bf16.mxu0 0
        %4025 = vmatpush2.bf16.msra.mxu0 0
        %4026 = vmatprep.subr.bf16.mxu0 0
        %4027 = vmatpush2.bf16.msra.mxu0 0
        %4028 = vmatprep.subr.bf16.mxu0 0
        %4029 = vmatpush2.bf16.msra.mxu0 0
        %4030 = vmatprep.subr.bf16.mxu0 0
        %4031 = vmatpush2.bf16.msra.mxu0 0
        %4032 = vmatprep.subr.bf16.mxu0 0
        %4033 = vmatpush2.bf16.msra.mxu0 0
        %4034 = vmatprep.subr.bf16.mxu0 0
        %4035 = vmatpush2.bf16.msra.mxu0 0
        %4036 = vmatprep.mubr.bf16.mxu0 0
        %4037 = vmatmul.mubr.bf16.gmra.mxu0 %v3999
        %v4038 = vpop.f32.mrf.mxu0
        %v4039 = vadd.f32 0.0, %v4038
        %v4040 = vpop.f32.mrf.mxu0
        %v4041 = vpop.f32.mrf.mxu0
        %v4042 = vpop.f32.mrf.mxu0
        %4043 = vdwg.mxu0
        %4044 = vrot.lane.b32.xlu0 %v3419, 64
        %v4045 = vpop.permute.xlu0 %4044
        %v4047 = vsel %vm2031, %v3995, 0
        %v4050 = vsel %vm2059, %v4045, 0
        %4052 = vmatprep.subr.bf16.mxu0 0
        %4053 = vmatpush1.bf16.msra.mxu0 0
        %4054 = vmatprep.subr.bf16.mxu0 0
        %4055 = vmatpush1.bf16.msra.mxu0 0
        %4056 = vmatprep.subr.bf16.mxu0 0
        %4057 = vmatpush1.bf16.msra.mxu0 0
        %4058 = vmatprep.subr.bf16.mxu0 0
        %4059 = vmatpush1.bf16.msra.mxu0 0
        %4060 = vmatprep.subr.bf16.mxu0 0
        %4061 = vmatpush1.bf16.msra.mxu0 0
        %4062 = vmatprep.subr.bf16.mxu0 0
        %4063 = vmatpush1.bf16.msra.mxu0 0
        %4064 = vmatprep.subr.bf16.mxu0 0
        %4065 = vmatpush1.bf16.msra.mxu0 0
        %4066 = vmatprep.subr.bf16.mxu0 0
        %4067 = vmatpush1.bf16.msra.mxu0 %v4050
        %4068 = vmatprep.subr.bf16.mxu0 0
        %4069 = vmatpush2.bf16.msra.mxu0 0
        %4070 = vmatprep.subr.bf16.mxu0 0
        %4071 = vmatpush2.bf16.msra.mxu0 0
        %4072 = vmatprep.subr.bf16.mxu0 0
        %4073 = vmatpush2.bf16.msra.mxu0 0
        %4074 = vmatprep.subr.bf16.mxu0 0
        %4075 = vmatpush2.bf16.msra.mxu0 0
        %4076 = vmatprep.subr.bf16.mxu0 0
        %4077 = vmatpush2.bf16.msra.mxu0 0
        %4078 = vmatprep.subr.bf16.mxu0 0
        %4079 = vmatpush2.bf16.msra.mxu0 0
        %4080 = vmatprep.subr.bf16.mxu0 0
        %4081 = vmatpush2.bf16.msra.mxu0 0
        %4082 = vmatprep.subr.bf16.mxu0 0
        %4083 = vmatpush2.bf16.msra.mxu0 0
        %4084 = vmatprep.mubr.bf16.mxu0 0
        %4085 = vmatmul.mubr.bf16.gmra.mxu0 %v4047
        %v4086 = vpop.f32.mrf.mxu0
        %v4087 = vadd.f32 0.0, %v4086
        %v4088 = vpop.f32.mrf.mxu0
        %v4089 = vpop.f32.mrf.mxu0
        %v4090 = vpop.f32.mrf.mxu0
        %4091 = vdwg.mxu0
        %v4092 = vpack.c.bf16 %v4087, %v4039
        %v4094 = vunpack.c.l.b16 %v4092
        %v4095 = vunpack.c.h.b16 %v4092
        %v4096 = vpack.c.b16 %v4094, %v4094
        %v4097 = vpack.c.b16 %v4095, %v4095
        %4098 = vrot.lane.b32.xlu0 %v4096, 64
        %v4099 = vpop.permute.xlu0 %4098
        %4100 = vrot.lane.b32.xlu0 %v4097, 64
        %v4101 = vpop.permute.xlu0 %4100
        %4104 = vst.msk [vmem:[#allocation3] sm:$0xf] %vm2627, %v4099
        %4105 = vst.msk [vmem:[#allocation3 + $0x4] sm:$0xf] %vm2627, %v4101
        %4106 = vrot.lane.b32.xlu0 %v3408, 32
        %v4107 = vpop.permute.xlu0 %4106
        %4108 = vrot.lane.b32.xlu0 %v3413, 32
        %v4109 = vpop.permute.xlu0 %4108
        %v4111 = vsel %vm1938, %v4107, 0
        %v4114 = vsel %vm1938, %v4109, 0
        %4116 = vmatprep.subr.bf16.mxu0 0
        %4117 = vmatpush1.bf16.xpose.msra.mxu0 0
        %4118 = vmatprep.subr.bf16.mxu0 0
        %4119 = vmatpush1.bf16.xpose.msra.mxu0 0
        %4120 = vmatprep.subr.bf16.mxu0 0
        %4121 = vmatpush1.bf16.xpose.msra.mxu0 0
        %4122 = vmatprep.subr.bf16.mxu0 0
        %4123 = vmatpush1.bf16.xpose.msra.mxu0 0
        %4124 = vmatprep.subr.bf16.mxu0 0
        %4125 = vmatpush1.bf16.xpose.msra.mxu0 0
        %4126 = vmatprep.subr.bf16.mxu0 0
        %4127 = vmatpush1.bf16.xpose.msra.mxu0 0
        %4128 = vmatprep.subr.bf16.mxu0 0
        %4129 = vmatpush1.bf16.xpose.msra.mxu0 0
        %4130 = vmatprep.subr.bf16.mxu0 0
        %4131 = vmatpush1.bf16.xpose.msra.mxu0 %v4114
        %4132 = vmatprep.subr.bf16.mxu0 0
        %4133 = vmatpush2.bf16.xpose.msra.mxu0 0
        %4134 = vmatprep.subr.bf16.mxu0 0
        %4135 = vmatpush2.bf16.xpose.msra.mxu0 0
        %4136 = vmatprep.subr.bf16.mxu0 0
        %4137 = vmatpush2.bf16.xpose.msra.mxu0 0
        %4138 = vmatprep.subr.bf16.mxu0 0
        %4139 = vmatpush2.bf16.xpose.msra.mxu0 0
        %4140 = vmatprep.subr.bf16.mxu0 0
        %4141 = vmatpush2.bf16.xpose.msra.mxu0 0
        %4142 = vmatprep.subr.bf16.mxu0 0
        %4143 = vmatpush2.bf16.xpose.msra.mxu0 0
        %4144 = vmatprep.subr.bf16.mxu0 0
        %4145 = vmatpush2.bf16.xpose.msra.mxu0 0
        %4146 = vmatprep.subr.bf16.mxu0 0
        %4147 = vmatpush2.bf16.xpose.msra.mxu0 0
        %4148 = vmatprep.mubr.bf16.mxu0 0
        %4149 = vmatmul.mubr.bf16.gmra.mxu0 %v4111
        %v4150 = vpop.f32.mrf.mxu0
        %v4151 = vadd.f32 %v3042, %v4150
        %v4152 = vpop.f32.mrf.mxu0
        %v4153 = vpop.f32.mrf.mxu0
        %v4154 = vpop.f32.mrf.mxu0
        %4155 = vdwg.mxu0
        %4156 = vrot.lane.b32.xlu0 %v3409, 32
        %v4157 = vpop.permute.xlu0 %4156
        %4158 = vrot.lane.b32.xlu0 %v3414, 32
        %v4159 = vpop.permute.xlu0 %4158
        %v4161 = vsel %vm1938, %v4157, 0
        %v4164 = vsel %vm1938, %v4159, 0
        %4166 = vmatprep.subr.bf16.mxu0 0
        %4167 = vmatpush1.bf16.xpose.msra.mxu0 0
        %4168 = vmatprep.subr.bf16.mxu0 0
        %4169 = vmatpush1.bf16.xpose.msra.mxu0 0
        %4170 = vmatprep.subr.bf16.mxu0 0
        %4171 = vmatpush1.bf16.xpose.msra.mxu0 0
        %4172 = vmatprep.subr.bf16.mxu0 0
        %4173 = vmatpush1.bf16.xpose.msra.mxu0 0
        %4174 = vmatprep.subr.bf16.mxu0 0
        %4175 = vmatpush1.bf16.xpose.msra.mxu0 0
        %4176 = vmatprep.subr.bf16.mxu0 0
        %4177 = vmatpush1.bf16.xpose.msra.mxu0 0
        %4178 = vmatprep.subr.bf16.mxu0 0
        %4179 = vmatpush1.bf16.xpose.msra.mxu0 0
        %4180 = vmatprep.subr.bf16.mxu0 0
        %4181 = vmatpush1.bf16.xpose.msra.mxu0 %v4164
        %4182 = vmatprep.subr.bf16.mxu0 0
        %4183 = vmatpush2.bf16.xpose.msra.mxu0 0
        %4184 = vmatprep.subr.bf16.mxu0 0
        %4185 = vmatpush2.bf16.xpose.msra.mxu0 0
        %4186 = vmatprep.subr.bf16.mxu0 0
        %4187 = vmatpush2.bf16.xpose.msra.mxu0 0
        %4188 = vmatprep.subr.bf16.mxu0 0
        %4189 = vmatpush2.bf16.xpose.msra.mxu0 0
        %4190 = vmatprep.subr.bf16.mxu0 0
        %4191 = vmatpush2.bf16.xpose.msra.mxu0 0
        %4192 = vmatprep.subr.bf16.mxu0 0
        %4193 = vmatpush2.bf16.xpose.msra.mxu0 0
        %4194 = vmatprep.subr.bf16.mxu0 0
        %4195 = vmatpush2.bf16.xpose.msra.mxu0 0
        %4196 = vmatprep.subr.bf16.mxu0 0
        %4197 = vmatpush2.bf16.xpose.msra.mxu0 0
        %4198 = vmatprep.mubr.bf16.mxu0 0
        %4199 = vmatmul.mubr.bf16.gmra.mxu0 %v4161
        %v4200 = vpop.f32.mrf.mxu0
        %v4201 = vadd.f32 %v3046, %v4200
        %v4202 = vpop.f32.mrf.mxu0
        %v4203 = vpop.f32.mrf.mxu0
        %v4204 = vpop.f32.mrf.mxu0
        %4205 = vdwg.mxu0
        %v4206 = vsel %vm2031, %v4151, -inf
        %4207 = vmax.xlane.f32.xlu0 %v4206
        %v4208 = vpop.xlane.xlu0 %4207
        %v4209 = vsel %vm2031, %v4201, -inf
        %4210 = vmax.xlane.f32.xlu0 %v4209
        %v4211 = vpop.xlane.xlu0 %4210
        %v4212 = vsub.f32 %v4151, %v4208
        %v4213 = vsub.f32 %v4201, %v4211
        %v4214 = vmul.f32 %v4212, 1.442695
        %v4215 = vpow.pop %v4214
        %v4216 = vmul.f32 %v4213, 1.442695
        %v4217 = vpow.pop %v4216
        %v4218 = vsel %vm2031, %v4215, 0.0
        %4219 = vadd.xlane.f32.xlu0 %v4218
        %v4220 = vpop.xlane.xlu0 %4219
        %v4221 = vsel %vm2031, %v4217, 0.0
        %4222 = vadd.xlane.f32.xlu0 %v4221
        %v4223 = vpop.xlane.xlu0 %4222
        %v4224 = vrcp.pop %v4220
        %v4225 = vrcp.pop %v4223
        %v4226 = vmul.f32 %v4215, %v4224
        %v4227 = vmul.f32 %v4217, %v4225
        %v4228 = vpack.c.bf16 %v4226, %v4226
        %v4229 = vpack.c.bf16 %v4227, %v4227
        %4230 = vrot.lane.b32.xlu0 %v3418, 32
        %v4231 = vpop.permute.xlu0 %4230
        %v4233 = vsel %vm2031, %v4228, 0
        %v4236 = vsel %vm2059, %v4231, 0
        %4238 = vmatprep.subr.bf16.mxu0 0
        %4239 = vmatpush1.bf16.msra.mxu0 0
        %4240 = vmatprep.subr.bf16.mxu0 0
        %4241 = vmatpush1.bf16.msra.mxu0 0
        %4242 = vmatprep.subr.bf16.mxu0 0
        %4243 = vmatpush1.bf16.msra.mxu0 0
        %4244 = vmatprep.subr.bf16.mxu0 0
        %4245 = vmatpush1.bf16.msra.mxu0 0
        %4246 = vmatprep.subr.bf16.mxu0 0
        %4247 = vmatpush1.bf16.msra.mxu0 0
        %4248 = vmatprep.subr.bf16.mxu0 0
        %4249 = vmatpush1.bf16.msra.mxu0 0
        %4250 = vmatprep.subr.bf16.mxu0 0
        %4251 = vmatpush1.bf16.msra.mxu0 0
        %4252 = vmatprep.subr.bf16.mxu0 0
        %4253 = vmatpush1.bf16.msra.mxu0 %v4236
        %4254 = vmatprep.subr.bf16.mxu0 0
        %4255 = vmatpush2.bf16.msra.mxu0 0
        %4256 = vmatprep.subr.bf16.mxu0 0
        %4257 = vmatpush2.bf16.msra.mxu0 0
        %4258 = vmatprep.subr.bf16.mxu0 0
        %4259 = vmatpush2.bf16.msra.mxu0 0
        %4260 = vmatprep.subr.bf16.mxu0 0
        %4261 = vmatpush2.bf16.msra.mxu0 0
        %4262 = vmatprep.subr.bf16.mxu0 0
        %4263 = vmatpush2.bf16.msra.mxu0 0
        %4264 = vmatprep.subr.bf16.mxu0 0
        %4265 = vmatpush2.bf16.msra.mxu0 0
        %4266 = vmatprep.subr.bf16.mxu0 0
        %4267 = vmatpush2.bf16.msra.mxu0 0
        %4268 = vmatprep.subr.bf16.mxu0 0
        %4269 = vmatpush2.bf16.msra.mxu0 0
        %4270 = vmatprep.mubr.bf16.mxu0 0
        %4271 = vmatmul.mubr.bf16.gmra.mxu0 %v4233
        %v4272 = vpop.f32.mrf.mxu0
        %v4273 = vadd.f32 0.0, %v4272
        %v4274 = vpop.f32.mrf.mxu0
        %v4275 = vpop.f32.mrf.mxu0
        %v4276 = vpop.f32.mrf.mxu0
        %4277 = vdwg.mxu0
        %4278 = vrot.lane.b32.xlu0 %v3419, 32
        %v4279 = vpop.permute.xlu0 %4278
        %v4281 = vsel %vm2031, %v4229, 0
        %v4284 = vsel %vm2059, %v4279, 0
        %4286 = vmatprep.subr.bf16.mxu0 0
        %4287 = vmatpush1.bf16.msra.mxu0 0
        %4288 = vmatprep.subr.bf16.mxu0 0
        %4289 = vmatpush1.bf16.msra.mxu0 0
        %4290 = vmatprep.subr.bf16.mxu0 0
        %4291 = vmatpush1.bf16.msra.mxu0 0
        %4292 = vmatprep.subr.bf16.mxu0 0
        %4293 = vmatpush1.bf16.msra.mxu0 0
        %4294 = vmatprep.subr.bf16.mxu0 0
        %4295 = vmatpush1.bf16.msra.mxu0 0
        %4296 = vmatprep.subr.bf16.mxu0 0
        %4297 = vmatpush1.bf16.msra.mxu0 0
        %4298 = vmatprep.subr.bf16.mxu0 0
        %4299 = vmatpush1.bf16.msra.mxu0 0
        %4300 = vmatprep.subr.bf16.mxu0 0
        %4301 = vmatpush1.bf16.msra.mxu0 %v4284
        %4302 = vmatprep.subr.bf16.mxu0 0
        %4303 = vmatpush2.bf16.msra.mxu0 0
        %4304 = vmatprep.subr.bf16.mxu0 0
        %4305 = vmatpush2.bf16.msra.mxu0 0
        %4306 = vmatprep.subr.bf16.mxu0 0
        %4307 = vmatpush2.bf16.msra.mxu0 0
        %4308 = vmatprep.subr.bf16.mxu0 0
        %4309 = vmatpush2.bf16.msra.mxu0 0
        %4310 = vmatprep.subr.bf16.mxu0 0
        %4311 = vmatpush2.bf16.msra.mxu0 0
        %4312 = vmatprep.subr.bf16.mxu0 0
        %4313 = vmatpush2.bf16.msra.mxu0 0
        %4314 = vmatprep.subr.bf16.mxu0 0
        %4315 = vmatpush2.bf16.msra.mxu0 0
        %4316 = vmatprep.subr.bf16.mxu0 0
        %4317 = vmatpush2.bf16.msra.mxu0 0
        %4318 = vmatprep.mubr.bf16.mxu0 0
        %4319 = vmatmul.mubr.bf16.gmra.mxu0 %v4281
        %v4320 = vpop.f32.mrf.mxu0
        %v4321 = vadd.f32 0.0, %v4320
        %v4322 = vpop.f32.mrf.mxu0
        %v4323 = vpop.f32.mrf.mxu0
        %v4324 = vpop.f32.mrf.mxu0
        %4325 = vdwg.mxu0
        %v4326 = vpack.c.bf16 %v4321, %v4273
        %v4328 = vunpack.c.l.b16 %v4326
        %v4329 = vunpack.c.h.b16 %v4326
        %v4330 = vpack.c.b16 %v4328, %v4328
        %v4331 = vpack.c.b16 %v4329, %v4329
        %4332 = vrot.lane.b32.xlu0 %v4330, 96
        %v4333 = vpop.permute.xlu0 %4332
        %4334 = vrot.lane.b32.xlu0 %v4331, 96
        %v4335 = vpop.permute.xlu0 %4334
        %4338 = vst.msk [vmem:[#allocation3] sm:$0xf] %vm2862, %v4333
        %4339 = vst.msk [vmem:[#allocation3 + $0x4] sm:$0xf] %vm2862, %v4335
        %v4340 = vld [vmem:[#allocation3] sm:$0xf]
        %v4341 = vld [vmem:[#allocation3 + $0x4] sm:$0xf]
        %s4342 = smul.addr %s1572, 4
        %s4343 = scalar_lea.vmem [#allocation32], %s4342
        %v4344 = vld [vmem:[%s4343] sm:$0xf]
        %v4345 = vld [vmem:[%s4343 + $0x4] sm:$0xf]
        %v4346 = vld [vmem:[%s4343 + $0x8] sm:$0xf]
        %v4347 = vld [vmem:[%s4343 + $0xc] sm:$0xf]
        %v4348 = vld [vmem:[%s4343 + $0x10] sm:$0xf]
        %v4349 = vld [vmem:[%s4343 + $0x14] sm:$0xf]
        %v4350 = vld [vmem:[%s4343 + $0x18] sm:$0xf]
        %v4351 = vld [vmem:[%s4343 + $0x1c] sm:$0xf]
        %v4352 = vld [vmem:[%s4343 + $0x20] sm:$0xf]
        %v4353 = vld [vmem:[%s4343 + $0x24] sm:$0xf]
        %v4354 = vld [vmem:[%s4343 + $0x28] sm:$0xf]
        %v4355 = vld [vmem:[%s4343 + $0x2c] sm:$0xf]
        %v4356 = vld [vmem:[%s4343 + $0x30] sm:$0xf]
        %v4357 = vld [vmem:[%s4343 + $0x34] sm:$0xf]
        %v4358 = vld [vmem:[%s4343 + $0x38] sm:$0xf]
        %v4359 = vld [vmem:[%s4343 + $0x3c] sm:$0xf]
        %s4360 = scalar_lea.vmem [#allocation33], %s102
        %v4361 = vld [vmem:[%s4360] sm:$0x1]
        %v4363 = vlaneseq
        %v4364 = vshrl.u32 %v4363, 7
        %v4365 = vsub.s32 0, %v4364
        %v4366 = vrot.slane %v4361, %v4365
        %v4370 = vunpack.c.l.b16 %v4340
        %v4371 = vunpack.c.l.b16 %v4341
        %v4372 = vpack.c.b16 %v4371, %v4370
        %v4390 = vunpack.c.l.b16 %v4344
        %v4391 = vunpack.c.l.b16 %v4345
        %v4392 = vunpack.c.l.b16 %v4346
        %v4393 = vunpack.c.l.b16 %v4347
        %v4394 = vunpack.c.l.b16 %v4348
        %v4395 = vunpack.c.l.b16 %v4349
        %v4396 = vunpack.c.l.b16 %v4350
        %v4397 = vunpack.c.l.b16 %v4351
        %v4398 = vunpack.c.l.b16 %v4352
        %v4399 = vunpack.c.l.b16 %v4353
        %v4400 = vunpack.c.l.b16 %v4354
        %v4401 = vunpack.c.l.b16 %v4355
        %v4402 = vunpack.c.l.b16 %v4356
        %v4403 = vunpack.c.l.b16 %v4357
        %v4404 = vunpack.c.l.b16 %v4358
        %v4405 = vunpack.c.l.b16 %v4359
        %v4406 = vpack.c.b16 %v4391, %v4390
        %v4407 = vpack.c.b16 %v4393, %v4392
        %v4408 = vpack.c.b16 %v4395, %v4394
        %v4409 = vpack.c.b16 %v4397, %v4396
        %v4410 = vpack.c.b16 %v4399, %v4398
        %v4411 = vpack.c.b16 %v4401, %v4400
        %v4412 = vpack.c.b16 %v4403, %v4402
        %v4413 = vpack.c.b16 %v4405, %v4404
        %4422 = vmatprep.subr.bf16.mxu0 0
        %4423 = vmatpush1.bf16.msra.mxu0 %v4413
        %4424 = vmatprep.subr.bf16.mxu0 0
        %4425 = vmatpush1.bf16.msra.mxu0 %v4412
        %4426 = vmatprep.subr.bf16.mxu0 0
        %4427 = vmatpush1.bf16.msra.mxu0 %v4411
        %4428 = vmatprep.subr.bf16.mxu0 0
        %4429 = vmatpush1.bf16.msra.mxu0 %v4410
        %4430 = vmatprep.subr.bf16.mxu0 0
        %4431 = vmatpush1.bf16.msra.mxu0 %v4409
        %4432 = vmatprep.subr.bf16.mxu0 0
        %4433 = vmatpush1.bf16.msra.mxu0 %v4408
        %4434 = vmatprep.subr.bf16.mxu0 0
        %4435 = vmatpush1.bf16.msra.mxu0 %v4407
        %4436 = vmatprep.subr.bf16.mxu0 0
        %4437 = vmatpush1.bf16.msra.mxu0 %v4406
        %4438 = vmatprep.subr.bf16.mxu0 0
        %4439 = vmatpush2.bf16.msra.mxu0 0
        %4440 = vmatprep.subr.bf16.mxu0 0
        %4441 = vmatpush2.bf16.msra.mxu0 0
        %4442 = vmatprep.subr.bf16.mxu0 0
        %4443 = vmatpush2.bf16.msra.mxu0 0
        %4444 = vmatprep.subr.bf16.mxu0 0
        %4445 = vmatpush2.bf16.msra.mxu0 0
        %4446 = vmatprep.subr.bf16.mxu0 0
        %4447 = vmatpush2.bf16.msra.mxu0 0
        %4448 = vmatprep.subr.bf16.mxu0 0
        %4449 = vmatpush2.bf16.msra.mxu0 0
        %4450 = vmatprep.subr.bf16.mxu0 0
        %4451 = vmatpush2.bf16.msra.mxu0 0
        %4452 = vmatprep.subr.bf16.mxu0 0
        %4453 = vmatpush2.bf16.msra.mxu0 0
        %4454 = vmatprep.mubr.bf16.mxu0 0
        %4455 = vmatmul.mubr.bf16.gmra.mxu0 %v4372
        %v4456 = vpop.f32.mrf.mxu0
        %v4457 = vadd.f32 %v4366, %v4456
        %v4458 = vpop.f32.mrf.mxu0
        %v4459 = vpop.f32.mrf.mxu0
        %v4460 = vadd.f32 %v4366, %v4459
        %v4461 = vpop.f32.mrf.mxu0
        %4462 = vdwg.mxu0
        %v4463 = vadd.f32 %v2988, %v4457
        %v4464 = vadd.f32 %v2989, %v4460
        %s4465 = scalar_lea.vmem [#allocation35], %s102
        %v4466 = vld [vmem:[%s4465] sm:$0x1]
        %s4467 = scalar_lea.vmem [#allocation36], %s102
        %v4468 = vld [vmem:[%s4467] sm:$0x1]
        %4469 = vadd.xlane.f32.xlu0 %v4463
        %v4470 = vpop.xlane.xlu0 %4469
        %4471 = vadd.xlane.f32.xlu0 %v4464
        %v4472 = vpop.xlane.xlu0 %4471
        %v4473 = vmul.f32 %v4470, %v1536
        %v4474 = vmul.f32 %v4472, %v1536
        %v4475 = vsub.f32 %v4463, %v4473
        %v4476 = vsub.f32 %v4464, %v4474
        %v4477 = vmul.f32 %v4475, %v4475
        %v4478 = vmul.f32 %v4476, %v4476
        %4479 = vadd.xlane.f32.xlu0 %v4477
        %v4480 = vpop.xlane.xlu0 %4479
        %4481 = vadd.xlane.f32.xlu0 %v4478
        %v4482 = vpop.xlane.xlu0 %4481
        %v4483 = vmul.f32 %v4480, %v1536
        %v4484 = vmul.f32 %v4482, %v1536
        %v4485 = vadd.f32 %v4483, 1e-05
        %v4486 = vadd.f32 %v4484, 1e-05
        %v4487 = vrsqrt.pop %v4485
        %v4488 = vrsqrt.pop %v4486
        %v4489 = vmul.f32 %v4475, %v4487
        %v4490 = vmul.f32 %v4476, %v4488
        %v4492 = vlaneseq
        %v4493 = vshrl.u32 %v4492, 7
        %v4494 = vsub.s32 0, %v4493
        %v4495 = vrot.slane %v4466, %v4494
        %v4497 = vmul.f32 %v4489, %v4495
        %v4498 = vmul.f32 %v4490, %v4495
        %v4500 = vlaneseq
        %v4501 = vshrl.u32 %v4500, 7
        %v4502 = vsub.s32 0, %v4501
        %v4503 = vrot.slane %v4468, %v4502
        %v4505 = vadd.f32 %v4497, %v4503
        %v4506 = vadd.f32 %v4498, %v4503
        %v4507 = vpack.c.bf16 %v4506, %v4505
        %s4508 = smul.u32 %s102, 64
        %s4509 = smul.addr %s4508, 4
        %s4510 = scalar_lea.vmem [#allocation38], %s4509
        %v4511 = vld [vmem:[%s4510] sm:$0xff]
        %v4512 = vld [vmem:[%s4510 + $0x8] sm:$0xff]
        %v4513 = vld [vmem:[%s4510 + $0x10] sm:$0xff]
        %v4514 = vld [vmem:[%s4510 + $0x18] sm:$0xff]
        %v4515 = vld [vmem:[%s4510 + $0x20] sm:$0xff]
        %v4516 = vld [vmem:[%s4510 + $0x28] sm:$0xff]
        %v4517 = vld [vmem:[%s4510 + $0x30] sm:$0xff]
        %v4518 = vld [vmem:[%s4510 + $0x38] sm:$0xff]
        %v4519 = vld [vmem:[%s4510 + $0x40] sm:$0xff]
        %v4520 = vld [vmem:[%s4510 + $0x48] sm:$0xff]
        %v4521 = vld [vmem:[%s4510 + $0x50] sm:$0xff]
        %v4522 = vld [vmem:[%s4510 + $0x58] sm:$0xff]
        %v4523 = vld [vmem:[%s4510 + $0x60] sm:$0xff]
        %v4524 = vld [vmem:[%s4510 + $0x68] sm:$0xff]
        %v4525 = vld [vmem:[%s4510 + $0x70] sm:$0xff]
        %v4526 = vld [vmem:[%s4510 + $0x78] sm:$0xff]
        %v4527 = vld [vmem:[%s4510 + $0x80] sm:$0xff]
        %v4528 = vld [vmem:[%s4510 + $0x88] sm:$0xff]
        %v4529 = vld [vmem:[%s4510 + $0x90] sm:$0xff]
        %v4530 = vld [vmem:[%s4510 + $0x98] sm:$0xff]
        %v4531 = vld [vmem:[%s4510 + $0xa0] sm:$0xff]
        %v4532 = vld [vmem:[%s4510 + $0xa8] sm:$0xff]
        %v4533 = vld [vmem:[%s4510 + $0xb0] sm:$0xff]
        %v4534 = vld [vmem:[%s4510 + $0xb8] sm:$0xff]
        %v4535 = vld [vmem:[%s4510 + $0xc0] sm:$0xff]
        %v4536 = vld [vmem:[%s4510 + $0xc8] sm:$0xff]
        %v4537 = vld [vmem:[%s4510 + $0xd0] sm:$0xff]
        %v4538 = vld [vmem:[%s4510 + $0xd8] sm:$0xff]
        %v4539 = vld [vmem:[%s4510 + $0xe0] sm:$0xff]
        %v4540 = vld [vmem:[%s4510 + $0xe8] sm:$0xff]
        %v4541 = vld [vmem:[%s4510 + $0xf0] sm:$0xff]
        %v4542 = vld [vmem:[%s4510 + $0xf8] sm:$0xff]
        %s4543 = smul.u32 %s102, 4
        %s4544 = scalar_lea.vmem [#allocation39], %s4543
        %v4545 = vld [vmem:[%s4544] sm:$0xf]
        %v4547 = vlaneseq
        %v4548 = vshrl.u32 %v4547, 7
        %v4549 = vsub.s32 0, %v4548
        %v4550 = vrot.slane %v4545, %v4549
        %v4551 = vlaneseq
        %v4552 = vshrl.u32 %v4551, 7
        %v4553 = vsub.s32 1, %v4552
        %v4554 = vrot.slane %v4545, %v4553
        %v4555 = vlaneseq
        %v4556 = vshrl.u32 %v4555, 7
        %v4557 = vsub.s32 2, %v4556
        %v4558 = vrot.slane %v4545, %v4557
        %v4559 = vlaneseq
        %v4560 = vshrl.u32 %v4559, 7
        %v4561 = vsub.s32 3, %v4560
        %v4562 = vrot.slane %v4545, %v4561
        %v4599 = vunpack.c.l.b16 %v4511
        %v4600 = vunpack.c.h.b16 %v4511
        %v4601 = vunpack.c.l.b16 %v4512
        %v4602 = vunpack.c.h.b16 %v4512
        %v4603 = vunpack.c.l.b16 %v4513
        %v4604 = vunpack.c.h.b16 %v4513
        %v4605 = vunpack.c.l.b16 %v4514
        %v4606 = vunpack.c.h.b16 %v4514
        %v4607 = vunpack.c.l.b16 %v4515
        %v4608 = vunpack.c.h.b16 %v4515
        %v4609 = vunpack.c.l.b16 %v4516
        %v4610 = vunpack.c.h.b16 %v4516
        %v4611 = vunpack.c.l.b16 %v4517
        %v4612 = vunpack.c.h.b16 %v4517
        %v4613 = vunpack.c.l.b16 %v4518
        %v4614 = vunpack.c.h.b16 %v4518
        %v4615 = vunpack.c.l.b16 %v4519
        %v4616 = vunpack.c.h.b16 %v4519
        %v4617 = vunpack.c.l.b16 %v4520
        %v4618 = vunpack.c.h.b16 %v4520
        %v4619 = vunpack.c.l.b16 %v4521
        %v4620 = vunpack.c.h.b16 %v4521
        %v4621 = vunpack.c.l.b16 %v4522
        %v4622 = vunpack.c.h.b16 %v4522
        %v4623 = vunpack.c.l.b16 %v4523
        %v4624 = vunpack.c.h.b16 %v4523
        %v4625 = vunpack.c.l.b16 %v4524
        %v4626 = vunpack.c.h.b16 %v4524
        %v4627 = vunpack.c.l.b16 %v4525
        %v4628 = vunpack.c.h.b16 %v4525
        %v4629 = vunpack.c.l.b16 %v4526
        %v4630 = vunpack.c.h.b16 %v4526
        %v4631 = vunpack.c.l.b16 %v4527
        %v4632 = vunpack.c.h.b16 %v4527
        %v4633 = vunpack.c.l.b16 %v4528
        %v4634 = vunpack.c.h.b16 %v4528
        %v4635 = vunpack.c.l.b16 %v4529
        %v4636 = vunpack.c.h.b16 %v4529
        %v4637 = vunpack.c.l.b16 %v4530
        %v4638 = vunpack.c.h.b16 %v4530
        %v4639 = vunpack.c.l.b16 %v4531
        %v4640 = vunpack.c.h.b16 %v4531
        %v4641 = vunpack.c.l.b16 %v4532
        %v4642 = vunpack.c.h.b16 %v4532
        %v4643 = vunpack.c.l.b16 %v4533
        %v4644 = vunpack.c.h.b16 %v4533
        %v4645 = vunpack.c.l.b16 %v4534
        %v4646 = vunpack.c.h.b16 %v4534
        %v4647 = vunpack.c.l.b16 %v4535
        %v4648 = vunpack.c.h.b16 %v4535
        %v4649 = vunpack.c.l.b16 %v4536
        %v4650 = vunpack.c.h.b16 %v4536
        %v4651 = vunpack.c.l.b16 %v4537
        %v4652 = vunpack.c.h.b16 %v4537
        %v4653 = vunpack.c.l.b16 %v4538
        %v4654 = vunpack.c.h.b16 %v4538
        %v4655 = vunpack.c.l.b16 %v4539
        %v4656 = vunpack.c.h.b16 %v4539
        %v4657 = vunpack.c.l.b16 %v4540
        %v4658 = vunpack.c.h.b16 %v4540
        %v4659 = vunpack.c.l.b16 %v4541
        %v4660 = vunpack.c.h.b16 %v4541
        %v4661 = vunpack.c.l.b16 %v4542
        %v4662 = vunpack.c.h.b16 %v4542
        %v4663 = vpack.c.b16 %v4603, %v4599
        %v4664 = vpack.c.b16 %v4604, %v4600
        %v4665 = vpack.c.b16 %v4605, %v4601
        %v4666 = vpack.c.b16 %v4606, %v4602
        %v4667 = vpack.c.b16 %v4611, %v4607
        %v4668 = vpack.c.b16 %v4612, %v4608
        %v4669 = vpack.c.b16 %v4613, %v4609
        %v4670 = vpack.c.b16 %v4614, %v4610
        %v4671 = vpack.c.b16 %v4619, %v4615
        %v4672 = vpack.c.b16 %v4620, %v4616
        %v4673 = vpack.c.b16 %v4621, %v4617
        %v4674 = vpack.c.b16 %v4622, %v4618
        %v4675 = vpack.c.b16 %v4627, %v4623
        %v4676 = vpack.c.b16 %v4628, %v4624
        %v4677 = vpack.c.b16 %v4629, %v4625
        %v4678 = vpack.c.b16 %v4630, %v4626
        %v4679 = vpack.c.b16 %v4635, %v4631
        %v4680 = vpack.c.b16 %v4636, %v4632
        %v4681 = vpack.c.b16 %v4637, %v4633
        %v4682 = vpack.c.b16 %v4638, %v4634
        %v4683 = vpack.c.b16 %v4643, %v4639
        %v4684 = vpack.c.b16 %v4644, %v4640
        %v4685 = vpack.c.b16 %v4645, %v4641
        %v4686 = vpack.c.b16 %v4646, %v4642
        %v4687 = vpack.c.b16 %v4651, %v4647
        %v4688 = vpack.c.b16 %v4652, %v4648
        %v4689 = vpack.c.b16 %v4653, %v4649
        %v4690 = vpack.c.b16 %v4654, %v4650
        %v4691 = vpack.c.b16 %v4659, %v4655
        %v4692 = vpack.c.b16 %v4660, %v4656
        %v4693 = vpack.c.b16 %v4661, %v4657
        %v4694 = vpack.c.b16 %v4662, %v4658
        %4727 = vmatprep.subr.bf16.mxu0 %v4692
        %4728 = vmatpush1.bf16.msra.mxu0 %v4691
        %4729 = vmatprep.subr.bf16.mxu0 %v4688
        %4730 = vmatpush1.bf16.msra.mxu0 %v4687
        %4731 = vmatprep.subr.bf16.mxu0 %v4684
        %4732 = vmatpush1.bf16.msra.mxu0 %v4683
        %4733 = vmatprep.subr.bf16.mxu0 %v4680
        %4734 = vmatpush1.bf16.msra.mxu0 %v4679
        %4735 = vmatprep.subr.bf16.mxu0 %v4676
        %4736 = vmatpush1.bf16.msra.mxu0 %v4675
        %4737 = vmatprep.subr.bf16.mxu0 %v4672
        %4738 = vmatpush1.bf16.msra.mxu0 %v4671
        %4739 = vmatprep.subr.bf16.mxu0 %v4668
        %4740 = vmatpush1.bf16.msra.mxu0 %v4667
        %4741 = vmatprep.subr.bf16.mxu0 %v4664
        %4742 = vmatpush1.bf16.msra.mxu0 %v4663
        %4743 = vmatprep.subr.bf16.mxu0 0
        %4744 = vmatpush2.bf16.msra.mxu0 0
        %4745 = vmatprep.subr.bf16.mxu0 0
        %4746 = vmatpush2.bf16.msra.mxu0 0
        %4747 = vmatprep.subr.bf16.mxu0 0
        %4748 = vmatpush2.bf16.msra.mxu0 0
        %4749 = vmatprep.subr.bf16.mxu0 0
        %4750 = vmatpush2.bf16.msra.mxu0 0
        %4751 = vmatprep.subr.bf16.mxu0 0
        %4752 = vmatpush2.bf16.msra.mxu0 0
        %4753 = vmatprep.subr.bf16.mxu0 0
        %4754 = vmatpush2.bf16.msra.mxu0 0
        %4755 = vmatprep.subr.bf16.mxu0 0
        %4756 = vmatpush2.bf16.msra.mxu0 0
        %4757 = vmatprep.subr.bf16.mxu0 0
        %4758 = vmatpush2.bf16.msra.mxu0 0
        %4759 = vmatprep.mubr.bf16.mxu0 0
        %4760 = vmatmul.mubr.bf16.gmra.mxu0 %v4507
        %v4761 = vpop.f32.mrf.mxu0
        %v4762 = vadd.f32 %v4550, %v4761
        %v4763 = vpop.f32.mrf.mxu0
        %v4764 = vadd.f32 %v4554, %v4763
        %v4765 = vpop.f32.mrf.mxu0
        %v4766 = vadd.f32 %v4550, %v4765
        %v4767 = vpop.f32.mrf.mxu0
        %v4768 = vadd.f32 %v4554, %v4767
        %4769 = vdwg.mxu0
        %4770 = vmatprep.subr.bf16.mxu0 %v4694
        %4771 = vmatpush1.bf16.msra.mxu0 %v4693
        %4772 = vmatprep.subr.bf16.mxu0 %v4690
        %4773 = vmatpush1.bf16.msra.mxu0 %v4689
        %4774 = vmatprep.subr.bf16.mxu0 %v4686
        %4775 = vmatpush1.bf16.msra.mxu0 %v4685
        %4776 = vmatprep.subr.bf16.mxu0 %v4682
        %4777 = vmatpush1.bf16.msra.mxu0 %v4681
        %4778 = vmatprep.subr.bf16.mxu0 %v4678
        %4779 = vmatpush1.bf16.msra.mxu0 %v4677
        %4780 = vmatprep.subr.bf16.mxu0 %v4674
        %4781 = vmatpush1.bf16.msra.mxu0 %v4673
        %4782 = vmatprep.subr.bf16.mxu0 %v4670
        %4783 = vmatpush1.bf16.msra.mxu0 %v4669
        %4784 = vmatprep.subr.bf16.mxu0 %v4666
        %4785 = vmatpush1.bf16.msra.mxu0 %v4665
        %4786 = vmatprep.subr.bf16.mxu0 0
        %4787 = vmatpush2.bf16.msra.mxu0 0
        %4788 = vmatprep.subr.bf16.mxu0 0
        %4789 = vmatpush2.bf16.msra.mxu0 0
        %4790 = vmatprep.subr.bf16.mxu0 0
        %4791 = vmatpush2.bf16.msra.mxu0 0
        %4792 = vmatprep.subr.bf16.mxu0 0
        %4793 = vmatpush2.bf16.msra.mxu0 0
        %4794 = vmatprep.subr.bf16.mxu0 0
        %4795 = vmatpush2.bf16.msra.mxu0 0
        %4796 = vmatprep.subr.bf16.mxu0 0
        %4797 = vmatpush2.bf16.msra.mxu0 0
        %4798 = vmatprep.subr.bf16.mxu0 0
        %4799 = vmatpush2.bf16.msra.mxu0 0
        %4800 = vmatprep.subr.bf16.mxu0 0
        %4801 = vmatpush2.bf16.msra.mxu0 0
        %4802 = vmatprep.mubr.bf16.mxu0 0
        %4803 = vmatmul.mubr.bf16.gmra.mxu0 %v4507
        %v4804 = vpop.f32.mrf.mxu0
        %v4805 = vadd.f32 %v4558, %v4804
        %v4806 = vpop.f32.mrf.mxu0
        %v4807 = vadd.f32 %v4562, %v4806
        %v4808 = vpop.f32.mrf.mxu0
        %v4809 = vadd.f32 %v4558, %v4808
        %v4810 = vpop.f32.mrf.mxu0
        %v4811 = vadd.f32 %v4562, %v4810
        %4812 = vdwg.mxu0
        %v4813 = vmul.f32 %v4762, %v4762
        %v4814 = vmul.f32 %v4764, %v4764
        %v4815 = vmul.f32 %v4805, %v4805
        %v4816 = vmul.f32 %v4807, %v4807
        %v4817 = vmul.f32 %v4766, %v4766
        %v4818 = vmul.f32 %v4768, %v4768
        %v4819 = vmul.f32 %v4809, %v4809
        %v4820 = vmul.f32 %v4811, %v4811
        %v4821 = vmul.f32 %v4762, %v4813
        %v4822 = vmul.f32 %v4764, %v4814
        %v4823 = vmul.f32 %v4805, %v4815
        %v4824 = vmul.f32 %v4807, %v4816
        %v4825 = vmul.f32 %v4766, %v4817
        %v4826 = vmul.f32 %v4768, %v4818
        %v4827 = vmul.f32 %v4809, %v4819
        %v4828 = vmul.f32 %v4811, %v4820
        %v4829 = vmul.f32 %v4821, 0.044715
        %v4830 = vmul.f32 %v4822, 0.044715
        %v4831 = vmul.f32 %v4823, 0.044715
        %v4832 = vmul.f32 %v4824, 0.044715
        %v4833 = vmul.f32 %v4825, 0.044715
        %v4834 = vmul.f32 %v4826, 0.044715
        %v4835 = vmul.f32 %v4827, 0.044715
        %v4836 = vmul.f32 %v4828, 0.044715
        %v4837 = vadd.f32 %v4762, %v4829
        %v4838 = vadd.f32 %v4764, %v4830
        %v4839 = vadd.f32 %v4805, %v4831
        %v4840 = vadd.f32 %v4807, %v4832
        %v4841 = vadd.f32 %v4766, %v4833
        %v4842 = vadd.f32 %v4768, %v4834
        %v4843 = vadd.f32 %v4809, %v4835
        %v4844 = vadd.f32 %v4811, %v4836
        %v4845 = vmul.f32 %v4837, 0.7978846
        %v4846 = vmul.f32 %v4838, 0.7978846
        %v4847 = vmul.f32 %v4839, 0.7978846
        %v4848 = vmul.f32 %v4840, 0.7978846
        %v4849 = vmul.f32 %v4841, 0.7978846
        %v4850 = vmul.f32 %v4842, 0.7978846
        %v4851 = vmul.f32 %v4843, 0.7978846
        %v4852 = vmul.f32 %v4844, 0.7978846
        %v4853 = vtanh.pop %v4845
        %v4854 = vtanh.pop %v4846
        %v4855 = vtanh.pop %v4847
        %v4856 = vtanh.pop %v4848
        %v4857 = vtanh.pop %v4849
        %v4858 = vtanh.pop %v4850
        %v4859 = vtanh.pop %v4851
        %v4860 = vtanh.pop %v4852
        %v4861 = vadd.f32 %v4853, 1.0
        %v4862 = vadd.f32 %v4854, 1.0
        %v4863 = vadd.f32 %v4855, 1.0
        %v4864 = vadd.f32 %v4856, 1.0
        %v4865 = vadd.f32 %v4857, 1.0
        %v4866 = vadd.f32 %v4858, 1.0
        %v4867 = vadd.f32 %v4859, 1.0
        %v4868 = vadd.f32 %v4860, 1.0
        %v4869 = vmul.f32 %v4861, 0.5
        %v4870 = vmul.f32 %v4862, 0.5
        %v4871 = vmul.f32 %v4863, 0.5
        %v4872 = vmul.f32 %v4864, 0.5
        %v4873 = vmul.f32 %v4865, 0.5
        %v4874 = vmul.f32 %v4866, 0.5
        %v4875 = vmul.f32 %v4867, 0.5
        %v4876 = vmul.f32 %v4868, 0.5
        %v4877 = vmul.f32 %v4762, %v4869
        %v4878 = vmul.f32 %v4764, %v4870
        %v4879 = vmul.f32 %v4805, %v4871
        %v4880 = vmul.f32 %v4807, %v4872
        %v4881 = vmul.f32 %v4766, %v4873
        %v4882 = vmul.f32 %v4768, %v4874
        %v4883 = vmul.f32 %v4809, %v4875
        %v4884 = vmul.f32 %v4811, %v4876
        %v4885 = vpack.c.bf16 %v4881, %v4877
        %v4886 = vpack.c.bf16 %v4882, %v4878
        %v4887 = vpack.c.bf16 %v4883, %v4879
        %v4888 = vpack.c.bf16 %v4884, %v4880
        %s4889 = smul.addr %s4508, 4
        %s4890 = scalar_lea.vmem [#allocation41], %s4889
        %v4891 = vld [vmem:[%s4890] sm:$0xf]
        %v4892 = vld [vmem:[%s4890 + $0x4] sm:$0xf]
        %v4893 = vld [vmem:[%s4890 + $0x8] sm:$0xf]
        %v4894 = vld [vmem:[%s4890 + $0xc] sm:$0xf]
        %v4895 = vld [vmem:[%s4890 + $0x10] sm:$0xf]
        %v4896 = vld [vmem:[%s4890 + $0x14] sm:$0xf]
        %v4897 = vld [vmem:[%s4890 + $0x18] sm:$0xf]
        %v4898 = vld [vmem:[%s4890 + $0x1c] sm:$0xf]
        %v4899 = vld [vmem:[%s4890 + $0x20] sm:$0xf]
        %v4900 = vld [vmem:[%s4890 + $0x24] sm:$0xf]
        %v4901 = vld [vmem:[%s4890 + $0x28] sm:$0xf]
        %v4902 = vld [vmem:[%s4890 + $0x2c] sm:$0xf]
        %v4903 = vld [vmem:[%s4890 + $0x30] sm:$0xf]
        %v4904 = vld [vmem:[%s4890 + $0x34] sm:$0xf]
        %v4905 = vld [vmem:[%s4890 + $0x38] sm:$0xf]
        %v4906 = vld [vmem:[%s4890 + $0x3c] sm:$0xf]
        %v4907 = vld [vmem:[%s4890 + $0x40] sm:$0xf]
        %v4908 = vld [vmem:[%s4890 + $0x44] sm:$0xf]
        %v4909 = vld [vmem:[%s4890 + $0x48] sm:$0xf]
        %v4910 = vld [vmem:[%s4890 + $0x4c] sm:$0xf]
        %v4911 = vld [vmem:[%s4890 + $0x50] sm:$0xf]
        %v4912 = vld [vmem:[%s4890 + $0x54] sm:$0xf]
        %v4913 = vld [vmem:[%s4890 + $0x58] sm:$0xf]
        %v4914 = vld [vmem:[%s4890 + $0x5c] sm:$0xf]
        %v4915 = vld [vmem:[%s4890 + $0x60] sm:$0xf]
        %v4916 = vld [vmem:[%s4890 + $0x64] sm:$0xf]
        %v4917 = vld [vmem:[%s4890 + $0x68] sm:$0xf]
        %v4918 = vld [vmem:[%s4890 + $0x6c] sm:$0xf]
        %v4919 = vld [vmem:[%s4890 + $0x70] sm:$0xf]
        %v4920 = vld [vmem:[%s4890 + $0x74] sm:$0xf]
        %v4921 = vld [vmem:[%s4890 + $0x78] sm:$0xf]
        %v4922 = vld [vmem:[%s4890 + $0x7c] sm:$0xf]
        %v4923 = vld [vmem:[%s4890 + $0x80] sm:$0xf]
        %v4924 = vld [vmem:[%s4890 + $0x84] sm:$0xf]
        %v4925 = vld [vmem:[%s4890 + $0x88] sm:$0xf]
        %v4926 = vld [vmem:[%s4890 + $0x8c] sm:$0xf]
        %v4927 = vld [vmem:[%s4890 + $0x90] sm:$0xf]
        %v4928 = vld [vmem:[%s4890 + $0x94] sm:$0xf]
        %v4929 = vld [vmem:[%s4890 + $0x98] sm:$0xf]
        %v4930 = vld [vmem:[%s4890 + $0x9c] sm:$0xf]
        %v4931 = vld [vmem:[%s4890 + $0xa0] sm:$0xf]
        %v4932 = vld [vmem:[%s4890 + $0xa4] sm:$0xf]
        %v4933 = vld [vmem:[%s4890 + $0xa8] sm:$0xf]
        %v4934 = vld [vmem:[%s4890 + $0xac] sm:$0xf]
        %v4935 = vld [vmem:[%s4890 + $0xb0] sm:$0xf]
        %v4936 = vld [vmem:[%s4890 + $0xb4] sm:$0xf]
        %v4937 = vld [vmem:[%s4890 + $0xb8] sm:$0xf]
        %v4938 = vld [vmem:[%s4890 + $0xbc] sm:$0xf]
        %v4939 = vld [vmem:[%s4890 + $0xc0] sm:$0xf]
        %v4940 = vld [vmem:[%s4890 + $0xc4] sm:$0xf]
        %v4941 = vld [vmem:[%s4890 + $0xc8] sm:$0xf]
        %v4942 = vld [vmem:[%s4890 + $0xcc] sm:$0xf]
        %v4943 = vld [vmem:[%s4890 + $0xd0] sm:$0xf]
        %v4944 = vld [vmem:[%s4890 + $0xd4] sm:$0xf]
        %v4945 = vld [vmem:[%s4890 + $0xd8] sm:$0xf]
        %v4946 = vld [vmem:[%s4890 + $0xdc] sm:$0xf]
        %v4947 = vld [vmem:[%s4890 + $0xe0] sm:$0xf]
        %v4948 = vld [vmem:[%s4890 + $0xe4] sm:$0xf]
        %v4949 = vld [vmem:[%s4890 + $0xe8] sm:$0xf]
        %v4950 = vld [vmem:[%s4890 + $0xec] sm:$0xf]
        %v4951 = vld [vmem:[%s4890 + $0xf0] sm:$0xf]
        %v4952 = vld [vmem:[%s4890 + $0xf4] sm:$0xf]
        %v4953 = vld [vmem:[%s4890 + $0xf8] sm:$0xf]
        %v4954 = vld [vmem:[%s4890 + $0xfc] sm:$0xf]
        %s4955 = scalar_lea.vmem [#allocation42], %s102
        %v4956 = vld [vmem:[%s4955] sm:$0x1]
        %v4958 = vlaneseq
        %v4959 = vshrl.u32 %v4958, 7
        %v4960 = vsub.s32 0, %v4959
        %v4961 = vrot.slane %v4956, %v4960
        %v5027 = vunpack.c.l.b16 %v4891
        %v5028 = vunpack.c.l.b16 %v4892
        %v5029 = vunpack.c.l.b16 %v4893
        %v5030 = vunpack.c.l.b16 %v4894
        %v5031 = vunpack.c.l.b16 %v4895
        %v5032 = vunpack.c.l.b16 %v4896
        %v5033 = vunpack.c.l.b16 %v4897
        %v5034 = vunpack.c.l.b16 %v4898
        %v5035 = vunpack.c.l.b16 %v4899
        %v5036 = vunpack.c.l.b16 %v4900
        %v5037 = vunpack.c.l.b16 %v4901
        %v5038 = vunpack.c.l.b16 %v4902
        %v5039 = vunpack.c.l.b16 %v4903
        %v5040 = vunpack.c.l.b16 %v4904
        %v5041 = vunpack.c.l.b16 %v4905
        %v5042 = vunpack.c.l.b16 %v4906
        %v5043 = vunpack.c.l.b16 %v4907
        %v5044 = vunpack.c.l.b16 %v4908
        %v5045 = vunpack.c.l.b16 %v4909
        %v5046 = vunpack.c.l.b16 %v4910
        %v5047 = vunpack.c.l.b16 %v4911
        %v5048 = vunpack.c.l.b16 %v4912
        %v5049 = vunpack.c.l.b16 %v4913
        %v5050 = vunpack.c.l.b16 %v4914
        %v5051 = vunpack.c.l.b16 %v4915
        %v5052 = vunpack.c.l.b16 %v4916
        %v5053 = vunpack.c.l.b16 %v4917
        %v5054 = vunpack.c.l.b16 %v4918
        %v5055 = vunpack.c.l.b16 %v4919
        %v5056 = vunpack.c.l.b16 %v4920
        %v5057 = vunpack.c.l.b16 %v4921
        %v5058 = vunpack.c.l.b16 %v4922
        %v5059 = vunpack.c.l.b16 %v4923
        %v5060 = vunpack.c.l.b16 %v4924
        %v5061 = vunpack.c.l.b16 %v4925
        %v5062 = vunpack.c.l.b16 %v4926
        %v5063 = vunpack.c.l.b16 %v4927
        %v5064 = vunpack.c.l.b16 %v4928
        %v5065 = vunpack.c.l.b16 %v4929
        %v5066 = vunpack.c.l.b16 %v4930
        %v5067 = vunpack.c.l.b16 %v4931
        %v5068 = vunpack.c.l.b16 %v4932
        %v5069 = vunpack.c.l.b16 %v4933
        %v5070 = vunpack.c.l.b16 %v4934
        %v5071 = vunpack.c.l.b16 %v4935
        %v5072 = vunpack.c.l.b16 %v4936
        %v5073 = vunpack.c.l.b16 %v4937
        %v5074 = vunpack.c.l.b16 %v4938
        %v5075 = vunpack.c.l.b16 %v4939
        %v5076 = vunpack.c.l.b16 %v4940
        %v5077 = vunpack.c.l.b16 %v4941
        %v5078 = vunpack.c.l.b16 %v4942
        %v5079 = vunpack.c.l.b16 %v4943
        %v5080 = vunpack.c.l.b16 %v4944
        %v5081 = vunpack.c.l.b16 %v4945
        %v5082 = vunpack.c.l.b16 %v4946
        %v5083 = vunpack.c.l.b16 %v4947
        %v5084 = vunpack.c.l.b16 %v4948
        %v5085 = vunpack.c.l.b16 %v4949
        %v5086 = vunpack.c.l.b16 %v4950
        %v5087 = vunpack.c.l.b16 %v4951
        %v5088 = vunpack.c.l.b16 %v4952
        %v5089 = vunpack.c.l.b16 %v4953
        %v5090 = vunpack.c.l.b16 %v4954
        %v5091 = vpack.c.b16 %v5028, %v5027
        %v5092 = vpack.c.b16 %v5030, %v5029
        %v5093 = vpack.c.b16 %v5032, %v5031
        %v5094 = vpack.c.b16 %v5034, %v5033
        %v5095 = vpack.c.b16 %v5036, %v5035
        %v5096 = vpack.c.b16 %v5038, %v5037
        %v5097 = vpack.c.b16 %v5040, %v5039
        %v5098 = vpack.c.b16 %v5042, %v5041
        %v5099 = vpack.c.b16 %v5044, %v5043
        %v5100 = vpack.c.b16 %v5046, %v5045
        %v5101 = vpack.c.b16 %v5048, %v5047
        %v5102 = vpack.c.b16 %v5050, %v5049
        %v5103 = vpack.c.b16 %v5052, %v5051
        %v5104 = vpack.c.b16 %v5054, %v5053
        %v5105 = vpack.c.b16 %v5056, %v5055
        %v5106 = vpack.c.b16 %v5058, %v5057
        %v5107 = vpack.c.b16 %v5060, %v5059
        %v5108 = vpack.c.b16 %v5062, %v5061
        %v5109 = vpack.c.b16 %v5064, %v5063
        %v5110 = vpack.c.b16 %v5066, %v5065
        %v5111 = vpack.c.b16 %v5068, %v5067
        %v5112 = vpack.c.b16 %v5070, %v5069
        %v5113 = vpack.c.b16 %v5072, %v5071
        %v5114 = vpack.c.b16 %v5074, %v5073
        %v5115 = vpack.c.b16 %v5076, %v5075
        %v5116 = vpack.c.b16 %v5078, %v5077
        %v5117 = vpack.c.b16 %v5080, %v5079
        %v5118 = vpack.c.b16 %v5082, %v5081
        %v5119 = vpack.c.b16 %v5084, %v5083
        %v5120 = vpack.c.b16 %v5086, %v5085
        %v5121 = vpack.c.b16 %v5088, %v5087
        %v5122 = vpack.c.b16 %v5090, %v5089
        %5155 = vmatprep.subr.bf16.mxu0 0
        %5156 = vmatpush1.bf16.msra.mxu0 %v5098
        %5157 = vmatprep.subr.bf16.mxu0 0
        %5158 = vmatpush1.bf16.msra.mxu0 %v5097
        %5159 = vmatprep.subr.bf16.mxu0 0
        %5160 = vmatpush1.bf16.msra.mxu0 %v5096
        %5161 = vmatprep.subr.bf16.mxu0 0
        %5162 = vmatpush1.bf16.msra.mxu0 %v5095
        %5163 = vmatprep.subr.bf16.mxu0 0
        %5164 = vmatpush1.bf16.msra.mxu0 %v5094
        %5165 = vmatprep.subr.bf16.mxu0 0
        %5166 = vmatpush1.bf16.msra.mxu0 %v5093
        %5167 = vmatprep.subr.bf16.mxu0 0
        %5168 = vmatpush1.bf16.msra.mxu0 %v5092
        %5169 = vmatprep.subr.bf16.mxu0 0
        %5170 = vmatpush1.bf16.msra.mxu0 %v5091
        %5171 = vmatprep.subr.bf16.mxu0 0
        %5172 = vmatpush2.bf16.msra.mxu0 %v5106
        %5173 = vmatprep.subr.bf16.mxu0 0
        %5174 = vmatpush2.bf16.msra.mxu0 %v5105
        %5175 = vmatprep.subr.bf16.mxu0 0
        %5176 = vmatpush2.bf16.msra.mxu0 %v5104
        %5177 = vmatprep.subr.bf16.mxu0 0
        %5178 = vmatpush2.bf16.msra.mxu0 %v5103
        %5179 = vmatprep.subr.bf16.mxu0 0
        %5180 = vmatpush2.bf16.msra.mxu0 %v5102
        %5181 = vmatprep.subr.bf16.mxu0 0
        %5182 = vmatpush2.bf16.msra.mxu0 %v5101
        %5183 = vmatprep.subr.bf16.mxu0 0
        %5184 = vmatpush2.bf16.msra.mxu0 %v5100
        %5185 = vmatprep.subr.bf16.mxu0 0
        %5186 = vmatpush2.bf16.msra.mxu0 %v5099
        %5187 = vmatprep.mubr.bf16.mxu0 %v4886
        %5188 = vmatmul.mubr.bf16.gmra.mxu0 %v4885
        %v5189 = vpop.f32.mrf.mxu0
        %v5190 = vadd.f32 %v4961, %v5189
        %v5191 = vpop.f32.mrf.mxu0
        %v5192 = vpop.f32.mrf.mxu0
        %v5193 = vadd.f32 %v4961, %v5192
        %v5194 = vpop.f32.mrf.mxu0
        %5195 = vdwg.mxu0
        %5196 = vmatprep.subr.bf16.mxu0 0
        %5197 = vmatpush1.bf16.msra.mxu0 %v5114
        %5198 = vmatprep.subr.bf16.mxu0 0
        %5199 = vmatpush1.bf16.msra.mxu0 %v5113
        %5200 = vmatprep.subr.bf16.mxu0 0
        %5201 = vmatpush1.bf16.msra.mxu0 %v5112
        %5202 = vmatprep.subr.bf16.mxu0 0
        %5203 = vmatpush1.bf16.msra.mxu0 %v5111
        %5204 = vmatprep.subr.bf16.mxu0 0
        %5205 = vmatpush1.bf16.msra.mxu0 %v5110
        %5206 = vmatprep.subr.bf16.mxu0 0
        %5207 = vmatpush1.bf16.msra.mxu0 %v5109
        %5208 = vmatprep.subr.bf16.mxu0 0
        %5209 = vmatpush1.bf16.msra.mxu0 %v5108
        %5210 = vmatprep.subr.bf16.mxu0 0
        %5211 = vmatpush1.bf16.msra.mxu0 %v5107
        %5212 = vmatprep.subr.bf16.mxu0 0
        %5213 = vmatpush2.bf16.msra.mxu0 %v5122
        %5214 = vmatprep.subr.bf16.mxu0 0
        %5215 = vmatpush2.bf16.msra.mxu0 %v5121
        %5216 = vmatprep.subr.bf16.mxu0 0
        %5217 = vmatpush2.bf16.msra.mxu0 %v5120
        %5218 = vmatprep.subr.bf16.mxu0 0
        %5219 = vmatpush2.bf16.msra.mxu0 %v5119
        %5220 = vmatprep.subr.bf16.mxu0 0
        %5221 = vmatpush2.bf16.msra.mxu0 %v5118
        %5222 = vmatprep.subr.bf16.mxu0 0
        %5223 = vmatpush2.bf16.msra.mxu0 %v5117
        %5224 = vmatprep.subr.bf16.mxu0 0
        %5225 = vmatpush2.bf16.msra.mxu0 %v5116
        %5226 = vmatprep.subr.bf16.mxu0 0
        %5227 = vmatpush2.bf16.msra.mxu0 %v5115
        %5228 = vmatprep.mubr.bf16.mxu0 %v4888
        %5229 = vmatmul.mubr.bf16.gmra.mxu0 %v4887
        %v5230 = vpop.f32.mrf.mxu0
        %v5231 = vadd.f32 %v5190, %v5230
        %v5232 = vpop.f32.mrf.mxu0
        %v5233 = vpop.f32.mrf.mxu0
        %v5234 = vadd.f32 %v5193, %v5233
        %v5235 = vpop.f32.mrf.mxu0
        %5236 = vdwg.mxu0
        %v5237 = vadd.f32 %v4463, %v5231
        %v5238 = vadd.f32 %v4464, %v5234
        %5239 = vst [vmem:[#allocation2] sm:$0xff] %v5237
        %5240 = vst [vmem:[#allocation2 + $0x8] sm:$0xff] %v5238
        %p5241 = scmp.eq.s32.totalorder %s102, 1
        // Predicated region
        $region281: #{voxel_decoder_forward.1} parent=159 // pred_check
          %p5242 = pneg %p5241
        $region282: #{voxel_decoder_forward.1} parent=159 // pred_check_branch
          %5244 = sbr.rel (%p5242) target = $region284
        $region283: #{voxel_decoder_forward.1} parent=159 // pred_region
          %v5245 = vld [vmem:[%s59] sm:$0x1]
          %v5246 = vld [vmem:[%s61] sm:$0x1]
          %5247 = vadd.xlane.f32.xlu0 %v5237
          %v5248 = vpop.xlane.xlu0 %5247
          %5249 = vadd.xlane.f32.xlu0 %v5238
          %v5250 = vpop.xlane.xlu0 %5249
          %v5251 = vmul.f32 %v5248, %v1536
          %v5252 = vmul.f32 %v5250, %v1536
          %v5253 = vsub.f32 %v5237, %v5251
          %v5254 = vsub.f32 %v5238, %v5252
          %v5255 = vmul.f32 %v5253, %v5253
          %v5256 = vmul.f32 %v5254, %v5254
          %5257 = vadd.xlane.f32.xlu0 %v5255
          %v5258 = vpop.xlane.xlu0 %5257
          %5259 = vadd.xlane.f32.xlu0 %v5256
          %v5260 = vpop.xlane.xlu0 %5259
          %v5261 = vmul.f32 %v5258, %v1536
          %v5262 = vmul.f32 %v5260, %v1536
          %v5263 = vadd.f32 %v5261, 1e-05
          %v5264 = vadd.f32 %v5262, 1e-05
          %v5265 = vrsqrt.pop %v5263
          %v5266 = vrsqrt.pop %v5264
          %v5267 = vmul.f32 %v5253, %v5265
          %v5268 = vmul.f32 %v5254, %v5266
          %v5270 = vlaneseq
          %v5271 = vshrl.u32 %v5270, 7
          %v5272 = vsub.s32 0, %v5271
          %v5273 = vrot.slane %v5245, %v5272
          %v5275 = vmul.f32 %v5267, %v5273
          %v5276 = vmul.f32 %v5268, %v5273
          %v5278 = vlaneseq
          %v5279 = vshrl.u32 %v5278, 7
          %v5280 = vsub.s32 0, %v5279
          %v5281 = vrot.slane %v5246, %v5280
          %v5283 = vadd.f32 %v5275, %v5281
          %v5284 = vadd.f32 %v5276, %v5281
          %v5285 = vld [vmem:[#allocation44] sm:$0x1]
          %v5286 = vld [vmem:[#allocation45] sm:$0x1]
          %5287 = vadd.xlane.f32.xlu0 %v5283
          %v5288 = vpop.xlane.xlu0 %5287
          %5289 = vadd.xlane.f32.xlu0 %v5284
          %v5290 = vpop.xlane.xlu0 %5289
          %v5291 = vmul.f32 %v5288, %v1536
          %v5292 = vmul.f32 %v5290, %v1536
          %v5293 = vsub.f32 %v5283, %v5291
          %v5294 = vsub.f32 %v5284, %v5292
          %v5295 = vmul.f32 %v5293, %v5293
          %v5296 = vmul.f32 %v5294, %v5294
          %5297 = vadd.xlane.f32.xlu0 %v5295
          %v5298 = vpop.xlane.xlu0 %5297
          %5299 = vadd.xlane.f32.xlu0 %v5296
          %v5300 = vpop.xlane.xlu0 %5299
          %v5301 = vmul.f32 %v5298, %v1536
          %v5302 = vmul.f32 %v5300, %v1536
          %v5303 = vadd.f32 %v5301, 1e-05
          %v5304 = vadd.f32 %v5302, 1e-05
          %v5305 = vrsqrt.pop %v5303
          %v5306 = vrsqrt.pop %v5304
          %v5307 = vmul.f32 %v5293, %v5305
          %v5308 = vmul.f32 %v5294, %v5306
          %v5310 = vlaneseq
          %v5311 = vshrl.u32 %v5310, 7
          %v5312 = vsub.s32 0, %v5311
          %v5313 = vrot.slane %v5285, %v5312
          %v5315 = vmul.f32 %v5307, %v5313
          %v5316 = vmul.f32 %v5308, %v5313
          %v5318 = vlaneseq
          %v5319 = vshrl.u32 %v5318, 7
          %v5320 = vsub.s32 0, %v5319
          %v5321 = vrot.slane %v5286, %v5320
          %v5323 = vadd.f32 %v5315, %v5321
          %v5324 = vadd.f32 %v5316, %v5321
          %v5325 = vpack.c.bf16 %v5324, %v5323
          %v5326 = vld [vmem:[%s67] sm:$0xf]
          %v5327 = vld [vmem:[%s67 + $0x4] sm:$0xf]
          %v5328 = vld [vmem:[%s67 + $0x8] sm:$0xf]
          %v5329 = vld [vmem:[%s67 + $0xc] sm:$0xf]
          %v5330 = vld [vmem:[%s67 + $0x10] sm:$0xf]
          %v5331 = vld [vmem:[%s67 + $0x14] sm:$0xf]
          %v5332 = vld [vmem:[%s67 + $0x18] sm:$0xf]
          %v5333 = vld [vmem:[%s67 + $0x1c] sm:$0xf]
          %v5334 = vld [vmem:[%s67 + $0x20] sm:$0xf]
          %v5335 = vld [vmem:[%s67 + $0x24] sm:$0xf]
          %v5336 = vld [vmem:[%s67 + $0x28] sm:$0xf]
          %v5337 = vld [vmem:[%s67 + $0x2c] sm:$0xf]
          %v5338 = vld [vmem:[%s67 + $0x30] sm:$0xf]
          %v5339 = vld [vmem:[%s67 + $0x34] sm:$0xf]
          %v5340 = vld [vmem:[%s67 + $0x38] sm:$0xf]
          %v5341 = vld [vmem:[%s67 + $0x3c] sm:$0xf]
          %v5342 = vld [vmem:[#allocation47] sm:$0x1]
          %v5344 = vlaneseq
          %v5345 = vshrl.u32 %v5344, 7
          %v5346 = vsub.s32 0, %v5345
          %v5347 = vrot.slane %v5342, %v5346
          %v5365 = vunpack.c.l.b16 %v5326
          %v5366 = vunpack.c.l.b16 %v5327
          %v5367 = vunpack.c.l.b16 %v5328
          %v5368 = vunpack.c.l.b16 %v5329
          %v5369 = vunpack.c.l.b16 %v5330
          %v5370 = vunpack.c.l.b16 %v5331
          %v5371 = vunpack.c.l.b16 %v5332
          %v5372 = vunpack.c.l.b16 %v5333
          %v5373 = vunpack.c.l.b16 %v5334
          %v5374 = vunpack.c.l.b16 %v5335
          %v5375 = vunpack.c.l.b16 %v5336
          %v5376 = vunpack.c.l.b16 %v5337
          %v5377 = vunpack.c.l.b16 %v5338
          %v5378 = vunpack.c.l.b16 %v5339
          %v5379 = vunpack.c.l.b16 %v5340
          %v5380 = vunpack.c.l.b16 %v5341
          %v5381 = vpack.c.b16 %v5366, %v5365
          %v5382 = vpack.c.b16 %v5368, %v5367
          %v5383 = vpack.c.b16 %v5370, %v5369
          %v5384 = vpack.c.b16 %v5372, %v5371
          %v5385 = vpack.c.b16 %v5374, %v5373
          %v5386 = vpack.c.b16 %v5376, %v5375
          %v5387 = vpack.c.b16 %v5378, %v5377
          %v5388 = vpack.c.b16 %v5380, %v5379
          %5397 = vmatprep.subr.bf16.mxu0 0
          %5398 = vmatpush1.bf16.msra.mxu0 %v5388
          %5399 = vmatprep.subr.bf16.mxu0 0
          %5400 = vmatpush1.bf16.msra.mxu0 %v5387
          %5401 = vmatprep.subr.bf16.mxu0 0
          %5402 = vmatpush1.bf16.msra.mxu0 %v5386
          %5403 = vmatprep.subr.bf16.mxu0 0
          %5404 = vmatpush1.bf16.msra.mxu0 %v5385
          %5405 = vmatprep.subr.bf16.mxu0 0
          %5406 = vmatpush1.bf16.msra.mxu0 %v5384
          %5407 = vmatprep.subr.bf16.mxu0 0
          %5408 = vmatpush1.bf16.msra.mxu0 %v5383
          %5409 = vmatprep.subr.bf16.mxu0 0
          %5410 = vmatpush1.bf16.msra.mxu0 %v5382
          %5411 = vmatprep.subr.bf16.mxu0 0
          %5412 = vmatpush1.bf16.msra.mxu0 %v5381
          %5413 = vmatprep.subr.bf16.mxu0 0
          %5414 = vmatpush2.bf16.msra.mxu0 0
          %5415 = vmatprep.subr.bf16.mxu0 0
          %5416 = vmatpush2.bf16.msra.mxu0 0
          %5417 = vmatprep.subr.bf16.mxu0 0
          %5418 = vmatpush2.bf16.msra.mxu0 0
          %5419 = vmatprep.subr.bf16.mxu0 0
          %5420 = vmatpush2.bf16.msra.mxu0 0
          %5421 = vmatprep.subr.bf16.mxu0 0
          %5422 = vmatpush2.bf16.msra.mxu0 0
          %5423 = vmatprep.subr.bf16.mxu0 0
          %5424 = vmatpush2.bf16.msra.mxu0 0
          %5425 = vmatprep.subr.bf16.mxu0 0
          %5426 = vmatpush2.bf16.msra.mxu0 0
          %5427 = vmatprep.subr.bf16.mxu0 0
          %5428 = vmatpush2.bf16.msra.mxu0 0
          %5429 = vmatprep.mubr.bf16.mxu0 0
          %5430 = vmatmul.mubr.bf16.gmra.mxu0 %v5325
          %v5431 = vpop.f32.mrf.mxu0
          %v5432 = vadd.f32 %v5347, %v5431
          %v5433 = vpop.f32.mrf.mxu0
          %v5434 = vpop.f32.mrf.mxu0
          %v5435 = vadd.f32 %v5347, %v5434
          %v5436 = vpop.f32.mrf.mxu0
          %5437 = vdwg.mxu0
          %5438 = vst [vmem:[%s1516] sm:$0xff] %v5432
          %5439 = vst [vmem:[%s1516 + $0x8] sm:$0xff] %v5435
        $region284: #{voxel_decoder_forward.1} parent=159 // pred_fallthru
          _
        %s5440 = smul.u32 2, %s101
        %p5441 = scmp.lt.s32.totalorder %s5440, 1
        %s5442 = scalar_select %p5441, %s5440, 1
        %s5443 = smul.addr %s5442, 8
        %s5444 = scalar_lea.vmem %s71, %s5443
        // Predicated region
        $region285: #{voxel_decoder_forward.1} parent=159 // pred_check
          %p5445 = pneg %p872
        $region286: #{voxel_decoder_forward.1} parent=159 // pred_check_branch
          %5447 = sbr.rel (%p5445) target = $region288
        $region287: #{voxel_decoder_forward.1} parent=159 // pred_region
          %s5448 = smul.u32 2, %s101
        $region288: #{voxel_decoder_forward.1} parent=159 // pred_fallthru
          _
        // Predicated region
        $region289: #{voxel_decoder_forward.1} parent=159 // pred_check
          %p5449 = pneg %p872
        $region290: #{voxel_decoder_forward.1} parent=159 // pred_check_branch
          %5451 = sbr.rel (%p5449) target = $region292
        $region291: #{voxel_decoder_forward.1} parent=159 // pred_region
          %s5452 = smul.u32 2, %s101
          %p5453 = scmp.lt.s32.totalorder %s5452, 1
          %s5454 = scalar_select %p5453, %s5452, 1
          %s5455 = smul.addr %s5454, 8
          %s5456 = scalar_lea.vmem %s71, %s5455
        $region292: #{voxel_decoder_forward.1} parent=159 // pred_fallthru
          _
      $region160: #{voxel_decoder_forward.1} parent=5 // pred_fallthru
        _
      %p5457 = scmp.le.s32.totalorder 2, %s92
      // Predicated region
      $region293: #{voxel_decoder_forward.1} parent=5 // pred_check
        %p5458 = pneg %p5457
      $region294: #{voxel_decoder_forward.1} parent=5 // pred_check_branch
        %5460 = sbr.rel (%p5458) target = $region296
      $region295: #{voxel_decoder_forward.1} parent=5 // pred_region
        %s5461 = ssub.s32 %s92, 2
      $region296: #{voxel_decoder_forward.1} parent=5 // pred_fallthru
        _
    $region6: #{voxel_decoder_forward.1} parent=1 // loop_footer
      %s96 = sadd.s32 1, %s92
    $region7: #{voxel_decoder_forward.1} parent=1 // loop_footer_branch
      %91 = sbr.rel target = $region3
    $region8: #{voxel_decoder_forward.1} parent=1 // loop_exit
      _
    %5462 = vsyncpa [#allocation5], 1
    %s5463 = scalar_lea.sflag [#allocation5], 1
    %5464 = vsyncpa %s5463, 1
    %5465 = vsyncpa [#allocation7], 1
    %5466 = vsyncpa [#allocation10], 1
    %5467 = vsyncpa [#allocation13], 1
    %5468 = vsyncpa [#allocation16], 1
    %5469 = vsyncpa [#allocation19], 1
    %5470 = vsyncpa [#allocation22], 1
    %5471 = vsyncpa [#allocation25], 1
    %5472 = vsyncpa [#allocation28], 1
    %5473 = vsyncpa [#allocation31], 1
    %5474 = vsyncpa [#allocation34], 1
    %5475 = vsyncpa [#allocation37], 1
    %5476 = vsyncpa [#allocation40], 1
    %5477 = vsyncpa [#allocation43], 1
    %5478 = vsyncpa [#allocation46], 1

</llo_original>
